<compile_context>
chip_gen: v7x
topology: tpu7x:2x2x1
jax: 0.10.0
libtpu: 0.0.40
codegen_flags: <defaults>
</compile_context>

<pallas_src>
import functools

import jax
import jax.numpy as jnp
from jax.experimental import pallas as pl
from jax.experimental.pallas import tpu as pltpu

D_IN = 512
D_HID = 1024
D_OUT = 512


def _round_up(x, m):
    return (x + m - 1) // m * m


def _cdiv(a, b):
    return -(-a // b)


def mlp3_kernel(xa_ref, xp_ref, xn_ref,
                w1_ref, b1_ref, w2_ref, b2_ref, w3_ref, b3_ref,
                oa_ref, op_ref, on_ref):
    tb = xa_ref.shape[0]

    # Fuse the three triplet members into one (3*tile_b, 512) block so each
    # layer is a single matmul: w1/w2/w3 are pushed into the MXU once per grid
    # step instead of once per member.
    x = jnp.concatenate([xa_ref[...], xp_ref[...], xn_ref[...]], axis=0)
    x = x.astype(jnp.bfloat16)                       # bf16 into the MXU

    h1 = jnp.dot(x, w1_ref[...],
                 preferred_element_type=jnp.float32) + b1_ref[...]
    h1 = jnp.maximum(h1, 0.0)                        # ReLU (VPU, f32)
    h2 = jnp.dot(h1.astype(jnp.bfloat16), w2_ref[...],
                 preferred_element_type=jnp.float32) + b2_ref[...]
    h2 = jnp.maximum(h2, 0.0)
    out = jnp.dot(h2.astype(jnp.bfloat16), w3_ref[...],
                  preferred_element_type=jnp.float32) + b3_ref[...]

    # Slice the fused result back into the three triplet outputs (tb is a
    # multiple of 8 -> sublane-aligned static slices).
    oa_ref[...] = out[:tb].astype(oa_ref.dtype)
    op_ref[...] = out[tb:2 * tb].astype(op_ref.dtype)
    on_ref[...] = out[2 * tb:].astype(on_ref.dtype)


@functools.partial(jax.jit, static_argnames=("tile_b",))
def _mlp3(xa, xp, xn, params, *, tile_b):
    """xa/xp/xn: (Np, 512) f32 with Np % tile_b == 0 -> three (Np, 512) f32."""
    w1, b1, w2, b2, w3, b3 = params
    n = xa.shape[0]
    num_tiles = n // tile_b

    x_spec = pl.BlockSpec((tile_b, D_IN), lambda i: (i, 0))
    o_spec = pl.BlockSpec((tile_b, D_OUT), lambda i: (i, 0))
    full = lambda shape: pl.BlockSpec(shape, lambda i: (0, 0))  # grid-invariant

    # Compute-aware megacore heuristic: only shard across v7x's two
    # TensorCores when the total row count makes the duplicated ~4 MiB
    # weight DMA negligible compared with the per-core matmul work.
    total_rows = 3 * n
    semantics = ("parallel",) if (num_tiles > 1 and total_rows >= 1024) \
        else ("arbitrary",)

    # Advisory cost estimate for XLA's scheduler around the custom call.
    flops = 2 * 3 * n * (D_IN * D_HID + D_HID * D_HID + D_HID * D_OUT)
    weight_bytes = (2 * (D_IN * D_HID + D_HID * D_HID + D_HID * D_OUT)  # bf16
                    + 4 * (D_HID + D_HID + D_OUT))                      # f32 bias
    act_bytes = 3 * n * (D_IN + D_OUT) * 4
    cost = pl.CostEstimate(flops=flops, transcendentals=0,
                           bytes_accessed=weight_bytes + act_bytes)

    # Default tile_b<=256 fits comfortably in 48 MiB (safe on v7x's 64 MiB
    # physical VMEM); larger tiles are only meant for v5e/v6e (128 MiB VMEM).
    vmem_limit = (64 << 20) if tile_b > 256 else (48 << 20)

    return pl.pallas_call(
        mlp3_kernel,
        out_shape=(
            jax.ShapeDtypeStruct((n, D_OUT), jnp.float32),
            jax.ShapeDtypeStruct((n, D_OUT), jnp.float32),
            jax.ShapeDtypeStruct((n, D_OUT), jnp.float32),
        ),
        grid_spec=pltpu.PrefetchScalarGridSpec(
            num_scalar_prefetch=0,
            grid=(num_tiles,),
            in_specs=[
                x_spec, x_spec, x_spec,          # anchor / positive / negative
                full((D_IN, D_HID)),             # w1 (bf16)
                full((1, D_HID)),                # b1 (f32)
                full((D_HID, D_HID)),            # w2 (bf16)
                full((1, D_HID)),                # b2 (f32)
                full((D_HID, D_OUT)),            # w3 (bf16)
                full((1, D_OUT)),                # b3 (f32)
            ],
            out_specs=(o_spec, o_spec, o_spec),
        ),
        compiler_params=pltpu.CompilerParams(
            dimension_semantics=semantics,
            vmem_limit_bytes=vmem_limit,
        ),
        cost_estimate=cost,
    )(xa, xp, xn, w1, b1, w2, b2, w3, b3)


def some_model_forward(triplet, params, *, max_tile_b=256):
    """triplet: tuple of 3 arrays, each (B, 512) f32. Returns (anchor, pos, neg)."""
    anchor, positive, negative = triplet
    b = anchor.shape[0]
    if b == 0:
        z = jnp.zeros((0, D_OUT), jnp.float32)
        return z, z, z

    # Minimal-padding tiling: split the batch into cdiv(B, max_tile_b) tiles
    # and round the tile up to a sublane multiple, so padding is < 8 rows
    # per tile (instead of up to tile_b-1 rows with the old scheme).
    num_tiles = _cdiv(b, max_tile_b)
    tile_b = _round_up(_cdiv(b, num_tiles), 8)
    bp = tile_b * num_tiles
    pad = bp - b
    if pad:
        padding = ((0, pad), (0, 0))
        anchor = jnp.pad(anchor, padding)
        positive = jnp.pad(positive, padding)
        negative = jnp.pad(negative, padding)

    oa, op_, on = _mlp3(anchor, positive, negative, params, tile_b=tile_b)
    return oa[:b], op_[:b], on[:b]


def init_params(key):
    """Deterministic init mimicking nn.Linear default U(-1/sqrt(fan_in), +).

    Weights are stored (in_features, out_features) in bf16 (x @ W + b, i.e.
    PyTorch weight.T); biases stay f32.  bf16 weights / bf16 MXU inputs with
    f32 accumulation are a deliberate precision tradeoff vs. the f32 PyTorch
    module (standard for TPU inference).
    """
    ks = jax.random.split(key, 6)

    def lin(kw, kb, fan_in, fan_out):
        bound = 1.0 / jnp.sqrt(fan_in)
        w = jax.random.uniform(kw, (fan_in, fan_out), jnp.float32, -bound, bound)
        b = jax.random.uniform(kb, (1, fan_out), jnp.float32, -bound, bound)
        return w.astype(jnp.bfloat16), b

    w1, b1 = lin(ks[0], ks[1], D_IN, D_HID)
    w2, b2 = lin(ks[2], ks[3], D_HID, D_HID)
    w3, b3 = lin(ks[4], ks[5], D_HID, D_OUT)
    return (w1, b1, w2, b2, w3, b3)


def _reference_forward(triplet, params):
    """Pure-JAX reference with the same bf16-in / f32-accumulate math."""
    w1, b1, w2, b2, w3, b3 = params

    def net(x):
        h = jnp.dot(x.astype(jnp.bfloat16), w1,
                    preferred_element_type=jnp.float32) + b1
        h = jnp.maximum(h, 0.0)
        h = jnp.dot(h.astype(jnp.bfloat16), w2,
                    preferred_element_type=jnp.float32) + b2
        h = jnp.maximum(h, 0.0)
        return jnp.dot(h.astype(jnp.bfloat16), w3,
                       preferred_element_type=jnp.float32) + b3

    return tuple(net(t) for t in triplet)


if __name__ == "__main__":
    key = jax.random.PRNGKey(0)
    k_params, ka, kp, kn = jax.random.split(key, 4)

    params = init_params(k_params)

    B = 8  # small batch per triplet member
    anchor = jax.random.normal(ka, (B, D_IN), jnp.float32)
    positive = jax.random.normal(kp, (B, D_IN), jnp.float32)
    negative = jax.random.normal(kn, (B, D_IN), jnp.float32)
    triplet = (anchor, positive, negative)

    out = some_model_forward(triplet, params)
    out = jax.block_until_ready(out)

    ref = _reference_forward(triplet, params)
    for o, r in zip(out, ref):
        assert o.shape == (B, D_OUT)
        assert jnp.allclose(o, r, atol=5e-3, rtol=5e-3), float(
            jnp.max(jnp.abs(o - r)))

    # TODO(synk): compute_all (TripletMarginLoss / accuracy metrics) is not part
    # of forward() and is left unimplemented.
    print("KERNEL_OK")
</pallas_src>

<mosaic_0001>
module attributes {stable_mosaic.version = 11 : i64} {
  func.func @mlp3_kernel(%arg0: i32, %arg1: memref<8x512xf32, #tpu.memory_space<vmem>>, %arg2: memref<8x512xf32, #tpu.memory_space<vmem>>, %arg3: memref<8x512xf32, #tpu.memory_space<vmem>>, %arg4: memref<512x1024xbf16, #tpu.memory_space<vmem>>, %arg5: memref<1x1024xf32, #tpu.memory_space<vmem>>, %arg6: memref<1024x1024xbf16, #tpu.memory_space<vmem>>, %arg7: memref<1x1024xf32, #tpu.memory_space<vmem>>, %arg8: memref<1024x512xbf16, #tpu.memory_space<vmem>>, %arg9: memref<1x512xf32, #tpu.memory_space<vmem>>, %arg10: memref<8x512xf32, #tpu.memory_space<vmem>>, %arg11: memref<8x512xf32, #tpu.memory_space<vmem>>, %arg12: memref<8x512xf32, #tpu.memory_space<vmem>>) attributes {dimension_semantics = [#tpu.dimension_semantics<arbitrary>], iteration_bounds = array<i64: 1>, scalar_prefetch = 0 : i64, scratch_operands = 0 : i64, tpu.core_type = #tpu.core_type<tc>, window_params = [{transform_indices = @transform_0, window_bounds = array<i64: 8, 512>}, {transform_indices = @transform_1, window_bounds = array<i64: 8, 512>}, {transform_indices = @transform_2, window_bounds = array<i64: 8, 512>}, {pipeline_mode = #tpu.pipeline_mode<synchronous>, transform_indices = @transform_3, window_bounds = array<i64: 512, 1024>}, {pipeline_mode = #tpu.pipeline_mode<synchronous>, transform_indices = @transform_4, window_bounds = array<i64: 1, 1024>}, {pipeline_mode = #tpu.pipeline_mode<synchronous>, transform_indices = @transform_5, window_bounds = array<i64: 1024, 1024>}, {pipeline_mode = #tpu.pipeline_mode<synchronous>, transform_indices = @transform_6, window_bounds = array<i64: 1, 1024>}, {pipeline_mode = #tpu.pipeline_mode<synchronous>, transform_indices = @transform_7, window_bounds = array<i64: 1024, 512>}, {pipeline_mode = #tpu.pipeline_mode<synchronous>, transform_indices = @transform_8, window_bounds = array<i64: 1, 512>}, {transform_indices = @transform_9, window_bounds = array<i64: 8, 512>}, {transform_indices = @transform_10, window_bounds = array<i64: 8, 512>}, {transform_indices = @transform_11, window_bounds = array<i64: 8, 512>}]} {
    %c0 = arith.constant 0 : index
    %c0_0 = arith.constant 0 : index
    %0 = vector.load %arg1[%c0, %c0_0] : memref<8x512xf32, #tpu.memory_space<vmem>>, vector<8x512xf32>
    %c0_1 = arith.constant 0 : index
    %c0_2 = arith.constant 0 : index
    %1 = vector.load %arg2[%c0_1, %c0_2] : memref<8x512xf32, #tpu.memory_space<vmem>>, vector<8x512xf32>
    %c0_3 = arith.constant 0 : index
    %c0_4 = arith.constant 0 : index
    %2 = vector.load %arg3[%c0_3, %c0_4] : memref<8x512xf32, #tpu.memory_space<vmem>>, vector<8x512xf32>
    %3 = tpu.concatenate %0, %1, %2 in 0 : vector<8x512xf32>, vector<8x512xf32>, vector<8x512xf32> -> vector<24x512xf32>
    %4 = arith.truncf %3 : vector<24x512xf32> to vector<24x512xbf16>
    %c0_5 = arith.constant 0 : index
    %c0_6 = arith.constant 0 : index
    %5 = vector.load %arg4[%c0_5, %c0_6] : memref<512x1024xbf16, #tpu.memory_space<vmem>>, vector<512x1024xbf16>
    %cst = arith.constant dense<0.000000e+00> : vector<24x1024xf32>
    %6 = tpu.matmul %4, %5, %cst {dimension_numbers = #tpu.dot_dimension_numbers<[1], [0], [0], [1], [0, 0, 1, 1], [], []>} : vector<24x512xbf16>, vector<512x1024xbf16>, vector<24x1024xf32> -> vector<24x1024xf32>
    %c0_7 = arith.constant 0 : index
    %c0_8 = arith.constant 0 : index
    %7 = vector.load %arg5[%c0_7, %c0_8] : memref<1x1024xf32, #tpu.memory_space<vmem>>, vector<1x1024xf32>
    %8 = vector.broadcast %7 : vector<1x1024xf32> to vector<24x1024xf32>
    %9 = arith.addf %6, %8 : vector<24x1024xf32>
    %cst_9 = arith.constant 0.000000e+00 : f32
    %10 = vector.broadcast %cst_9 : f32 to vector<24x1024xf32>
    %11 = arith.maximumf %9, %10 : vector<24x1024xf32>
    %12 = arith.truncf %11 : vector<24x1024xf32> to vector<24x1024xbf16>
    %c0_10 = arith.constant 0 : index
    %c0_11 = arith.constant 0 : index
    %13 = vector.load %arg6[%c0_10, %c0_11] : memref<1024x1024xbf16, #tpu.memory_space<vmem>>, vector<1024x1024xbf16>
    %cst_12 = arith.constant dense<0.000000e+00> : vector<24x1024xf32>
    %14 = tpu.matmul %12, %13, %cst_12 {dimension_numbers = #tpu.dot_dimension_numbers<[1], [0], [0], [1], [0, 0, 1, 1], [], []>} : vector<24x1024xbf16>, vector<1024x1024xbf16>, vector<24x1024xf32> -> vector<24x1024xf32>
    %c0_13 = arith.constant 0 : index
    %c0_14 = arith.constant 0 : index
    %15 = vector.load %arg7[%c0_13, %c0_14] : memref<1x1024xf32, #tpu.memory_space<vmem>>, vector<1x1024xf32>
    %16 = vector.broadcast %15 : vector<1x1024xf32> to vector<24x1024xf32>
    %17 = arith.addf %14, %16 : vector<24x1024xf32>
    %cst_15 = arith.constant 0.000000e+00 : f32
    %18 = vector.broadcast %cst_15 : f32 to vector<24x1024xf32>
    %19 = arith.maximumf %17, %18 : vector<24x1024xf32>
    %20 = arith.truncf %19 : vector<24x1024xf32> to vector<24x1024xbf16>
    %c0_16 = arith.constant 0 : index
    %c0_17 = arith.constant 0 : index
    %21 = vector.load %arg8[%c0_16, %c0_17] : memref<1024x512xbf16, #tpu.memory_space<vmem>>, vector<1024x512xbf16>
    %cst_18 = arith.constant dense<0.000000e+00> : vector<24x512xf32>
    %22 = tpu.matmul %20, %21, %cst_18 {dimension_numbers = #tpu.dot_dimension_numbers<[1], [0], [0], [1], [0, 0, 1, 1], [], []>} : vector<24x1024xbf16>, vector<1024x512xbf16>, vector<24x512xf32> -> vector<24x512xf32>
    %c0_19 = arith.constant 0 : index
    %c0_20 = arith.constant 0 : index
    %23 = vector.load %arg9[%c0_19, %c0_20] : memref<1x512xf32, #tpu.memory_space<vmem>>, vector<1x512xf32>
    %24 = vector.broadcast %23 : vector<1x512xf32> to vector<24x512xf32>
    %25 = arith.addf %22, %24 : vector<24x512xf32>
    %26 = vector.extract_strided_slice %25 {offsets = [0, 0], sizes = [8, 512], strides = [1, 1]} : vector<24x512xf32> to vector<8x512xf32>
    %c0_21 = arith.constant 0 : index
    %c0_22 = arith.constant 0 : index
    %27 = vector.load %arg10[%c0_21, %c0_22] : memref<8x512xf32, #tpu.memory_space<vmem>>, vector<8x512xf32>
    tpu.vector_store %arg10[%c0_21, %c0_22], %26 {strides = array<i32>} : memref<8x512xf32, #tpu.memory_space<vmem>>, vector<8x512xf32>,
    %28 = vector.extract_strided_slice %25 {offsets = [8, 0], sizes = [8, 512], strides = [1, 1]} : vector<24x512xf32> to vector<8x512xf32>
    %c0_23 = arith.constant 0 : index
    %c0_24 = arith.constant 0 : index
    %29 = vector.load %arg11[%c0_23, %c0_24] : memref<8x512xf32, #tpu.memory_space<vmem>>, vector<8x512xf32>
    tpu.vector_store %arg11[%c0_23, %c0_24], %28 {strides = array<i32>} : memref<8x512xf32, #tpu.memory_space<vmem>>, vector<8x512xf32>,
    %30 = vector.extract_strided_slice %25 {offsets = [16, 0], sizes = [8, 512], strides = [1, 1]} : vector<24x512xf32> to vector<8x512xf32>
    %c0_25 = arith.constant 0 : index
    %c0_26 = arith.constant 0 : index
    %31 = vector.load %arg12[%c0_25, %c0_26] : memref<8x512xf32, #tpu.memory_space<vmem>>, vector<8x512xf32>
    tpu.vector_store %arg12[%c0_25, %c0_26], %30 {strides = array<i32>} : memref<8x512xf32, #tpu.memory_space<vmem>>, vector<8x512xf32>,
    return
  }
  func.func @transform_0(%arg0: i32) -> (i32, i32) {
    %c0_i32 = arith.constant 0 : i32
    %c0_i32_0 = arith.constant 0 : i32
    return %arg0, %c0_i32 : i32, i32
  }
  func.func @transform_1(%arg0: i32) -> (i32, i32) {
    %c0_i32 = arith.constant 0 : i32
    %c0_i32_0 = arith.constant 0 : i32
    return %arg0, %c0_i32 : i32, i32
  }
  func.func @transform_2(%arg0: i32) -> (i32, i32) {
    %c0_i32 = arith.constant 0 : i32
    %c0_i32_0 = arith.constant 0 : i32
    return %arg0, %c0_i32 : i32, i32
  }
  func.func @transform_3(%arg0: i32) -> (i32, i32) {
    %c0_i32 = arith.constant 0 : i32
    %c0_i32_0 = arith.constant 0 : i32
    %c0_i32_1 = arith.constant 0 : i32
    return %c0_i32, %c0_i32_0 : i32, i32
  }
  func.func @transform_4(%arg0: i32) -> (i32, i32) {
    %c0_i32 = arith.constant 0 : i32
    %c0_i32_0 = arith.constant 0 : i32
    %c0_i32_1 = arith.constant 0 : i32
    return %c0_i32, %c0_i32_0 : i32, i32
  }
  func.func @transform_5(%arg0: i32) -> (i32, i32) {
    %c0_i32 = arith.constant 0 : i32
    %c0_i32_0 = arith.constant 0 : i32
    %c0_i32_1 = arith.constant 0 : i32
    return %c0_i32, %c0_i32_0 : i32, i32
  }
  func.func @transform_6(%arg0: i32) -> (i32, i32) {
    %c0_i32 = arith.constant 0 : i32
    %c0_i32_0 = arith.constant 0 : i32
    %c0_i32_1 = arith.constant 0 : i32
    return %c0_i32, %c0_i32_0 : i32, i32
  }
  func.func @transform_7(%arg0: i32) -> (i32, i32) {
    %c0_i32 = arith.constant 0 : i32
    %c0_i32_0 = arith.constant 0 : i32
    %c0_i32_1 = arith.constant 0 : i32
    return %c0_i32, %c0_i32_0 : i32, i32
  }
  func.func @transform_8(%arg0: i32) -> (i32, i32) {
    %c0_i32 = arith.constant 0 : i32
    %c0_i32_0 = arith.constant 0 : i32
    %c0_i32_1 = arith.constant 0 : i32
    return %c0_i32, %c0_i32_0 : i32, i32
  }
  func.func @transform_9(%arg0: i32) -> (i32, i32) {
    %c0_i32 = arith.constant 0 : i32
    %c0_i32_0 = arith.constant 0 : i32
    return %arg0, %c0_i32 : i32, i32
  }
  func.func @transform_10(%arg0: i32) -> (i32, i32) {
    %c0_i32 = arith.constant 0 : i32
    %c0_i32_0 = arith.constant 0 : i32
    return %arg0, %c0_i32 : i32, i32
  }
  func.func @transform_11(%arg0: i32) -> (i32, i32) {
    %c0_i32 = arith.constant 0 : i32
    %c0_i32_0 = arith.constant 0 : i32
    return %arg0, %c0_i32 : i32, i32
  }
}

</mosaic_0001>

<llo_original>
// kernel: _mlp3.1
$region0: #{_mlp3.1}
  #allocation0 [shape = 'u32[]', space=smem, size = 0x4, offset = 0x4, fixed_abs, tag = 'smem constant byte address 0x4 - core index']
  #allocation1 [shape = 'u32[144,128]{1,0:T(1,128)}', space=vmem, size = 0x12000, scoped, tag = 'internal scratch']
  %s0 = inlined_call_operand.hbm [shape: f32[8,512], index: 0, kind: input, shape index: {}]
  %s1 = inlined_call_operand.hbm [shape: f32[8,512], index: 1, kind: input, shape index: {}]
  %s2 = inlined_call_operand.hbm [shape: f32[8,512], index: 2, kind: input, shape index: {}]
  %s3 = inlined_call_operand.hbm [shape: bf16[512,1024], index: 3, kind: input, shape index: {}]
  %s4 = inlined_call_operand.hbm [shape: f32[1,1024], index: 4, kind: input, shape index: {}]
  %s5 = inlined_call_operand.hbm [shape: bf16[1024,1024], index: 5, kind: input, shape index: {}]
  %s6 = inlined_call_operand.hbm [shape: f32[1,1024], index: 6, kind: input, shape index: {}]
  %s7 = inlined_call_operand.hbm [shape: bf16[1024,512], index: 7, kind: input, shape index: {}]
  %s8 = inlined_call_operand.hbm [shape: f32[1,512], index: 8, kind: input, shape index: {}]
  %s9 = inlined_call_operand.hbm [shape: f32[8,512], index: 9, kind: output, shape index: {0}]
  %s10 = inlined_call_operand.hbm [shape: f32[8,512], index: 10, kind: output, shape index: {1}]
  %s11 = inlined_call_operand.hbm [shape: f32[8,512], index: 11, kind: output, shape index: {2}]
  %12 = xla_tuple %s9, %s10, %s11
  %s13 = sld [smem:[#allocation0]]
  $region98: #{_mlp3.1} parent=0
    _
  %s15 = ssub.s32 1, %s13
  %s16 = scalar_select 0, %s15, %s13
  $region1: #{_mlp3.1} parent=0
    #allocation2 [shape = 'u8[16384]{0}', space=vmem, size = 0x4000, scoped, tag = 'input window, operand 0, single buffered']
    #allocation3 [shape = 's32[1]{0}', space=sflag, size = 0x4, scoped, tag = 'scoped memory for _mlp3.1']
    #allocation4 [shape = 's32[1]{0}', space=sflag, size = 0x4, scoped, tag = 'scoped memory for _mlp3.1']
    #allocation5 [shape = 'u8[16384]{0}', space=vmem, size = 0x4000, scoped, tag = 'input window, operand 1, single buffered']
    #allocation6 [shape = 's32[1]{0}', space=sflag, size = 0x4, scoped, tag = 'scoped memory for _mlp3.1']
    #allocation7 [shape = 'u8[16384]{0}', space=vmem, size = 0x4000, scoped, tag = 'input window, operand 2, single buffered']
    #allocation8 [shape = 'u8[1048576]{0}', space=vmem, size = 0x100000, scoped, tag = 'input window, operand 3, single buffered']
    #allocation9 [shape = 's32[1]{0}', space=sflag, size = 0x4, scoped, tag = 'scoped memory for _mlp3.1']
    #allocation10 [shape = 'u8[4096]{0}', space=vmem, size = 0x1000, scoped, tag = 'input window, operand 4, single buffered']
    #allocation11 [shape = 'u8[2097152]{0}', space=vmem, size = 0x200000, scoped, tag = 'input window, operand 5, single buffered']
    #allocation12 [shape = 's32[1]{0}', space=sflag, size = 0x4, scoped, tag = 'scoped memory for _mlp3.1']
    #allocation13 [shape = 'u8[4096]{0}', space=vmem, size = 0x1000, scoped, tag = 'input window, operand 6, single buffered']
    #allocation14 [shape = 'u8[1048576]{0}', space=vmem, size = 0x100000, scoped, tag = 'input window, operand 7, single buffered']
    #allocation15 [shape = 's32[1]{0}', space=sflag, size = 0x4, scoped, tag = 'scoped memory for _mlp3.1']
    #allocation16 [shape = 'u8[2048]{0}', space=vmem, size = 0x800, scoped, tag = 'input window, operand 8, single buffered']
    #allocation17 [shape = 'u8[16384]{0}', space=vmem, size = 0x4000, scoped, tag = 'output window, operand 0, single buffered']
    #allocation18 [shape = 'u8[16384]{0}', space=vmem, size = 0x4000, scoped, tag = 'output window, operand 1, single buffered']
    #allocation19 [shape = 's32[1]{0}', space=sflag, size = 0x4, scoped, tag = 'scoped memory for _mlp3.1']
    #allocation20 [shape = 'u8[16384]{0}', space=vmem, size = 0x4000, scoped, tag = 'output window, operand 2, single buffered']
    %17 = vsyncpa [#allocation3], 0
    %18 = vsyncpa [#allocation6], 0
    %19 = vsyncpa [#allocation9], 0
    %20 = vsyncpa [#allocation12], 0
    %21 = vsyncpa [#allocation15], 0
    %22 = vsyncpa [#allocation4], 0
    %23 = vsyncpa [#allocation19], 0
    // Predicated region
    $region2: #{_mlp3.1} parent=1 // pred_check
      _
    $region3: #{_mlp3.1} parent=1 // pred_check_branch
      %25 = sbr.rel (0) target = $region5
    $region4: #{_mlp3.1} parent=1 // pred_region
      %s27 = ssub.s32 512, 512
      %28 = vsyncadd [#allocation3], %s27
      %s30 = sshll.u32 [#allocation2], 4
      %s31 = int_to_ptr.vmem [resolvable:$true] %s30
      %33 = dma.hbm_to_vmem [thread:$0]  %s0, 512, %s31, [#allocation3]
    $region5: #{_mlp3.1} parent=1 // pred_fallthru
      _
    // Predicated region
    $region6: #{_mlp3.1} parent=1 // pred_check
      _
    $region7: #{_mlp3.1} parent=1 // pred_check_branch
      %35 = sbr.rel (0) target = $region9
    $region8: #{_mlp3.1} parent=1 // pred_region
      %s37 = ssub.s32 512, 512
      %38 = vsyncadd [#allocation6], %s37
      %s40 = sshll.u32 [#allocation5], 4
      %s41 = int_to_ptr.vmem [resolvable:$true] %s40
      %43 = dma.hbm_to_vmem [thread:$0]  %s1, 512, %s41, [#allocation6]
    $region9: #{_mlp3.1} parent=1 // pred_fallthru
      _
    // Predicated region
    $region10: #{_mlp3.1} parent=1 // pred_check
      _
    $region11: #{_mlp3.1} parent=1 // pred_check_branch
      %45 = sbr.rel (0) target = $region13
    $region12: #{_mlp3.1} parent=1 // pred_region
      %s47 = ssub.s32 512, 512
      %48 = vsyncadd [#allocation6], %s47
      %s50 = sshll.u32 [#allocation7], 4
      %s51 = int_to_ptr.vmem [resolvable:$true] %s50
      %53 = dma.hbm_to_vmem [thread:$0]  %s2, 512, %s51, [#allocation6]
    $region13: #{_mlp3.1} parent=1 // pred_fallthru
      _
    // Predicated region
    $region14: #{_mlp3.1} parent=1 // pred_check
      _
    $region15: #{_mlp3.1} parent=1 // pred_check_branch
      %55 = sbr.rel (0) target = $region17
    $region16: #{_mlp3.1} parent=1 // pred_region
      %s57 = ssub.s32 32768, 32768
      %58 = vsyncadd [#allocation9], %s57
      %s59 = sshll.u32 [#allocation8], 4
      %s60 = int_to_ptr.vmem [resolvable:$true] %s59
      %65 = dma.hbm_to_vmem [thread:$0]  %s3, 32768, %s60, [#allocation9], 512, 512, 32
    $region17: #{_mlp3.1} parent=1 // pred_fallthru
      _
    // Predicated region
    $region18: #{_mlp3.1} parent=1 // pred_check
      _
    $region19: #{_mlp3.1} parent=1 // pred_check_branch
      %67 = sbr.rel (0) target = $region21
    $region20: #{_mlp3.1} parent=1 // pred_region
      %s69 = ssub.s32 128, 128
      %70 = vsyncadd [#allocation9], %s69
      %s72 = sshll.u32 [#allocation10], 4
      %s73 = int_to_ptr.vmem [resolvable:$true] %s72
      %75 = dma.hbm_to_vmem [thread:$0]  %s4, 128, %s73, [#allocation9]
    $region21: #{_mlp3.1} parent=1 // pred_fallthru
      _
    // Predicated region
    $region22: #{_mlp3.1} parent=1 // pred_check
      _
    $region23: #{_mlp3.1} parent=1 // pred_check_branch
      %77 = sbr.rel (0) target = $region25
    $region24: #{_mlp3.1} parent=1 // pred_region
      %s79 = ssub.s32 65536, 65536
      %80 = vsyncadd [#allocation12], %s79
      %s81 = sshll.u32 [#allocation11], 4
      %s82 = int_to_ptr.vmem [resolvable:$true] %s81
      %87 = dma.hbm_to_vmem [thread:$0]  %s5, 65536, %s82, [#allocation12], 512, 512, 32
    $region25: #{_mlp3.1} parent=1 // pred_fallthru
      _
    // Predicated region
    $region26: #{_mlp3.1} parent=1 // pred_check
      _
    $region27: #{_mlp3.1} parent=1 // pred_check_branch
      %89 = sbr.rel (0) target = $region29
    $region28: #{_mlp3.1} parent=1 // pred_region
      %s91 = ssub.s32 128, 128
      %92 = vsyncadd [#allocation12], %s91
      %s94 = sshll.u32 [#allocation13], 4
      %s95 = int_to_ptr.vmem [resolvable:$true] %s94
      %97 = dma.hbm_to_vmem [thread:$0]  %s6, 128, %s95, [#allocation12]
    $region29: #{_mlp3.1} parent=1 // pred_fallthru
      _
    // Predicated region
    $region30: #{_mlp3.1} parent=1 // pred_check
      _
    $region31: #{_mlp3.1} parent=1 // pred_check_branch
      %99 = sbr.rel (0) target = $region33
    $region32: #{_mlp3.1} parent=1 // pred_region
      %s101 = ssub.s32 32768, 32768
      %102 = vsyncadd [#allocation15], %s101
      %s103 = sshll.u32 [#allocation14], 4
      %s104 = int_to_ptr.vmem [resolvable:$true] %s103
      %109 = dma.hbm_to_vmem [thread:$0]  %s7, 32768, %s104, [#allocation15], 256, 256, 16
    $region33: #{_mlp3.1} parent=1 // pred_fallthru
      _
    // Predicated region
    $region34: #{_mlp3.1} parent=1 // pred_check
      _
    $region35: #{_mlp3.1} parent=1 // pred_check_branch
      %111 = sbr.rel (0) target = $region37
    $region36: #{_mlp3.1} parent=1 // pred_region
      %s113 = ssub.s32 64, 64
      %114 = vsyncadd [#allocation15], %s113
      %s116 = sshll.u32 [#allocation16], 4
      %s117 = int_to_ptr.vmem [resolvable:$true] %s116
      %119 = dma.hbm_to_vmem [thread:$0]  %s8, 64, %s117, [#allocation15]
    $region37: #{_mlp3.1} parent=1 // pred_fallthru
      _
    // Predicated region
    $region38: #{_mlp3.1} parent=1 // pred_check
      _
    $region39: #{_mlp3.1} parent=1 // pred_check_branch
      %121 = sbr.rel (0) target = $region41
    $region40: #{_mlp3.1} parent=1 // pred_region
      %122 = dma.done [#allocation3], 512
    $region41: #{_mlp3.1} parent=1 // pred_fallthru
      _
    // Predicated region
    $region42: #{_mlp3.1} parent=1 // pred_check
      _
    $region43: #{_mlp3.1} parent=1 // pred_check_branch
      %124 = sbr.rel (0) target = $region45
    $region44: #{_mlp3.1} parent=1 // pred_region
      %125 = dma.done [#allocation6], 512
    $region45: #{_mlp3.1} parent=1 // pred_fallthru
      _
    // Predicated region
    $region46: #{_mlp3.1} parent=1 // pred_check
      _
    $region47: #{_mlp3.1} parent=1 // pred_check_branch
      %127 = sbr.rel (0) target = $region49
    $region48: #{_mlp3.1} parent=1 // pred_region
      %128 = dma.done [#allocation6], 512
    $region49: #{_mlp3.1} parent=1 // pred_fallthru
      _
    // Predicated region
    $region50: #{_mlp3.1} parent=1 // pred_check
      _
    $region51: #{_mlp3.1} parent=1 // pred_check_branch
      %130 = sbr.rel (0) target = $region53
    $region52: #{_mlp3.1} parent=1 // pred_region
      %131 = dma.done [#allocation9], 32768
    $region53: #{_mlp3.1} parent=1 // pred_fallthru
      _
    // Predicated region
    $region54: #{_mlp3.1} parent=1 // pred_check
      _
    $region55: #{_mlp3.1} parent=1 // pred_check_branch
      %133 = sbr.rel (0) target = $region57
    $region56: #{_mlp3.1} parent=1 // pred_region
      %134 = dma.done [#allocation9], 128
    $region57: #{_mlp3.1} parent=1 // pred_fallthru
      _
    // Predicated region
    $region58: #{_mlp3.1} parent=1 // pred_check
      _
    $region59: #{_mlp3.1} parent=1 // pred_check_branch
      %136 = sbr.rel (0) target = $region61
    $region60: #{_mlp3.1} parent=1 // pred_region
      %137 = dma.done [#allocation12], 65536
    $region61: #{_mlp3.1} parent=1 // pred_fallthru
      _
    // Predicated region
    $region62: #{_mlp3.1} parent=1 // pred_check
      _
    $region63: #{_mlp3.1} parent=1 // pred_check_branch
      %139 = sbr.rel (0) target = $region65
    $region64: #{_mlp3.1} parent=1 // pred_region
      %140 = dma.done [#allocation12], 128
    $region65: #{_mlp3.1} parent=1 // pred_fallthru
      _
    // Predicated region
    $region66: #{_mlp3.1} parent=1 // pred_check
      _
    $region67: #{_mlp3.1} parent=1 // pred_check_branch
      %142 = sbr.rel (0) target = $region69
    $region68: #{_mlp3.1} parent=1 // pred_region
      %143 = dma.done [#allocation15], 32768
    $region69: #{_mlp3.1} parent=1 // pred_fallthru
      _
    // Predicated region
    $region70: #{_mlp3.1} parent=1 // pred_check
      _
    $region71: #{_mlp3.1} parent=1 // pred_check_branch
      %145 = sbr.rel (0) target = $region73
    $region72: #{_mlp3.1} parent=1 // pred_region
      %146 = dma.done [#allocation15], 64
    $region73: #{_mlp3.1} parent=1 // pred_fallthru
      _
    %v147 = vld [vmem:[#allocation2] sm:$0xff]
    %v148 = vld [vmem:[#allocation2 + $0x8] sm:$0xff]
    %v149 = vld [vmem:[#allocation2 + $0x10] sm:$0xff]
    %v150 = vld [vmem:[#allocation2 + $0x18] sm:$0xff]
    %v151 = vld [vmem:[#allocation5] sm:$0xff]
    %v152 = vld [vmem:[#allocation5 + $0x8] sm:$0xff]
    %v153 = vld [vmem:[#allocation5 + $0x10] sm:$0xff]
    %v154 = vld [vmem:[#allocation5 + $0x18] sm:$0xff]
    %v155 = vld [vmem:[#allocation7] sm:$0xff]
    %v156 = vld [vmem:[#allocation7 + $0x8] sm:$0xff]
    %v157 = vld [vmem:[#allocation7 + $0x10] sm:$0xff]
    %v158 = vld [vmem:[#allocation7 + $0x18] sm:$0xff]
    %v159 = vpack.c.bf16 %v151, %v147
    %v160 = vpack.c.bf16 %v152, %v148
    %v161 = vpack.c.bf16 %v153, %v149
    %v162 = vpack.c.bf16 %v154, %v150
    %v163 = vpack.c.bf16 %v155, %v155
    %v164 = vpack.c.bf16 %v156, %v156
    %v165 = vpack.c.bf16 %v157, %v157
    %v166 = vpack.c.bf16 %v158, %v158
    %v167 = vld [vmem:[#allocation8] sm:$0xff]
    %v168 = vld [vmem:[#allocation8 + $0x8] sm:$0xff]
    %v169 = vld [vmem:[#allocation8 + $0x10] sm:$0xff]
    %v170 = vld [vmem:[#allocation8 + $0x18] sm:$0xff]
    %v171 = vld [vmem:[#allocation8 + $0x20] sm:$0xff]
    %v172 = vld [vmem:[#allocation8 + $0x28] sm:$0xff]
    %v173 = vld [vmem:[#allocation8 + $0x30] sm:$0xff]
    %v174 = vld [vmem:[#allocation8 + $0x38] sm:$0xff]
    %v175 = vld [vmem:[#allocation8 + $0x40] sm:$0xff]
    %v176 = vld [vmem:[#allocation8 + $0x48] sm:$0xff]
    %v177 = vld [vmem:[#allocation8 + $0x50] sm:$0xff]
    %v178 = vld [vmem:[#allocation8 + $0x58] sm:$0xff]
    %v179 = vld [vmem:[#allocation8 + $0x60] sm:$0xff]
    %v180 = vld [vmem:[#allocation8 + $0x68] sm:$0xff]
    %v181 = vld [vmem:[#allocation8 + $0x70] sm:$0xff]
    %v182 = vld [vmem:[#allocation8 + $0x78] sm:$0xff]
    %v183 = vld [vmem:[#allocation8 + $0x80] sm:$0xff]
    %v184 = vld [vmem:[#allocation8 + $0x88] sm:$0xff]
    %v185 = vld [vmem:[#allocation8 + $0x90] sm:$0xff]
    %v186 = vld [vmem:[#allocation8 + $0x98] sm:$0xff]
    %v187 = vld [vmem:[#allocation8 + $0xa0] sm:$0xff]
    %v188 = vld [vmem:[#allocation8 + $0xa8] sm:$0xff]
    %v189 = vld [vmem:[#allocation8 + $0xb0] sm:$0xff]
    %v190 = vld [vmem:[#allocation8 + $0xb8] sm:$0xff]
    %v191 = vld [vmem:[#allocation8 + $0xc0] sm:$0xff]
    %v192 = vld [vmem:[#allocation8 + $0xc8] sm:$0xff]
    %v193 = vld [vmem:[#allocation8 + $0xd0] sm:$0xff]
    %v194 = vld [vmem:[#allocation8 + $0xd8] sm:$0xff]
    %v195 = vld [vmem:[#allocation8 + $0xe0] sm:$0xff]
    %v196 = vld [vmem:[#allocation8 + $0xe8] sm:$0xff]
    %v197 = vld [vmem:[#allocation8 + $0xf0] sm:$0xff]
    %v198 = vld [vmem:[#allocation8 + $0xf8] sm:$0xff]
    %v199 = vld [vmem:[#allocation8 + $0x100] sm:$0xff]
    %v200 = vld [vmem:[#allocation8 + $0x108] sm:$0xff]
    %v201 = vld [vmem:[#allocation8 + $0x110] sm:$0xff]
    %v202 = vld [vmem:[#allocation8 + $0x118] sm:$0xff]
    %v203 = vld [vmem:[#allocation8 + $0x120] sm:$0xff]
    %v204 = vld [vmem:[#allocation8 + $0x128] sm:$0xff]
    %v205 = vld [vmem:[#allocation8 + $0x130] sm:$0xff]
    %v206 = vld [vmem:[#allocation8 + $0x138] sm:$0xff]
    %v207 = vld [vmem:[#allocation8 + $0x140] sm:$0xff]
    %v208 = vld [vmem:[#allocation8 + $0x148] sm:$0xff]
    %v209 = vld [vmem:[#allocation8 + $0x150] sm:$0xff]
    %v210 = vld [vmem:[#allocation8 + $0x158] sm:$0xff]
    %v211 = vld [vmem:[#allocation8 + $0x160] sm:$0xff]
    %v212 = vld [vmem:[#allocation8 + $0x168] sm:$0xff]
    %v213 = vld [vmem:[#allocation8 + $0x170] sm:$0xff]
    %v214 = vld [vmem:[#allocation8 + $0x178] sm:$0xff]
    %v215 = vld [vmem:[#allocation8 + $0x180] sm:$0xff]
    %v216 = vld [vmem:[#allocation8 + $0x188] sm:$0xff]
    %v217 = vld [vmem:[#allocation8 + $0x190] sm:$0xff]
    %v218 = vld [vmem:[#allocation8 + $0x198] sm:$0xff]
    %v219 = vld [vmem:[#allocation8 + $0x1a0] sm:$0xff]
    %v220 = vld [vmem:[#allocation8 + $0x1a8] sm:$0xff]
    %v221 = vld [vmem:[#allocation8 + $0x1b0] sm:$0xff]
    %v222 = vld [vmem:[#allocation8 + $0x1b8] sm:$0xff]
    %v223 = vld [vmem:[#allocation8 + $0x1c0] sm:$0xff]
    %v224 = vld [vmem:[#allocation8 + $0x1c8] sm:$0xff]
    %v225 = vld [vmem:[#allocation8 + $0x1d0] sm:$0xff]
    %v226 = vld [vmem:[#allocation8 + $0x1d8] sm:$0xff]
    %v227 = vld [vmem:[#allocation8 + $0x1e0] sm:$0xff]
    %v228 = vld [vmem:[#allocation8 + $0x1e8] sm:$0xff]
    %v229 = vld [vmem:[#allocation8 + $0x1f0] sm:$0xff]
    %v230 = vld [vmem:[#allocation8 + $0x1f8] sm:$0xff]
    %v231 = vld [vmem:[#allocation8 + $0x200] sm:$0xff]
    %v232 = vld [vmem:[#allocation8 + $0x208] sm:$0xff]
    %v233 = vld [vmem:[#allocation8 + $0x210] sm:$0xff]
    %v234 = vld [vmem:[#allocation8 + $0x218] sm:$0xff]
    %v235 = vld [vmem:[#allocation8 + $0x220] sm:$0xff]
    %v236 = vld [vmem:[#allocation8 + $0x228] sm:$0xff]
    %v237 = vld [vmem:[#allocation8 + $0x230] sm:$0xff]
    %v238 = vld [vmem:[#allocation8 + $0x238] sm:$0xff]
    %v239 = vld [vmem:[#allocation8 + $0x240] sm:$0xff]
    %v240 = vld [vmem:[#allocation8 + $0x248] sm:$0xff]
    %v241 = vld [vmem:[#allocation8 + $0x250] sm:$0xff]
    %v242 = vld [vmem:[#allocation8 + $0x258] sm:$0xff]
    %v243 = vld [vmem:[#allocation8 + $0x260] sm:$0xff]
    %v244 = vld [vmem:[#allocation8 + $0x268] sm:$0xff]
    %v245 = vld [vmem:[#allocation8 + $0x270] sm:$0xff]
    %v246 = vld [vmem:[#allocation8 + $0x278] sm:$0xff]
    %v247 = vld [vmem:[#allocation8 + $0x280] sm:$0xff]
    %v248 = vld [vmem:[#allocation8 + $0x288] sm:$0xff]
    %v249 = vld [vmem:[#allocation8 + $0x290] sm:$0xff]
    %v250 = vld [vmem:[#allocation8 + $0x298] sm:$0xff]
    %v251 = vld [vmem:[#allocation8 + $0x2a0] sm:$0xff]
    %v252 = vld [vmem:[#allocation8 + $0x2a8] sm:$0xff]
    %v253 = vld [vmem:[#allocation8 + $0x2b0] sm:$0xff]
    %v254 = vld [vmem:[#allocation8 + $0x2b8] sm:$0xff]
    %v255 = vld [vmem:[#allocation8 + $0x2c0] sm:$0xff]
    %v256 = vld [vmem:[#allocation8 + $0x2c8] sm:$0xff]
    %v257 = vld [vmem:[#allocation8 + $0x2d0] sm:$0xff]
    %v258 = vld [vmem:[#allocation8 + $0x2d8] sm:$0xff]
    %v259 = vld [vmem:[#allocation8 + $0x2e0] sm:$0xff]
    %v260 = vld [vmem:[#allocation8 + $0x2e8] sm:$0xff]
    %v261 = vld [vmem:[#allocation8 + $0x2f0] sm:$0xff]
    %v262 = vld [vmem:[#allocation8 + $0x2f8] sm:$0xff]
    %v263 = vld [vmem:[#allocation8 + $0x300] sm:$0xff]
    %v264 = vld [vmem:[#allocation8 + $0x308] sm:$0xff]
    %v265 = vld [vmem:[#allocation8 + $0x310] sm:$0xff]
    %v266 = vld [vmem:[#allocation8 + $0x318] sm:$0xff]
    %v267 = vld [vmem:[#allocation8 + $0x320] sm:$0xff]
    %v268 = vld [vmem:[#allocation8 + $0x328] sm:$0xff]
    %v269 = vld [vmem:[#allocation8 + $0x330] sm:$0xff]
    %v270 = vld [vmem:[#allocation8 + $0x338] sm:$0xff]
    %v271 = vld [vmem:[#allocation8 + $0x340] sm:$0xff]
    %v272 = vld [vmem:[#allocation8 + $0x348] sm:$0xff]
    %v273 = vld [vmem:[#allocation8 + $0x350] sm:$0xff]
    %v274 = vld [vmem:[#allocation8 + $0x358] sm:$0xff]
    %v275 = vld [vmem:[#allocation8 + $0x360] sm:$0xff]
    %v276 = vld [vmem:[#allocation8 + $0x368] sm:$0xff]
    %v277 = vld [vmem:[#allocation8 + $0x370] sm:$0xff]
    %v278 = vld [vmem:[#allocation8 + $0x378] sm:$0xff]
    %v279 = vld [vmem:[#allocation8 + $0x380] sm:$0xff]
    %v280 = vld [vmem:[#allocation8 + $0x388] sm:$0xff]
    %v281 = vld [vmem:[#allocation8 + $0x390] sm:$0xff]
    %v282 = vld [vmem:[#allocation8 + $0x398] sm:$0xff]
    %v283 = vld [vmem:[#allocation8 + $0x3a0] sm:$0xff]
    %v284 = vld [vmem:[#allocation8 + $0x3a8] sm:$0xff]
    %v285 = vld [vmem:[#allocation8 + $0x3b0] sm:$0xff]
    %v286 = vld [vmem:[#allocation8 + $0x3b8] sm:$0xff]
    %v287 = vld [vmem:[#allocation8 + $0x3c0] sm:$0xff]
    %v288 = vld [vmem:[#allocation8 + $0x3c8] sm:$0xff]
    %v289 = vld [vmem:[#allocation8 + $0x3d0] sm:$0xff]
    %v290 = vld [vmem:[#allocation8 + $0x3d8] sm:$0xff]
    %v291 = vld [vmem:[#allocation8 + $0x3e0] sm:$0xff]
    %v292 = vld [vmem:[#allocation8 + $0x3e8] sm:$0xff]
    %v293 = vld [vmem:[#allocation8 + $0x3f0] sm:$0xff]
    %v294 = vld [vmem:[#allocation8 + $0x3f8] sm:$0xff]
    %v295 = vld [vmem:[#allocation8 + $0x400] sm:$0xff]
    %v296 = vld [vmem:[#allocation8 + $0x408] sm:$0xff]
    %v297 = vld [vmem:[#allocation8 + $0x410] sm:$0xff]
    %v298 = vld [vmem:[#allocation8 + $0x418] sm:$0xff]
    %v299 = vld [vmem:[#allocation8 + $0x420] sm:$0xff]
    %v300 = vld [vmem:[#allocation8 + $0x428] sm:$0xff]
    %v301 = vld [vmem:[#allocation8 + $0x430] sm:$0xff]
    %v302 = vld [vmem:[#allocation8 + $0x438] sm:$0xff]
    %v303 = vld [vmem:[#allocation8 + $0x440] sm:$0xff]
    %v304 = vld [vmem:[#allocation8 + $0x448] sm:$0xff]
    %v305 = vld [vmem:[#allocation8 + $0x450] sm:$0xff]
    %v306 = vld [vmem:[#allocation8 + $0x458] sm:$0xff]
    %v307 = vld [vmem:[#allocation8 + $0x460] sm:$0xff]
    %v308 = vld [vmem:[#allocation8 + $0x468] sm:$0xff]
    %v309 = vld [vmem:[#allocation8 + $0x470] sm:$0xff]
    %v310 = vld [vmem:[#allocation8 + $0x478] sm:$0xff]
    %v311 = vld [vmem:[#allocation8 + $0x480] sm:$0xff]
    %v312 = vld [vmem:[#allocation8 + $0x488] sm:$0xff]
    %v313 = vld [vmem:[#allocation8 + $0x490] sm:$0xff]
    %v314 = vld [vmem:[#allocation8 + $0x498] sm:$0xff]
    %v315 = vld [vmem:[#allocation8 + $0x4a0] sm:$0xff]
    %v316 = vld [vmem:[#allocation8 + $0x4a8] sm:$0xff]
    %v317 = vld [vmem:[#allocation8 + $0x4b0] sm:$0xff]
    %v318 = vld [vmem:[#allocation8 + $0x4b8] sm:$0xff]
    %v319 = vld [vmem:[#allocation8 + $0x4c0] sm:$0xff]
    %v320 = vld [vmem:[#allocation8 + $0x4c8] sm:$0xff]
    %v321 = vld [vmem:[#allocation8 + $0x4d0] sm:$0xff]
    %v322 = vld [vmem:[#allocation8 + $0x4d8] sm:$0xff]
    %v323 = vld [vmem:[#allocation8 + $0x4e0] sm:$0xff]
    %v324 = vld [vmem:[#allocation8 + $0x4e8] sm:$0xff]
    %v325 = vld [vmem:[#allocation8 + $0x4f0] sm:$0xff]
    %v326 = vld [vmem:[#allocation8 + $0x4f8] sm:$0xff]
    %v327 = vld [vmem:[#allocation8 + $0x500] sm:$0xff]
    %v328 = vld [vmem:[#allocation8 + $0x508] sm:$0xff]
    %v329 = vld [vmem:[#allocation8 + $0x510] sm:$0xff]
    %v330 = vld [vmem:[#allocation8 + $0x518] sm:$0xff]
    %v331 = vld [vmem:[#allocation8 + $0x520] sm:$0xff]
    %v332 = vld [vmem:[#allocation8 + $0x528] sm:$0xff]
    %v333 = vld [vmem:[#allocation8 + $0x530] sm:$0xff]
    %v334 = vld [vmem:[#allocation8 + $0x538] sm:$0xff]
    %v335 = vld [vmem:[#allocation8 + $0x540] sm:$0xff]
    %v336 = vld [vmem:[#allocation8 + $0x548] sm:$0xff]
    %v337 = vld [vmem:[#allocation8 + $0x550] sm:$0xff]
    %v338 = vld [vmem:[#allocation8 + $0x558] sm:$0xff]
    %v339 = vld [vmem:[#allocation8 + $0x560] sm:$0xff]
    %v340 = vld [vmem:[#allocation8 + $0x568] sm:$0xff]
    %v341 = vld [vmem:[#allocation8 + $0x570] sm:$0xff]
    %v342 = vld [vmem:[#allocation8 + $0x578] sm:$0xff]
    %v343 = vld [vmem:[#allocation8 + $0x580] sm:$0xff]
    %v344 = vld [vmem:[#allocation8 + $0x588] sm:$0xff]
    %v345 = vld [vmem:[#allocation8 + $0x590] sm:$0xff]
    %v346 = vld [vmem:[#allocation8 + $0x598] sm:$0xff]
    %v347 = vld [vmem:[#allocation8 + $0x5a0] sm:$0xff]
    %v348 = vld [vmem:[#allocation8 + $0x5a8] sm:$0xff]
    %v349 = vld [vmem:[#allocation8 + $0x5b0] sm:$0xff]
    %v350 = vld [vmem:[#allocation8 + $0x5b8] sm:$0xff]
    %v351 = vld [vmem:[#allocation8 + $0x5c0] sm:$0xff]
    %v352 = vld [vmem:[#allocation8 + $0x5c8] sm:$0xff]
    %v353 = vld [vmem:[#allocation8 + $0x5d0] sm:$0xff]
    %v354 = vld [vmem:[#allocation8 + $0x5d8] sm:$0xff]
    %v355 = vld [vmem:[#allocation8 + $0x5e0] sm:$0xff]
    %v356 = vld [vmem:[#allocation8 + $0x5e8] sm:$0xff]
    %v357 = vld [vmem:[#allocation8 + $0x5f0] sm:$0xff]
    %v358 = vld [vmem:[#allocation8 + $0x5f8] sm:$0xff]
    %v359 = vld [vmem:[#allocation8 + $0x600] sm:$0xff]
    %v360 = vld [vmem:[#allocation8 + $0x608] sm:$0xff]
    %v361 = vld [vmem:[#allocation8 + $0x610] sm:$0xff]
    %v362 = vld [vmem:[#allocation8 + $0x618] sm:$0xff]
    %v363 = vld [vmem:[#allocation8 + $0x620] sm:$0xff]
    %v364 = vld [vmem:[#allocation8 + $0x628] sm:$0xff]
    %v365 = vld [vmem:[#allocation8 + $0x630] sm:$0xff]
    %v366 = vld [vmem:[#allocation8 + $0x638] sm:$0xff]
    %v367 = vld [vmem:[#allocation8 + $0x640] sm:$0xff]
    %v368 = vld [vmem:[#allocation8 + $0x648] sm:$0xff]
    %v369 = vld [vmem:[#allocation8 + $0x650] sm:$0xff]
    %v370 = vld [vmem:[#allocation8 + $0x658] sm:$0xff]
    %v371 = vld [vmem:[#allocation8 + $0x660] sm:$0xff]
    %v372 = vld [vmem:[#allocation8 + $0x668] sm:$0xff]
    %v373 = vld [vmem:[#allocation8 + $0x670] sm:$0xff]
    %v374 = vld [vmem:[#allocation8 + $0x678] sm:$0xff]
    %v375 = vld [vmem:[#allocation8 + $0x680] sm:$0xff]
    %v376 = vld [vmem:[#allocation8 + $0x688] sm:$0xff]
    %v377 = vld [vmem:[#allocation8 + $0x690] sm:$0xff]
    %v378 = vld [vmem:[#allocation8 + $0x698] sm:$0xff]
    %v379 = vld [vmem:[#allocation8 + $0x6a0] sm:$0xff]
    %v380 = vld [vmem:[#allocation8 + $0x6a8] sm:$0xff]
    %v381 = vld [vmem:[#allocation8 + $0x6b0] sm:$0xff]
    %v382 = vld [vmem:[#allocation8 + $0x6b8] sm:$0xff]
    %v383 = vld [vmem:[#allocation8 + $0x6c0] sm:$0xff]
    %v384 = vld [vmem:[#allocation8 + $0x6c8] sm:$0xff]
    %v385 = vld [vmem:[#allocation8 + $0x6d0] sm:$0xff]
    %v386 = vld [vmem:[#allocation8 + $0x6d8] sm:$0xff]
    %v387 = vld [vmem:[#allocation8 + $0x6e0] sm:$0xff]
    %v388 = vld [vmem:[#allocation8 + $0x6e8] sm:$0xff]
    %v389 = vld [vmem:[#allocation8 + $0x6f0] sm:$0xff]
    %v390 = vld [vmem:[#allocation8 + $0x6f8] sm:$0xff]
    %v391 = vld [vmem:[#allocation8 + $0x700] sm:$0xff]
    %v392 = vld [vmem:[#allocation8 + $0x708] sm:$0xff]
    %v393 = vld [vmem:[#allocation8 + $0x710] sm:$0xff]
    %v394 = vld [vmem:[#allocation8 + $0x718] sm:$0xff]
    %v395 = vld [vmem:[#allocation8 + $0x720] sm:$0xff]
    %v396 = vld [vmem:[#allocation8 + $0x728] sm:$0xff]
    %v397 = vld [vmem:[#allocation8 + $0x730] sm:$0xff]
    %v398 = vld [vmem:[#allocation8 + $0x738] sm:$0xff]
    %v399 = vld [vmem:[#allocation8 + $0x740] sm:$0xff]
    %v400 = vld [vmem:[#allocation8 + $0x748] sm:$0xff]
    %v401 = vld [vmem:[#allocation8 + $0x750] sm:$0xff]
    %v402 = vld [vmem:[#allocation8 + $0x758] sm:$0xff]
    %v403 = vld [vmem:[#allocation8 + $0x760] sm:$0xff]
    %v404 = vld [vmem:[#allocation8 + $0x768] sm:$0xff]
    %v405 = vld [vmem:[#allocation8 + $0x770] sm:$0xff]
    %v406 = vld [vmem:[#allocation8 + $0x778] sm:$0xff]
    %v407 = vld [vmem:[#allocation8 + $0x780] sm:$0xff]
    %v408 = vld [vmem:[#allocation8 + $0x788] sm:$0xff]
    %v409 = vld [vmem:[#allocation8 + $0x790] sm:$0xff]
    %v410 = vld [vmem:[#allocation8 + $0x798] sm:$0xff]
    %v411 = vld [vmem:[#allocation8 + $0x7a0] sm:$0xff]
    %v412 = vld [vmem:[#allocation8 + $0x7a8] sm:$0xff]
    %v413 = vld [vmem:[#allocation8 + $0x7b0] sm:$0xff]
    %v414 = vld [vmem:[#allocation8 + $0x7b8] sm:$0xff]
    %v415 = vld [vmem:[#allocation8 + $0x7c0] sm:$0xff]
    %v416 = vld [vmem:[#allocation8 + $0x7c8] sm:$0xff]
    %v417 = vld [vmem:[#allocation8 + $0x7d0] sm:$0xff]
    %v418 = vld [vmem:[#allocation8 + $0x7d8] sm:$0xff]
    %v419 = vld [vmem:[#allocation8 + $0x7e0] sm:$0xff]
    %v420 = vld [vmem:[#allocation8 + $0x7e8] sm:$0xff]
    %v421 = vld [vmem:[#allocation8 + $0x7f0] sm:$0xff]
    %v422 = vld [vmem:[#allocation8 + $0x7f8] sm:$0xff]
    %v423 = vld [vmem:[#allocation10] sm:$0xff]
    %v425 = vlaneseq
    %v426 = vshrl.u32 %v425, 7
    %v427 = vsub.s32 0, %v426
    %v428 = vrot.slane %v423, %v427
    %v429 = vlaneseq
    %v430 = vshrl.u32 %v429, 7
    %v431 = vsub.s32 1, %v430
    %v432 = vrot.slane %v423, %v431
    %v433 = vlaneseq
    %v434 = vshrl.u32 %v433, 7
    %v435 = vsub.s32 2, %v434
    %v436 = vrot.slane %v423, %v435
    %v437 = vlaneseq
    %v438 = vshrl.u32 %v437, 7
    %v439 = vsub.s32 3, %v438
    %v440 = vrot.slane %v423, %v439
    %v441 = vlaneseq
    %v442 = vshrl.u32 %v441, 7
    %v443 = vsub.s32 4, %v442
    %v444 = vrot.slane %v423, %v443
    %v445 = vlaneseq
    %v446 = vshrl.u32 %v445, 7
    %v447 = vsub.s32 5, %v446
    %v448 = vrot.slane %v423, %v447
    %v449 = vlaneseq
    %v450 = vshrl.u32 %v449, 7
    %v451 = vsub.s32 6, %v450
    %v452 = vrot.slane %v423, %v451
    %v453 = vlaneseq
    %v454 = vshrl.u32 %v453, 7
    %v455 = vsub.s32 7, %v454
    %v456 = vrot.slane %v423, %v455
    %v721 = vunpack.c.l.b16 %v167
    %v722 = vunpack.c.h.b16 %v167
    %v723 = vunpack.c.l.b16 %v168
    %v724 = vunpack.c.h.b16 %v168
    %v725 = vunpack.c.l.b16 %v169
    %v726 = vunpack.c.h.b16 %v169
    %v727 = vunpack.c.l.b16 %v170
    %v728 = vunpack.c.h.b16 %v170
    %v729 = vunpack.c.l.b16 %v171
    %v730 = vunpack.c.h.b16 %v171
    %v731 = vunpack.c.l.b16 %v172
    %v732 = vunpack.c.h.b16 %v172
    %v733 = vunpack.c.l.b16 %v173
    %v734 = vunpack.c.h.b16 %v173
    %v735 = vunpack.c.l.b16 %v174
    %v736 = vunpack.c.h.b16 %v174
    %v737 = vunpack.c.l.b16 %v175
    %v738 = vunpack.c.h.b16 %v175
    %v739 = vunpack.c.l.b16 %v176
    %v740 = vunpack.c.h.b16 %v176
    %v741 = vunpack.c.l.b16 %v177
    %v742 = vunpack.c.h.b16 %v177
    %v743 = vunpack.c.l.b16 %v178
    %v744 = vunpack.c.h.b16 %v178
    %v745 = vunpack.c.l.b16 %v179
    %v746 = vunpack.c.h.b16 %v179
    %v747 = vunpack.c.l.b16 %v180
    %v748 = vunpack.c.h.b16 %v180
    %v749 = vunpack.c.l.b16 %v181
    %v750 = vunpack.c.h.b16 %v181
    %v751 = vunpack.c.l.b16 %v182
    %v752 = vunpack.c.h.b16 %v182
    %v753 = vunpack.c.l.b16 %v183
    %v754 = vunpack.c.h.b16 %v183
    %v755 = vunpack.c.l.b16 %v184
    %v756 = vunpack.c.h.b16 %v184
    %v757 = vunpack.c.l.b16 %v185
    %v758 = vunpack.c.h.b16 %v185
    %v759 = vunpack.c.l.b16 %v186
    %v760 = vunpack.c.h.b16 %v186
    %v761 = vunpack.c.l.b16 %v187
    %v762 = vunpack.c.h.b16 %v187
    %v763 = vunpack.c.l.b16 %v188
    %v764 = vunpack.c.h.b16 %v188
    %v765 = vunpack.c.l.b16 %v189
    %v766 = vunpack.c.h.b16 %v189
    %v767 = vunpack.c.l.b16 %v190
    %v768 = vunpack.c.h.b16 %v190
    %v769 = vunpack.c.l.b16 %v191
    %v770 = vunpack.c.h.b16 %v191
    %v771 = vunpack.c.l.b16 %v192
    %v772 = vunpack.c.h.b16 %v192
    %v773 = vunpack.c.l.b16 %v193
    %v774 = vunpack.c.h.b16 %v193
    %v775 = vunpack.c.l.b16 %v194
    %v776 = vunpack.c.h.b16 %v194
    %v777 = vunpack.c.l.b16 %v195
    %v778 = vunpack.c.h.b16 %v195
    %v779 = vunpack.c.l.b16 %v196
    %v780 = vunpack.c.h.b16 %v196
    %v781 = vunpack.c.l.b16 %v197
    %v782 = vunpack.c.h.b16 %v197
    %v783 = vunpack.c.l.b16 %v198
    %v784 = vunpack.c.h.b16 %v198
    %v785 = vunpack.c.l.b16 %v199
    %v786 = vunpack.c.h.b16 %v199
    %v787 = vunpack.c.l.b16 %v200
    %v788 = vunpack.c.h.b16 %v200
    %v789 = vunpack.c.l.b16 %v201
    %v790 = vunpack.c.h.b16 %v201
    %v791 = vunpack.c.l.b16 %v202
    %v792 = vunpack.c.h.b16 %v202
    %v793 = vunpack.c.l.b16 %v203
    %v794 = vunpack.c.h.b16 %v203
    %v795 = vunpack.c.l.b16 %v204
    %v796 = vunpack.c.h.b16 %v204
    %v797 = vunpack.c.l.b16 %v205
    %v798 = vunpack.c.h.b16 %v205
    %v799 = vunpack.c.l.b16 %v206
    %v800 = vunpack.c.h.b16 %v206
    %v801 = vunpack.c.l.b16 %v207
    %v802 = vunpack.c.h.b16 %v207
    %v803 = vunpack.c.l.b16 %v208
    %v804 = vunpack.c.h.b16 %v208
    %v805 = vunpack.c.l.b16 %v209
    %v806 = vunpack.c.h.b16 %v209
    %v807 = vunpack.c.l.b16 %v210
    %v808 = vunpack.c.h.b16 %v210
    %v809 = vunpack.c.l.b16 %v211
    %v810 = vunpack.c.h.b16 %v211
    %v811 = vunpack.c.l.b16 %v212
    %v812 = vunpack.c.h.b16 %v212
    %v813 = vunpack.c.l.b16 %v213
    %v814 = vunpack.c.h.b16 %v213
    %v815 = vunpack.c.l.b16 %v214
    %v816 = vunpack.c.h.b16 %v214
    %v817 = vunpack.c.l.b16 %v215
    %v818 = vunpack.c.h.b16 %v215
    %v819 = vunpack.c.l.b16 %v216
    %v820 = vunpack.c.h.b16 %v216
    %v821 = vunpack.c.l.b16 %v217
    %v822 = vunpack.c.h.b16 %v217
    %v823 = vunpack.c.l.b16 %v218
    %v824 = vunpack.c.h.b16 %v218
    %v825 = vunpack.c.l.b16 %v219
    %v826 = vunpack.c.h.b16 %v219
    %v827 = vunpack.c.l.b16 %v220
    %v828 = vunpack.c.h.b16 %v220
    %v829 = vunpack.c.l.b16 %v221
    %v830 = vunpack.c.h.b16 %v221
    %v831 = vunpack.c.l.b16 %v222
    %v832 = vunpack.c.h.b16 %v222
    %v833 = vunpack.c.l.b16 %v223
    %v834 = vunpack.c.h.b16 %v223
    %v835 = vunpack.c.l.b16 %v224
    %v836 = vunpack.c.h.b16 %v224
    %v837 = vunpack.c.l.b16 %v225
    %v838 = vunpack.c.h.b16 %v225
    %v839 = vunpack.c.l.b16 %v226
    %v840 = vunpack.c.h.b16 %v226
    %v841 = vunpack.c.l.b16 %v227
    %v842 = vunpack.c.h.b16 %v227
    %v843 = vunpack.c.l.b16 %v228
    %v844 = vunpack.c.h.b16 %v228
    %v845 = vunpack.c.l.b16 %v229
    %v846 = vunpack.c.h.b16 %v229
    %v847 = vunpack.c.l.b16 %v230
    %v848 = vunpack.c.h.b16 %v230
    %v849 = vunpack.c.l.b16 %v231
    %v850 = vunpack.c.h.b16 %v231
    %v851 = vunpack.c.l.b16 %v232
    %v852 = vunpack.c.h.b16 %v232
    %v853 = vunpack.c.l.b16 %v233
    %v854 = vunpack.c.h.b16 %v233
    %v855 = vunpack.c.l.b16 %v234
    %v856 = vunpack.c.h.b16 %v234
    %v857 = vunpack.c.l.b16 %v235
    %v858 = vunpack.c.h.b16 %v235
    %v859 = vunpack.c.l.b16 %v236
    %v860 = vunpack.c.h.b16 %v236
    %v861 = vunpack.c.l.b16 %v237
    %v862 = vunpack.c.h.b16 %v237
    %v863 = vunpack.c.l.b16 %v238
    %v864 = vunpack.c.h.b16 %v238
    %v865 = vunpack.c.l.b16 %v239
    %v866 = vunpack.c.h.b16 %v239
    %v867 = vunpack.c.l.b16 %v240
    %v868 = vunpack.c.h.b16 %v240
    %v869 = vunpack.c.l.b16 %v241
    %v870 = vunpack.c.h.b16 %v241
    %v871 = vunpack.c.l.b16 %v242
    %v872 = vunpack.c.h.b16 %v242
    %v873 = vunpack.c.l.b16 %v243
    %v874 = vunpack.c.h.b16 %v243
    %v875 = vunpack.c.l.b16 %v244
    %v876 = vunpack.c.h.b16 %v244
    %v877 = vunpack.c.l.b16 %v245
    %v878 = vunpack.c.h.b16 %v245
    %v879 = vunpack.c.l.b16 %v246
    %v880 = vunpack.c.h.b16 %v246
    %v881 = vunpack.c.l.b16 %v247
    %v882 = vunpack.c.h.b16 %v247
    %v883 = vunpack.c.l.b16 %v248
    %v884 = vunpack.c.h.b16 %v248
    %v885 = vunpack.c.l.b16 %v249
    %v886 = vunpack.c.h.b16 %v249
    %v887 = vunpack.c.l.b16 %v250
    %v888 = vunpack.c.h.b16 %v250
    %v889 = vunpack.c.l.b16 %v251
    %v890 = vunpack.c.h.b16 %v251
    %v891 = vunpack.c.l.b16 %v252
    %v892 = vunpack.c.h.b16 %v252
    %v893 = vunpack.c.l.b16 %v253
    %v894 = vunpack.c.h.b16 %v253
    %v895 = vunpack.c.l.b16 %v254
    %v896 = vunpack.c.h.b16 %v254
    %v897 = vunpack.c.l.b16 %v255
    %v898 = vunpack.c.h.b16 %v255
    %v899 = vunpack.c.l.b16 %v256
    %v900 = vunpack.c.h.b16 %v256
    %v901 = vunpack.c.l.b16 %v257
    %v902 = vunpack.c.h.b16 %v257
    %v903 = vunpack.c.l.b16 %v258
    %v904 = vunpack.c.h.b16 %v258
    %v905 = vunpack.c.l.b16 %v259
    %v906 = vunpack.c.h.b16 %v259
    %v907 = vunpack.c.l.b16 %v260
    %v908 = vunpack.c.h.b16 %v260
    %v909 = vunpack.c.l.b16 %v261
    %v910 = vunpack.c.h.b16 %v261
    %v911 = vunpack.c.l.b16 %v262
    %v912 = vunpack.c.h.b16 %v262
    %v913 = vunpack.c.l.b16 %v263
    %v914 = vunpack.c.h.b16 %v263
    %v915 = vunpack.c.l.b16 %v264
    %v916 = vunpack.c.h.b16 %v264
    %v917 = vunpack.c.l.b16 %v265
    %v918 = vunpack.c.h.b16 %v265
    %v919 = vunpack.c.l.b16 %v266
    %v920 = vunpack.c.h.b16 %v266
    %v921 = vunpack.c.l.b16 %v267
    %v922 = vunpack.c.h.b16 %v267
    %v923 = vunpack.c.l.b16 %v268
    %v924 = vunpack.c.h.b16 %v268
    %v925 = vunpack.c.l.b16 %v269
    %v926 = vunpack.c.h.b16 %v269
    %v927 = vunpack.c.l.b16 %v270
    %v928 = vunpack.c.h.b16 %v270
    %v929 = vunpack.c.l.b16 %v271
    %v930 = vunpack.c.h.b16 %v271
    %v931 = vunpack.c.l.b16 %v272
    %v932 = vunpack.c.h.b16 %v272
    %v933 = vunpack.c.l.b16 %v273
    %v934 = vunpack.c.h.b16 %v273
    %v935 = vunpack.c.l.b16 %v274
    %v936 = vunpack.c.h.b16 %v274
    %v937 = vunpack.c.l.b16 %v275
    %v938 = vunpack.c.h.b16 %v275
    %v939 = vunpack.c.l.b16 %v276
    %v940 = vunpack.c.h.b16 %v276
    %v941 = vunpack.c.l.b16 %v277
    %v942 = vunpack.c.h.b16 %v277
    %v943 = vunpack.c.l.b16 %v278
    %v944 = vunpack.c.h.b16 %v278
    %v945 = vunpack.c.l.b16 %v279
    %v946 = vunpack.c.h.b16 %v279
    %v947 = vunpack.c.l.b16 %v280
    %v948 = vunpack.c.h.b16 %v280
    %v949 = vunpack.c.l.b16 %v281
    %v950 = vunpack.c.h.b16 %v281
    %v951 = vunpack.c.l.b16 %v282
    %v952 = vunpack.c.h.b16 %v282
    %v953 = vunpack.c.l.b16 %v283
    %v954 = vunpack.c.h.b16 %v283
    %v955 = vunpack.c.l.b16 %v284
    %v956 = vunpack.c.h.b16 %v284
    %v957 = vunpack.c.l.b16 %v285
    %v958 = vunpack.c.h.b16 %v285
    %v959 = vunpack.c.l.b16 %v286
    %v960 = vunpack.c.h.b16 %v286
    %v961 = vunpack.c.l.b16 %v287
    %v962 = vunpack.c.h.b16 %v287
    %v963 = vunpack.c.l.b16 %v288
    %v964 = vunpack.c.h.b16 %v288
    %v965 = vunpack.c.l.b16 %v289
    %v966 = vunpack.c.h.b16 %v289
    %v967 = vunpack.c.l.b16 %v290
    %v968 = vunpack.c.h.b16 %v290
    %v969 = vunpack.c.l.b16 %v291
    %v970 = vunpack.c.h.b16 %v291
    %v971 = vunpack.c.l.b16 %v292
    %v972 = vunpack.c.h.b16 %v292
    %v973 = vunpack.c.l.b16 %v293
    %v974 = vunpack.c.h.b16 %v293
    %v975 = vunpack.c.l.b16 %v294
    %v976 = vunpack.c.h.b16 %v294
    %v977 = vunpack.c.l.b16 %v295
    %v978 = vunpack.c.h.b16 %v295
    %v979 = vunpack.c.l.b16 %v296
    %v980 = vunpack.c.h.b16 %v296
    %v981 = vunpack.c.l.b16 %v297
    %v982 = vunpack.c.h.b16 %v297
    %v983 = vunpack.c.l.b16 %v298
    %v984 = vunpack.c.h.b16 %v298
    %v985 = vunpack.c.l.b16 %v299
    %v986 = vunpack.c.h.b16 %v299
    %v987 = vunpack.c.l.b16 %v300
    %v988 = vunpack.c.h.b16 %v300
    %v989 = vunpack.c.l.b16 %v301
    %v990 = vunpack.c.h.b16 %v301
    %v991 = vunpack.c.l.b16 %v302
    %v992 = vunpack.c.h.b16 %v302
    %v993 = vunpack.c.l.b16 %v303
    %v994 = vunpack.c.h.b16 %v303
    %v995 = vunpack.c.l.b16 %v304
    %v996 = vunpack.c.h.b16 %v304
    %v997 = vunpack.c.l.b16 %v305
    %v998 = vunpack.c.h.b16 %v305
    %v999 = vunpack.c.l.b16 %v306
    %v1000 = vunpack.c.h.b16 %v306
    %v1001 = vunpack.c.l.b16 %v307
    %v1002 = vunpack.c.h.b16 %v307
    %v1003 = vunpack.c.l.b16 %v308
    %v1004 = vunpack.c.h.b16 %v308
    %v1005 = vunpack.c.l.b16 %v309
    %v1006 = vunpack.c.h.b16 %v309
    %v1007 = vunpack.c.l.b16 %v310
    %v1008 = vunpack.c.h.b16 %v310
    %v1009 = vunpack.c.l.b16 %v311
    %v1010 = vunpack.c.h.b16 %v311
    %v1011 = vunpack.c.l.b16 %v312
    %v1012 = vunpack.c.h.b16 %v312
    %v1013 = vunpack.c.l.b16 %v313
    %v1014 = vunpack.c.h.b16 %v313
    %v1015 = vunpack.c.l.b16 %v314
    %v1016 = vunpack.c.h.b16 %v314
    %v1017 = vunpack.c.l.b16 %v315
    %v1018 = vunpack.c.h.b16 %v315
    %v1019 = vunpack.c.l.b16 %v316
    %v1020 = vunpack.c.h.b16 %v316
    %v1021 = vunpack.c.l.b16 %v317
    %v1022 = vunpack.c.h.b16 %v317
    %v1023 = vunpack.c.l.b16 %v318
    %v1024 = vunpack.c.h.b16 %v318
    %v1025 = vunpack.c.l.b16 %v319
    %v1026 = vunpack.c.h.b16 %v319
    %v1027 = vunpack.c.l.b16 %v320
    %v1028 = vunpack.c.h.b16 %v320
    %v1029 = vunpack.c.l.b16 %v321
    %v1030 = vunpack.c.h.b16 %v321
    %v1031 = vunpack.c.l.b16 %v322
    %v1032 = vunpack.c.h.b16 %v322
    %v1033 = vunpack.c.l.b16 %v323
    %v1034 = vunpack.c.h.b16 %v323
    %v1035 = vunpack.c.l.b16 %v324
    %v1036 = vunpack.c.h.b16 %v324
    %v1037 = vunpack.c.l.b16 %v325
    %v1038 = vunpack.c.h.b16 %v325
    %v1039 = vunpack.c.l.b16 %v326
    %v1040 = vunpack.c.h.b16 %v326
    %v1041 = vunpack.c.l.b16 %v327
    %v1042 = vunpack.c.h.b16 %v327
    %v1043 = vunpack.c.l.b16 %v328
    %v1044 = vunpack.c.h.b16 %v328
    %v1045 = vunpack.c.l.b16 %v329
    %v1046 = vunpack.c.h.b16 %v329
    %v1047 = vunpack.c.l.b16 %v330
    %v1048 = vunpack.c.h.b16 %v330
    %v1049 = vunpack.c.l.b16 %v331
    %v1050 = vunpack.c.h.b16 %v331
    %v1051 = vunpack.c.l.b16 %v332
    %v1052 = vunpack.c.h.b16 %v332
    %v1053 = vunpack.c.l.b16 %v333
    %v1054 = vunpack.c.h.b16 %v333
    %v1055 = vunpack.c.l.b16 %v334
    %v1056 = vunpack.c.h.b16 %v334
    %v1057 = vunpack.c.l.b16 %v335
    %v1058 = vunpack.c.h.b16 %v335
    %v1059 = vunpack.c.l.b16 %v336
    %v1060 = vunpack.c.h.b16 %v336
    %v1061 = vunpack.c.l.b16 %v337
    %v1062 = vunpack.c.h.b16 %v337
    %v1063 = vunpack.c.l.b16 %v338
    %v1064 = vunpack.c.h.b16 %v338
    %v1065 = vunpack.c.l.b16 %v339
    %v1066 = vunpack.c.h.b16 %v339
    %v1067 = vunpack.c.l.b16 %v340
    %v1068 = vunpack.c.h.b16 %v340
    %v1069 = vunpack.c.l.b16 %v341
    %v1070 = vunpack.c.h.b16 %v341
    %v1071 = vunpack.c.l.b16 %v342
    %v1072 = vunpack.c.h.b16 %v342
    %v1073 = vunpack.c.l.b16 %v343
    %v1074 = vunpack.c.h.b16 %v343
    %v1075 = vunpack.c.l.b16 %v344
    %v1076 = vunpack.c.h.b16 %v344
    %v1077 = vunpack.c.l.b16 %v345
    %v1078 = vunpack.c.h.b16 %v345
    %v1079 = vunpack.c.l.b16 %v346
    %v1080 = vunpack.c.h.b16 %v346
    %v1081 = vunpack.c.l.b16 %v347
    %v1082 = vunpack.c.h.b16 %v347
    %v1083 = vunpack.c.l.b16 %v348
    %v1084 = vunpack.c.h.b16 %v348
    %v1085 = vunpack.c.l.b16 %v349
    %v1086 = vunpack.c.h.b16 %v349
    %v1087 = vunpack.c.l.b16 %v350
    %v1088 = vunpack.c.h.b16 %v350
    %v1089 = vunpack.c.l.b16 %v351
    %v1090 = vunpack.c.h.b16 %v351
    %v1091 = vunpack.c.l.b16 %v352
    %v1092 = vunpack.c.h.b16 %v352
    %v1093 = vunpack.c.l.b16 %v353
    %v1094 = vunpack.c.h.b16 %v353
    %v1095 = vunpack.c.l.b16 %v354
    %v1096 = vunpack.c.h.b16 %v354
    %v1097 = vunpack.c.l.b16 %v355
    %v1098 = vunpack.c.h.b16 %v355
    %v1099 = vunpack.c.l.b16 %v356
    %v1100 = vunpack.c.h.b16 %v356
    %v1101 = vunpack.c.l.b16 %v357
    %v1102 = vunpack.c.h.b16 %v357
    %v1103 = vunpack.c.l.b16 %v358
    %v1104 = vunpack.c.h.b16 %v358
    %v1105 = vunpack.c.l.b16 %v359
    %v1106 = vunpack.c.h.b16 %v359
    %v1107 = vunpack.c.l.b16 %v360
    %v1108 = vunpack.c.h.b16 %v360
    %v1109 = vunpack.c.l.b16 %v361
    %v1110 = vunpack.c.h.b16 %v361
    %v1111 = vunpack.c.l.b16 %v362
    %v1112 = vunpack.c.h.b16 %v362
    %v1113 = vunpack.c.l.b16 %v363
    %v1114 = vunpack.c.h.b16 %v363
    %v1115 = vunpack.c.l.b16 %v364
    %v1116 = vunpack.c.h.b16 %v364
    %v1117 = vunpack.c.l.b16 %v365
    %v1118 = vunpack.c.h.b16 %v365
    %v1119 = vunpack.c.l.b16 %v366
    %v1120 = vunpack.c.h.b16 %v366
    %v1121 = vunpack.c.l.b16 %v367
    %v1122 = vunpack.c.h.b16 %v367
    %v1123 = vunpack.c.l.b16 %v368
    %v1124 = vunpack.c.h.b16 %v368
    %v1125 = vunpack.c.l.b16 %v369
    %v1126 = vunpack.c.h.b16 %v369
    %v1127 = vunpack.c.l.b16 %v370
    %v1128 = vunpack.c.h.b16 %v370
    %v1129 = vunpack.c.l.b16 %v371
    %v1130 = vunpack.c.h.b16 %v371
    %v1131 = vunpack.c.l.b16 %v372
    %v1132 = vunpack.c.h.b16 %v372
    %v1133 = vunpack.c.l.b16 %v373
    %v1134 = vunpack.c.h.b16 %v373
    %v1135 = vunpack.c.l.b16 %v374
    %v1136 = vunpack.c.h.b16 %v374
    %v1137 = vunpack.c.l.b16 %v375
    %v1138 = vunpack.c.h.b16 %v375
    %v1139 = vunpack.c.l.b16 %v376
    %v1140 = vunpack.c.h.b16 %v376
    %v1141 = vunpack.c.l.b16 %v377
    %v1142 = vunpack.c.h.b16 %v377
    %v1143 = vunpack.c.l.b16 %v378
    %v1144 = vunpack.c.h.b16 %v378
    %v1145 = vunpack.c.l.b16 %v379
    %v1146 = vunpack.c.h.b16 %v379
    %v1147 = vunpack.c.l.b16 %v380
    %v1148 = vunpack.c.h.b16 %v380
    %v1149 = vunpack.c.l.b16 %v381
    %v1150 = vunpack.c.h.b16 %v381
    %v1151 = vunpack.c.l.b16 %v382
    %v1152 = vunpack.c.h.b16 %v382
    %v1153 = vunpack.c.l.b16 %v383
    %v1154 = vunpack.c.h.b16 %v383
    %v1155 = vunpack.c.l.b16 %v384
    %v1156 = vunpack.c.h.b16 %v384
    %v1157 = vunpack.c.l.b16 %v385
    %v1158 = vunpack.c.h.b16 %v385
    %v1159 = vunpack.c.l.b16 %v386
    %v1160 = vunpack.c.h.b16 %v386
    %v1161 = vunpack.c.l.b16 %v387
    %v1162 = vunpack.c.h.b16 %v387
    %v1163 = vunpack.c.l.b16 %v388
    %v1164 = vunpack.c.h.b16 %v388
    %v1165 = vunpack.c.l.b16 %v389
    %v1166 = vunpack.c.h.b16 %v389
    %v1167 = vunpack.c.l.b16 %v390
    %v1168 = vunpack.c.h.b16 %v390
    %v1169 = vunpack.c.l.b16 %v391
    %v1170 = vunpack.c.h.b16 %v391
    %v1171 = vunpack.c.l.b16 %v392
    %v1172 = vunpack.c.h.b16 %v392
    %v1173 = vunpack.c.l.b16 %v393
    %v1174 = vunpack.c.h.b16 %v393
    %v1175 = vunpack.c.l.b16 %v394
    %v1176 = vunpack.c.h.b16 %v394
    %v1177 = vunpack.c.l.b16 %v395
    %v1178 = vunpack.c.h.b16 %v395
    %v1179 = vunpack.c.l.b16 %v396
    %v1180 = vunpack.c.h.b16 %v396
    %v1181 = vunpack.c.l.b16 %v397
    %v1182 = vunpack.c.h.b16 %v397
    %v1183 = vunpack.c.l.b16 %v398
    %v1184 = vunpack.c.h.b16 %v398
    %v1185 = vunpack.c.l.b16 %v399
    %v1186 = vunpack.c.h.b16 %v399
    %v1187 = vunpack.c.l.b16 %v400
    %v1188 = vunpack.c.h.b16 %v400
    %v1189 = vunpack.c.l.b16 %v401
    %v1190 = vunpack.c.h.b16 %v401
    %v1191 = vunpack.c.l.b16 %v402
    %v1192 = vunpack.c.h.b16 %v402
    %v1193 = vunpack.c.l.b16 %v403
    %v1194 = vunpack.c.h.b16 %v403
    %v1195 = vunpack.c.l.b16 %v404
    %v1196 = vunpack.c.h.b16 %v404
    %v1197 = vunpack.c.l.b16 %v405
    %v1198 = vunpack.c.h.b16 %v405
    %v1199 = vunpack.c.l.b16 %v406
    %v1200 = vunpack.c.h.b16 %v406
    %v1201 = vunpack.c.l.b16 %v407
    %v1202 = vunpack.c.h.b16 %v407
    %v1203 = vunpack.c.l.b16 %v408
    %v1204 = vunpack.c.h.b16 %v408
    %v1205 = vunpack.c.l.b16 %v409
    %v1206 = vunpack.c.h.b16 %v409
    %v1207 = vunpack.c.l.b16 %v410
    %v1208 = vunpack.c.h.b16 %v410
    %v1209 = vunpack.c.l.b16 %v411
    %v1210 = vunpack.c.h.b16 %v411
    %v1211 = vunpack.c.l.b16 %v412
    %v1212 = vunpack.c.h.b16 %v412
    %v1213 = vunpack.c.l.b16 %v413
    %v1214 = vunpack.c.h.b16 %v413
    %v1215 = vunpack.c.l.b16 %v414
    %v1216 = vunpack.c.h.b16 %v414
    %v1217 = vunpack.c.l.b16 %v415
    %v1218 = vunpack.c.h.b16 %v415
    %v1219 = vunpack.c.l.b16 %v416
    %v1220 = vunpack.c.h.b16 %v416
    %v1221 = vunpack.c.l.b16 %v417
    %v1222 = vunpack.c.h.b16 %v417
    %v1223 = vunpack.c.l.b16 %v418
    %v1224 = vunpack.c.h.b16 %v418
    %v1225 = vunpack.c.l.b16 %v419
    %v1226 = vunpack.c.h.b16 %v419
    %v1227 = vunpack.c.l.b16 %v420
    %v1228 = vunpack.c.h.b16 %v420
    %v1229 = vunpack.c.l.b16 %v421
    %v1230 = vunpack.c.h.b16 %v421
    %v1231 = vunpack.c.l.b16 %v422
    %v1232 = vunpack.c.h.b16 %v422
    %v1233 = vpack.c.b16 %v729, %v721
    %v1234 = vpack.c.b16 %v730, %v722
    %v1235 = vpack.c.b16 %v731, %v723
    %v1236 = vpack.c.b16 %v732, %v724
    %v1237 = vpack.c.b16 %v733, %v725
    %v1238 = vpack.c.b16 %v734, %v726
    %v1239 = vpack.c.b16 %v735, %v727
    %v1240 = vpack.c.b16 %v736, %v728
    %v1241 = vpack.c.b16 %v745, %v737
    %v1242 = vpack.c.b16 %v746, %v738
    %v1243 = vpack.c.b16 %v747, %v739
    %v1244 = vpack.c.b16 %v748, %v740
    %v1245 = vpack.c.b16 %v749, %v741
    %v1246 = vpack.c.b16 %v750, %v742
    %v1247 = vpack.c.b16 %v751, %v743
    %v1248 = vpack.c.b16 %v752, %v744
    %v1249 = vpack.c.b16 %v761, %v753
    %v1250 = vpack.c.b16 %v762, %v754
    %v1251 = vpack.c.b16 %v763, %v755
    %v1252 = vpack.c.b16 %v764, %v756
    %v1253 = vpack.c.b16 %v765, %v757
    %v1254 = vpack.c.b16 %v766, %v758
    %v1255 = vpack.c.b16 %v767, %v759
    %v1256 = vpack.c.b16 %v768, %v760
    %v1257 = vpack.c.b16 %v777, %v769
    %v1258 = vpack.c.b16 %v778, %v770
    %v1259 = vpack.c.b16 %v779, %v771
    %v1260 = vpack.c.b16 %v780, %v772
    %v1261 = vpack.c.b16 %v781, %v773
    %v1262 = vpack.c.b16 %v782, %v774
    %v1263 = vpack.c.b16 %v783, %v775
    %v1264 = vpack.c.b16 %v784, %v776
    %v1265 = vpack.c.b16 %v793, %v785
    %v1266 = vpack.c.b16 %v794, %v786
    %v1267 = vpack.c.b16 %v795, %v787
    %v1268 = vpack.c.b16 %v796, %v788
    %v1269 = vpack.c.b16 %v797, %v789
    %v1270 = vpack.c.b16 %v798, %v790
    %v1271 = vpack.c.b16 %v799, %v791
    %v1272 = vpack.c.b16 %v800, %v792
    %v1273 = vpack.c.b16 %v809, %v801
    %v1274 = vpack.c.b16 %v810, %v802
    %v1275 = vpack.c.b16 %v811, %v803
    %v1276 = vpack.c.b16 %v812, %v804
    %v1277 = vpack.c.b16 %v813, %v805
    %v1278 = vpack.c.b16 %v814, %v806
    %v1279 = vpack.c.b16 %v815, %v807
    %v1280 = vpack.c.b16 %v816, %v808
    %v1281 = vpack.c.b16 %v825, %v817
    %v1282 = vpack.c.b16 %v826, %v818
    %v1283 = vpack.c.b16 %v827, %v819
    %v1284 = vpack.c.b16 %v828, %v820
    %v1285 = vpack.c.b16 %v829, %v821
    %v1286 = vpack.c.b16 %v830, %v822
    %v1287 = vpack.c.b16 %v831, %v823
    %v1288 = vpack.c.b16 %v832, %v824
    %v1289 = vpack.c.b16 %v841, %v833
    %v1290 = vpack.c.b16 %v842, %v834
    %v1291 = vpack.c.b16 %v843, %v835
    %v1292 = vpack.c.b16 %v844, %v836
    %v1293 = vpack.c.b16 %v845, %v837
    %v1294 = vpack.c.b16 %v846, %v838
    %v1295 = vpack.c.b16 %v847, %v839
    %v1296 = vpack.c.b16 %v848, %v840
    %v1297 = vpack.c.b16 %v857, %v849
    %v1298 = vpack.c.b16 %v858, %v850
    %v1299 = vpack.c.b16 %v859, %v851
    %v1300 = vpack.c.b16 %v860, %v852
    %v1301 = vpack.c.b16 %v861, %v853
    %v1302 = vpack.c.b16 %v862, %v854
    %v1303 = vpack.c.b16 %v863, %v855
    %v1304 = vpack.c.b16 %v864, %v856
    %v1305 = vpack.c.b16 %v873, %v865
    %v1306 = vpack.c.b16 %v874, %v866
    %v1307 = vpack.c.b16 %v875, %v867
    %v1308 = vpack.c.b16 %v876, %v868
    %v1309 = vpack.c.b16 %v877, %v869
    %v1310 = vpack.c.b16 %v878, %v870
    %v1311 = vpack.c.b16 %v879, %v871
    %v1312 = vpack.c.b16 %v880, %v872
    %v1313 = vpack.c.b16 %v889, %v881
    %v1314 = vpack.c.b16 %v890, %v882
    %v1315 = vpack.c.b16 %v891, %v883
    %v1316 = vpack.c.b16 %v892, %v884
    %v1317 = vpack.c.b16 %v893, %v885
    %v1318 = vpack.c.b16 %v894, %v886
    %v1319 = vpack.c.b16 %v895, %v887
    %v1320 = vpack.c.b16 %v896, %v888
    %v1321 = vpack.c.b16 %v905, %v897
    %v1322 = vpack.c.b16 %v906, %v898
    %v1323 = vpack.c.b16 %v907, %v899
    %v1324 = vpack.c.b16 %v908, %v900
    %v1325 = vpack.c.b16 %v909, %v901
    %v1326 = vpack.c.b16 %v910, %v902
    %v1327 = vpack.c.b16 %v911, %v903
    %v1328 = vpack.c.b16 %v912, %v904
    %v1329 = vpack.c.b16 %v921, %v913
    %v1330 = vpack.c.b16 %v922, %v914
    %v1331 = vpack.c.b16 %v923, %v915
    %v1332 = vpack.c.b16 %v924, %v916
    %v1333 = vpack.c.b16 %v925, %v917
    %v1334 = vpack.c.b16 %v926, %v918
    %v1335 = vpack.c.b16 %v927, %v919
    %v1336 = vpack.c.b16 %v928, %v920
    %v1337 = vpack.c.b16 %v937, %v929
    %v1338 = vpack.c.b16 %v938, %v930
    %v1339 = vpack.c.b16 %v939, %v931
    %v1340 = vpack.c.b16 %v940, %v932
    %v1341 = vpack.c.b16 %v941, %v933
    %v1342 = vpack.c.b16 %v942, %v934
    %v1343 = vpack.c.b16 %v943, %v935
    %v1344 = vpack.c.b16 %v944, %v936
    %v1345 = vpack.c.b16 %v953, %v945
    %v1346 = vpack.c.b16 %v954, %v946
    %v1347 = vpack.c.b16 %v955, %v947
    %v1348 = vpack.c.b16 %v956, %v948
    %v1349 = vpack.c.b16 %v957, %v949
    %v1350 = vpack.c.b16 %v958, %v950
    %v1351 = vpack.c.b16 %v959, %v951
    %v1352 = vpack.c.b16 %v960, %v952
    %v1353 = vpack.c.b16 %v969, %v961
    %v1354 = vpack.c.b16 %v970, %v962
    %v1355 = vpack.c.b16 %v971, %v963
    %v1356 = vpack.c.b16 %v972, %v964
    %v1357 = vpack.c.b16 %v973, %v965
    %v1358 = vpack.c.b16 %v974, %v966
    %v1359 = vpack.c.b16 %v975, %v967
    %v1360 = vpack.c.b16 %v976, %v968
    %v1361 = vpack.c.b16 %v985, %v977
    %v1362 = vpack.c.b16 %v986, %v978
    %v1363 = vpack.c.b16 %v987, %v979
    %v1364 = vpack.c.b16 %v988, %v980
    %v1365 = vpack.c.b16 %v989, %v981
    %v1366 = vpack.c.b16 %v990, %v982
    %v1367 = vpack.c.b16 %v991, %v983
    %v1368 = vpack.c.b16 %v992, %v984
    %v1369 = vpack.c.b16 %v1001, %v993
    %v1370 = vpack.c.b16 %v1002, %v994
    %v1371 = vpack.c.b16 %v1003, %v995
    %v1372 = vpack.c.b16 %v1004, %v996
    %v1373 = vpack.c.b16 %v1005, %v997
    %v1374 = vpack.c.b16 %v1006, %v998
    %v1375 = vpack.c.b16 %v1007, %v999
    %v1376 = vpack.c.b16 %v1008, %v1000
    %v1377 = vpack.c.b16 %v1017, %v1009
    %v1378 = vpack.c.b16 %v1018, %v1010
    %v1379 = vpack.c.b16 %v1019, %v1011
    %v1380 = vpack.c.b16 %v1020, %v1012
    %v1381 = vpack.c.b16 %v1021, %v1013
    %v1382 = vpack.c.b16 %v1022, %v1014
    %v1383 = vpack.c.b16 %v1023, %v1015
    %v1384 = vpack.c.b16 %v1024, %v1016
    %v1385 = vpack.c.b16 %v1033, %v1025
    %v1386 = vpack.c.b16 %v1034, %v1026
    %v1387 = vpack.c.b16 %v1035, %v1027
    %v1388 = vpack.c.b16 %v1036, %v1028
    %v1389 = vpack.c.b16 %v1037, %v1029
    %v1390 = vpack.c.b16 %v1038, %v1030
    %v1391 = vpack.c.b16 %v1039, %v1031
    %v1392 = vpack.c.b16 %v1040, %v1032
    %v1393 = vpack.c.b16 %v1049, %v1041
    %v1394 = vpack.c.b16 %v1050, %v1042
    %v1395 = vpack.c.b16 %v1051, %v1043
    %v1396 = vpack.c.b16 %v1052, %v1044
    %v1397 = vpack.c.b16 %v1053, %v1045
    %v1398 = vpack.c.b16 %v1054, %v1046
    %v1399 = vpack.c.b16 %v1055, %v1047
    %v1400 = vpack.c.b16 %v1056, %v1048
    %v1401 = vpack.c.b16 %v1065, %v1057
    %v1402 = vpack.c.b16 %v1066, %v1058
    %v1403 = vpack.c.b16 %v1067, %v1059
    %v1404 = vpack.c.b16 %v1068, %v1060
    %v1405 = vpack.c.b16 %v1069, %v1061
    %v1406 = vpack.c.b16 %v1070, %v1062
    %v1407 = vpack.c.b16 %v1071, %v1063
    %v1408 = vpack.c.b16 %v1072, %v1064
    %v1409 = vpack.c.b16 %v1081, %v1073
    %v1410 = vpack.c.b16 %v1082, %v1074
    %v1411 = vpack.c.b16 %v1083, %v1075
    %v1412 = vpack.c.b16 %v1084, %v1076
    %v1413 = vpack.c.b16 %v1085, %v1077
    %v1414 = vpack.c.b16 %v1086, %v1078
    %v1415 = vpack.c.b16 %v1087, %v1079
    %v1416 = vpack.c.b16 %v1088, %v1080
    %v1417 = vpack.c.b16 %v1097, %v1089
    %v1418 = vpack.c.b16 %v1098, %v1090
    %v1419 = vpack.c.b16 %v1099, %v1091
    %v1420 = vpack.c.b16 %v1100, %v1092
    %v1421 = vpack.c.b16 %v1101, %v1093
    %v1422 = vpack.c.b16 %v1102, %v1094
    %v1423 = vpack.c.b16 %v1103, %v1095
    %v1424 = vpack.c.b16 %v1104, %v1096
    %v1425 = vpack.c.b16 %v1113, %v1105
    %v1426 = vpack.c.b16 %v1114, %v1106
    %v1427 = vpack.c.b16 %v1115, %v1107
    %v1428 = vpack.c.b16 %v1116, %v1108
    %v1429 = vpack.c.b16 %v1117, %v1109
    %v1430 = vpack.c.b16 %v1118, %v1110
    %v1431 = vpack.c.b16 %v1119, %v1111
    %v1432 = vpack.c.b16 %v1120, %v1112
    %v1433 = vpack.c.b16 %v1129, %v1121
    %v1434 = vpack.c.b16 %v1130, %v1122
    %v1435 = vpack.c.b16 %v1131, %v1123
    %v1436 = vpack.c.b16 %v1132, %v1124
    %v1437 = vpack.c.b16 %v1133, %v1125
    %v1438 = vpack.c.b16 %v1134, %v1126
    %v1439 = vpack.c.b16 %v1135, %v1127
    %v1440 = vpack.c.b16 %v1136, %v1128
    %v1441 = vpack.c.b16 %v1145, %v1137
    %v1442 = vpack.c.b16 %v1146, %v1138
    %v1443 = vpack.c.b16 %v1147, %v1139
    %v1444 = vpack.c.b16 %v1148, %v1140
    %v1445 = vpack.c.b16 %v1149, %v1141
    %v1446 = vpack.c.b16 %v1150, %v1142
    %v1447 = vpack.c.b16 %v1151, %v1143
    %v1448 = vpack.c.b16 %v1152, %v1144
    %v1449 = vpack.c.b16 %v1161, %v1153
    %v1450 = vpack.c.b16 %v1162, %v1154
    %v1451 = vpack.c.b16 %v1163, %v1155
    %v1452 = vpack.c.b16 %v1164, %v1156
    %v1453 = vpack.c.b16 %v1165, %v1157
    %v1454 = vpack.c.b16 %v1166, %v1158
    %v1455 = vpack.c.b16 %v1167, %v1159
    %v1456 = vpack.c.b16 %v1168, %v1160
    %v1457 = vpack.c.b16 %v1177, %v1169
    %v1458 = vpack.c.b16 %v1178, %v1170
    %v1459 = vpack.c.b16 %v1179, %v1171
    %v1460 = vpack.c.b16 %v1180, %v1172
    %v1461 = vpack.c.b16 %v1181, %v1173
    %v1462 = vpack.c.b16 %v1182, %v1174
    %v1463 = vpack.c.b16 %v1183, %v1175
    %v1464 = vpack.c.b16 %v1184, %v1176
    %v1465 = vpack.c.b16 %v1193, %v1185
    %v1466 = vpack.c.b16 %v1194, %v1186
    %v1467 = vpack.c.b16 %v1195, %v1187
    %v1468 = vpack.c.b16 %v1196, %v1188
    %v1469 = vpack.c.b16 %v1197, %v1189
    %v1470 = vpack.c.b16 %v1198, %v1190
    %v1471 = vpack.c.b16 %v1199, %v1191
    %v1472 = vpack.c.b16 %v1200, %v1192
    %v1473 = vpack.c.b16 %v1209, %v1201
    %v1474 = vpack.c.b16 %v1210, %v1202
    %v1475 = vpack.c.b16 %v1211, %v1203
    %v1476 = vpack.c.b16 %v1212, %v1204
    %v1477 = vpack.c.b16 %v1213, %v1205
    %v1478 = vpack.c.b16 %v1214, %v1206
    %v1479 = vpack.c.b16 %v1215, %v1207
    %v1480 = vpack.c.b16 %v1216, %v1208
    %v1481 = vpack.c.b16 %v1225, %v1217
    %v1482 = vpack.c.b16 %v1226, %v1218
    %v1483 = vpack.c.b16 %v1227, %v1219
    %v1484 = vpack.c.b16 %v1228, %v1220
    %v1485 = vpack.c.b16 %v1229, %v1221
    %v1486 = vpack.c.b16 %v1230, %v1222
    %v1487 = vpack.c.b16 %v1231, %v1223
    %v1488 = vpack.c.b16 %v1232, %v1224
    %1745 = vmatprep.subr.bf16.mxu0 %v1234
    %1746 = vmatpush1.bf16.msra.mxu0 %v1233
    %1747 = vmatprep.subr.bf16.mxu0 %v1242
    %1748 = vmatpush1.bf16.msra.mxu0 %v1241
    %1749 = vmatprep.subr.bf16.mxu0 %v1250
    %1750 = vmatpush1.bf16.msra.mxu0 %v1249
    %1751 = vmatprep.subr.bf16.mxu0 %v1258
    %1752 = vmatpush1.bf16.msra.mxu0 %v1257
    %1753 = vmatprep.subr.bf16.mxu0 %v1266
    %1754 = vmatpush1.bf16.msra.mxu0 %v1265
    %1755 = vmatprep.subr.bf16.mxu0 %v1274
    %1756 = vmatpush1.bf16.msra.mxu0 %v1273
    %1757 = vmatprep.subr.bf16.mxu0 %v1282
    %1758 = vmatpush1.bf16.msra.mxu0 %v1281
    %1759 = vmatprep.subr.bf16.mxu0 %v1290
    %1760 = vmatpush1.bf16.msra.mxu0 %v1289
    %1761 = vmatprep.subr.bf16.mxu0 %v1298
    %1762 = vmatpush1.bf16.msra.mxu0 %v1297
    %1763 = vmatprep.subr.bf16.mxu0 %v1306
    %1764 = vmatpush1.bf16.msra.mxu0 %v1305
    %1765 = vmatprep.subr.bf16.mxu0 %v1314
    %1766 = vmatpush1.bf16.msra.mxu0 %v1313
    %1767 = vmatprep.subr.bf16.mxu0 %v1322
    %1768 = vmatpush1.bf16.msra.mxu0 %v1321
    %1769 = vmatprep.subr.bf16.mxu0 %v1330
    %1770 = vmatpush1.bf16.msra.mxu0 %v1329
    %1771 = vmatprep.subr.bf16.mxu0 %v1338
    %1772 = vmatpush1.bf16.msra.mxu0 %v1337
    %1773 = vmatprep.subr.bf16.mxu0 %v1346
    %1774 = vmatpush1.bf16.msra.mxu0 %v1345
    %1775 = vmatprep.subr.bf16.mxu0 %v1354
    %1776 = vmatpush1.bf16.msra.mxu0 %v1353
    %1777 = vmatprep.mubr.bf16.mxu0 %v160
    %1778 = vmatmul.mubr.bf16.gmra.mrb[0].mxu0 %v159
    %v1779 = vpop.f32.mrb[0].mxu0
    %v1780 = vadd.f32 %v428, %v1779
    %v1781 = vpop.f32.mrb[0].mxu0
    %v1782 = vadd.f32 %v432, %v1781
    %v1783 = vpop.f32.mrb[0].mxu0
    %v1784 = vadd.f32 %v428, %v1783
    %v1785 = vpop.f32.mrb[0].mxu0
    %v1786 = vadd.f32 %v432, %v1785
    %1787 = vmatprep.mubr.bf16.mxu0 %v164
    %1788 = vmatmul.mubr.bf16.gmra.mrb[0].mxu0 %v163
    %v1789 = vpop.f32.mrb[0].mxu0
    %v1790 = vadd.f32 %v428, %v1789
    %v1791 = vpop.f32.mrb[0].mxu0
    %v1792 = vadd.f32 %v432, %v1791
    %v1793 = vpop.f32.mrb[0].mxu0
    %v1794 = vpop.f32.mrb[0].mxu0
    %1795 = vdwg.mxu0
    %1796 = vmatprep.subr.bf16.mxu0 %v1362
    %1797 = vmatpush1.bf16.msra.mxu0 %v1361
    %1798 = vmatprep.subr.bf16.mxu0 %v1370
    %1799 = vmatpush1.bf16.msra.mxu0 %v1369
    %1800 = vmatprep.subr.bf16.mxu0 %v1378
    %1801 = vmatpush1.bf16.msra.mxu0 %v1377
    %1802 = vmatprep.subr.bf16.mxu0 %v1386
    %1803 = vmatpush1.bf16.msra.mxu0 %v1385
    %1804 = vmatprep.subr.bf16.mxu0 %v1394
    %1805 = vmatpush1.bf16.msra.mxu0 %v1393
    %1806 = vmatprep.subr.bf16.mxu0 %v1402
    %1807 = vmatpush1.bf16.msra.mxu0 %v1401
    %1808 = vmatprep.subr.bf16.mxu0 %v1410
    %1809 = vmatpush1.bf16.msra.mxu0 %v1409
    %1810 = vmatprep.subr.bf16.mxu0 %v1418
    %1811 = vmatpush1.bf16.msra.mxu0 %v1417
    %1812 = vmatprep.subr.bf16.mxu0 %v1426
    %1813 = vmatpush1.bf16.msra.mxu0 %v1425
    %1814 = vmatprep.subr.bf16.mxu0 %v1434
    %1815 = vmatpush1.bf16.msra.mxu0 %v1433
    %1816 = vmatprep.subr.bf16.mxu0 %v1442
    %1817 = vmatpush1.bf16.msra.mxu0 %v1441
    %1818 = vmatprep.subr.bf16.mxu0 %v1450
    %1819 = vmatpush1.bf16.msra.mxu0 %v1449
    %1820 = vmatprep.subr.bf16.mxu0 %v1458
    %1821 = vmatpush1.bf16.msra.mxu0 %v1457
    %1822 = vmatprep.subr.bf16.mxu0 %v1466
    %1823 = vmatpush1.bf16.msra.mxu0 %v1465
    %1824 = vmatprep.subr.bf16.mxu0 %v1474
    %1825 = vmatpush1.bf16.msra.mxu0 %v1473
    %1826 = vmatprep.subr.bf16.mxu0 %v1482
    %1827 = vmatpush1.bf16.msra.mxu0 %v1481
    %1828 = vmatprep.mubr.bf16.mxu0 %v162
    %1829 = vmatmul.mubr.bf16.gmra.mrb[0].mxu0 %v161
    %v1830 = vpop.f32.mrb[0].mxu0
    %v1831 = vadd.f32 %v1780, %v1830
    %v1832 = vpop.f32.mrb[0].mxu0
    %v1833 = vadd.f32 %v1782, %v1832
    %v1834 = vpop.f32.mrb[0].mxu0
    %v1835 = vadd.f32 %v1784, %v1834
    %v1836 = vpop.f32.mrb[0].mxu0
    %v1837 = vadd.f32 %v1786, %v1836
    %1838 = vmatprep.mubr.bf16.mxu0 %v166
    %1839 = vmatmul.mubr.bf16.gmra.mrb[0].mxu0 %v165
    %v1840 = vpop.f32.mrb[0].mxu0
    %v1841 = vadd.f32 %v1790, %v1840
    %v1842 = vpop.f32.mrb[0].mxu0
    %v1843 = vadd.f32 %v1792, %v1842
    %v1844 = vpop.f32.mrb[0].mxu0
    %v1845 = vpop.f32.mrb[0].mxu0
    %1846 = vdwg.mxu0
    %1847 = vmatprep.subr.bf16.mxu0 %v1236
    %1848 = vmatpush1.bf16.msra.mxu0 %v1235
    %1849 = vmatprep.subr.bf16.mxu0 %v1244
    %1850 = vmatpush1.bf16.msra.mxu0 %v1243
    %1851 = vmatprep.subr.bf16.mxu0 %v1252
    %1852 = vmatpush1.bf16.msra.mxu0 %v1251
    %1853 = vmatprep.subr.bf16.mxu0 %v1260
    %1854 = vmatpush1.bf16.msra.mxu0 %v1259
    %1855 = vmatprep.subr.bf16.mxu0 %v1268
    %1856 = vmatpush1.bf16.msra.mxu0 %v1267
    %1857 = vmatprep.subr.bf16.mxu0 %v1276
    %1858 = vmatpush1.bf16.msra.mxu0 %v1275
    %1859 = vmatprep.subr.bf16.mxu0 %v1284
    %1860 = vmatpush1.bf16.msra.mxu0 %v1283
    %1861 = vmatprep.subr.bf16.mxu0 %v1292
    %1862 = vmatpush1.bf16.msra.mxu0 %v1291
    %1863 = vmatprep.subr.bf16.mxu0 %v1300
    %1864 = vmatpush1.bf16.msra.mxu0 %v1299
    %1865 = vmatprep.subr.bf16.mxu0 %v1308
    %1866 = vmatpush1.bf16.msra.mxu0 %v1307
    %1867 = vmatprep.subr.bf16.mxu0 %v1316
    %1868 = vmatpush1.bf16.msra.mxu0 %v1315
    %1869 = vmatprep.subr.bf16.mxu0 %v1324
    %1870 = vmatpush1.bf16.msra.mxu0 %v1323
    %1871 = vmatprep.subr.bf16.mxu0 %v1332
    %1872 = vmatpush1.bf16.msra.mxu0 %v1331
    %1873 = vmatprep.subr.bf16.mxu0 %v1340
    %1874 = vmatpush1.bf16.msra.mxu0 %v1339
    %1875 = vmatprep.subr.bf16.mxu0 %v1348
    %1876 = vmatpush1.bf16.msra.mxu0 %v1347
    %1877 = vmatprep.subr.bf16.mxu0 %v1356
    %1878 = vmatpush1.bf16.msra.mxu0 %v1355
    %1879 = vmatprep.mubr.bf16.mxu0 %v160
    %1880 = vmatmul.mubr.bf16.gmra.mrb[0].mxu0 %v159
    %v1881 = vpop.f32.mrb[0].mxu0
    %v1882 = vadd.f32 %v436, %v1881
    %v1883 = vpop.f32.mrb[0].mxu0
    %v1884 = vadd.f32 %v440, %v1883
    %v1885 = vpop.f32.mrb[0].mxu0
    %v1886 = vadd.f32 %v436, %v1885
    %v1887 = vpop.f32.mrb[0].mxu0
    %v1888 = vadd.f32 %v440, %v1887
    %1889 = vmatprep.mubr.bf16.mxu0 %v164
    %1890 = vmatmul.mubr.bf16.gmra.mrb[0].mxu0 %v163
    %v1891 = vpop.f32.mrb[0].mxu0
    %v1892 = vadd.f32 %v436, %v1891
    %v1893 = vpop.f32.mrb[0].mxu0
    %v1894 = vadd.f32 %v440, %v1893
    %v1895 = vpop.f32.mrb[0].mxu0
    %v1896 = vpop.f32.mrb[0].mxu0
    %1897 = vdwg.mxu0
    %1898 = vmatprep.subr.bf16.mxu0 %v1364
    %1899 = vmatpush1.bf16.msra.mxu0 %v1363
    %1900 = vmatprep.subr.bf16.mxu0 %v1372
    %1901 = vmatpush1.bf16.msra.mxu0 %v1371
    %1902 = vmatprep.subr.bf16.mxu0 %v1380
    %1903 = vmatpush1.bf16.msra.mxu0 %v1379
    %1904 = vmatprep.subr.bf16.mxu0 %v1388
    %1905 = vmatpush1.bf16.msra.mxu0 %v1387
    %1906 = vmatprep.subr.bf16.mxu0 %v1396
    %1907 = vmatpush1.bf16.msra.mxu0 %v1395
    %1908 = vmatprep.subr.bf16.mxu0 %v1404
    %1909 = vmatpush1.bf16.msra.mxu0 %v1403
    %1910 = vmatprep.subr.bf16.mxu0 %v1412
    %1911 = vmatpush1.bf16.msra.mxu0 %v1411
    %1912 = vmatprep.subr.bf16.mxu0 %v1420
    %1913 = vmatpush1.bf16.msra.mxu0 %v1419
    %1914 = vmatprep.subr.bf16.mxu0 %v1428
    %1915 = vmatpush1.bf16.msra.mxu0 %v1427
    %1916 = vmatprep.subr.bf16.mxu0 %v1436
    %1917 = vmatpush1.bf16.msra.mxu0 %v1435
    %1918 = vmatprep.subr.bf16.mxu0 %v1444
    %1919 = vmatpush1.bf16.msra.mxu0 %v1443
    %1920 = vmatprep.subr.bf16.mxu0 %v1452
    %1921 = vmatpush1.bf16.msra.mxu0 %v1451
    %1922 = vmatprep.subr.bf16.mxu0 %v1460
    %1923 = vmatpush1.bf16.msra.mxu0 %v1459
    %1924 = vmatprep.subr.bf16.mxu0 %v1468
    %1925 = vmatpush1.bf16.msra.mxu0 %v1467
    %1926 = vmatprep.subr.bf16.mxu0 %v1476
    %1927 = vmatpush1.bf16.msra.mxu0 %v1475
    %1928 = vmatprep.subr.bf16.mxu0 %v1484
    %1929 = vmatpush1.bf16.msra.mxu0 %v1483
    %1930 = vmatprep.mubr.bf16.mxu0 %v162
    %1931 = vmatmul.mubr.bf16.gmra.mrb[0].mxu0 %v161
    %v1932 = vpop.f32.mrb[0].mxu0
    %v1933 = vadd.f32 %v1882, %v1932
    %v1934 = vpop.f32.mrb[0].mxu0
    %v1935 = vadd.f32 %v1884, %v1934
    %v1936 = vpop.f32.mrb[0].mxu0
    %v1937 = vadd.f32 %v1886, %v1936
    %v1938 = vpop.f32.mrb[0].mxu0
    %v1939 = vadd.f32 %v1888, %v1938
    %1940 = vmatprep.mubr.bf16.mxu0 %v166
    %1941 = vmatmul.mubr.bf16.gmra.mrb[0].mxu0 %v165
    %v1942 = vpop.f32.mrb[0].mxu0
    %v1943 = vadd.f32 %v1892, %v1942
    %v1944 = vpop.f32.mrb[0].mxu0
    %v1945 = vadd.f32 %v1894, %v1944
    %v1946 = vpop.f32.mrb[0].mxu0
    %v1947 = vpop.f32.mrb[0].mxu0
    %1948 = vdwg.mxu0
    %1949 = vmatprep.subr.bf16.mxu0 %v1238
    %1950 = vmatpush1.bf16.msra.mxu0 %v1237
    %1951 = vmatprep.subr.bf16.mxu0 %v1246
    %1952 = vmatpush1.bf16.msra.mxu0 %v1245
    %1953 = vmatprep.subr.bf16.mxu0 %v1254
    %1954 = vmatpush1.bf16.msra.mxu0 %v1253
    %1955 = vmatprep.subr.bf16.mxu0 %v1262
    %1956 = vmatpush1.bf16.msra.mxu0 %v1261
    %1957 = vmatprep.subr.bf16.mxu0 %v1270
    %1958 = vmatpush1.bf16.msra.mxu0 %v1269
    %1959 = vmatprep.subr.bf16.mxu0 %v1278
    %1960 = vmatpush1.bf16.msra.mxu0 %v1277
    %1961 = vmatprep.subr.bf16.mxu0 %v1286
    %1962 = vmatpush1.bf16.msra.mxu0 %v1285
    %1963 = vmatprep.subr.bf16.mxu0 %v1294
    %1964 = vmatpush1.bf16.msra.mxu0 %v1293
    %1965 = vmatprep.subr.bf16.mxu0 %v1302
    %1966 = vmatpush1.bf16.msra.mxu0 %v1301
    %1967 = vmatprep.subr.bf16.mxu0 %v1310
    %1968 = vmatpush1.bf16.msra.mxu0 %v1309
    %1969 = vmatprep.subr.bf16.mxu0 %v1318
    %1970 = vmatpush1.bf16.msra.mxu0 %v1317
    %1971 = vmatprep.subr.bf16.mxu0 %v1326
    %1972 = vmatpush1.bf16.msra.mxu0 %v1325
    %1973 = vmatprep.subr.bf16.mxu0 %v1334
    %1974 = vmatpush1.bf16.msra.mxu0 %v1333
    %1975 = vmatprep.subr.bf16.mxu0 %v1342
    %1976 = vmatpush1.bf16.msra.mxu0 %v1341
    %1977 = vmatprep.subr.bf16.mxu0 %v1350
    %1978 = vmatpush1.bf16.msra.mxu0 %v1349
    %1979 = vmatprep.subr.bf16.mxu0 %v1358
    %1980 = vmatpush1.bf16.msra.mxu0 %v1357
    %1981 = vmatprep.mubr.bf16.mxu0 %v160
    %1982 = vmatmul.mubr.bf16.gmra.mrb[0].mxu0 %v159
    %v1983 = vpop.f32.mrb[0].mxu0
    %v1984 = vadd.f32 %v444, %v1983
    %v1985 = vpop.f32.mrb[0].mxu0
    %v1986 = vadd.f32 %v448, %v1985
    %v1987 = vpop.f32.mrb[0].mxu0
    %v1988 = vadd.f32 %v444, %v1987
    %v1989 = vpop.f32.mrb[0].mxu0
    %v1990 = vadd.f32 %v448, %v1989
    %1991 = vmatprep.mubr.bf16.mxu0 %v164
    %1992 = vmatmul.mubr.bf16.gmra.mrb[0].mxu0 %v163
    %v1993 = vpop.f32.mrb[0].mxu0
    %v1994 = vadd.f32 %v444, %v1993
    %v1995 = vpop.f32.mrb[0].mxu0
    %v1996 = vadd.f32 %v448, %v1995
    %v1997 = vpop.f32.mrb[0].mxu0
    %v1998 = vpop.f32.mrb[0].mxu0
    %1999 = vdwg.mxu0
    %2000 = vmatprep.subr.bf16.mxu0 %v1366
    %2001 = vmatpush1.bf16.msra.mxu0 %v1365
    %2002 = vmatprep.subr.bf16.mxu0 %v1374
    %2003 = vmatpush1.bf16.msra.mxu0 %v1373
    %2004 = vmatprep.subr.bf16.mxu0 %v1382
    %2005 = vmatpush1.bf16.msra.mxu0 %v1381
    %2006 = vmatprep.subr.bf16.mxu0 %v1390
    %2007 = vmatpush1.bf16.msra.mxu0 %v1389
    %2008 = vmatprep.subr.bf16.mxu0 %v1398
    %2009 = vmatpush1.bf16.msra.mxu0 %v1397
    %2010 = vmatprep.subr.bf16.mxu0 %v1406
    %2011 = vmatpush1.bf16.msra.mxu0 %v1405
    %2012 = vmatprep.subr.bf16.mxu0 %v1414
    %2013 = vmatpush1.bf16.msra.mxu0 %v1413
    %2014 = vmatprep.subr.bf16.mxu0 %v1422
    %2015 = vmatpush1.bf16.msra.mxu0 %v1421
    %2016 = vmatprep.subr.bf16.mxu0 %v1430
    %2017 = vmatpush1.bf16.msra.mxu0 %v1429
    %2018 = vmatprep.subr.bf16.mxu0 %v1438
    %2019 = vmatpush1.bf16.msra.mxu0 %v1437
    %2020 = vmatprep.subr.bf16.mxu0 %v1446
    %2021 = vmatpush1.bf16.msra.mxu0 %v1445
    %2022 = vmatprep.subr.bf16.mxu0 %v1454
    %2023 = vmatpush1.bf16.msra.mxu0 %v1453
    %2024 = vmatprep.subr.bf16.mxu0 %v1462
    %2025 = vmatpush1.bf16.msra.mxu0 %v1461
    %2026 = vmatprep.subr.bf16.mxu0 %v1470
    %2027 = vmatpush1.bf16.msra.mxu0 %v1469
    %2028 = vmatprep.subr.bf16.mxu0 %v1478
    %2029 = vmatpush1.bf16.msra.mxu0 %v1477
    %2030 = vmatprep.subr.bf16.mxu0 %v1486
    %2031 = vmatpush1.bf16.msra.mxu0 %v1485
    %2032 = vmatprep.mubr.bf16.mxu0 %v162
    %2033 = vmatmul.mubr.bf16.gmra.mrb[0].mxu0 %v161
    %v2034 = vpop.f32.mrb[0].mxu0
    %v2035 = vadd.f32 %v1984, %v2034
    %v2036 = vpop.f32.mrb[0].mxu0
    %v2037 = vadd.f32 %v1986, %v2036
    %v2038 = vpop.f32.mrb[0].mxu0
    %v2039 = vadd.f32 %v1988, %v2038
    %v2040 = vpop.f32.mrb[0].mxu0
    %v2041 = vadd.f32 %v1990, %v2040
    %2042 = vmatprep.mubr.bf16.mxu0 %v166
    %2043 = vmatmul.mubr.bf16.gmra.mrb[0].mxu0 %v165
    %v2044 = vpop.f32.mrb[0].mxu0
    %v2045 = vadd.f32 %v1994, %v2044
    %v2046 = vpop.f32.mrb[0].mxu0
    %v2047 = vadd.f32 %v1996, %v2046
    %v2048 = vpop.f32.mrb[0].mxu0
    %v2049 = vpop.f32.mrb[0].mxu0
    %2050 = vdwg.mxu0
    %2051 = vmatprep.subr.bf16.mxu0 %v1240
    %2052 = vmatpush1.bf16.msra.mxu0 %v1239
    %2053 = vmatprep.subr.bf16.mxu0 %v1248
    %2054 = vmatpush1.bf16.msra.mxu0 %v1247
    %2055 = vmatprep.subr.bf16.mxu0 %v1256
    %2056 = vmatpush1.bf16.msra.mxu0 %v1255
    %2057 = vmatprep.subr.bf16.mxu0 %v1264
    %2058 = vmatpush1.bf16.msra.mxu0 %v1263
    %2059 = vmatprep.subr.bf16.mxu0 %v1272
    %2060 = vmatpush1.bf16.msra.mxu0 %v1271
    %2061 = vmatprep.subr.bf16.mxu0 %v1280
    %2062 = vmatpush1.bf16.msra.mxu0 %v1279
    %2063 = vmatprep.subr.bf16.mxu0 %v1288
    %2064 = vmatpush1.bf16.msra.mxu0 %v1287
    %2065 = vmatprep.subr.bf16.mxu0 %v1296
    %2066 = vmatpush1.bf16.msra.mxu0 %v1295
    %2067 = vmatprep.subr.bf16.mxu0 %v1304
    %2068 = vmatpush1.bf16.msra.mxu0 %v1303
    %2069 = vmatprep.subr.bf16.mxu0 %v1312
    %2070 = vmatpush1.bf16.msra.mxu0 %v1311
    %2071 = vmatprep.subr.bf16.mxu0 %v1320
    %2072 = vmatpush1.bf16.msra.mxu0 %v1319
    %2073 = vmatprep.subr.bf16.mxu0 %v1328
    %2074 = vmatpush1.bf16.msra.mxu0 %v1327
    %2075 = vmatprep.subr.bf16.mxu0 %v1336
    %2076 = vmatpush1.bf16.msra.mxu0 %v1335
    %2077 = vmatprep.subr.bf16.mxu0 %v1344
    %2078 = vmatpush1.bf16.msra.mxu0 %v1343
    %2079 = vmatprep.subr.bf16.mxu0 %v1352
    %2080 = vmatpush1.bf16.msra.mxu0 %v1351
    %2081 = vmatprep.subr.bf16.mxu0 %v1360
    %2082 = vmatpush1.bf16.msra.mxu0 %v1359
    %2083 = vmatprep.mubr.bf16.mxu0 %v160
    %2084 = vmatmul.mubr.bf16.gmra.mrb[0].mxu0 %v159
    %v2085 = vpop.f32.mrb[0].mxu0
    %v2086 = vadd.f32 %v452, %v2085
    %v2087 = vpop.f32.mrb[0].mxu0
    %v2088 = vadd.f32 %v456, %v2087
    %v2089 = vpop.f32.mrb[0].mxu0
    %v2090 = vadd.f32 %v452, %v2089
    %v2091 = vpop.f32.mrb[0].mxu0
    %v2092 = vadd.f32 %v456, %v2091
    %2093 = vmatprep.mubr.bf16.mxu0 %v164
    %2094 = vmatmul.mubr.bf16.gmra.mrb[0].mxu0 %v163
    %v2095 = vpop.f32.mrb[0].mxu0
    %v2096 = vadd.f32 %v452, %v2095
    %v2097 = vpop.f32.mrb[0].mxu0
    %v2098 = vadd.f32 %v456, %v2097
    %v2099 = vpop.f32.mrb[0].mxu0
    %v2100 = vpop.f32.mrb[0].mxu0
    %2101 = vdwg.mxu0
    %2102 = vmatprep.subr.bf16.mxu0 %v1368
    %2103 = vmatpush1.bf16.msra.mxu0 %v1367
    %2104 = vmatprep.subr.bf16.mxu0 %v1376
    %2105 = vmatpush1.bf16.msra.mxu0 %v1375
    %2106 = vmatprep.subr.bf16.mxu0 %v1384
    %2107 = vmatpush1.bf16.msra.mxu0 %v1383
    %2108 = vmatprep.subr.bf16.mxu0 %v1392
    %2109 = vmatpush1.bf16.msra.mxu0 %v1391
    %2110 = vmatprep.subr.bf16.mxu0 %v1400
    %2111 = vmatpush1.bf16.msra.mxu0 %v1399
    %2112 = vmatprep.subr.bf16.mxu0 %v1408
    %2113 = vmatpush1.bf16.msra.mxu0 %v1407
    %2114 = vmatprep.subr.bf16.mxu0 %v1416
    %2115 = vmatpush1.bf16.msra.mxu0 %v1415
    %2116 = vmatprep.subr.bf16.mxu0 %v1424
    %2117 = vmatpush1.bf16.msra.mxu0 %v1423
    %2118 = vmatprep.subr.bf16.mxu0 %v1432
    %2119 = vmatpush1.bf16.msra.mxu0 %v1431
    %2120 = vmatprep.subr.bf16.mxu0 %v1440
    %2121 = vmatpush1.bf16.msra.mxu0 %v1439
    %2122 = vmatprep.subr.bf16.mxu0 %v1448
    %2123 = vmatpush1.bf16.msra.mxu0 %v1447
    %2124 = vmatprep.subr.bf16.mxu0 %v1456
    %2125 = vmatpush1.bf16.msra.mxu0 %v1455
    %2126 = vmatprep.subr.bf16.mxu0 %v1464
    %2127 = vmatpush1.bf16.msra.mxu0 %v1463
    %2128 = vmatprep.subr.bf16.mxu0 %v1472
    %2129 = vmatpush1.bf16.msra.mxu0 %v1471
    %2130 = vmatprep.subr.bf16.mxu0 %v1480
    %2131 = vmatpush1.bf16.msra.mxu0 %v1479
    %2132 = vmatprep.subr.bf16.mxu0 %v1488
    %2133 = vmatpush1.bf16.msra.mxu0 %v1487
    %2134 = vmatprep.mubr.bf16.mxu0 %v162
    %2135 = vmatmul.mubr.bf16.gmra.mrb[0].mxu0 %v161
    %v2136 = vpop.f32.mrb[0].mxu0
    %v2137 = vadd.f32 %v2086, %v2136
    %v2138 = vpop.f32.mrb[0].mxu0
    %v2139 = vadd.f32 %v2088, %v2138
    %v2140 = vpop.f32.mrb[0].mxu0
    %v2141 = vadd.f32 %v2090, %v2140
    %v2142 = vpop.f32.mrb[0].mxu0
    %v2143 = vadd.f32 %v2092, %v2142
    %2144 = vmatprep.mubr.bf16.mxu0 %v166
    %2145 = vmatmul.mubr.bf16.gmra.mrb[0].mxu0 %v165
    %v2146 = vpop.f32.mrb[0].mxu0
    %v2147 = vadd.f32 %v2096, %v2146
    %v2148 = vpop.f32.mrb[0].mxu0
    %v2149 = vadd.f32 %v2098, %v2148
    %v2150 = vpop.f32.mrb[0].mxu0
    %v2151 = vpop.f32.mrb[0].mxu0
    %2152 = vdwg.mxu0
    %v2153 = vmax.f32 %v1831, 0.0
    %v2154 = vmax.f32 %v1833, 0.0
    %v2155 = vmax.f32 %v1933, 0.0
    %v2156 = vmax.f32 %v1935, 0.0
    %v2157 = vmax.f32 %v2035, 0.0
    %v2158 = vmax.f32 %v2037, 0.0
    %v2159 = vmax.f32 %v2137, 0.0
    %v2160 = vmax.f32 %v2139, 0.0
    %v2161 = vmax.f32 %v1835, 0.0
    %v2162 = vmax.f32 %v1837, 0.0
    %v2163 = vmax.f32 %v1937, 0.0
    %v2164 = vmax.f32 %v1939, 0.0
    %v2165 = vmax.f32 %v2039, 0.0
    %v2166 = vmax.f32 %v2041, 0.0
    %v2167 = vmax.f32 %v2141, 0.0
    %v2168 = vmax.f32 %v2143, 0.0
    %v2169 = vmax.f32 %v1841, 0.0
    %v2170 = vmax.f32 %v1843, 0.0
    %v2171 = vmax.f32 %v1943, 0.0
    %v2172 = vmax.f32 %v1945, 0.0
    %v2173 = vmax.f32 %v2045, 0.0
    %v2174 = vmax.f32 %v2047, 0.0
    %v2175 = vmax.f32 %v2147, 0.0
    %v2176 = vmax.f32 %v2149, 0.0
    %v2177 = vpack.c.bf16 %v2161, %v2153
    %v2178 = vpack.c.bf16 %v2162, %v2154
    %v2179 = vpack.c.bf16 %v2163, %v2155
    %v2180 = vpack.c.bf16 %v2164, %v2156
    %v2181 = vpack.c.bf16 %v2165, %v2157
    %v2182 = vpack.c.bf16 %v2166, %v2158
    %v2183 = vpack.c.bf16 %v2167, %v2159
    %v2184 = vpack.c.bf16 %v2168, %v2160
    %v2185 = vpack.c.bf16 %v2169, %v2169
    %v2186 = vpack.c.bf16 %v2170, %v2170
    %v2187 = vpack.c.bf16 %v2171, %v2171
    %v2188 = vpack.c.bf16 %v2172, %v2172
    %v2189 = vpack.c.bf16 %v2173, %v2173
    %v2190 = vpack.c.bf16 %v2174, %v2174
    %v2191 = vpack.c.bf16 %v2175, %v2175
    %v2192 = vpack.c.bf16 %v2176, %v2176
    %v2193 = vld [vmem:[#allocation11] sm:$0xff]
    %v2194 = vld [vmem:[#allocation11 + $0x8] sm:$0xff]
    %v2195 = vld [vmem:[#allocation11 + $0x10] sm:$0xff]
    %v2196 = vld [vmem:[#allocation11 + $0x18] sm:$0xff]
    %v2197 = vld [vmem:[#allocation11 + $0x20] sm:$0xff]
    %v2198 = vld [vmem:[#allocation11 + $0x28] sm:$0xff]
    %v2199 = vld [vmem:[#allocation11 + $0x30] sm:$0xff]
    %v2200 = vld [vmem:[#allocation11 + $0x38] sm:$0xff]
    %v2201 = vld [vmem:[#allocation11 + $0x40] sm:$0xff]
    %v2202 = vld [vmem:[#allocation11 + $0x48] sm:$0xff]
    %v2203 = vld [vmem:[#allocation11 + $0x50] sm:$0xff]
    %v2204 = vld [vmem:[#allocation11 + $0x58] sm:$0xff]
    %v2205 = vld [vmem:[#allocation11 + $0x60] sm:$0xff]
    %v2206 = vld [vmem:[#allocation11 + $0x68] sm:$0xff]
    %v2207 = vld [vmem:[#allocation11 + $0x70] sm:$0xff]
    %v2208 = vld [vmem:[#allocation11 + $0x78] sm:$0xff]
    %v2209 = vld [vmem:[#allocation11 + $0x80] sm:$0xff]
    %v2210 = vld [vmem:[#allocation11 + $0x88] sm:$0xff]
    %v2211 = vld [vmem:[#allocation11 + $0x90] sm:$0xff]
    %v2212 = vld [vmem:[#allocation11 + $0x98] sm:$0xff]
    %v2213 = vld [vmem:[#allocation11 + $0xa0] sm:$0xff]
    %v2214 = vld [vmem:[#allocation11 + $0xa8] sm:$0xff]
    %v2215 = vld [vmem:[#allocation11 + $0xb0] sm:$0xff]
    %v2216 = vld [vmem:[#allocation11 + $0xb8] sm:$0xff]
    %v2217 = vld [vmem:[#allocation11 + $0xc0] sm:$0xff]
    %v2218 = vld [vmem:[#allocation11 + $0xc8] sm:$0xff]
    %v2219 = vld [vmem:[#allocation11 + $0xd0] sm:$0xff]
    %v2220 = vld [vmem:[#allocation11 + $0xd8] sm:$0xff]
    %v2221 = vld [vmem:[#allocation11 + $0xe0] sm:$0xff]
    %v2222 = vld [vmem:[#allocation11 + $0xe8] sm:$0xff]
    %v2223 = vld [vmem:[#allocation11 + $0xf0] sm:$0xff]
    %v2224 = vld [vmem:[#allocation11 + $0xf8] sm:$0xff]
    %v2225 = vld [vmem:[#allocation11 + $0x100] sm:$0xff]
    %v2226 = vld [vmem:[#allocation11 + $0x108] sm:$0xff]
    %v2227 = vld [vmem:[#allocation11 + $0x110] sm:$0xff]
    %v2228 = vld [vmem:[#allocation11 + $0x118] sm:$0xff]
    %v2229 = vld [vmem:[#allocation11 + $0x120] sm:$0xff]
    %v2230 = vld [vmem:[#allocation11 + $0x128] sm:$0xff]
    %v2231 = vld [vmem:[#allocation11 + $0x130] sm:$0xff]
    %v2232 = vld [vmem:[#allocation11 + $0x138] sm:$0xff]
    %v2233 = vld [vmem:[#allocation11 + $0x140] sm:$0xff]
    %v2234 = vld [vmem:[#allocation11 + $0x148] sm:$0xff]
    %v2235 = vld [vmem:[#allocation11 + $0x150] sm:$0xff]
    %v2236 = vld [vmem:[#allocation11 + $0x158] sm:$0xff]
    %v2237 = vld [vmem:[#allocation11 + $0x160] sm:$0xff]
    %v2238 = vld [vmem:[#allocation11 + $0x168] sm:$0xff]
    %v2239 = vld [vmem:[#allocation11 + $0x170] sm:$0xff]
    %v2240 = vld [vmem:[#allocation11 + $0x178] sm:$0xff]
    %v2241 = vld [vmem:[#allocation11 + $0x180] sm:$0xff]
    %v2242 = vld [vmem:[#allocation11 + $0x188] sm:$0xff]
    %v2243 = vld [vmem:[#allocation11 + $0x190] sm:$0xff]
    %v2244 = vld [vmem:[#allocation11 + $0x198] sm:$0xff]
    %v2245 = vld [vmem:[#allocation11 + $0x1a0] sm:$0xff]
    %v2246 = vld [vmem:[#allocation11 + $0x1a8] sm:$0xff]
    %v2247 = vld [vmem:[#allocation11 + $0x1b0] sm:$0xff]
    %v2248 = vld [vmem:[#allocation11 + $0x1b8] sm:$0xff]
    %v2249 = vld [vmem:[#allocation11 + $0x1c0] sm:$0xff]
    %v2250 = vld [vmem:[#allocation11 + $0x1c8] sm:$0xff]
    %v2251 = vld [vmem:[#allocation11 + $0x1d0] sm:$0xff]
    %v2252 = vld [vmem:[#allocation11 + $0x1d8] sm:$0xff]
    %v2253 = vld [vmem:[#allocation11 + $0x1e0] sm:$0xff]
    %v2254 = vld [vmem:[#allocation11 + $0x1e8] sm:$0xff]
    %v2255 = vld [vmem:[#allocation11 + $0x1f0] sm:$0xff]
    %v2256 = vld [vmem:[#allocation11 + $0x1f8] sm:$0xff]
    %v2257 = vld [vmem:[#allocation11 + $0x200] sm:$0xff]
    %v2258 = vld [vmem:[#allocation11 + $0x208] sm:$0xff]
    %v2259 = vld [vmem:[#allocation11 + $0x210] sm:$0xff]
    %v2260 = vld [vmem:[#allocation11 + $0x218] sm:$0xff]
    %v2261 = vld [vmem:[#allocation11 + $0x220] sm:$0xff]
    %v2262 = vld [vmem:[#allocation11 + $0x228] sm:$0xff]
    %v2263 = vld [vmem:[#allocation11 + $0x230] sm:$0xff]
    %v2264 = vld [vmem:[#allocation11 + $0x238] sm:$0xff]
    %v2265 = vld [vmem:[#allocation11 + $0x240] sm:$0xff]
    %v2266 = vld [vmem:[#allocation11 + $0x248] sm:$0xff]
    %v2267 = vld [vmem:[#allocation11 + $0x250] sm:$0xff]
    %v2268 = vld [vmem:[#allocation11 + $0x258] sm:$0xff]
    %v2269 = vld [vmem:[#allocation11 + $0x260] sm:$0xff]
    %v2270 = vld [vmem:[#allocation11 + $0x268] sm:$0xff]
    %v2271 = vld [vmem:[#allocation11 + $0x270] sm:$0xff]
    %v2272 = vld [vmem:[#allocation11 + $0x278] sm:$0xff]
    %v2273 = vld [vmem:[#allocation11 + $0x280] sm:$0xff]
    %v2274 = vld [vmem:[#allocation11 + $0x288] sm:$0xff]
    %v2275 = vld [vmem:[#allocation11 + $0x290] sm:$0xff]
    %v2276 = vld [vmem:[#allocation11 + $0x298] sm:$0xff]
    %v2277 = vld [vmem:[#allocation11 + $0x2a0] sm:$0xff]
    %v2278 = vld [vmem:[#allocation11 + $0x2a8] sm:$0xff]
    %v2279 = vld [vmem:[#allocation11 + $0x2b0] sm:$0xff]
    %v2280 = vld [vmem:[#allocation11 + $0x2b8] sm:$0xff]
    %v2281 = vld [vmem:[#allocation11 + $0x2c0] sm:$0xff]
    %v2282 = vld [vmem:[#allocation11 + $0x2c8] sm:$0xff]
    %v2283 = vld [vmem:[#allocation11 + $0x2d0] sm:$0xff]
    %v2284 = vld [vmem:[#allocation11 + $0x2d8] sm:$0xff]
    %v2285 = vld [vmem:[#allocation11 + $0x2e0] sm:$0xff]
    %v2286 = vld [vmem:[#allocation11 + $0x2e8] sm:$0xff]
    %v2287 = vld [vmem:[#allocation11 + $0x2f0] sm:$0xff]
    %v2288 = vld [vmem:[#allocation11 + $0x2f8] sm:$0xff]
    %v2289 = vld [vmem:[#allocation11 + $0x300] sm:$0xff]
    %v2290 = vld [vmem:[#allocation11 + $0x308] sm:$0xff]
    %v2291 = vld [vmem:[#allocation11 + $0x310] sm:$0xff]
    %v2292 = vld [vmem:[#allocation11 + $0x318] sm:$0xff]
    %v2293 = vld [vmem:[#allocation11 + $0x320] sm:$0xff]
    %v2294 = vld [vmem:[#allocation11 + $0x328] sm:$0xff]
    %v2295 = vld [vmem:[#allocation11 + $0x330] sm:$0xff]
    %v2296 = vld [vmem:[#allocation11 + $0x338] sm:$0xff]
    %v2297 = vld [vmem:[#allocation11 + $0x340] sm:$0xff]
    %v2298 = vld [vmem:[#allocation11 + $0x348] sm:$0xff]
    %v2299 = vld [vmem:[#allocation11 + $0x350] sm:$0xff]
    %v2300 = vld [vmem:[#allocation11 + $0x358] sm:$0xff]
    %v2301 = vld [vmem:[#allocation11 + $0x360] sm:$0xff]
    %v2302 = vld [vmem:[#allocation11 + $0x368] sm:$0xff]
    %v2303 = vld [vmem:[#allocation11 + $0x370] sm:$0xff]
    %v2304 = vld [vmem:[#allocation11 + $0x378] sm:$0xff]
    %v2305 = vld [vmem:[#allocation11 + $0x380] sm:$0xff]
    %v2306 = vld [vmem:[#allocation11 + $0x388] sm:$0xff]
    %v2307 = vld [vmem:[#allocation11 + $0x390] sm:$0xff]
    %v2308 = vld [vmem:[#allocation11 + $0x398] sm:$0xff]
    %v2309 = vld [vmem:[#allocation11 + $0x3a0] sm:$0xff]
    %v2310 = vld [vmem:[#allocation11 + $0x3a8] sm:$0xff]
    %v2311 = vld [vmem:[#allocation11 + $0x3b0] sm:$0xff]
    %v2312 = vld [vmem:[#allocation11 + $0x3b8] sm:$0xff]
    %v2313 = vld [vmem:[#allocation11 + $0x3c0] sm:$0xff]
    %v2314 = vld [vmem:[#allocation11 + $0x3c8] sm:$0xff]
    %v2315 = vld [vmem:[#allocation11 + $0x3d0] sm:$0xff]
    %v2316 = vld [vmem:[#allocation11 + $0x3d8] sm:$0xff]
    %v2317 = vld [vmem:[#allocation11 + $0x3e0] sm:$0xff]
    %v2318 = vld [vmem:[#allocation11 + $0x3e8] sm:$0xff]
    %v2319 = vld [vmem:[#allocation11 + $0x3f0] sm:$0xff]
    %v2320 = vld [vmem:[#allocation11 + $0x3f8] sm:$0xff]
    %v2321 = vld [vmem:[#allocation11 + $0x400] sm:$0xff]
    %v2322 = vld [vmem:[#allocation11 + $0x408] sm:$0xff]
    %v2323 = vld [vmem:[#allocation11 + $0x410] sm:$0xff]
    %v2324 = vld [vmem:[#allocation11 + $0x418] sm:$0xff]
    %v2325 = vld [vmem:[#allocation11 + $0x420] sm:$0xff]
    %v2326 = vld [vmem:[#allocation11 + $0x428] sm:$0xff]
    %v2327 = vld [vmem:[#allocation11 + $0x430] sm:$0xff]
    %v2328 = vld [vmem:[#allocation11 + $0x438] sm:$0xff]
    %v2329 = vld [vmem:[#allocation11 + $0x440] sm:$0xff]
    %v2330 = vld [vmem:[#allocation11 + $0x448] sm:$0xff]
    %v2331 = vld [vmem:[#allocation11 + $0x450] sm:$0xff]
    %v2332 = vld [vmem:[#allocation11 + $0x458] sm:$0xff]
    %v2333 = vld [vmem:[#allocation11 + $0x460] sm:$0xff]
    %v2334 = vld [vmem:[#allocation11 + $0x468] sm:$0xff]
    %v2335 = vld [vmem:[#allocation11 + $0x470] sm:$0xff]
    %v2336 = vld [vmem:[#allocation11 + $0x478] sm:$0xff]
    %v2337 = vld [vmem:[#allocation11 + $0x480] sm:$0xff]
    %v2338 = vld [vmem:[#allocation11 + $0x488] sm:$0xff]
    %v2339 = vld [vmem:[#allocation11 + $0x490] sm:$0xff]
    %v2340 = vld [vmem:[#allocation11 + $0x498] sm:$0xff]
    %v2341 = vld [vmem:[#allocation11 + $0x4a0] sm:$0xff]
    %v2342 = vld [vmem:[#allocation11 + $0x4a8] sm:$0xff]
    %v2343 = vld [vmem:[#allocation11 + $0x4b0] sm:$0xff]
    %v2344 = vld [vmem:[#allocation11 + $0x4b8] sm:$0xff]
    %v2345 = vld [vmem:[#allocation11 + $0x4c0] sm:$0xff]
    %v2346 = vld [vmem:[#allocation11 + $0x4c8] sm:$0xff]
    %v2347 = vld [vmem:[#allocation11 + $0x4d0] sm:$0xff]
    %v2348 = vld [vmem:[#allocation11 + $0x4d8] sm:$0xff]
    %v2349 = vld [vmem:[#allocation11 + $0x4e0] sm:$0xff]
    %v2350 = vld [vmem:[#allocation11 + $0x4e8] sm:$0xff]
    %v2351 = vld [vmem:[#allocation11 + $0x4f0] sm:$0xff]
    %v2352 = vld [vmem:[#allocation11 + $0x4f8] sm:$0xff]
    %v2353 = vld [vmem:[#allocation11 + $0x500] sm:$0xff]
    %v2354 = vld [vmem:[#allocation11 + $0x508] sm:$0xff]
    %v2355 = vld [vmem:[#allocation11 + $0x510] sm:$0xff]
    %v2356 = vld [vmem:[#allocation11 + $0x518] sm:$0xff]
    %v2357 = vld [vmem:[#allocation11 + $0x520] sm:$0xff]
    %v2358 = vld [vmem:[#allocation11 + $0x528] sm:$0xff]
    %v2359 = vld [vmem:[#allocation11 + $0x530] sm:$0xff]
    %v2360 = vld [vmem:[#allocation11 + $0x538] sm:$0xff]
    %v2361 = vld [vmem:[#allocation11 + $0x540] sm:$0xff]
    %v2362 = vld [vmem:[#allocation11 + $0x548] sm:$0xff]
    %v2363 = vld [vmem:[#allocation11 + $0x550] sm:$0xff]
    %v2364 = vld [vmem:[#allocation11 + $0x558] sm:$0xff]
    %v2365 = vld [vmem:[#allocation11 + $0x560] sm:$0xff]
    %v2366 = vld [vmem:[#allocation11 + $0x568] sm:$0xff]
    %v2367 = vld [vmem:[#allocation11 + $0x570] sm:$0xff]
    %v2368 = vld [vmem:[#allocation11 + $0x578] sm:$0xff]
    %v2369 = vld [vmem:[#allocation11 + $0x580] sm:$0xff]
    %v2370 = vld [vmem:[#allocation11 + $0x588] sm:$0xff]
    %v2371 = vld [vmem:[#allocation11 + $0x590] sm:$0xff]
    %v2372 = vld [vmem:[#allocation11 + $0x598] sm:$0xff]
    %v2373 = vld [vmem:[#allocation11 + $0x5a0] sm:$0xff]
    %v2374 = vld [vmem:[#allocation11 + $0x5a8] sm:$0xff]
    %v2375 = vld [vmem:[#allocation11 + $0x5b0] sm:$0xff]
    %v2376 = vld [vmem:[#allocation11 + $0x5b8] sm:$0xff]
    %v2377 = vld [vmem:[#allocation11 + $0x5c0] sm:$0xff]
    %v2378 = vld [vmem:[#allocation11 + $0x5c8] sm:$0xff]
    %v2379 = vld [vmem:[#allocation11 + $0x5d0] sm:$0xff]
    %v2380 = vld [vmem:[#allocation11 + $0x5d8] sm:$0xff]
    %v2381 = vld [vmem:[#allocation11 + $0x5e0] sm:$0xff]
    %v2382 = vld [vmem:[#allocation11 + $0x5e8] sm:$0xff]
    %v2383 = vld [vmem:[#allocation11 + $0x5f0] sm:$0xff]
    %v2384 = vld [vmem:[#allocation11 + $0x5f8] sm:$0xff]
    %v2385 = vld [vmem:[#allocation11 + $0x600] sm:$0xff]
    %v2386 = vld [vmem:[#allocation11 + $0x608] sm:$0xff]
    %v2387 = vld [vmem:[#allocation11 + $0x610] sm:$0xff]
    %v2388 = vld [vmem:[#allocation11 + $0x618] sm:$0xff]
    %v2389 = vld [vmem:[#allocation11 + $0x620] sm:$0xff]
    %v2390 = vld [vmem:[#allocation11 + $0x628] sm:$0xff]
    %v2391 = vld [vmem:[#allocation11 + $0x630] sm:$0xff]
    %v2392 = vld [vmem:[#allocation11 + $0x638] sm:$0xff]
    %v2393 = vld [vmem:[#allocation11 + $0x640] sm:$0xff]
    %v2394 = vld [vmem:[#allocation11 + $0x648] sm:$0xff]
    %v2395 = vld [vmem:[#allocation11 + $0x650] sm:$0xff]
    %v2396 = vld [vmem:[#allocation11 + $0x658] sm:$0xff]
    %v2397 = vld [vmem:[#allocation11 + $0x660] sm:$0xff]
    %v2398 = vld [vmem:[#allocation11 + $0x668] sm:$0xff]
    %v2399 = vld [vmem:[#allocation11 + $0x670] sm:$0xff]
    %v2400 = vld [vmem:[#allocation11 + $0x678] sm:$0xff]
    %v2401 = vld [vmem:[#allocation11 + $0x680] sm:$0xff]
    %v2402 = vld [vmem:[#allocation11 + $0x688] sm:$0xff]
    %v2403 = vld [vmem:[#allocation11 + $0x690] sm:$0xff]
    %v2404 = vld [vmem:[#allocation11 + $0x698] sm:$0xff]
    %v2405 = vld [vmem:[#allocation11 + $0x6a0] sm:$0xff]
    %v2406 = vld [vmem:[#allocation11 + $0x6a8] sm:$0xff]
    %v2407 = vld [vmem:[#allocation11 + $0x6b0] sm:$0xff]
    %v2408 = vld [vmem:[#allocation11 + $0x6b8] sm:$0xff]
    %v2409 = vld [vmem:[#allocation11 + $0x6c0] sm:$0xff]
    %v2410 = vld [vmem:[#allocation11 + $0x6c8] sm:$0xff]
    %v2411 = vld [vmem:[#allocation11 + $0x6d0] sm:$0xff]
    %v2412 = vld [vmem:[#allocation11 + $0x6d8] sm:$0xff]
    %v2413 = vld [vmem:[#allocation11 + $0x6e0] sm:$0xff]
    %v2414 = vld [vmem:[#allocation11 + $0x6e8] sm:$0xff]
    %v2415 = vld [vmem:[#allocation11 + $0x6f0] sm:$0xff]
    %v2416 = vld [vmem:[#allocation11 + $0x6f8] sm:$0xff]
    %v2417 = vld [vmem:[#allocation11 + $0x700] sm:$0xff]
    %v2418 = vld [vmem:[#allocation11 + $0x708] sm:$0xff]
    %v2419 = vld [vmem:[#allocation11 + $0x710] sm:$0xff]
    %v2420 = vld [vmem:[#allocation11 + $0x718] sm:$0xff]
    %v2421 = vld [vmem:[#allocation11 + $0x720] sm:$0xff]
    %v2422 = vld [vmem:[#allocation11 + $0x728] sm:$0xff]
    %v2423 = vld [vmem:[#allocation11 + $0x730] sm:$0xff]
    %v2424 = vld [vmem:[#allocation11 + $0x738] sm:$0xff]
    %v2425 = vld [vmem:[#allocation11 + $0x740] sm:$0xff]
    %v2426 = vld [vmem:[#allocation11 + $0x748] sm:$0xff]
    %v2427 = vld [vmem:[#allocation11 + $0x750] sm:$0xff]
    %v2428 = vld [vmem:[#allocation11 + $0x758] sm:$0xff]
    %v2429 = vld [vmem:[#allocation11 + $0x760] sm:$0xff]
    %v2430 = vld [vmem:[#allocation11 + $0x768] sm:$0xff]
    %v2431 = vld [vmem:[#allocation11 + $0x770] sm:$0xff]
    %v2432 = vld [vmem:[#allocation11 + $0x778] sm:$0xff]
    %v2433 = vld [vmem:[#allocation11 + $0x780] sm:$0xff]
    %v2434 = vld [vmem:[#allocation11 + $0x788] sm:$0xff]
    %v2435 = vld [vmem:[#allocation11 + $0x790] sm:$0xff]
    %v2436 = vld [vmem:[#allocation11 + $0x798] sm:$0xff]
    %v2437 = vld [vmem:[#allocation11 + $0x7a0] sm:$0xff]
    %v2438 = vld [vmem:[#allocation11 + $0x7a8] sm:$0xff]
    %v2439 = vld [vmem:[#allocation11 + $0x7b0] sm:$0xff]
    %v2440 = vld [vmem:[#allocation11 + $0x7b8] sm:$0xff]
    %v2441 = vld [vmem:[#allocation11 + $0x7c0] sm:$0xff]
    %v2442 = vld [vmem:[#allocation11 + $0x7c8] sm:$0xff]
    %v2443 = vld [vmem:[#allocation11 + $0x7d0] sm:$0xff]
    %v2444 = vld [vmem:[#allocation11 + $0x7d8] sm:$0xff]
    %v2445 = vld [vmem:[#allocation11 + $0x7e0] sm:$0xff]
    %v2446 = vld [vmem:[#allocation11 + $0x7e8] sm:$0xff]
    %v2447 = vld [vmem:[#allocation11 + $0x7f0] sm:$0xff]
    %v2448 = vld [vmem:[#allocation11 + $0x7f8] sm:$0xff]
    %v2449 = vld [vmem:[#allocation11 + $0x800] sm:$0xff]
    %v2450 = vld [vmem:[#allocation11 + $0x808] sm:$0xff]
    %v2451 = vld [vmem:[#allocation11 + $0x810] sm:$0xff]
    %v2452 = vld [vmem:[#allocation11 + $0x818] sm:$0xff]
    %v2453 = vld [vmem:[#allocation11 + $0x820] sm:$0xff]
    %v2454 = vld [vmem:[#allocation11 + $0x828] sm:$0xff]
    %v2455 = vld [vmem:[#allocation11 + $0x830] sm:$0xff]
    %v2456 = vld [vmem:[#allocation11 + $0x838] sm:$0xff]
    %v2457 = vld [vmem:[#allocation11 + $0x840] sm:$0xff]
    %v2458 = vld [vmem:[#allocation11 + $0x848] sm:$0xff]
    %v2459 = vld [vmem:[#allocation11 + $0x850] sm:$0xff]
    %v2460 = vld [vmem:[#allocation11 + $0x858] sm:$0xff]
    %v2461 = vld [vmem:[#allocation11 + $0x860] sm:$0xff]
    %v2462 = vld [vmem:[#allocation11 + $0x868] sm:$0xff]
    %v2463 = vld [vmem:[#allocation11 + $0x870] sm:$0xff]
    %v2464 = vld [vmem:[#allocation11 + $0x878] sm:$0xff]
    %v2465 = vld [vmem:[#allocation11 + $0x880] sm:$0xff]
    %v2466 = vld [vmem:[#allocation11 + $0x888] sm:$0xff]
    %v2467 = vld [vmem:[#allocation11 + $0x890] sm:$0xff]
    %v2468 = vld [vmem:[#allocation11 + $0x898] sm:$0xff]
    %v2469 = vld [vmem:[#allocation11 + $0x8a0] sm:$0xff]
    %v2470 = vld [vmem:[#allocation11 + $0x8a8] sm:$0xff]
    %v2471 = vld [vmem:[#allocation11 + $0x8b0] sm:$0xff]
    %v2472 = vld [vmem:[#allocation11 + $0x8b8] sm:$0xff]
    %v2473 = vld [vmem:[#allocation11 + $0x8c0] sm:$0xff]
    %v2474 = vld [vmem:[#allocation11 + $0x8c8] sm:$0xff]
    %v2475 = vld [vmem:[#allocation11 + $0x8d0] sm:$0xff]
    %v2476 = vld [vmem:[#allocation11 + $0x8d8] sm:$0xff]
    %v2477 = vld [vmem:[#allocation11 + $0x8e0] sm:$0xff]
    %v2478 = vld [vmem:[#allocation11 + $0x8e8] sm:$0xff]
    %v2479 = vld [vmem:[#allocation11 + $0x8f0] sm:$0xff]
    %v2480 = vld [vmem:[#allocation11 + $0x8f8] sm:$0xff]
    %v2481 = vld [vmem:[#allocation11 + $0x900] sm:$0xff]
    %v2482 = vld [vmem:[#allocation11 + $0x908] sm:$0xff]
    %v2483 = vld [vmem:[#allocation11 + $0x910] sm:$0xff]
    %v2484 = vld [vmem:[#allocation11 + $0x918] sm:$0xff]
    %v2485 = vld [vmem:[#allocation11 + $0x920] sm:$0xff]
    %v2486 = vld [vmem:[#allocation11 + $0x928] sm:$0xff]
    %v2487 = vld [vmem:[#allocation11 + $0x930] sm:$0xff]
    %v2488 = vld [vmem:[#allocation11 + $0x938] sm:$0xff]
    %v2489 = vld [vmem:[#allocation11 + $0x940] sm:$0xff]
    %v2490 = vld [vmem:[#allocation11 + $0x948] sm:$0xff]
    %v2491 = vld [vmem:[#allocation11 + $0x950] sm:$0xff]
    %v2492 = vld [vmem:[#allocation11 + $0x958] sm:$0xff]
    %v2493 = vld [vmem:[#allocation11 + $0x960] sm:$0xff]
    %v2494 = vld [vmem:[#allocation11 + $0x968] sm:$0xff]
    %v2495 = vld [vmem:[#allocation11 + $0x970] sm:$0xff]
    %v2496 = vld [vmem:[#allocation11 + $0x978] sm:$0xff]
    %v2497 = vld [vmem:[#allocation11 + $0x980] sm:$0xff]
    %v2498 = vld [vmem:[#allocation11 + $0x988] sm:$0xff]
    %v2499 = vld [vmem:[#allocation11 + $0x990] sm:$0xff]
    %v2500 = vld [vmem:[#allocation11 + $0x998] sm:$0xff]
    %v2501 = vld [vmem:[#allocation11 + $0x9a0] sm:$0xff]
    %v2502 = vld [vmem:[#allocation11 + $0x9a8] sm:$0xff]
    %v2503 = vld [vmem:[#allocation11 + $0x9b0] sm:$0xff]
    %v2504 = vld [vmem:[#allocation11 + $0x9b8] sm:$0xff]
    %v2505 = vld [vmem:[#allocation11 + $0x9c0] sm:$0xff]
    %v2506 = vld [vmem:[#allocation11 + $0x9c8] sm:$0xff]
    %v2507 = vld [vmem:[#allocation11 + $0x9d0] sm:$0xff]
    %v2508 = vld [vmem:[#allocation11 + $0x9d8] sm:$0xff]
    %v2509 = vld [vmem:[#allocation11 + $0x9e0] sm:$0xff]
    %v2510 = vld [vmem:[#allocation11 + $0x9e8] sm:$0xff]
    %v2511 = vld [vmem:[#allocation11 + $0x9f0] sm:$0xff]
    %v2512 = vld [vmem:[#allocation11 + $0x9f8] sm:$0xff]
    %v2513 = vld [vmem:[#allocation11 + $0xa00] sm:$0xff]
    %v2514 = vld [vmem:[#allocation11 + $0xa08] sm:$0xff]
    %v2515 = vld [vmem:[#allocation11 + $0xa10] sm:$0xff]
    %v2516 = vld [vmem:[#allocation11 + $0xa18] sm:$0xff]
    %v2517 = vld [vmem:[#allocation11 + $0xa20] sm:$0xff]
    %v2518 = vld [vmem:[#allocation11 + $0xa28] sm:$0xff]
    %v2519 = vld [vmem:[#allocation11 + $0xa30] sm:$0xff]
    %v2520 = vld [vmem:[#allocation11 + $0xa38] sm:$0xff]
    %v2521 = vld [vmem:[#allocation11 + $0xa40] sm:$0xff]
    %v2522 = vld [vmem:[#allocation11 + $0xa48] sm:$0xff]
    %v2523 = vld [vmem:[#allocation11 + $0xa50] sm:$0xff]
    %v2524 = vld [vmem:[#allocation11 + $0xa58] sm:$0xff]
    %v2525 = vld [vmem:[#allocation11 + $0xa60] sm:$0xff]
    %v2526 = vld [vmem:[#allocation11 + $0xa68] sm:$0xff]
    %v2527 = vld [vmem:[#allocation11 + $0xa70] sm:$0xff]
    %v2528 = vld [vmem:[#allocation11 + $0xa78] sm:$0xff]
    %v2529 = vld [vmem:[#allocation11 + $0xa80] sm:$0xff]
    %v2530 = vld [vmem:[#allocation11 + $0xa88] sm:$0xff]
    %v2531 = vld [vmem:[#allocation11 + $0xa90] sm:$0xff]
    %v2532 = vld [vmem:[#allocation11 + $0xa98] sm:$0xff]
    %v2533 = vld [vmem:[#allocation11 + $0xaa0] sm:$0xff]
    %v2534 = vld [vmem:[#allocation11 + $0xaa8] sm:$0xff]
    %v2535 = vld [vmem:[#allocation11 + $0xab0] sm:$0xff]
    %v2536 = vld [vmem:[#allocation11 + $0xab8] sm:$0xff]
    %v2537 = vld [vmem:[#allocation11 + $0xac0] sm:$0xff]
    %v2538 = vld [vmem:[#allocation11 + $0xac8] sm:$0xff]
    %v2539 = vld [vmem:[#allocation11 + $0xad0] sm:$0xff]
    %v2540 = vld [vmem:[#allocation11 + $0xad8] sm:$0xff]
    %v2541 = vld [vmem:[#allocation11 + $0xae0] sm:$0xff]
    %v2542 = vld [vmem:[#allocation11 + $0xae8] sm:$0xff]
    %v2543 = vld [vmem:[#allocation11 + $0xaf0] sm:$0xff]
    %v2544 = vld [vmem:[#allocation11 + $0xaf8] sm:$0xff]
    %v2545 = vld [vmem:[#allocation11 + $0xb00] sm:$0xff]
    %v2546 = vld [vmem:[#allocation11 + $0xb08] sm:$0xff]
    %v2547 = vld [vmem:[#allocation11 + $0xb10] sm:$0xff]
    %v2548 = vld [vmem:[#allocation11 + $0xb18] sm:$0xff]
    %v2549 = vld [vmem:[#allocation11 + $0xb20] sm:$0xff]
    %v2550 = vld [vmem:[#allocation11 + $0xb28] sm:$0xff]
    %v2551 = vld [vmem:[#allocation11 + $0xb30] sm:$0xff]
    %v2552 = vld [vmem:[#allocation11 + $0xb38] sm:$0xff]
    %v2553 = vld [vmem:[#allocation11 + $0xb40] sm:$0xff]
    %v2554 = vld [vmem:[#allocation11 + $0xb48] sm:$0xff]
    %v2555 = vld [vmem:[#allocation11 + $0xb50] sm:$0xff]
    %v2556 = vld [vmem:[#allocation11 + $0xb58] sm:$0xff]
    %v2557 = vld [vmem:[#allocation11 + $0xb60] sm:$0xff]
    %v2558 = vld [vmem:[#allocation11 + $0xb68] sm:$0xff]
    %v2559 = vld [vmem:[#allocation11 + $0xb70] sm:$0xff]
    %v2560 = vld [vmem:[#allocation11 + $0xb78] sm:$0xff]
    %v2561 = vld [vmem:[#allocation11 + $0xb80] sm:$0xff]
    %v2562 = vld [vmem:[#allocation11 + $0xb88] sm:$0xff]
    %v2563 = vld [vmem:[#allocation11 + $0xb90] sm:$0xff]
    %v2564 = vld [vmem:[#allocation11 + $0xb98] sm:$0xff]
    %v2565 = vld [vmem:[#allocation11 + $0xba0] sm:$0xff]
    %v2566 = vld [vmem:[#allocation11 + $0xba8] sm:$0xff]
    %v2567 = vld [vmem:[#allocation11 + $0xbb0] sm:$0xff]
    %v2568 = vld [vmem:[#allocation11 + $0xbb8] sm:$0xff]
    %v2569 = vld [vmem:[#allocation11 + $0xbc0] sm:$0xff]
    %v2570 = vld [vmem:[#allocation11 + $0xbc8] sm:$0xff]
    %v2571 = vld [vmem:[#allocation11 + $0xbd0] sm:$0xff]
    %v2572 = vld [vmem:[#allocation11 + $0xbd8] sm:$0xff]
    %v2573 = vld [vmem:[#allocation11 + $0xbe0] sm:$0xff]
    %v2574 = vld [vmem:[#allocation11 + $0xbe8] sm:$0xff]
    %v2575 = vld [vmem:[#allocation11 + $0xbf0] sm:$0xff]
    %v2576 = vld [vmem:[#allocation11 + $0xbf8] sm:$0xff]
    %v2577 = vld [vmem:[#allocation11 + $0xc00] sm:$0xff]
    %v2578 = vld [vmem:[#allocation11 + $0xc08] sm:$0xff]
    %v2579 = vld [vmem:[#allocation11 + $0xc10] sm:$0xff]
    %v2580 = vld [vmem:[#allocation11 + $0xc18] sm:$0xff]
    %v2581 = vld [vmem:[#allocation11 + $0xc20] sm:$0xff]
    %v2582 = vld [vmem:[#allocation11 + $0xc28] sm:$0xff]
    %v2583 = vld [vmem:[#allocation11 + $0xc30] sm:$0xff]
    %v2584 = vld [vmem:[#allocation11 + $0xc38] sm:$0xff]
    %v2585 = vld [vmem:[#allocation11 + $0xc40] sm:$0xff]
    %v2586 = vld [vmem:[#allocation11 + $0xc48] sm:$0xff]
    %v2587 = vld [vmem:[#allocation11 + $0xc50] sm:$0xff]
    %v2588 = vld [vmem:[#allocation11 + $0xc58] sm:$0xff]
    %v2589 = vld [vmem:[#allocation11 + $0xc60] sm:$0xff]
    %v2590 = vld [vmem:[#allocation11 + $0xc68] sm:$0xff]
    %v2591 = vld [vmem:[#allocation11 + $0xc70] sm:$0xff]
    %v2592 = vld [vmem:[#allocation11 + $0xc78] sm:$0xff]
    %v2593 = vld [vmem:[#allocation11 + $0xc80] sm:$0xff]
    %v2594 = vld [vmem:[#allocation11 + $0xc88] sm:$0xff]
    %v2595 = vld [vmem:[#allocation11 + $0xc90] sm:$0xff]
    %v2596 = vld [vmem:[#allocation11 + $0xc98] sm:$0xff]
    %v2597 = vld [vmem:[#allocation11 + $0xca0] sm:$0xff]
    %v2598 = vld [vmem:[#allocation11 + $0xca8] sm:$0xff]
    %v2599 = vld [vmem:[#allocation11 + $0xcb0] sm:$0xff]
    %v2600 = vld [vmem:[#allocation11 + $0xcb8] sm:$0xff]
    %v2601 = vld [vmem:[#allocation11 + $0xcc0] sm:$0xff]
    %v2602 = vld [vmem:[#allocation11 + $0xcc8] sm:$0xff]
    %v2603 = vld [vmem:[#allocation11 + $0xcd0] sm:$0xff]
    %v2604 = vld [vmem:[#allocation11 + $0xcd8] sm:$0xff]
    %v2605 = vld [vmem:[#allocation11 + $0xce0] sm:$0xff]
    %v2606 = vld [vmem:[#allocation11 + $0xce8] sm:$0xff]
    %v2607 = vld [vmem:[#allocation11 + $0xcf0] sm:$0xff]
    %v2608 = vld [vmem:[#allocation11 + $0xcf8] sm:$0xff]
    %v2609 = vld [vmem:[#allocation11 + $0xd00] sm:$0xff]
    %v2610 = vld [vmem:[#allocation11 + $0xd08] sm:$0xff]
    %v2611 = vld [vmem:[#allocation11 + $0xd10] sm:$0xff]
    %v2612 = vld [vmem:[#allocation11 + $0xd18] sm:$0xff]
    %v2613 = vld [vmem:[#allocation11 + $0xd20] sm:$0xff]
    %v2614 = vld [vmem:[#allocation11 + $0xd28] sm:$0xff]
    %v2615 = vld [vmem:[#allocation11 + $0xd30] sm:$0xff]
    %v2616 = vld [vmem:[#allocation11 + $0xd38] sm:$0xff]
    %v2617 = vld [vmem:[#allocation11 + $0xd40] sm:$0xff]
    %v2618 = vld [vmem:[#allocation11 + $0xd48] sm:$0xff]
    %v2619 = vld [vmem:[#allocation11 + $0xd50] sm:$0xff]
    %v2620 = vld [vmem:[#allocation11 + $0xd58] sm:$0xff]
    %v2621 = vld [vmem:[#allocation11 + $0xd60] sm:$0xff]
    %v2622 = vld [vmem:[#allocation11 + $0xd68] sm:$0xff]
    %v2623 = vld [vmem:[#allocation11 + $0xd70] sm:$0xff]
    %v2624 = vld [vmem:[#allocation11 + $0xd78] sm:$0xff]
    %v2625 = vld [vmem:[#allocation11 + $0xd80] sm:$0xff]
    %v2626 = vld [vmem:[#allocation11 + $0xd88] sm:$0xff]
    %v2627 = vld [vmem:[#allocation11 + $0xd90] sm:$0xff]
    %v2628 = vld [vmem:[#allocation11 + $0xd98] sm:$0xff]
    %v2629 = vld [vmem:[#allocation11 + $0xda0] sm:$0xff]
    %v2630 = vld [vmem:[#allocation11 + $0xda8] sm:$0xff]
    %v2631 = vld [vmem:[#allocation11 + $0xdb0] sm:$0xff]
    %v2632 = vld [vmem:[#allocation11 + $0xdb8] sm:$0xff]
    %v2633 = vld [vmem:[#allocation11 + $0xdc0] sm:$0xff]
    %v2634 = vld [vmem:[#allocation11 + $0xdc8] sm:$0xff]
    %v2635 = vld [vmem:[#allocation11 + $0xdd0] sm:$0xff]
    %v2636 = vld [vmem:[#allocation11 + $0xdd8] sm:$0xff]
    %v2637 = vld [vmem:[#allocation11 + $0xde0] sm:$0xff]
    %v2638 = vld [vmem:[#allocation11 + $0xde8] sm:$0xff]
    %v2639 = vld [vmem:[#allocation11 + $0xdf0] sm:$0xff]
    %v2640 = vld [vmem:[#allocation11 + $0xdf8] sm:$0xff]
    %v2641 = vld [vmem:[#allocation11 + $0xe00] sm:$0xff]
    %v2642 = vld [vmem:[#allocation11 + $0xe08] sm:$0xff]
    %v2643 = vld [vmem:[#allocation11 + $0xe10] sm:$0xff]
    %v2644 = vld [vmem:[#allocation11 + $0xe18] sm:$0xff]
    %v2645 = vld [vmem:[#allocation11 + $0xe20] sm:$0xff]
    %v2646 = vld [vmem:[#allocation11 + $0xe28] sm:$0xff]
    %v2647 = vld [vmem:[#allocation11 + $0xe30] sm:$0xff]
    %v2648 = vld [vmem:[#allocation11 + $0xe38] sm:$0xff]
    %v2649 = vld [vmem:[#allocation11 + $0xe40] sm:$0xff]
    %v2650 = vld [vmem:[#allocation11 + $0xe48] sm:$0xff]
    %v2651 = vld [vmem:[#allocation11 + $0xe50] sm:$0xff]
    %v2652 = vld [vmem:[#allocation11 + $0xe58] sm:$0xff]
    %v2653 = vld [vmem:[#allocation11 + $0xe60] sm:$0xff]
    %v2654 = vld [vmem:[#allocation11 + $0xe68] sm:$0xff]
    %v2655 = vld [vmem:[#allocation11 + $0xe70] sm:$0xff]
    %v2656 = vld [vmem:[#allocation11 + $0xe78] sm:$0xff]
    %v2657 = vld [vmem:[#allocation11 + $0xe80] sm:$0xff]
    %v2658 = vld [vmem:[#allocation11 + $0xe88] sm:$0xff]
    %v2659 = vld [vmem:[#allocation11 + $0xe90] sm:$0xff]
    %v2660 = vld [vmem:[#allocation11 + $0xe98] sm:$0xff]
    %v2661 = vld [vmem:[#allocation11 + $0xea0] sm:$0xff]
    %v2662 = vld [vmem:[#allocation11 + $0xea8] sm:$0xff]
    %v2663 = vld [vmem:[#allocation11 + $0xeb0] sm:$0xff]
    %v2664 = vld [vmem:[#allocation11 + $0xeb8] sm:$0xff]
    %v2665 = vld [vmem:[#allocation11 + $0xec0] sm:$0xff]
    %v2666 = vld [vmem:[#allocation11 + $0xec8] sm:$0xff]
    %v2667 = vld [vmem:[#allocation11 + $0xed0] sm:$0xff]
    %v2668 = vld [vmem:[#allocation11 + $0xed8] sm:$0xff]
    %v2669 = vld [vmem:[#allocation11 + $0xee0] sm:$0xff]
    %v2670 = vld [vmem:[#allocation11 + $0xee8] sm:$0xff]
    %v2671 = vld [vmem:[#allocation11 + $0xef0] sm:$0xff]
    %v2672 = vld [vmem:[#allocation11 + $0xef8] sm:$0xff]
    %v2673 = vld [vmem:[#allocation11 + $0xf00] sm:$0xff]
    %v2674 = vld [vmem:[#allocation11 + $0xf08] sm:$0xff]
    %v2675 = vld [vmem:[#allocation11 + $0xf10] sm:$0xff]
    %v2676 = vld [vmem:[#allocation11 + $0xf18] sm:$0xff]
    %v2677 = vld [vmem:[#allocation11 + $0xf20] sm:$0xff]
    %v2678 = vld [vmem:[#allocation11 + $0xf28] sm:$0xff]
    %v2679 = vld [vmem:[#allocation11 + $0xf30] sm:$0xff]
    %v2680 = vld [vmem:[#allocation11 + $0xf38] sm:$0xff]
    %v2681 = vld [vmem:[#allocation11 + $0xf40] sm:$0xff]
    %v2682 = vld [vmem:[#allocation11 + $0xf48] sm:$0xff]
    %v2683 = vld [vmem:[#allocation11 + $0xf50] sm:$0xff]
    %v2684 = vld [vmem:[#allocation11 + $0xf58] sm:$0xff]
    %v2685 = vld [vmem:[#allocation11 + $0xf60] sm:$0xff]
    %v2686 = vld [vmem:[#allocation11 + $0xf68] sm:$0xff]
    %v2687 = vld [vmem:[#allocation11 + $0xf70] sm:$0xff]
    %v2688 = vld [vmem:[#allocation11 + $0xf78] sm:$0xff]
    %v2689 = vld [vmem:[#allocation11 + $0xf80] sm:$0xff]
    %v2690 = vld [vmem:[#allocation11 + $0xf88] sm:$0xff]
    %v2691 = vld [vmem:[#allocation11 + $0xf90] sm:$0xff]
    %v2692 = vld [vmem:[#allocation11 + $0xf98] sm:$0xff]
    %v2693 = vld [vmem:[#allocation11 + $0xfa0] sm:$0xff]
    %v2694 = vld [vmem:[#allocation11 + $0xfa8] sm:$0xff]
    %v2695 = vld [vmem:[#allocation11 + $0xfb0] sm:$0xff]
    %v2696 = vld [vmem:[#allocation11 + $0xfb8] sm:$0xff]
    %v2697 = vld [vmem:[#allocation11 + $0xfc0] sm:$0xff]
    %v2698 = vld [vmem:[#allocation11 + $0xfc8] sm:$0xff]
    %v2699 = vld [vmem:[#allocation11 + $0xfd0] sm:$0xff]
    %v2700 = vld [vmem:[#allocation11 + $0xfd8] sm:$0xff]
    %v2701 = vld [vmem:[#allocation11 + $0xfe0] sm:$0xff]
    %v2702 = vld [vmem:[#allocation11 + $0xfe8] sm:$0xff]
    %v2703 = vld [vmem:[#allocation11 + $0xff0] sm:$0xff]
    %v2704 = vld [vmem:[#allocation11 + $0xff8] sm:$0xff]
    %v2705 = vld [vmem:[#allocation13] sm:$0xff]
    %v2707 = vlaneseq
    %v2708 = vshrl.u32 %v2707, 7
    %v2709 = vsub.s32 0, %v2708
    %v2710 = vrot.slane %v2705, %v2709
    %v2711 = vlaneseq
    %v2712 = vshrl.u32 %v2711, 7
    %v2713 = vsub.s32 1, %v2712
    %v2714 = vrot.slane %v2705, %v2713
    %v2715 = vlaneseq
    %v2716 = vshrl.u32 %v2715, 7
    %v2717 = vsub.s32 2, %v2716
    %v2718 = vrot.slane %v2705, %v2717
    %v2719 = vlaneseq
    %v2720 = vshrl.u32 %v2719, 7
    %v2721 = vsub.s32 3, %v2720
    %v2722 = vrot.slane %v2705, %v2721
    %v2723 = vlaneseq
    %v2724 = vshrl.u32 %v2723, 7
    %v2725 = vsub.s32 4, %v2724
    %v2726 = vrot.slane %v2705, %v2725
    %v2727 = vlaneseq
    %v2728 = vshrl.u32 %v2727, 7
    %v2729 = vsub.s32 5, %v2728
    %v2730 = vrot.slane %v2705, %v2729
    %v2731 = vlaneseq
    %v2732 = vshrl.u32 %v2731, 7
    %v2733 = vsub.s32 6, %v2732
    %v2734 = vrot.slane %v2705, %v2733
    %v2735 = vlaneseq
    %v2736 = vshrl.u32 %v2735, 7
    %v2737 = vsub.s32 7, %v2736
    %v2738 = vrot.slane %v2705, %v2737
    %v3259 = vunpack.c.l.b16 %v2193
    %v3260 = vunpack.c.h.b16 %v2193
    %v3261 = vunpack.c.l.b16 %v2194
    %v3262 = vunpack.c.h.b16 %v2194
    %v3263 = vunpack.c.l.b16 %v2195
    %v3264 = vunpack.c.h.b16 %v2195
    %v3265 = vunpack.c.l.b16 %v2196
    %v3266 = vunpack.c.h.b16 %v2196
    %v3267 = vunpack.c.l.b16 %v2197
    %v3268 = vunpack.c.h.b16 %v2197
    %v3269 = vunpack.c.l.b16 %v2198
    %v3270 = vunpack.c.h.b16 %v2198
    %v3271 = vunpack.c.l.b16 %v2199
    %v3272 = vunpack.c.h.b16 %v2199
    %v3273 = vunpack.c.l.b16 %v2200
    %v3274 = vunpack.c.h.b16 %v2200
    %v3275 = vunpack.c.l.b16 %v2201
    %v3276 = vunpack.c.h.b16 %v2201
    %v3277 = vunpack.c.l.b16 %v2202
    %v3278 = vunpack.c.h.b16 %v2202
    %v3279 = vunpack.c.l.b16 %v2203
    %v3280 = vunpack.c.h.b16 %v2203
    %v3281 = vunpack.c.l.b16 %v2204
    %v3282 = vunpack.c.h.b16 %v2204
    %v3283 = vunpack.c.l.b16 %v2205
    %v3284 = vunpack.c.h.b16 %v2205
    %v3285 = vunpack.c.l.b16 %v2206
    %v3286 = vunpack.c.h.b16 %v2206
    %v3287 = vunpack.c.l.b16 %v2207
    %v3288 = vunpack.c.h.b16 %v2207
    %v3289 = vunpack.c.l.b16 %v2208
    %v3290 = vunpack.c.h.b16 %v2208
    %v3291 = vunpack.c.l.b16 %v2209
    %v3292 = vunpack.c.h.b16 %v2209
    %v3293 = vunpack.c.l.b16 %v2210
    %v3294 = vunpack.c.h.b16 %v2210
    %v3295 = vunpack.c.l.b16 %v2211
    %v3296 = vunpack.c.h.b16 %v2211
    %v3297 = vunpack.c.l.b16 %v2212
    %v3298 = vunpack.c.h.b16 %v2212
    %v3299 = vunpack.c.l.b16 %v2213
    %v3300 = vunpack.c.h.b16 %v2213
    %v3301 = vunpack.c.l.b16 %v2214
    %v3302 = vunpack.c.h.b16 %v2214
    %v3303 = vunpack.c.l.b16 %v2215
    %v3304 = vunpack.c.h.b16 %v2215
    %v3305 = vunpack.c.l.b16 %v2216
    %v3306 = vunpack.c.h.b16 %v2216
    %v3307 = vunpack.c.l.b16 %v2217
    %v3308 = vunpack.c.h.b16 %v2217
    %v3309 = vunpack.c.l.b16 %v2218
    %v3310 = vunpack.c.h.b16 %v2218
    %v3311 = vunpack.c.l.b16 %v2219
    %v3312 = vunpack.c.h.b16 %v2219
    %v3313 = vunpack.c.l.b16 %v2220
    %v3314 = vunpack.c.h.b16 %v2220
    %v3315 = vunpack.c.l.b16 %v2221
    %v3316 = vunpack.c.h.b16 %v2221
    %v3317 = vunpack.c.l.b16 %v2222
    %v3318 = vunpack.c.h.b16 %v2222
    %v3319 = vunpack.c.l.b16 %v2223
    %v3320 = vunpack.c.h.b16 %v2223
    %v3321 = vunpack.c.l.b16 %v2224
    %v3322 = vunpack.c.h.b16 %v2224
    %v3323 = vunpack.c.l.b16 %v2225
    %v3324 = vunpack.c.h.b16 %v2225
    %v3325 = vunpack.c.l.b16 %v2226
    %v3326 = vunpack.c.h.b16 %v2226
    %v3327 = vunpack.c.l.b16 %v2227
    %v3328 = vunpack.c.h.b16 %v2227
    %v3329 = vunpack.c.l.b16 %v2228
    %v3330 = vunpack.c.h.b16 %v2228
    %v3331 = vunpack.c.l.b16 %v2229
    %v3332 = vunpack.c.h.b16 %v2229
    %v3333 = vunpack.c.l.b16 %v2230
    %v3334 = vunpack.c.h.b16 %v2230
    %v3335 = vunpack.c.l.b16 %v2231
    %v3336 = vunpack.c.h.b16 %v2231
    %v3337 = vunpack.c.l.b16 %v2232
    %v3338 = vunpack.c.h.b16 %v2232
    %v3339 = vunpack.c.l.b16 %v2233
    %v3340 = vunpack.c.h.b16 %v2233
    %v3341 = vunpack.c.l.b16 %v2234
    %v3342 = vunpack.c.h.b16 %v2234
    %v3343 = vunpack.c.l.b16 %v2235
    %v3344 = vunpack.c.h.b16 %v2235
    %v3345 = vunpack.c.l.b16 %v2236
    %v3346 = vunpack.c.h.b16 %v2236
    %v3347 = vunpack.c.l.b16 %v2237
    %v3348 = vunpack.c.h.b16 %v2237
    %v3349 = vunpack.c.l.b16 %v2238
    %v3350 = vunpack.c.h.b16 %v2238
    %v3351 = vunpack.c.l.b16 %v2239
    %v3352 = vunpack.c.h.b16 %v2239
    %v3353 = vunpack.c.l.b16 %v2240
    %v3354 = vunpack.c.h.b16 %v2240
    %v3355 = vunpack.c.l.b16 %v2241
    %v3356 = vunpack.c.h.b16 %v2241
    %v3357 = vunpack.c.l.b16 %v2242
    %v3358 = vunpack.c.h.b16 %v2242
    %v3359 = vunpack.c.l.b16 %v2243
    %v3360 = vunpack.c.h.b16 %v2243
    %v3361 = vunpack.c.l.b16 %v2244
    %v3362 = vunpack.c.h.b16 %v2244
    %v3363 = vunpack.c.l.b16 %v2245
    %v3364 = vunpack.c.h.b16 %v2245
    %v3365 = vunpack.c.l.b16 %v2246
    %v3366 = vunpack.c.h.b16 %v2246
    %v3367 = vunpack.c.l.b16 %v2247
    %v3368 = vunpack.c.h.b16 %v2247
    %v3369 = vunpack.c.l.b16 %v2248
    %v3370 = vunpack.c.h.b16 %v2248
    %v3371 = vunpack.c.l.b16 %v2249
    %v3372 = vunpack.c.h.b16 %v2249
    %v3373 = vunpack.c.l.b16 %v2250
    %v3374 = vunpack.c.h.b16 %v2250
    %v3375 = vunpack.c.l.b16 %v2251
    %v3376 = vunpack.c.h.b16 %v2251
    %v3377 = vunpack.c.l.b16 %v2252
    %v3378 = vunpack.c.h.b16 %v2252
    %v3379 = vunpack.c.l.b16 %v2253
    %v3380 = vunpack.c.h.b16 %v2253
    %v3381 = vunpack.c.l.b16 %v2254
    %v3382 = vunpack.c.h.b16 %v2254
    %v3383 = vunpack.c.l.b16 %v2255
    %v3384 = vunpack.c.h.b16 %v2255
    %v3385 = vunpack.c.l.b16 %v2256
    %v3386 = vunpack.c.h.b16 %v2256
    %v3387 = vunpack.c.l.b16 %v2257
    %v3388 = vunpack.c.h.b16 %v2257
    %v3389 = vunpack.c.l.b16 %v2258
    %v3390 = vunpack.c.h.b16 %v2258
    %v3391 = vunpack.c.l.b16 %v2259
    %v3392 = vunpack.c.h.b16 %v2259
    %v3393 = vunpack.c.l.b16 %v2260
    %v3394 = vunpack.c.h.b16 %v2260
    %v3395 = vunpack.c.l.b16 %v2261
    %v3396 = vunpack.c.h.b16 %v2261
    %v3397 = vunpack.c.l.b16 %v2262
    %v3398 = vunpack.c.h.b16 %v2262
    %v3399 = vunpack.c.l.b16 %v2263
    %v3400 = vunpack.c.h.b16 %v2263
    %v3401 = vunpack.c.l.b16 %v2264
    %v3402 = vunpack.c.h.b16 %v2264
    %v3403 = vunpack.c.l.b16 %v2265
    %v3404 = vunpack.c.h.b16 %v2265
    %v3405 = vunpack.c.l.b16 %v2266
    %v3406 = vunpack.c.h.b16 %v2266
    %v3407 = vunpack.c.l.b16 %v2267
    %v3408 = vunpack.c.h.b16 %v2267
    %v3409 = vunpack.c.l.b16 %v2268
    %v3410 = vunpack.c.h.b16 %v2268
    %v3411 = vunpack.c.l.b16 %v2269
    %v3412 = vunpack.c.h.b16 %v2269
    %v3413 = vunpack.c.l.b16 %v2270
    %v3414 = vunpack.c.h.b16 %v2270
    %v3415 = vunpack.c.l.b16 %v2271
    %v3416 = vunpack.c.h.b16 %v2271
    %v3417 = vunpack.c.l.b16 %v2272
    %v3418 = vunpack.c.h.b16 %v2272
    %v3419 = vunpack.c.l.b16 %v2273
    %v3420 = vunpack.c.h.b16 %v2273
    %v3421 = vunpack.c.l.b16 %v2274
    %v3422 = vunpack.c.h.b16 %v2274
    %v3423 = vunpack.c.l.b16 %v2275
    %v3424 = vunpack.c.h.b16 %v2275
    %v3425 = vunpack.c.l.b16 %v2276
    %v3426 = vunpack.c.h.b16 %v2276
    %v3427 = vunpack.c.l.b16 %v2277
    %v3428 = vunpack.c.h.b16 %v2277
    %v3429 = vunpack.c.l.b16 %v2278
    %v3430 = vunpack.c.h.b16 %v2278
    %v3431 = vunpack.c.l.b16 %v2279
    %v3432 = vunpack.c.h.b16 %v2279
    %v3433 = vunpack.c.l.b16 %v2280
    %v3434 = vunpack.c.h.b16 %v2280
    %v3435 = vunpack.c.l.b16 %v2281
    %v3436 = vunpack.c.h.b16 %v2281
    %v3437 = vunpack.c.l.b16 %v2282
    %v3438 = vunpack.c.h.b16 %v2282
    %v3439 = vunpack.c.l.b16 %v2283
    %v3440 = vunpack.c.h.b16 %v2283
    %v3441 = vunpack.c.l.b16 %v2284
    %v3442 = vunpack.c.h.b16 %v2284
    %v3443 = vunpack.c.l.b16 %v2285
    %v3444 = vunpack.c.h.b16 %v2285
    %v3445 = vunpack.c.l.b16 %v2286
    %v3446 = vunpack.c.h.b16 %v2286
    %v3447 = vunpack.c.l.b16 %v2287
    %v3448 = vunpack.c.h.b16 %v2287
    %v3449 = vunpack.c.l.b16 %v2288
    %v3450 = vunpack.c.h.b16 %v2288
    %v3451 = vunpack.c.l.b16 %v2289
    %v3452 = vunpack.c.h.b16 %v2289
    %v3453 = vunpack.c.l.b16 %v2290
    %v3454 = vunpack.c.h.b16 %v2290
    %v3455 = vunpack.c.l.b16 %v2291
    %v3456 = vunpack.c.h.b16 %v2291
    %v3457 = vunpack.c.l.b16 %v2292
    %v3458 = vunpack.c.h.b16 %v2292
    %v3459 = vunpack.c.l.b16 %v2293
    %v3460 = vunpack.c.h.b16 %v2293
    %v3461 = vunpack.c.l.b16 %v2294
    %v3462 = vunpack.c.h.b16 %v2294
    %v3463 = vunpack.c.l.b16 %v2295
    %v3464 = vunpack.c.h.b16 %v2295
    %v3465 = vunpack.c.l.b16 %v2296
    %v3466 = vunpack.c.h.b16 %v2296
    %v3467 = vunpack.c.l.b16 %v2297
    %v3468 = vunpack.c.h.b16 %v2297
    %v3469 = vunpack.c.l.b16 %v2298
    %v3470 = vunpack.c.h.b16 %v2298
    %v3471 = vunpack.c.l.b16 %v2299
    %v3472 = vunpack.c.h.b16 %v2299
    %v3473 = vunpack.c.l.b16 %v2300
    %v3474 = vunpack.c.h.b16 %v2300
    %v3475 = vunpack.c.l.b16 %v2301
    %v3476 = vunpack.c.h.b16 %v2301
    %v3477 = vunpack.c.l.b16 %v2302
    %v3478 = vunpack.c.h.b16 %v2302
    %v3479 = vunpack.c.l.b16 %v2303
    %v3480 = vunpack.c.h.b16 %v2303
    %v3481 = vunpack.c.l.b16 %v2304
    %v3482 = vunpack.c.h.b16 %v2304
    %v3483 = vunpack.c.l.b16 %v2305
    %v3484 = vunpack.c.h.b16 %v2305
    %v3485 = vunpack.c.l.b16 %v2306
    %v3486 = vunpack.c.h.b16 %v2306
    %v3487 = vunpack.c.l.b16 %v2307
    %v3488 = vunpack.c.h.b16 %v2307
    %v3489 = vunpack.c.l.b16 %v2308
    %v3490 = vunpack.c.h.b16 %v2308
    %v3491 = vunpack.c.l.b16 %v2309
    %v3492 = vunpack.c.h.b16 %v2309
    %v3493 = vunpack.c.l.b16 %v2310
    %v3494 = vunpack.c.h.b16 %v2310
    %v3495 = vunpack.c.l.b16 %v2311
    %v3496 = vunpack.c.h.b16 %v2311
    %v3497 = vunpack.c.l.b16 %v2312
    %v3498 = vunpack.c.h.b16 %v2312
    %v3499 = vunpack.c.l.b16 %v2313
    %v3500 = vunpack.c.h.b16 %v2313
    %v3501 = vunpack.c.l.b16 %v2314
    %v3502 = vunpack.c.h.b16 %v2314
    %v3503 = vunpack.c.l.b16 %v2315
    %v3504 = vunpack.c.h.b16 %v2315
    %v3505 = vunpack.c.l.b16 %v2316
    %v3506 = vunpack.c.h.b16 %v2316
    %v3507 = vunpack.c.l.b16 %v2317
    %v3508 = vunpack.c.h.b16 %v2317
    %v3509 = vunpack.c.l.b16 %v2318
    %v3510 = vunpack.c.h.b16 %v2318
    %v3511 = vunpack.c.l.b16 %v2319
    %v3512 = vunpack.c.h.b16 %v2319
    %v3513 = vunpack.c.l.b16 %v2320
    %v3514 = vunpack.c.h.b16 %v2320
    %v3515 = vunpack.c.l.b16 %v2321
    %v3516 = vunpack.c.h.b16 %v2321
    %v3517 = vunpack.c.l.b16 %v2322
    %v3518 = vunpack.c.h.b16 %v2322
    %v3519 = vunpack.c.l.b16 %v2323
    %v3520 = vunpack.c.h.b16 %v2323
    %v3521 = vunpack.c.l.b16 %v2324
    %v3522 = vunpack.c.h.b16 %v2324
    %v3523 = vunpack.c.l.b16 %v2325
    %v3524 = vunpack.c.h.b16 %v2325
    %v3525 = vunpack.c.l.b16 %v2326
    %v3526 = vunpack.c.h.b16 %v2326
    %v3527 = vunpack.c.l.b16 %v2327
    %v3528 = vunpack.c.h.b16 %v2327
    %v3529 = vunpack.c.l.b16 %v2328
    %v3530 = vunpack.c.h.b16 %v2328
    %v3531 = vunpack.c.l.b16 %v2329
    %v3532 = vunpack.c.h.b16 %v2329
    %v3533 = vunpack.c.l.b16 %v2330
    %v3534 = vunpack.c.h.b16 %v2330
    %v3535 = vunpack.c.l.b16 %v2331
    %v3536 = vunpack.c.h.b16 %v2331
    %v3537 = vunpack.c.l.b16 %v2332
    %v3538 = vunpack.c.h.b16 %v2332
    %v3539 = vunpack.c.l.b16 %v2333
    %v3540 = vunpack.c.h.b16 %v2333
    %v3541 = vunpack.c.l.b16 %v2334
    %v3542 = vunpack.c.h.b16 %v2334
    %v3543 = vunpack.c.l.b16 %v2335
    %v3544 = vunpack.c.h.b16 %v2335
    %v3545 = vunpack.c.l.b16 %v2336
    %v3546 = vunpack.c.h.b16 %v2336
    %v3547 = vunpack.c.l.b16 %v2337
    %v3548 = vunpack.c.h.b16 %v2337
    %v3549 = vunpack.c.l.b16 %v2338
    %v3550 = vunpack.c.h.b16 %v2338
    %v3551 = vunpack.c.l.b16 %v2339
    %v3552 = vunpack.c.h.b16 %v2339
    %v3553 = vunpack.c.l.b16 %v2340
    %v3554 = vunpack.c.h.b16 %v2340
    %v3555 = vunpack.c.l.b16 %v2341
    %v3556 = vunpack.c.h.b16 %v2341
    %v3557 = vunpack.c.l.b16 %v2342
    %v3558 = vunpack.c.h.b16 %v2342
    %v3559 = vunpack.c.l.b16 %v2343
    %v3560 = vunpack.c.h.b16 %v2343
    %v3561 = vunpack.c.l.b16 %v2344
    %v3562 = vunpack.c.h.b16 %v2344
    %v3563 = vunpack.c.l.b16 %v2345
    %v3564 = vunpack.c.h.b16 %v2345
    %v3565 = vunpack.c.l.b16 %v2346
    %v3566 = vunpack.c.h.b16 %v2346
    %v3567 = vunpack.c.l.b16 %v2347
    %v3568 = vunpack.c.h.b16 %v2347
    %v3569 = vunpack.c.l.b16 %v2348
    %v3570 = vunpack.c.h.b16 %v2348
    %v3571 = vunpack.c.l.b16 %v2349
    %v3572 = vunpack.c.h.b16 %v2349
    %v3573 = vunpack.c.l.b16 %v2350
    %v3574 = vunpack.c.h.b16 %v2350
    %v3575 = vunpack.c.l.b16 %v2351
    %v3576 = vunpack.c.h.b16 %v2351
    %v3577 = vunpack.c.l.b16 %v2352
    %v3578 = vunpack.c.h.b16 %v2352
    %v3579 = vunpack.c.l.b16 %v2353
    %v3580 = vunpack.c.h.b16 %v2353
    %v3581 = vunpack.c.l.b16 %v2354
    %v3582 = vunpack.c.h.b16 %v2354
    %v3583 = vunpack.c.l.b16 %v2355
    %v3584 = vunpack.c.h.b16 %v2355
    %v3585 = vunpack.c.l.b16 %v2356
    %v3586 = vunpack.c.h.b16 %v2356
    %v3587 = vunpack.c.l.b16 %v2357
    %v3588 = vunpack.c.h.b16 %v2357
    %v3589 = vunpack.c.l.b16 %v2358
    %v3590 = vunpack.c.h.b16 %v2358
    %v3591 = vunpack.c.l.b16 %v2359
    %v3592 = vunpack.c.h.b16 %v2359
    %v3593 = vunpack.c.l.b16 %v2360
    %v3594 = vunpack.c.h.b16 %v2360
    %v3595 = vunpack.c.l.b16 %v2361
    %v3596 = vunpack.c.h.b16 %v2361
    %v3597 = vunpack.c.l.b16 %v2362
    %v3598 = vunpack.c.h.b16 %v2362
    %v3599 = vunpack.c.l.b16 %v2363
    %v3600 = vunpack.c.h.b16 %v2363
    %v3601 = vunpack.c.l.b16 %v2364
    %v3602 = vunpack.c.h.b16 %v2364
    %v3603 = vunpack.c.l.b16 %v2365
    %v3604 = vunpack.c.h.b16 %v2365
    %v3605 = vunpack.c.l.b16 %v2366
    %v3606 = vunpack.c.h.b16 %v2366
    %v3607 = vunpack.c.l.b16 %v2367
    %v3608 = vunpack.c.h.b16 %v2367
    %v3609 = vunpack.c.l.b16 %v2368
    %v3610 = vunpack.c.h.b16 %v2368
    %v3611 = vunpack.c.l.b16 %v2369
    %v3612 = vunpack.c.h.b16 %v2369
    %v3613 = vunpack.c.l.b16 %v2370
    %v3614 = vunpack.c.h.b16 %v2370
    %v3615 = vunpack.c.l.b16 %v2371
    %v3616 = vunpack.c.h.b16 %v2371
    %v3617 = vunpack.c.l.b16 %v2372
    %v3618 = vunpack.c.h.b16 %v2372
    %v3619 = vunpack.c.l.b16 %v2373
    %v3620 = vunpack.c.h.b16 %v2373
    %v3621 = vunpack.c.l.b16 %v2374
    %v3622 = vunpack.c.h.b16 %v2374
    %v3623 = vunpack.c.l.b16 %v2375
    %v3624 = vunpack.c.h.b16 %v2375
    %v3625 = vunpack.c.l.b16 %v2376
    %v3626 = vunpack.c.h.b16 %v2376
    %v3627 = vunpack.c.l.b16 %v2377
    %v3628 = vunpack.c.h.b16 %v2377
    %v3629 = vunpack.c.l.b16 %v2378
    %v3630 = vunpack.c.h.b16 %v2378
    %v3631 = vunpack.c.l.b16 %v2379
    %v3632 = vunpack.c.h.b16 %v2379
    %v3633 = vunpack.c.l.b16 %v2380
    %v3634 = vunpack.c.h.b16 %v2380
    %v3635 = vunpack.c.l.b16 %v2381
    %v3636 = vunpack.c.h.b16 %v2381
    %v3637 = vunpack.c.l.b16 %v2382
    %v3638 = vunpack.c.h.b16 %v2382
    %v3639 = vunpack.c.l.b16 %v2383
    %v3640 = vunpack.c.h.b16 %v2383
    %v3641 = vunpack.c.l.b16 %v2384
    %v3642 = vunpack.c.h.b16 %v2384
    %v3643 = vunpack.c.l.b16 %v2385
    %v3644 = vunpack.c.h.b16 %v2385
    %v3645 = vunpack.c.l.b16 %v2386
    %v3646 = vunpack.c.h.b16 %v2386
    %v3647 = vunpack.c.l.b16 %v2387
    %v3648 = vunpack.c.h.b16 %v2387
    %v3649 = vunpack.c.l.b16 %v2388
    %v3650 = vunpack.c.h.b16 %v2388
    %v3651 = vunpack.c.l.b16 %v2389
    %v3652 = vunpack.c.h.b16 %v2389
    %v3653 = vunpack.c.l.b16 %v2390
    %v3654 = vunpack.c.h.b16 %v2390
    %v3655 = vunpack.c.l.b16 %v2391
    %v3656 = vunpack.c.h.b16 %v2391
    %v3657 = vunpack.c.l.b16 %v2392
    %v3658 = vunpack.c.h.b16 %v2392
    %v3659 = vunpack.c.l.b16 %v2393
    %v3660 = vunpack.c.h.b16 %v2393
    %v3661 = vunpack.c.l.b16 %v2394
    %v3662 = vunpack.c.h.b16 %v2394
    %v3663 = vunpack.c.l.b16 %v2395
    %v3664 = vunpack.c.h.b16 %v2395
    %v3665 = vunpack.c.l.b16 %v2396
    %v3666 = vunpack.c.h.b16 %v2396
    %v3667 = vunpack.c.l.b16 %v2397
    %v3668 = vunpack.c.h.b16 %v2397
    %v3669 = vunpack.c.l.b16 %v2398
    %v3670 = vunpack.c.h.b16 %v2398
    %v3671 = vunpack.c.l.b16 %v2399
    %v3672 = vunpack.c.h.b16 %v2399
    %v3673 = vunpack.c.l.b16 %v2400
    %v3674 = vunpack.c.h.b16 %v2400
    %v3675 = vunpack.c.l.b16 %v2401
    %v3676 = vunpack.c.h.b16 %v2401
    %v3677 = vunpack.c.l.b16 %v2402
    %v3678 = vunpack.c.h.b16 %v2402
    %v3679 = vunpack.c.l.b16 %v2403
    %v3680 = vunpack.c.h.b16 %v2403
    %v3681 = vunpack.c.l.b16 %v2404
    %v3682 = vunpack.c.h.b16 %v2404
    %v3683 = vunpack.c.l.b16 %v2405
    %v3684 = vunpack.c.h.b16 %v2405
    %v3685 = vunpack.c.l.b16 %v2406
    %v3686 = vunpack.c.h.b16 %v2406
    %v3687 = vunpack.c.l.b16 %v2407
    %v3688 = vunpack.c.h.b16 %v2407
    %v3689 = vunpack.c.l.b16 %v2408
    %v3690 = vunpack.c.h.b16 %v2408
    %v3691 = vunpack.c.l.b16 %v2409
    %v3692 = vunpack.c.h.b16 %v2409
    %v3693 = vunpack.c.l.b16 %v2410
    %v3694 = vunpack.c.h.b16 %v2410
    %v3695 = vunpack.c.l.b16 %v2411
    %v3696 = vunpack.c.h.b16 %v2411
    %v3697 = vunpack.c.l.b16 %v2412
    %v3698 = vunpack.c.h.b16 %v2412
    %v3699 = vunpack.c.l.b16 %v2413
    %v3700 = vunpack.c.h.b16 %v2413
    %v3701 = vunpack.c.l.b16 %v2414
    %v3702 = vunpack.c.h.b16 %v2414
    %v3703 = vunpack.c.l.b16 %v2415
    %v3704 = vunpack.c.h.b16 %v2415
    %v3705 = vunpack.c.l.b16 %v2416
    %v3706 = vunpack.c.h.b16 %v2416
    %v3707 = vunpack.c.l.b16 %v2417
    %v3708 = vunpack.c.h.b16 %v2417
    %v3709 = vunpack.c.l.b16 %v2418
    %v3710 = vunpack.c.h.b16 %v2418
    %v3711 = vunpack.c.l.b16 %v2419
    %v3712 = vunpack.c.h.b16 %v2419
    %v3713 = vunpack.c.l.b16 %v2420
    %v3714 = vunpack.c.h.b16 %v2420
    %v3715 = vunpack.c.l.b16 %v2421
    %v3716 = vunpack.c.h.b16 %v2421
    %v3717 = vunpack.c.l.b16 %v2422
    %v3718 = vunpack.c.h.b16 %v2422
    %v3719 = vunpack.c.l.b16 %v2423
    %v3720 = vunpack.c.h.b16 %v2423
    %v3721 = vunpack.c.l.b16 %v2424
    %v3722 = vunpack.c.h.b16 %v2424
    %v3723 = vunpack.c.l.b16 %v2425
    %v3724 = vunpack.c.h.b16 %v2425
    %v3725 = vunpack.c.l.b16 %v2426
    %v3726 = vunpack.c.h.b16 %v2426
    %v3727 = vunpack.c.l.b16 %v2427
    %v3728 = vunpack.c.h.b16 %v2427
    %v3729 = vunpack.c.l.b16 %v2428
    %v3730 = vunpack.c.h.b16 %v2428
    %v3731 = vunpack.c.l.b16 %v2429
    %v3732 = vunpack.c.h.b16 %v2429
    %v3733 = vunpack.c.l.b16 %v2430
    %v3734 = vunpack.c.h.b16 %v2430
    %v3735 = vunpack.c.l.b16 %v2431
    %v3736 = vunpack.c.h.b16 %v2431
    %v3737 = vunpack.c.l.b16 %v2432
    %v3738 = vunpack.c.h.b16 %v2432
    %v3739 = vunpack.c.l.b16 %v2433
    %v3740 = vunpack.c.h.b16 %v2433
    %v3741 = vunpack.c.l.b16 %v2434
    %v3742 = vunpack.c.h.b16 %v2434
    %v3743 = vunpack.c.l.b16 %v2435
    %v3744 = vunpack.c.h.b16 %v2435
    %v3745 = vunpack.c.l.b16 %v2436
    %v3746 = vunpack.c.h.b16 %v2436
    %v3747 = vunpack.c.l.b16 %v2437
    %v3748 = vunpack.c.h.b16 %v2437
    %v3749 = vunpack.c.l.b16 %v2438
    %v3750 = vunpack.c.h.b16 %v2438
    %v3751 = vunpack.c.l.b16 %v2439
    %v3752 = vunpack.c.h.b16 %v2439
    %v3753 = vunpack.c.l.b16 %v2440
    %v3754 = vunpack.c.h.b16 %v2440
    %v3755 = vunpack.c.l.b16 %v2441
    %v3756 = vunpack.c.h.b16 %v2441
    %v3757 = vunpack.c.l.b16 %v2442
    %v3758 = vunpack.c.h.b16 %v2442
    %v3759 = vunpack.c.l.b16 %v2443
    %v3760 = vunpack.c.h.b16 %v2443
    %v3761 = vunpack.c.l.b16 %v2444
    %v3762 = vunpack.c.h.b16 %v2444
    %v3763 = vunpack.c.l.b16 %v2445
    %v3764 = vunpack.c.h.b16 %v2445
    %v3765 = vunpack.c.l.b16 %v2446
    %v3766 = vunpack.c.h.b16 %v2446
    %v3767 = vunpack.c.l.b16 %v2447
    %v3768 = vunpack.c.h.b16 %v2447
    %v3769 = vunpack.c.l.b16 %v2448
    %v3770 = vunpack.c.h.b16 %v2448
    %v3771 = vunpack.c.l.b16 %v2449
    %v3772 = vunpack.c.h.b16 %v2449
    %v3773 = vunpack.c.l.b16 %v2450
    %v3774 = vunpack.c.h.b16 %v2450
    %v3775 = vunpack.c.l.b16 %v2451
    %v3776 = vunpack.c.h.b16 %v2451
    %v3777 = vunpack.c.l.b16 %v2452
    %v3778 = vunpack.c.h.b16 %v2452
    %v3779 = vunpack.c.l.b16 %v2453
    %v3780 = vunpack.c.h.b16 %v2453
    %v3781 = vunpack.c.l.b16 %v2454
    %v3782 = vunpack.c.h.b16 %v2454
    %v3783 = vunpack.c.l.b16 %v2455
    %v3784 = vunpack.c.h.b16 %v2455
    %v3785 = vunpack.c.l.b16 %v2456
    %v3786 = vunpack.c.h.b16 %v2456
    %v3787 = vunpack.c.l.b16 %v2457
    %v3788 = vunpack.c.h.b16 %v2457
    %v3789 = vunpack.c.l.b16 %v2458
    %v3790 = vunpack.c.h.b16 %v2458
    %v3791 = vunpack.c.l.b16 %v2459
    %v3792 = vunpack.c.h.b16 %v2459
    %v3793 = vunpack.c.l.b16 %v2460
    %v3794 = vunpack.c.h.b16 %v2460
    %v3795 = vunpack.c.l.b16 %v2461
    %v3796 = vunpack.c.h.b16 %v2461
    %v3797 = vunpack.c.l.b16 %v2462
    %v3798 = vunpack.c.h.b16 %v2462
    %v3799 = vunpack.c.l.b16 %v2463
    %v3800 = vunpack.c.h.b16 %v2463
    %v3801 = vunpack.c.l.b16 %v2464
    %v3802 = vunpack.c.h.b16 %v2464
    %v3803 = vunpack.c.l.b16 %v2465
    %v3804 = vunpack.c.h.b16 %v2465
    %v3805 = vunpack.c.l.b16 %v2466
    %v3806 = vunpack.c.h.b16 %v2466
    %v3807 = vunpack.c.l.b16 %v2467
    %v3808 = vunpack.c.h.b16 %v2467
    %v3809 = vunpack.c.l.b16 %v2468
    %v3810 = vunpack.c.h.b16 %v2468
    %v3811 = vunpack.c.l.b16 %v2469
    %v3812 = vunpack.c.h.b16 %v2469
    %v3813 = vunpack.c.l.b16 %v2470
    %v3814 = vunpack.c.h.b16 %v2470
    %v3815 = vunpack.c.l.b16 %v2471
    %v3816 = vunpack.c.h.b16 %v2471
    %v3817 = vunpack.c.l.b16 %v2472
    %v3818 = vunpack.c.h.b16 %v2472
    %v3819 = vunpack.c.l.b16 %v2473
    %v3820 = vunpack.c.h.b16 %v2473
    %v3821 = vunpack.c.l.b16 %v2474
    %v3822 = vunpack.c.h.b16 %v2474
    %v3823 = vunpack.c.l.b16 %v2475
    %v3824 = vunpack.c.h.b16 %v2475
    %v3825 = vunpack.c.l.b16 %v2476
    %v3826 = vunpack.c.h.b16 %v2476
    %v3827 = vunpack.c.l.b16 %v2477
    %v3828 = vunpack.c.h.b16 %v2477
    %v3829 = vunpack.c.l.b16 %v2478
    %v3830 = vunpack.c.h.b16 %v2478
    %v3831 = vunpack.c.l.b16 %v2479
    %v3832 = vunpack.c.h.b16 %v2479
    %v3833 = vunpack.c.l.b16 %v2480
    %v3834 = vunpack.c.h.b16 %v2480
    %v3835 = vunpack.c.l.b16 %v2481
    %v3836 = vunpack.c.h.b16 %v2481
    %v3837 = vunpack.c.l.b16 %v2482
    %v3838 = vunpack.c.h.b16 %v2482
    %v3839 = vunpack.c.l.b16 %v2483
    %v3840 = vunpack.c.h.b16 %v2483
    %v3841 = vunpack.c.l.b16 %v2484
    %v3842 = vunpack.c.h.b16 %v2484
    %v3843 = vunpack.c.l.b16 %v2485
    %v3844 = vunpack.c.h.b16 %v2485
    %v3845 = vunpack.c.l.b16 %v2486
    %v3846 = vunpack.c.h.b16 %v2486
    %v3847 = vunpack.c.l.b16 %v2487
    %v3848 = vunpack.c.h.b16 %v2487
    %v3849 = vunpack.c.l.b16 %v2488
    %v3850 = vunpack.c.h.b16 %v2488
    %v3851 = vunpack.c.l.b16 %v2489
    %v3852 = vunpack.c.h.b16 %v2489
    %v3853 = vunpack.c.l.b16 %v2490
    %v3854 = vunpack.c.h.b16 %v2490
    %v3855 = vunpack.c.l.b16 %v2491
    %v3856 = vunpack.c.h.b16 %v2491
    %v3857 = vunpack.c.l.b16 %v2492
    %v3858 = vunpack.c.h.b16 %v2492
    %v3859 = vunpack.c.l.b16 %v2493
    %v3860 = vunpack.c.h.b16 %v2493
    %v3861 = vunpack.c.l.b16 %v2494
    %v3862 = vunpack.c.h.b16 %v2494
    %v3863 = vunpack.c.l.b16 %v2495
    %v3864 = vunpack.c.h.b16 %v2495
    %v3865 = vunpack.c.l.b16 %v2496
    %v3866 = vunpack.c.h.b16 %v2496
    %v3867 = vunpack.c.l.b16 %v2497
    %v3868 = vunpack.c.h.b16 %v2497
    %v3869 = vunpack.c.l.b16 %v2498
    %v3870 = vunpack.c.h.b16 %v2498
    %v3871 = vunpack.c.l.b16 %v2499
    %v3872 = vunpack.c.h.b16 %v2499
    %v3873 = vunpack.c.l.b16 %v2500
    %v3874 = vunpack.c.h.b16 %v2500
    %v3875 = vunpack.c.l.b16 %v2501
    %v3876 = vunpack.c.h.b16 %v2501
    %v3877 = vunpack.c.l.b16 %v2502
    %v3878 = vunpack.c.h.b16 %v2502
    %v3879 = vunpack.c.l.b16 %v2503
    %v3880 = vunpack.c.h.b16 %v2503
    %v3881 = vunpack.c.l.b16 %v2504
    %v3882 = vunpack.c.h.b16 %v2504
    %v3883 = vunpack.c.l.b16 %v2505
    %v3884 = vunpack.c.h.b16 %v2505
    %v3885 = vunpack.c.l.b16 %v2506
    %v3886 = vunpack.c.h.b16 %v2506
    %v3887 = vunpack.c.l.b16 %v2507
    %v3888 = vunpack.c.h.b16 %v2507
    %v3889 = vunpack.c.l.b16 %v2508
    %v3890 = vunpack.c.h.b16 %v2508
    %v3891 = vunpack.c.l.b16 %v2509
    %v3892 = vunpack.c.h.b16 %v2509
    %v3893 = vunpack.c.l.b16 %v2510
    %v3894 = vunpack.c.h.b16 %v2510
    %v3895 = vunpack.c.l.b16 %v2511
    %v3896 = vunpack.c.h.b16 %v2511
    %v3897 = vunpack.c.l.b16 %v2512
    %v3898 = vunpack.c.h.b16 %v2512
    %v3899 = vunpack.c.l.b16 %v2513
    %v3900 = vunpack.c.h.b16 %v2513
    %v3901 = vunpack.c.l.b16 %v2514
    %v3902 = vunpack.c.h.b16 %v2514
    %v3903 = vunpack.c.l.b16 %v2515
    %v3904 = vunpack.c.h.b16 %v2515
    %v3905 = vunpack.c.l.b16 %v2516
    %v3906 = vunpack.c.h.b16 %v2516
    %v3907 = vunpack.c.l.b16 %v2517
    %v3908 = vunpack.c.h.b16 %v2517
    %v3909 = vunpack.c.l.b16 %v2518
    %v3910 = vunpack.c.h.b16 %v2518
    %v3911 = vunpack.c.l.b16 %v2519
    %v3912 = vunpack.c.h.b16 %v2519
    %v3913 = vunpack.c.l.b16 %v2520
    %v3914 = vunpack.c.h.b16 %v2520
    %v3915 = vunpack.c.l.b16 %v2521
    %v3916 = vunpack.c.h.b16 %v2521
    %v3917 = vunpack.c.l.b16 %v2522
    %v3918 = vunpack.c.h.b16 %v2522
    %v3919 = vunpack.c.l.b16 %v2523
    %v3920 = vunpack.c.h.b16 %v2523
    %v3921 = vunpack.c.l.b16 %v2524
    %v3922 = vunpack.c.h.b16 %v2524
    %v3923 = vunpack.c.l.b16 %v2525
    %v3924 = vunpack.c.h.b16 %v2525
    %v3925 = vunpack.c.l.b16 %v2526
    %v3926 = vunpack.c.h.b16 %v2526
    %v3927 = vunpack.c.l.b16 %v2527
    %v3928 = vunpack.c.h.b16 %v2527
    %v3929 = vunpack.c.l.b16 %v2528
    %v3930 = vunpack.c.h.b16 %v2528
    %v3931 = vunpack.c.l.b16 %v2529
    %v3932 = vunpack.c.h.b16 %v2529
    %v3933 = vunpack.c.l.b16 %v2530
    %v3934 = vunpack.c.h.b16 %v2530
    %v3935 = vunpack.c.l.b16 %v2531
    %v3936 = vunpack.c.h.b16 %v2531
    %v3937 = vunpack.c.l.b16 %v2532
    %v3938 = vunpack.c.h.b16 %v2532
    %v3939 = vunpack.c.l.b16 %v2533
    %v3940 = vunpack.c.h.b16 %v2533
    %v3941 = vunpack.c.l.b16 %v2534
    %v3942 = vunpack.c.h.b16 %v2534
    %v3943 = vunpack.c.l.b16 %v2535
    %v3944 = vunpack.c.h.b16 %v2535
    %v3945 = vunpack.c.l.b16 %v2536
    %v3946 = vunpack.c.h.b16 %v2536
    %v3947 = vunpack.c.l.b16 %v2537
    %v3948 = vunpack.c.h.b16 %v2537
    %v3949 = vunpack.c.l.b16 %v2538
    %v3950 = vunpack.c.h.b16 %v2538
    %v3951 = vunpack.c.l.b16 %v2539
    %v3952 = vunpack.c.h.b16 %v2539
    %v3953 = vunpack.c.l.b16 %v2540
    %v3954 = vunpack.c.h.b16 %v2540
    %v3955 = vunpack.c.l.b16 %v2541
    %v3956 = vunpack.c.h.b16 %v2541
    %v3957 = vunpack.c.l.b16 %v2542
    %v3958 = vunpack.c.h.b16 %v2542
    %v3959 = vunpack.c.l.b16 %v2543
    %v3960 = vunpack.c.h.b16 %v2543
    %v3961 = vunpack.c.l.b16 %v2544
    %v3962 = vunpack.c.h.b16 %v2544
    %v3963 = vunpack.c.l.b16 %v2545
    %v3964 = vunpack.c.h.b16 %v2545
    %v3965 = vunpack.c.l.b16 %v2546
    %v3966 = vunpack.c.h.b16 %v2546
    %v3967 = vunpack.c.l.b16 %v2547
    %v3968 = vunpack.c.h.b16 %v2547
    %v3969 = vunpack.c.l.b16 %v2548
    %v3970 = vunpack.c.h.b16 %v2548
    %v3971 = vunpack.c.l.b16 %v2549
    %v3972 = vunpack.c.h.b16 %v2549
    %v3973 = vunpack.c.l.b16 %v2550
    %v3974 = vunpack.c.h.b16 %v2550
    %v3975 = vunpack.c.l.b16 %v2551
    %v3976 = vunpack.c.h.b16 %v2551
    %v3977 = vunpack.c.l.b16 %v2552
    %v3978 = vunpack.c.h.b16 %v2552
    %v3979 = vunpack.c.l.b16 %v2553
    %v3980 = vunpack.c.h.b16 %v2553
    %v3981 = vunpack.c.l.b16 %v2554
    %v3982 = vunpack.c.h.b16 %v2554
    %v3983 = vunpack.c.l.b16 %v2555
    %v3984 = vunpack.c.h.b16 %v2555
    %v3985 = vunpack.c.l.b16 %v2556
    %v3986 = vunpack.c.h.b16 %v2556
    %v3987 = vunpack.c.l.b16 %v2557
    %v3988 = vunpack.c.h.b16 %v2557
    %v3989 = vunpack.c.l.b16 %v2558
    %v3990 = vunpack.c.h.b16 %v2558
    %v3991 = vunpack.c.l.b16 %v2559
    %v3992 = vunpack.c.h.b16 %v2559
    %v3993 = vunpack.c.l.b16 %v2560
    %v3994 = vunpack.c.h.b16 %v2560
    %v3995 = vunpack.c.l.b16 %v2561
    %v3996 = vunpack.c.h.b16 %v2561
    %v3997 = vunpack.c.l.b16 %v2562
    %v3998 = vunpack.c.h.b16 %v2562
    %v3999 = vunpack.c.l.b16 %v2563
    %v4000 = vunpack.c.h.b16 %v2563
    %v4001 = vunpack.c.l.b16 %v2564
    %v4002 = vunpack.c.h.b16 %v2564
    %v4003 = vunpack.c.l.b16 %v2565
    %v4004 = vunpack.c.h.b16 %v2565
    %v4005 = vunpack.c.l.b16 %v2566
    %v4006 = vunpack.c.h.b16 %v2566
    %v4007 = vunpack.c.l.b16 %v2567
    %v4008 = vunpack.c.h.b16 %v2567
    %v4009 = vunpack.c.l.b16 %v2568
    %v4010 = vunpack.c.h.b16 %v2568
    %v4011 = vunpack.c.l.b16 %v2569
    %v4012 = vunpack.c.h.b16 %v2569
    %v4013 = vunpack.c.l.b16 %v2570
    %v4014 = vunpack.c.h.b16 %v2570
    %v4015 = vunpack.c.l.b16 %v2571
    %v4016 = vunpack.c.h.b16 %v2571
    %v4017 = vunpack.c.l.b16 %v2572
    %v4018 = vunpack.c.h.b16 %v2572
    %v4019 = vunpack.c.l.b16 %v2573
    %v4020 = vunpack.c.h.b16 %v2573
    %v4021 = vunpack.c.l.b16 %v2574
    %v4022 = vunpack.c.h.b16 %v2574
    %v4023 = vunpack.c.l.b16 %v2575
    %v4024 = vunpack.c.h.b16 %v2575
    %v4025 = vunpack.c.l.b16 %v2576
    %v4026 = vunpack.c.h.b16 %v2576
    %v4027 = vunpack.c.l.b16 %v2577
    %v4028 = vunpack.c.h.b16 %v2577
    %v4029 = vunpack.c.l.b16 %v2578
    %v4030 = vunpack.c.h.b16 %v2578
    %v4031 = vunpack.c.l.b16 %v2579
    %v4032 = vunpack.c.h.b16 %v2579
    %v4033 = vunpack.c.l.b16 %v2580
    %v4034 = vunpack.c.h.b16 %v2580
    %v4035 = vunpack.c.l.b16 %v2581
    %v4036 = vunpack.c.h.b16 %v2581
    %v4037 = vunpack.c.l.b16 %v2582
    %v4038 = vunpack.c.h.b16 %v2582
    %v4039 = vunpack.c.l.b16 %v2583
    %v4040 = vunpack.c.h.b16 %v2583
    %v4041 = vunpack.c.l.b16 %v2584
    %v4042 = vunpack.c.h.b16 %v2584
    %v4043 = vunpack.c.l.b16 %v2585
    %v4044 = vunpack.c.h.b16 %v2585
    %v4045 = vunpack.c.l.b16 %v2586
    %v4046 = vunpack.c.h.b16 %v2586
    %v4047 = vunpack.c.l.b16 %v2587
    %v4048 = vunpack.c.h.b16 %v2587
    %v4049 = vunpack.c.l.b16 %v2588
    %v4050 = vunpack.c.h.b16 %v2588
    %v4051 = vunpack.c.l.b16 %v2589
    %v4052 = vunpack.c.h.b16 %v2589
    %v4053 = vunpack.c.l.b16 %v2590
    %v4054 = vunpack.c.h.b16 %v2590
    %v4055 = vunpack.c.l.b16 %v2591
    %v4056 = vunpack.c.h.b16 %v2591
    %v4057 = vunpack.c.l.b16 %v2592
    %v4058 = vunpack.c.h.b16 %v2592
    %v4059 = vunpack.c.l.b16 %v2593
    %v4060 = vunpack.c.h.b16 %v2593
    %v4061 = vunpack.c.l.b16 %v2594
    %v4062 = vunpack.c.h.b16 %v2594
    %v4063 = vunpack.c.l.b16 %v2595
    %v4064 = vunpack.c.h.b16 %v2595
    %v4065 = vunpack.c.l.b16 %v2596
    %v4066 = vunpack.c.h.b16 %v2596
    %v4067 = vunpack.c.l.b16 %v2597
    %v4068 = vunpack.c.h.b16 %v2597
    %v4069 = vunpack.c.l.b16 %v2598
    %v4070 = vunpack.c.h.b16 %v2598
    %v4071 = vunpack.c.l.b16 %v2599
    %v4072 = vunpack.c.h.b16 %v2599
    %v4073 = vunpack.c.l.b16 %v2600
    %v4074 = vunpack.c.h.b16 %v2600
    %v4075 = vunpack.c.l.b16 %v2601
    %v4076 = vunpack.c.h.b16 %v2601
    %v4077 = vunpack.c.l.b16 %v2602
    %v4078 = vunpack.c.h.b16 %v2602
    %v4079 = vunpack.c.l.b16 %v2603
    %v4080 = vunpack.c.h.b16 %v2603
    %v4081 = vunpack.c.l.b16 %v2604
    %v4082 = vunpack.c.h.b16 %v2604
    %v4083 = vunpack.c.l.b16 %v2605
    %v4084 = vunpack.c.h.b16 %v2605
    %v4085 = vunpack.c.l.b16 %v2606
    %v4086 = vunpack.c.h.b16 %v2606
    %v4087 = vunpack.c.l.b16 %v2607
    %v4088 = vunpack.c.h.b16 %v2607
    %v4089 = vunpack.c.l.b16 %v2608
    %v4090 = vunpack.c.h.b16 %v2608
    %v4091 = vunpack.c.l.b16 %v2609
    %v4092 = vunpack.c.h.b16 %v2609
    %v4093 = vunpack.c.l.b16 %v2610
    %v4094 = vunpack.c.h.b16 %v2610
    %v4095 = vunpack.c.l.b16 %v2611
    %v4096 = vunpack.c.h.b16 %v2611
    %v4097 = vunpack.c.l.b16 %v2612
    %v4098 = vunpack.c.h.b16 %v2612
    %v4099 = vunpack.c.l.b16 %v2613
    %v4100 = vunpack.c.h.b16 %v2613
    %v4101 = vunpack.c.l.b16 %v2614
    %v4102 = vunpack.c.h.b16 %v2614
    %v4103 = vunpack.c.l.b16 %v2615
    %v4104 = vunpack.c.h.b16 %v2615
    %v4105 = vunpack.c.l.b16 %v2616
    %v4106 = vunpack.c.h.b16 %v2616
    %v4107 = vunpack.c.l.b16 %v2617
    %v4108 = vunpack.c.h.b16 %v2617
    %v4109 = vunpack.c.l.b16 %v2618
    %v4110 = vunpack.c.h.b16 %v2618
    %v4111 = vunpack.c.l.b16 %v2619
    %v4112 = vunpack.c.h.b16 %v2619
    %v4113 = vunpack.c.l.b16 %v2620
    %v4114 = vunpack.c.h.b16 %v2620
    %v4115 = vunpack.c.l.b16 %v2621
    %v4116 = vunpack.c.h.b16 %v2621
    %v4117 = vunpack.c.l.b16 %v2622
    %v4118 = vunpack.c.h.b16 %v2622
    %v4119 = vunpack.c.l.b16 %v2623
    %v4120 = vunpack.c.h.b16 %v2623
    %v4121 = vunpack.c.l.b16 %v2624
    %v4122 = vunpack.c.h.b16 %v2624
    %v4123 = vunpack.c.l.b16 %v2625
    %v4124 = vunpack.c.h.b16 %v2625
    %v4125 = vunpack.c.l.b16 %v2626
    %v4126 = vunpack.c.h.b16 %v2626
    %v4127 = vunpack.c.l.b16 %v2627
    %v4128 = vunpack.c.h.b16 %v2627
    %v4129 = vunpack.c.l.b16 %v2628
    %v4130 = vunpack.c.h.b16 %v2628
    %v4131 = vunpack.c.l.b16 %v2629
    %v4132 = vunpack.c.h.b16 %v2629
    %v4133 = vunpack.c.l.b16 %v2630
    %v4134 = vunpack.c.h.b16 %v2630
    %v4135 = vunpack.c.l.b16 %v2631
    %v4136 = vunpack.c.h.b16 %v2631
    %v4137 = vunpack.c.l.b16 %v2632
    %v4138 = vunpack.c.h.b16 %v2632
    %v4139 = vunpack.c.l.b16 %v2633
    %v4140 = vunpack.c.h.b16 %v2633
    %v4141 = vunpack.c.l.b16 %v2634
    %v4142 = vunpack.c.h.b16 %v2634
    %v4143 = vunpack.c.l.b16 %v2635
    %v4144 = vunpack.c.h.b16 %v2635
    %v4145 = vunpack.c.l.b16 %v2636
    %v4146 = vunpack.c.h.b16 %v2636
    %v4147 = vunpack.c.l.b16 %v2637
    %v4148 = vunpack.c.h.b16 %v2637
    %v4149 = vunpack.c.l.b16 %v2638
    %v4150 = vunpack.c.h.b16 %v2638
    %v4151 = vunpack.c.l.b16 %v2639
    %v4152 = vunpack.c.h.b16 %v2639
    %v4153 = vunpack.c.l.b16 %v2640
    %v4154 = vunpack.c.h.b16 %v2640
    %v4155 = vunpack.c.l.b16 %v2641
    %v4156 = vunpack.c.h.b16 %v2641
    %v4157 = vunpack.c.l.b16 %v2642
    %v4158 = vunpack.c.h.b16 %v2642
    %v4159 = vunpack.c.l.b16 %v2643
    %v4160 = vunpack.c.h.b16 %v2643
    %v4161 = vunpack.c.l.b16 %v2644
    %v4162 = vunpack.c.h.b16 %v2644
    %v4163 = vunpack.c.l.b16 %v2645
    %v4164 = vunpack.c.h.b16 %v2645
    %v4165 = vunpack.c.l.b16 %v2646
    %v4166 = vunpack.c.h.b16 %v2646
    %v4167 = vunpack.c.l.b16 %v2647
    %v4168 = vunpack.c.h.b16 %v2647
    %v4169 = vunpack.c.l.b16 %v2648
    %v4170 = vunpack.c.h.b16 %v2648
    %v4171 = vunpack.c.l.b16 %v2649
    %v4172 = vunpack.c.h.b16 %v2649
    %v4173 = vunpack.c.l.b16 %v2650
    %v4174 = vunpack.c.h.b16 %v2650
    %v4175 = vunpack.c.l.b16 %v2651
    %v4176 = vunpack.c.h.b16 %v2651
    %v4177 = vunpack.c.l.b16 %v2652
    %v4178 = vunpack.c.h.b16 %v2652
    %v4179 = vunpack.c.l.b16 %v2653
    %v4180 = vunpack.c.h.b16 %v2653
    %v4181 = vunpack.c.l.b16 %v2654
    %v4182 = vunpack.c.h.b16 %v2654
    %v4183 = vunpack.c.l.b16 %v2655
    %v4184 = vunpack.c.h.b16 %v2655
    %v4185 = vunpack.c.l.b16 %v2656
    %v4186 = vunpack.c.h.b16 %v2656
    %v4187 = vunpack.c.l.b16 %v2657
    %v4188 = vunpack.c.h.b16 %v2657
    %v4189 = vunpack.c.l.b16 %v2658
    %v4190 = vunpack.c.h.b16 %v2658
    %v4191 = vunpack.c.l.b16 %v2659
    %v4192 = vunpack.c.h.b16 %v2659
    %v4193 = vunpack.c.l.b16 %v2660
    %v4194 = vunpack.c.h.b16 %v2660
    %v4195 = vunpack.c.l.b16 %v2661
    %v4196 = vunpack.c.h.b16 %v2661
    %v4197 = vunpack.c.l.b16 %v2662
    %v4198 = vunpack.c.h.b16 %v2662
    %v4199 = vunpack.c.l.b16 %v2663
    %v4200 = vunpack.c.h.b16 %v2663
    %v4201 = vunpack.c.l.b16 %v2664
    %v4202 = vunpack.c.h.b16 %v2664
    %v4203 = vunpack.c.l.b16 %v2665
    %v4204 = vunpack.c.h.b16 %v2665
    %v4205 = vunpack.c.l.b16 %v2666
    %v4206 = vunpack.c.h.b16 %v2666
    %v4207 = vunpack.c.l.b16 %v2667
    %v4208 = vunpack.c.h.b16 %v2667
    %v4209 = vunpack.c.l.b16 %v2668
    %v4210 = vunpack.c.h.b16 %v2668
    %v4211 = vunpack.c.l.b16 %v2669
    %v4212 = vunpack.c.h.b16 %v2669
    %v4213 = vunpack.c.l.b16 %v2670
    %v4214 = vunpack.c.h.b16 %v2670
    %v4215 = vunpack.c.l.b16 %v2671
    %v4216 = vunpack.c.h.b16 %v2671
    %v4217 = vunpack.c.l.b16 %v2672
    %v4218 = vunpack.c.h.b16 %v2672
    %v4219 = vunpack.c.l.b16 %v2673
    %v4220 = vunpack.c.h.b16 %v2673
    %v4221 = vunpack.c.l.b16 %v2674
    %v4222 = vunpack.c.h.b16 %v2674
    %v4223 = vunpack.c.l.b16 %v2675
    %v4224 = vunpack.c.h.b16 %v2675
    %v4225 = vunpack.c.l.b16 %v2676
    %v4226 = vunpack.c.h.b16 %v2676
    %v4227 = vunpack.c.l.b16 %v2677
    %v4228 = vunpack.c.h.b16 %v2677
    %v4229 = vunpack.c.l.b16 %v2678
    %v4230 = vunpack.c.h.b16 %v2678
    %v4231 = vunpack.c.l.b16 %v2679
    %v4232 = vunpack.c.h.b16 %v2679
    %v4233 = vunpack.c.l.b16 %v2680
    %v4234 = vunpack.c.h.b16 %v2680
    %v4235 = vunpack.c.l.b16 %v2681
    %v4236 = vunpack.c.h.b16 %v2681
    %v4237 = vunpack.c.l.b16 %v2682
    %v4238 = vunpack.c.h.b16 %v2682
    %v4239 = vunpack.c.l.b16 %v2683
    %v4240 = vunpack.c.h.b16 %v2683
    %v4241 = vunpack.c.l.b16 %v2684
    %v4242 = vunpack.c.h.b16 %v2684
    %v4243 = vunpack.c.l.b16 %v2685
    %v4244 = vunpack.c.h.b16 %v2685
    %v4245 = vunpack.c.l.b16 %v2686
    %v4246 = vunpack.c.h.b16 %v2686
    %v4247 = vunpack.c.l.b16 %v2687
    %v4248 = vunpack.c.h.b16 %v2687
    %v4249 = vunpack.c.l.b16 %v2688
    %v4250 = vunpack.c.h.b16 %v2688
    %v4251 = vunpack.c.l.b16 %v2689
    %v4252 = vunpack.c.h.b16 %v2689
    %v4253 = vunpack.c.l.b16 %v2690
    %v4254 = vunpack.c.h.b16 %v2690
    %v4255 = vunpack.c.l.b16 %v2691
    %v4256 = vunpack.c.h.b16 %v2691
    %v4257 = vunpack.c.l.b16 %v2692
    %v4258 = vunpack.c.h.b16 %v2692
    %v4259 = vunpack.c.l.b16 %v2693
    %v4260 = vunpack.c.h.b16 %v2693
    %v4261 = vunpack.c.l.b16 %v2694
    %v4262 = vunpack.c.h.b16 %v2694
    %v4263 = vunpack.c.l.b16 %v2695
    %v4264 = vunpack.c.h.b16 %v2695
    %v4265 = vunpack.c.l.b16 %v2696
    %v4266 = vunpack.c.h.b16 %v2696
    %v4267 = vunpack.c.l.b16 %v2697
    %v4268 = vunpack.c.h.b16 %v2697
    %v4269 = vunpack.c.l.b16 %v2698
    %v4270 = vunpack.c.h.b16 %v2698
    %v4271 = vunpack.c.l.b16 %v2699
    %v4272 = vunpack.c.h.b16 %v2699
    %v4273 = vunpack.c.l.b16 %v2700
    %v4274 = vunpack.c.h.b16 %v2700
    %v4275 = vunpack.c.l.b16 %v2701
    %v4276 = vunpack.c.h.b16 %v2701
    %v4277 = vunpack.c.l.b16 %v2702
    %v4278 = vunpack.c.h.b16 %v2702
    %v4279 = vunpack.c.l.b16 %v2703
    %v4280 = vunpack.c.h.b16 %v2703
    %v4281 = vunpack.c.l.b16 %v2704
    %v4282 = vunpack.c.h.b16 %v2704
    %v4283 = vpack.c.b16 %v3267, %v3259
    %v4284 = vpack.c.b16 %v3268, %v3260
    %v4285 = vpack.c.b16 %v3269, %v3261
    %v4286 = vpack.c.b16 %v3270, %v3262
    %v4287 = vpack.c.b16 %v3271, %v3263
    %v4288 = vpack.c.b16 %v3272, %v3264
    %v4289 = vpack.c.b16 %v3273, %v3265
    %v4290 = vpack.c.b16 %v3274, %v3266
    %v4291 = vpack.c.b16 %v3283, %v3275
    %v4292 = vpack.c.b16 %v3284, %v3276
    %v4293 = vpack.c.b16 %v3285, %v3277
    %v4294 = vpack.c.b16 %v3286, %v3278
    %v4295 = vpack.c.b16 %v3287, %v3279
    %v4296 = vpack.c.b16 %v3288, %v3280
    %v4297 = vpack.c.b16 %v3289, %v3281
    %v4298 = vpack.c.b16 %v3290, %v3282
    %v4299 = vpack.c.b16 %v3299, %v3291
    %v4300 = vpack.c.b16 %v3300, %v3292
    %v4301 = vpack.c.b16 %v3301, %v3293
    %v4302 = vpack.c.b16 %v3302, %v3294
    %v4303 = vpack.c.b16 %v3303, %v3295
    %v4304 = vpack.c.b16 %v3304, %v3296
    %v4305 = vpack.c.b16 %v3305, %v3297
    %v4306 = vpack.c.b16 %v3306, %v3298
    %v4307 = vpack.c.b16 %v3315, %v3307
    %v4308 = vpack.c.b16 %v3316, %v3308
    %v4309 = vpack.c.b16 %v3317, %v3309
    %v4310 = vpack.c.b16 %v3318, %v3310
    %v4311 = vpack.c.b16 %v3319, %v3311
    %v4312 = vpack.c.b16 %v3320, %v3312
    %v4313 = vpack.c.b16 %v3321, %v3313
    %v4314 = vpack.c.b16 %v3322, %v3314
    %v4315 = vpack.c.b16 %v3331, %v3323
    %v4316 = vpack.c.b16 %v3332, %v3324
    %v4317 = vpack.c.b16 %v3333, %v3325
    %v4318 = vpack.c.b16 %v3334, %v3326
    %v4319 = vpack.c.b16 %v3335, %v3327
    %v4320 = vpack.c.b16 %v3336, %v3328
    %v4321 = vpack.c.b16 %v3337, %v3329
    %v4322 = vpack.c.b16 %v3338, %v3330
    %v4323 = vpack.c.b16 %v3347, %v3339
    %v4324 = vpack.c.b16 %v3348, %v3340
    %v4325 = vpack.c.b16 %v3349, %v3341
    %v4326 = vpack.c.b16 %v3350, %v3342
    %v4327 = vpack.c.b16 %v3351, %v3343
    %v4328 = vpack.c.b16 %v3352, %v3344
    %v4329 = vpack.c.b16 %v3353, %v3345
    %v4330 = vpack.c.b16 %v3354, %v3346
    %v4331 = vpack.c.b16 %v3363, %v3355
    %v4332 = vpack.c.b16 %v3364, %v3356
    %v4333 = vpack.c.b16 %v3365, %v3357
    %v4334 = vpack.c.b16 %v3366, %v3358
    %v4335 = vpack.c.b16 %v3367, %v3359
    %v4336 = vpack.c.b16 %v3368, %v3360
    %v4337 = vpack.c.b16 %v3369, %v3361
    %v4338 = vpack.c.b16 %v3370, %v3362
    %v4339 = vpack.c.b16 %v3379, %v3371
    %v4340 = vpack.c.b16 %v3380, %v3372
    %v4341 = vpack.c.b16 %v3381, %v3373
    %v4342 = vpack.c.b16 %v3382, %v3374
    %v4343 = vpack.c.b16 %v3383, %v3375
    %v4344 = vpack.c.b16 %v3384, %v3376
    %v4345 = vpack.c.b16 %v3385, %v3377
    %v4346 = vpack.c.b16 %v3386, %v3378
    %v4347 = vpack.c.b16 %v3395, %v3387
    %v4348 = vpack.c.b16 %v3396, %v3388
    %v4349 = vpack.c.b16 %v3397, %v3389
    %v4350 = vpack.c.b16 %v3398, %v3390
    %v4351 = vpack.c.b16 %v3399, %v3391
    %v4352 = vpack.c.b16 %v3400, %v3392
    %v4353 = vpack.c.b16 %v3401, %v3393
    %v4354 = vpack.c.b16 %v3402, %v3394
    %v4355 = vpack.c.b16 %v3411, %v3403
    %v4356 = vpack.c.b16 %v3412, %v3404
    %v4357 = vpack.c.b16 %v3413, %v3405
    %v4358 = vpack.c.b16 %v3414, %v3406
    %v4359 = vpack.c.b16 %v3415, %v3407
    %v4360 = vpack.c.b16 %v3416, %v3408
    %v4361 = vpack.c.b16 %v3417, %v3409
    %v4362 = vpack.c.b16 %v3418, %v3410
    %v4363 = vpack.c.b16 %v3427, %v3419
    %v4364 = vpack.c.b16 %v3428, %v3420
    %v4365 = vpack.c.b16 %v3429, %v3421
    %v4366 = vpack.c.b16 %v3430, %v3422
    %v4367 = vpack.c.b16 %v3431, %v3423
    %v4368 = vpack.c.b16 %v3432, %v3424
    %v4369 = vpack.c.b16 %v3433, %v3425
    %v4370 = vpack.c.b16 %v3434, %v3426
    %v4371 = vpack.c.b16 %v3443, %v3435
    %v4372 = vpack.c.b16 %v3444, %v3436
    %v4373 = vpack.c.b16 %v3445, %v3437
    %v4374 = vpack.c.b16 %v3446, %v3438
    %v4375 = vpack.c.b16 %v3447, %v3439
    %v4376 = vpack.c.b16 %v3448, %v3440
    %v4377 = vpack.c.b16 %v3449, %v3441
    %v4378 = vpack.c.b16 %v3450, %v3442
    %v4379 = vpack.c.b16 %v3459, %v3451
    %v4380 = vpack.c.b16 %v3460, %v3452
    %v4381 = vpack.c.b16 %v3461, %v3453
    %v4382 = vpack.c.b16 %v3462, %v3454
    %v4383 = vpack.c.b16 %v3463, %v3455
    %v4384 = vpack.c.b16 %v3464, %v3456
    %v4385 = vpack.c.b16 %v3465, %v3457
    %v4386 = vpack.c.b16 %v3466, %v3458
    %v4387 = vpack.c.b16 %v3475, %v3467
    %v4388 = vpack.c.b16 %v3476, %v3468
    %v4389 = vpack.c.b16 %v3477, %v3469
    %v4390 = vpack.c.b16 %v3478, %v3470
    %v4391 = vpack.c.b16 %v3479, %v3471
    %v4392 = vpack.c.b16 %v3480, %v3472
    %v4393 = vpack.c.b16 %v3481, %v3473
    %v4394 = vpack.c.b16 %v3482, %v3474
    %v4395 = vpack.c.b16 %v3491, %v3483
    %v4396 = vpack.c.b16 %v3492, %v3484
    %v4397 = vpack.c.b16 %v3493, %v3485
    %v4398 = vpack.c.b16 %v3494, %v3486
    %v4399 = vpack.c.b16 %v3495, %v3487
    %v4400 = vpack.c.b16 %v3496, %v3488
    %v4401 = vpack.c.b16 %v3497, %v3489
    %v4402 = vpack.c.b16 %v3498, %v3490
    %v4403 = vpack.c.b16 %v3507, %v3499
    %v4404 = vpack.c.b16 %v3508, %v3500
    %v4405 = vpack.c.b16 %v3509, %v3501
    %v4406 = vpack.c.b16 %v3510, %v3502
    %v4407 = vpack.c.b16 %v3511, %v3503
    %v4408 = vpack.c.b16 %v3512, %v3504
    %v4409 = vpack.c.b16 %v3513, %v3505
    %v4410 = vpack.c.b16 %v3514, %v3506
    %v4411 = vpack.c.b16 %v3523, %v3515
    %v4412 = vpack.c.b16 %v3524, %v3516
    %v4413 = vpack.c.b16 %v3525, %v3517
    %v4414 = vpack.c.b16 %v3526, %v3518
    %v4415 = vpack.c.b16 %v3527, %v3519
    %v4416 = vpack.c.b16 %v3528, %v3520
    %v4417 = vpack.c.b16 %v3529, %v3521
    %v4418 = vpack.c.b16 %v3530, %v3522
    %v4419 = vpack.c.b16 %v3539, %v3531
    %v4420 = vpack.c.b16 %v3540, %v3532
    %v4421 = vpack.c.b16 %v3541, %v3533
    %v4422 = vpack.c.b16 %v3542, %v3534
    %v4423 = vpack.c.b16 %v3543, %v3535
    %v4424 = vpack.c.b16 %v3544, %v3536
    %v4425 = vpack.c.b16 %v3545, %v3537
    %v4426 = vpack.c.b16 %v3546, %v3538
    %v4427 = vpack.c.b16 %v3555, %v3547
    %v4428 = vpack.c.b16 %v3556, %v3548
    %v4429 = vpack.c.b16 %v3557, %v3549
    %v4430 = vpack.c.b16 %v3558, %v3550
    %v4431 = vpack.c.b16 %v3559, %v3551
    %v4432 = vpack.c.b16 %v3560, %v3552
    %v4433 = vpack.c.b16 %v3561, %v3553
    %v4434 = vpack.c.b16 %v3562, %v3554
    %v4435 = vpack.c.b16 %v3571, %v3563
    %v4436 = vpack.c.b16 %v3572, %v3564
    %v4437 = vpack.c.b16 %v3573, %v3565
    %v4438 = vpack.c.b16 %v3574, %v3566
    %v4439 = vpack.c.b16 %v3575, %v3567
    %v4440 = vpack.c.b16 %v3576, %v3568
    %v4441 = vpack.c.b16 %v3577, %v3569
    %v4442 = vpack.c.b16 %v3578, %v3570
    %v4443 = vpack.c.b16 %v3587, %v3579
    %v4444 = vpack.c.b16 %v3588, %v3580
    %v4445 = vpack.c.b16 %v3589, %v3581
    %v4446 = vpack.c.b16 %v3590, %v3582
    %v4447 = vpack.c.b16 %v3591, %v3583
    %v4448 = vpack.c.b16 %v3592, %v3584
    %v4449 = vpack.c.b16 %v3593, %v3585
    %v4450 = vpack.c.b16 %v3594, %v3586
    %v4451 = vpack.c.b16 %v3603, %v3595
    %v4452 = vpack.c.b16 %v3604, %v3596
    %v4453 = vpack.c.b16 %v3605, %v3597
    %v4454 = vpack.c.b16 %v3606, %v3598
    %v4455 = vpack.c.b16 %v3607, %v3599
    %v4456 = vpack.c.b16 %v3608, %v3600
    %v4457 = vpack.c.b16 %v3609, %v3601
    %v4458 = vpack.c.b16 %v3610, %v3602
    %v4459 = vpack.c.b16 %v3619, %v3611
    %v4460 = vpack.c.b16 %v3620, %v3612
    %v4461 = vpack.c.b16 %v3621, %v3613
    %v4462 = vpack.c.b16 %v3622, %v3614
    %v4463 = vpack.c.b16 %v3623, %v3615
    %v4464 = vpack.c.b16 %v3624, %v3616
    %v4465 = vpack.c.b16 %v3625, %v3617
    %v4466 = vpack.c.b16 %v3626, %v3618
    %v4467 = vpack.c.b16 %v3635, %v3627
    %v4468 = vpack.c.b16 %v3636, %v3628
    %v4469 = vpack.c.b16 %v3637, %v3629
    %v4470 = vpack.c.b16 %v3638, %v3630
    %v4471 = vpack.c.b16 %v3639, %v3631
    %v4472 = vpack.c.b16 %v3640, %v3632
    %v4473 = vpack.c.b16 %v3641, %v3633
    %v4474 = vpack.c.b16 %v3642, %v3634
    %v4475 = vpack.c.b16 %v3651, %v3643
    %v4476 = vpack.c.b16 %v3652, %v3644
    %v4477 = vpack.c.b16 %v3653, %v3645
    %v4478 = vpack.c.b16 %v3654, %v3646
    %v4479 = vpack.c.b16 %v3655, %v3647
    %v4480 = vpack.c.b16 %v3656, %v3648
    %v4481 = vpack.c.b16 %v3657, %v3649
    %v4482 = vpack.c.b16 %v3658, %v3650
    %v4483 = vpack.c.b16 %v3667, %v3659
    %v4484 = vpack.c.b16 %v3668, %v3660
    %v4485 = vpack.c.b16 %v3669, %v3661
    %v4486 = vpack.c.b16 %v3670, %v3662
    %v4487 = vpack.c.b16 %v3671, %v3663
    %v4488 = vpack.c.b16 %v3672, %v3664
    %v4489 = vpack.c.b16 %v3673, %v3665
    %v4490 = vpack.c.b16 %v3674, %v3666
    %v4491 = vpack.c.b16 %v3683, %v3675
    %v4492 = vpack.c.b16 %v3684, %v3676
    %v4493 = vpack.c.b16 %v3685, %v3677
    %v4494 = vpack.c.b16 %v3686, %v3678
    %v4495 = vpack.c.b16 %v3687, %v3679
    %v4496 = vpack.c.b16 %v3688, %v3680
    %v4497 = vpack.c.b16 %v3689, %v3681
    %v4498 = vpack.c.b16 %v3690, %v3682
    %v4499 = vpack.c.b16 %v3699, %v3691
    %v4500 = vpack.c.b16 %v3700, %v3692
    %v4501 = vpack.c.b16 %v3701, %v3693
    %v4502 = vpack.c.b16 %v3702, %v3694
    %v4503 = vpack.c.b16 %v3703, %v3695
    %v4504 = vpack.c.b16 %v3704, %v3696
    %v4505 = vpack.c.b16 %v3705, %v3697
    %v4506 = vpack.c.b16 %v3706, %v3698
    %v4507 = vpack.c.b16 %v3715, %v3707
    %v4508 = vpack.c.b16 %v3716, %v3708
    %v4509 = vpack.c.b16 %v3717, %v3709
    %v4510 = vpack.c.b16 %v3718, %v3710
    %v4511 = vpack.c.b16 %v3719, %v3711
    %v4512 = vpack.c.b16 %v3720, %v3712
    %v4513 = vpack.c.b16 %v3721, %v3713
    %v4514 = vpack.c.b16 %v3722, %v3714
    %v4515 = vpack.c.b16 %v3731, %v3723
    %v4516 = vpack.c.b16 %v3732, %v3724
    %v4517 = vpack.c.b16 %v3733, %v3725
    %v4518 = vpack.c.b16 %v3734, %v3726
    %v4519 = vpack.c.b16 %v3735, %v3727
    %v4520 = vpack.c.b16 %v3736, %v3728
    %v4521 = vpack.c.b16 %v3737, %v3729
    %v4522 = vpack.c.b16 %v3738, %v3730
    %v4523 = vpack.c.b16 %v3747, %v3739
    %v4524 = vpack.c.b16 %v3748, %v3740
    %v4525 = vpack.c.b16 %v3749, %v3741
    %v4526 = vpack.c.b16 %v3750, %v3742
    %v4527 = vpack.c.b16 %v3751, %v3743
    %v4528 = vpack.c.b16 %v3752, %v3744
    %v4529 = vpack.c.b16 %v3753, %v3745
    %v4530 = vpack.c.b16 %v3754, %v3746
    %v4531 = vpack.c.b16 %v3763, %v3755
    %v4532 = vpack.c.b16 %v3764, %v3756
    %v4533 = vpack.c.b16 %v3765, %v3757
    %v4534 = vpack.c.b16 %v3766, %v3758
    %v4535 = vpack.c.b16 %v3767, %v3759
    %v4536 = vpack.c.b16 %v3768, %v3760
    %v4537 = vpack.c.b16 %v3769, %v3761
    %v4538 = vpack.c.b16 %v3770, %v3762
    %v4539 = vpack.c.b16 %v3779, %v3771
    %v4540 = vpack.c.b16 %v3780, %v3772
    %v4541 = vpack.c.b16 %v3781, %v3773
    %v4542 = vpack.c.b16 %v3782, %v3774
    %v4543 = vpack.c.b16 %v3783, %v3775
    %v4544 = vpack.c.b16 %v3784, %v3776
    %v4545 = vpack.c.b16 %v3785, %v3777
    %v4546 = vpack.c.b16 %v3786, %v3778
    %v4547 = vpack.c.b16 %v3795, %v3787
    %v4548 = vpack.c.b16 %v3796, %v3788
    %v4549 = vpack.c.b16 %v3797, %v3789
    %v4550 = vpack.c.b16 %v3798, %v3790
    %v4551 = vpack.c.b16 %v3799, %v3791
    %v4552 = vpack.c.b16 %v3800, %v3792
    %v4553 = vpack.c.b16 %v3801, %v3793
    %v4554 = vpack.c.b16 %v3802, %v3794
    %v4555 = vpack.c.b16 %v3811, %v3803
    %v4556 = vpack.c.b16 %v3812, %v3804
    %v4557 = vpack.c.b16 %v3813, %v3805
    %v4558 = vpack.c.b16 %v3814, %v3806
    %v4559 = vpack.c.b16 %v3815, %v3807
    %v4560 = vpack.c.b16 %v3816, %v3808
    %v4561 = vpack.c.b16 %v3817, %v3809
    %v4562 = vpack.c.b16 %v3818, %v3810
    %v4563 = vpack.c.b16 %v3827, %v3819
    %v4564 = vpack.c.b16 %v3828, %v3820
    %v4565 = vpack.c.b16 %v3829, %v3821
    %v4566 = vpack.c.b16 %v3830, %v3822
    %v4567 = vpack.c.b16 %v3831, %v3823
    %v4568 = vpack.c.b16 %v3832, %v3824
    %v4569 = vpack.c.b16 %v3833, %v3825
    %v4570 = vpack.c.b16 %v3834, %v3826
    %v4571 = vpack.c.b16 %v3843, %v3835
    %v4572 = vpack.c.b16 %v3844, %v3836
    %v4573 = vpack.c.b16 %v3845, %v3837
    %v4574 = vpack.c.b16 %v3846, %v3838
    %v4575 = vpack.c.b16 %v3847, %v3839
    %v4576 = vpack.c.b16 %v3848, %v3840
    %v4577 = vpack.c.b16 %v3849, %v3841
    %v4578 = vpack.c.b16 %v3850, %v3842
    %v4579 = vpack.c.b16 %v3859, %v3851
    %v4580 = vpack.c.b16 %v3860, %v3852
    %v4581 = vpack.c.b16 %v3861, %v3853
    %v4582 = vpack.c.b16 %v3862, %v3854
    %v4583 = vpack.c.b16 %v3863, %v3855
    %v4584 = vpack.c.b16 %v3864, %v3856
    %v4585 = vpack.c.b16 %v3865, %v3857
    %v4586 = vpack.c.b16 %v3866, %v3858
    %v4587 = vpack.c.b16 %v3875, %v3867
    %v4588 = vpack.c.b16 %v3876, %v3868
    %v4589 = vpack.c.b16 %v3877, %v3869
    %v4590 = vpack.c.b16 %v3878, %v3870
    %v4591 = vpack.c.b16 %v3879, %v3871
    %v4592 = vpack.c.b16 %v3880, %v3872
    %v4593 = vpack.c.b16 %v3881, %v3873
    %v4594 = vpack.c.b16 %v3882, %v3874
    %v4595 = vpack.c.b16 %v3891, %v3883
    %v4596 = vpack.c.b16 %v3892, %v3884
    %v4597 = vpack.c.b16 %v3893, %v3885
    %v4598 = vpack.c.b16 %v3894, %v3886
    %v4599 = vpack.c.b16 %v3895, %v3887
    %v4600 = vpack.c.b16 %v3896, %v3888
    %v4601 = vpack.c.b16 %v3897, %v3889
    %v4602 = vpack.c.b16 %v3898, %v3890
    %v4603 = vpack.c.b16 %v3907, %v3899
    %v4604 = vpack.c.b16 %v3908, %v3900
    %v4605 = vpack.c.b16 %v3909, %v3901
    %v4606 = vpack.c.b16 %v3910, %v3902
    %v4607 = vpack.c.b16 %v3911, %v3903
    %v4608 = vpack.c.b16 %v3912, %v3904
    %v4609 = vpack.c.b16 %v3913, %v3905
    %v4610 = vpack.c.b16 %v3914, %v3906
    %v4611 = vpack.c.b16 %v3923, %v3915
    %v4612 = vpack.c.b16 %v3924, %v3916
    %v4613 = vpack.c.b16 %v3925, %v3917
    %v4614 = vpack.c.b16 %v3926, %v3918
    %v4615 = vpack.c.b16 %v3927, %v3919
    %v4616 = vpack.c.b16 %v3928, %v3920
    %v4617 = vpack.c.b16 %v3929, %v3921
    %v4618 = vpack.c.b16 %v3930, %v3922
    %v4619 = vpack.c.b16 %v3939, %v3931
    %v4620 = vpack.c.b16 %v3940, %v3932
    %v4621 = vpack.c.b16 %v3941, %v3933
    %v4622 = vpack.c.b16 %v3942, %v3934
    %v4623 = vpack.c.b16 %v3943, %v3935
    %v4624 = vpack.c.b16 %v3944, %v3936
    %v4625 = vpack.c.b16 %v3945, %v3937
    %v4626 = vpack.c.b16 %v3946, %v3938
    %v4627 = vpack.c.b16 %v3955, %v3947
    %v4628 = vpack.c.b16 %v3956, %v3948
    %v4629 = vpack.c.b16 %v3957, %v3949
    %v4630 = vpack.c.b16 %v3958, %v3950
    %v4631 = vpack.c.b16 %v3959, %v3951
    %v4632 = vpack.c.b16 %v3960, %v3952
    %v4633 = vpack.c.b16 %v3961, %v3953
    %v4634 = vpack.c.b16 %v3962, %v3954
    %v4635 = vpack.c.b16 %v3971, %v3963
    %v4636 = vpack.c.b16 %v3972, %v3964
    %v4637 = vpack.c.b16 %v3973, %v3965
    %v4638 = vpack.c.b16 %v3974, %v3966
    %v4639 = vpack.c.b16 %v3975, %v3967
    %v4640 = vpack.c.b16 %v3976, %v3968
    %v4641 = vpack.c.b16 %v3977, %v3969
    %v4642 = vpack.c.b16 %v3978, %v3970
    %v4643 = vpack.c.b16 %v3987, %v3979
    %v4644 = vpack.c.b16 %v3988, %v3980
    %v4645 = vpack.c.b16 %v3989, %v3981
    %v4646 = vpack.c.b16 %v3990, %v3982
    %v4647 = vpack.c.b16 %v3991, %v3983
    %v4648 = vpack.c.b16 %v3992, %v3984
    %v4649 = vpack.c.b16 %v3993, %v3985
    %v4650 = vpack.c.b16 %v3994, %v3986
    %v4651 = vpack.c.b16 %v4003, %v3995
    %v4652 = vpack.c.b16 %v4004, %v3996
    %v4653 = vpack.c.b16 %v4005, %v3997
    %v4654 = vpack.c.b16 %v4006, %v3998
    %v4655 = vpack.c.b16 %v4007, %v3999
    %v4656 = vpack.c.b16 %v4008, %v4000
    %v4657 = vpack.c.b16 %v4009, %v4001
    %v4658 = vpack.c.b16 %v4010, %v4002
    %v4659 = vpack.c.b16 %v4019, %v4011
    %v4660 = vpack.c.b16 %v4020, %v4012
    %v4661 = vpack.c.b16 %v4021, %v4013
    %v4662 = vpack.c.b16 %v4022, %v4014
    %v4663 = vpack.c.b16 %v4023, %v4015
    %v4664 = vpack.c.b16 %v4024, %v4016
    %v4665 = vpack.c.b16 %v4025, %v4017
    %v4666 = vpack.c.b16 %v4026, %v4018
    %v4667 = vpack.c.b16 %v4035, %v4027
    %v4668 = vpack.c.b16 %v4036, %v4028
    %v4669 = vpack.c.b16 %v4037, %v4029
    %v4670 = vpack.c.b16 %v4038, %v4030
    %v4671 = vpack.c.b16 %v4039, %v4031
    %v4672 = vpack.c.b16 %v4040, %v4032
    %v4673 = vpack.c.b16 %v4041, %v4033
    %v4674 = vpack.c.b16 %v4042, %v4034
    %v4675 = vpack.c.b16 %v4051, %v4043
    %v4676 = vpack.c.b16 %v4052, %v4044
    %v4677 = vpack.c.b16 %v4053, %v4045
    %v4678 = vpack.c.b16 %v4054, %v4046
    %v4679 = vpack.c.b16 %v4055, %v4047
    %v4680 = vpack.c.b16 %v4056, %v4048
    %v4681 = vpack.c.b16 %v4057, %v4049
    %v4682 = vpack.c.b16 %v4058, %v4050
    %v4683 = vpack.c.b16 %v4067, %v4059
    %v4684 = vpack.c.b16 %v4068, %v4060
    %v4685 = vpack.c.b16 %v4069, %v4061
    %v4686 = vpack.c.b16 %v4070, %v4062
    %v4687 = vpack.c.b16 %v4071, %v4063
    %v4688 = vpack.c.b16 %v4072, %v4064
    %v4689 = vpack.c.b16 %v4073, %v4065
    %v4690 = vpack.c.b16 %v4074, %v4066
    %v4691 = vpack.c.b16 %v4083, %v4075
    %v4692 = vpack.c.b16 %v4084, %v4076
    %v4693 = vpack.c.b16 %v4085, %v4077
    %v4694 = vpack.c.b16 %v4086, %v4078
    %v4695 = vpack.c.b16 %v4087, %v4079
    %v4696 = vpack.c.b16 %v4088, %v4080
    %v4697 = vpack.c.b16 %v4089, %v4081
    %v4698 = vpack.c.b16 %v4090, %v4082
    %v4699 = vpack.c.b16 %v4099, %v4091
    %v4700 = vpack.c.b16 %v4100, %v4092
    %v4701 = vpack.c.b16 %v4101, %v4093
    %v4702 = vpack.c.b16 %v4102, %v4094
    %v4703 = vpack.c.b16 %v4103, %v4095
    %v4704 = vpack.c.b16 %v4104, %v4096
    %v4705 = vpack.c.b16 %v4105, %v4097
    %v4706 = vpack.c.b16 %v4106, %v4098
    %v4707 = vpack.c.b16 %v4115, %v4107
    %v4708 = vpack.c.b16 %v4116, %v4108
    %v4709 = vpack.c.b16 %v4117, %v4109
    %v4710 = vpack.c.b16 %v4118, %v4110
    %v4711 = vpack.c.b16 %v4119, %v4111
    %v4712 = vpack.c.b16 %v4120, %v4112
    %v4713 = vpack.c.b16 %v4121, %v4113
    %v4714 = vpack.c.b16 %v4122, %v4114
    %v4715 = vpack.c.b16 %v4131, %v4123
    %v4716 = vpack.c.b16 %v4132, %v4124
    %v4717 = vpack.c.b16 %v4133, %v4125
    %v4718 = vpack.c.b16 %v4134, %v4126
    %v4719 = vpack.c.b16 %v4135, %v4127
    %v4720 = vpack.c.b16 %v4136, %v4128
    %v4721 = vpack.c.b16 %v4137, %v4129
    %v4722 = vpack.c.b16 %v4138, %v4130
    %v4723 = vpack.c.b16 %v4147, %v4139
    %v4724 = vpack.c.b16 %v4148, %v4140
    %v4725 = vpack.c.b16 %v4149, %v4141
    %v4726 = vpack.c.b16 %v4150, %v4142
    %v4727 = vpack.c.b16 %v4151, %v4143
    %v4728 = vpack.c.b16 %v4152, %v4144
    %v4729 = vpack.c.b16 %v4153, %v4145
    %v4730 = vpack.c.b16 %v4154, %v4146
    %v4731 = vpack.c.b16 %v4163, %v4155
    %v4732 = vpack.c.b16 %v4164, %v4156
    %v4733 = vpack.c.b16 %v4165, %v4157
    %v4734 = vpack.c.b16 %v4166, %v4158
    %v4735 = vpack.c.b16 %v4167, %v4159
    %v4736 = vpack.c.b16 %v4168, %v4160
    %v4737 = vpack.c.b16 %v4169, %v4161
    %v4738 = vpack.c.b16 %v4170, %v4162
    %v4739 = vpack.c.b16 %v4179, %v4171
    %v4740 = vpack.c.b16 %v4180, %v4172
    %v4741 = vpack.c.b16 %v4181, %v4173
    %v4742 = vpack.c.b16 %v4182, %v4174
    %v4743 = vpack.c.b16 %v4183, %v4175
    %v4744 = vpack.c.b16 %v4184, %v4176
    %v4745 = vpack.c.b16 %v4185, %v4177
    %v4746 = vpack.c.b16 %v4186, %v4178
    %v4747 = vpack.c.b16 %v4195, %v4187
    %v4748 = vpack.c.b16 %v4196, %v4188
    %v4749 = vpack.c.b16 %v4197, %v4189
    %v4750 = vpack.c.b16 %v4198, %v4190
    %v4751 = vpack.c.b16 %v4199, %v4191
    %v4752 = vpack.c.b16 %v4200, %v4192
    %v4753 = vpack.c.b16 %v4201, %v4193
    %v4754 = vpack.c.b16 %v4202, %v4194
    %v4755 = vpack.c.b16 %v4211, %v4203
    %v4756 = vpack.c.b16 %v4212, %v4204
    %v4757 = vpack.c.b16 %v4213, %v4205
    %v4758 = vpack.c.b16 %v4214, %v4206
    %v4759 = vpack.c.b16 %v4215, %v4207
    %v4760 = vpack.c.b16 %v4216, %v4208
    %v4761 = vpack.c.b16 %v4217, %v4209
    %v4762 = vpack.c.b16 %v4218, %v4210
    %v4763 = vpack.c.b16 %v4227, %v4219
    %v4764 = vpack.c.b16 %v4228, %v4220
    %v4765 = vpack.c.b16 %v4229, %v4221
    %v4766 = vpack.c.b16 %v4230, %v4222
    %v4767 = vpack.c.b16 %v4231, %v4223
    %v4768 = vpack.c.b16 %v4232, %v4224
    %v4769 = vpack.c.b16 %v4233, %v4225
    %v4770 = vpack.c.b16 %v4234, %v4226
    %v4771 = vpack.c.b16 %v4243, %v4235
    %v4772 = vpack.c.b16 %v4244, %v4236
    %v4773 = vpack.c.b16 %v4245, %v4237
    %v4774 = vpack.c.b16 %v4246, %v4238
    %v4775 = vpack.c.b16 %v4247, %v4239
    %v4776 = vpack.c.b16 %v4248, %v4240
    %v4777 = vpack.c.b16 %v4249, %v4241
    %v4778 = vpack.c.b16 %v4250, %v4242
    %v4779 = vpack.c.b16 %v4259, %v4251
    %v4780 = vpack.c.b16 %v4260, %v4252
    %v4781 = vpack.c.b16 %v4261, %v4253
    %v4782 = vpack.c.b16 %v4262, %v4254
    %v4783 = vpack.c.b16 %v4263, %v4255
    %v4784 = vpack.c.b16 %v4264, %v4256
    %v4785 = vpack.c.b16 %v4265, %v4257
    %v4786 = vpack.c.b16 %v4266, %v4258
    %v4787 = vpack.c.b16 %v4275, %v4267
    %v4788 = vpack.c.b16 %v4276, %v4268
    %v4789 = vpack.c.b16 %v4277, %v4269
    %v4790 = vpack.c.b16 %v4278, %v4270
    %v4791 = vpack.c.b16 %v4279, %v4271
    %v4792 = vpack.c.b16 %v4280, %v4272
    %v4793 = vpack.c.b16 %v4281, %v4273
    %v4794 = vpack.c.b16 %v4282, %v4274
    %5307 = vmatprep.subr.bf16.mxu0 %v4284
    %5308 = vmatpush1.bf16.msra.mxu0 %v4283
    %5309 = vmatprep.subr.bf16.mxu0 %v4292
    %5310 = vmatpush1.bf16.msra.mxu0 %v4291
    %5311 = vmatprep.subr.bf16.mxu0 %v4300
    %5312 = vmatpush1.bf16.msra.mxu0 %v4299
    %5313 = vmatprep.subr.bf16.mxu0 %v4308
    %5314 = vmatpush1.bf16.msra.mxu0 %v4307
    %5315 = vmatprep.subr.bf16.mxu0 %v4316
    %5316 = vmatpush1.bf16.msra.mxu0 %v4315
    %5317 = vmatprep.subr.bf16.mxu0 %v4324
    %5318 = vmatpush1.bf16.msra.mxu0 %v4323
    %5319 = vmatprep.subr.bf16.mxu0 %v4332
    %5320 = vmatpush1.bf16.msra.mxu0 %v4331
    %5321 = vmatprep.subr.bf16.mxu0 %v4340
    %5322 = vmatpush1.bf16.msra.mxu0 %v4339
    %5323 = vmatprep.subr.bf16.mxu0 %v4348
    %5324 = vmatpush1.bf16.msra.mxu0 %v4347
    %5325 = vmatprep.subr.bf16.mxu0 %v4356
    %5326 = vmatpush1.bf16.msra.mxu0 %v4355
    %5327 = vmatprep.subr.bf16.mxu0 %v4364
    %5328 = vmatpush1.bf16.msra.mxu0 %v4363
    %5329 = vmatprep.subr.bf16.mxu0 %v4372
    %5330 = vmatpush1.bf16.msra.mxu0 %v4371
    %5331 = vmatprep.subr.bf16.mxu0 %v4380
    %5332 = vmatpush1.bf16.msra.mxu0 %v4379
    %5333 = vmatprep.subr.bf16.mxu0 %v4388
    %5334 = vmatpush1.bf16.msra.mxu0 %v4387
    %5335 = vmatprep.subr.bf16.mxu0 %v4396
    %5336 = vmatpush1.bf16.msra.mxu0 %v4395
    %5337 = vmatprep.subr.bf16.mxu0 %v4404
    %5338 = vmatpush1.bf16.msra.mxu0 %v4403
    %5339 = vmatprep.mubr.bf16.mxu0 %v2178
    %5340 = vmatmul.mubr.bf16.gmra.mrb[0].mxu0 %v2177
    %v5341 = vpop.f32.mrb[0].mxu0
    %v5342 = vadd.f32 %v2710, %v5341
    %v5343 = vpop.f32.mrb[0].mxu0
    %v5344 = vadd.f32 %v2714, %v5343
    %v5345 = vpop.f32.mrb[0].mxu0
    %v5346 = vadd.f32 %v2710, %v5345
    %v5347 = vpop.f32.mrb[0].mxu0
    %v5348 = vadd.f32 %v2714, %v5347
    %5349 = vmatprep.mubr.bf16.mxu0 %v2186
    %5350 = vmatmul.mubr.bf16.gmra.mrb[0].mxu0 %v2185
    %v5351 = vpop.f32.mrb[0].mxu0
    %v5352 = vadd.f32 %v2710, %v5351
    %v5353 = vpop.f32.mrb[0].mxu0
    %v5354 = vadd.f32 %v2714, %v5353
    %v5355 = vpop.f32.mrb[0].mxu0
    %v5356 = vpop.f32.mrb[0].mxu0
    %5357 = vdwg.mxu0
    %5358 = vmatprep.subr.bf16.mxu0 %v4412
    %5359 = vmatpush1.bf16.msra.mxu0 %v4411
    %5360 = vmatprep.subr.bf16.mxu0 %v4420
    %5361 = vmatpush1.bf16.msra.mxu0 %v4419
    %5362 = vmatprep.subr.bf16.mxu0 %v4428
    %5363 = vmatpush1.bf16.msra.mxu0 %v4427
    %5364 = vmatprep.subr.bf16.mxu0 %v4436
    %5365 = vmatpush1.bf16.msra.mxu0 %v4435
    %5366 = vmatprep.subr.bf16.mxu0 %v4444
    %5367 = vmatpush1.bf16.msra.mxu0 %v4443
    %5368 = vmatprep.subr.bf16.mxu0 %v4452
    %5369 = vmatpush1.bf16.msra.mxu0 %v4451
    %5370 = vmatprep.subr.bf16.mxu0 %v4460
    %5371 = vmatpush1.bf16.msra.mxu0 %v4459
    %5372 = vmatprep.subr.bf16.mxu0 %v4468
    %5373 = vmatpush1.bf16.msra.mxu0 %v4467
    %5374 = vmatprep.subr.bf16.mxu0 %v4476
    %5375 = vmatpush1.bf16.msra.mxu0 %v4475
    %5376 = vmatprep.subr.bf16.mxu0 %v4484
    %5377 = vmatpush1.bf16.msra.mxu0 %v4483
    %5378 = vmatprep.subr.bf16.mxu0 %v4492
    %5379 = vmatpush1.bf16.msra.mxu0 %v4491
    %5380 = vmatprep.subr.bf16.mxu0 %v4500
    %5381 = vmatpush1.bf16.msra.mxu0 %v4499
    %5382 = vmatprep.subr.bf16.mxu0 %v4508
    %5383 = vmatpush1.bf16.msra.mxu0 %v4507
    %5384 = vmatprep.subr.bf16.mxu0 %v4516
    %5385 = vmatpush1.bf16.msra.mxu0 %v4515
    %5386 = vmatprep.subr.bf16.mxu0 %v4524
    %5387 = vmatpush1.bf16.msra.mxu0 %v4523
    %5388 = vmatprep.subr.bf16.mxu0 %v4532
    %5389 = vmatpush1.bf16.msra.mxu0 %v4531
    %5390 = vmatprep.mubr.bf16.mxu0 %v2180
    %5391 = vmatmul.mubr.bf16.gmra.mrb[0].mxu0 %v2179
    %v5392 = vpop.f32.mrb[0].mxu0
    %v5393 = vadd.f32 %v5342, %v5392
    %v5394 = vpop.f32.mrb[0].mxu0
    %v5395 = vadd.f32 %v5344, %v5394
    %v5396 = vpop.f32.mrb[0].mxu0
    %v5397 = vadd.f32 %v5346, %v5396
    %v5398 = vpop.f32.mrb[0].mxu0
    %v5399 = vadd.f32 %v5348, %v5398
    %5400 = vmatprep.mubr.bf16.mxu0 %v2188
    %5401 = vmatmul.mubr.bf16.gmra.mrb[0].mxu0 %v2187
    %v5402 = vpop.f32.mrb[0].mxu0
    %v5403 = vadd.f32 %v5352, %v5402
    %v5404 = vpop.f32.mrb[0].mxu0
    %v5405 = vadd.f32 %v5354, %v5404
    %v5406 = vpop.f32.mrb[0].mxu0
    %v5407 = vpop.f32.mrb[0].mxu0
    %5408 = vdwg.mxu0
    %5409 = vmatprep.subr.bf16.mxu0 %v4540
    %5410 = vmatpush1.bf16.msra.mxu0 %v4539
    %5411 = vmatprep.subr.bf16.mxu0 %v4548
    %5412 = vmatpush1.bf16.msra.mxu0 %v4547
    %5413 = vmatprep.subr.bf16.mxu0 %v4556
    %5414 = vmatpush1.bf16.msra.mxu0 %v4555
    %5415 = vmatprep.subr.bf16.mxu0 %v4564
    %5416 = vmatpush1.bf16.msra.mxu0 %v4563
    %5417 = vmatprep.subr.bf16.mxu0 %v4572
    %5418 = vmatpush1.bf16.msra.mxu0 %v4571
    %5419 = vmatprep.subr.bf16.mxu0 %v4580
    %5420 = vmatpush1.bf16.msra.mxu0 %v4579
    %5421 = vmatprep.subr.bf16.mxu0 %v4588
    %5422 = vmatpush1.bf16.msra.mxu0 %v4587
    %5423 = vmatprep.subr.bf16.mxu0 %v4596
    %5424 = vmatpush1.bf16.msra.mxu0 %v4595
    %5425 = vmatprep.subr.bf16.mxu0 %v4604
    %5426 = vmatpush1.bf16.msra.mxu0 %v4603
    %5427 = vmatprep.subr.bf16.mxu0 %v4612
    %5428 = vmatpush1.bf16.msra.mxu0 %v4611
    %5429 = vmatprep.subr.bf16.mxu0 %v4620
    %5430 = vmatpush1.bf16.msra.mxu0 %v4619
    %5431 = vmatprep.subr.bf16.mxu0 %v4628
    %5432 = vmatpush1.bf16.msra.mxu0 %v4627
    %5433 = vmatprep.subr.bf16.mxu0 %v4636
    %5434 = vmatpush1.bf16.msra.mxu0 %v4635
    %5435 = vmatprep.subr.bf16.mxu0 %v4644
    %5436 = vmatpush1.bf16.msra.mxu0 %v4643
    %5437 = vmatprep.subr.bf16.mxu0 %v4652
    %5438 = vmatpush1.bf16.msra.mxu0 %v4651
    %5439 = vmatprep.subr.bf16.mxu0 %v4660
    %5440 = vmatpush1.bf16.msra.mxu0 %v4659
    %5441 = vmatprep.mubr.bf16.mxu0 %v2182
    %5442 = vmatmul.mubr.bf16.gmra.mrb[0].mxu0 %v2181
    %v5443 = vpop.f32.mrb[0].mxu0
    %v5444 = vadd.f32 %v5393, %v5443
    %v5445 = vpop.f32.mrb[0].mxu0
    %v5446 = vadd.f32 %v5395, %v5445
    %v5447 = vpop.f32.mrb[0].mxu0
    %v5448 = vadd.f32 %v5397, %v5447
    %v5449 = vpop.f32.mrb[0].mxu0
    %v5450 = vadd.f32 %v5399, %v5449
    %5451 = vmatprep.mubr.bf16.mxu0 %v2190
    %5452 = vmatmul.mubr.bf16.gmra.mrb[0].mxu0 %v2189
    %v5453 = vpop.f32.mrb[0].mxu0
    %v5454 = vadd.f32 %v5403, %v5453
    %v5455 = vpop.f32.mrb[0].mxu0
    %v5456 = vadd.f32 %v5405, %v5455
    %v5457 = vpop.f32.mrb[0].mxu0
    %v5458 = vpop.f32.mrb[0].mxu0
    %5459 = vdwg.mxu0
    %5460 = vmatprep.subr.bf16.mxu0 %v4668
    %5461 = vmatpush1.bf16.msra.mxu0 %v4667
    %5462 = vmatprep.subr.bf16.mxu0 %v4676
    %5463 = vmatpush1.bf16.msra.mxu0 %v4675
    %5464 = vmatprep.subr.bf16.mxu0 %v4684
    %5465 = vmatpush1.bf16.msra.mxu0 %v4683
    %5466 = vmatprep.subr.bf16.mxu0 %v4692
    %5467 = vmatpush1.bf16.msra.mxu0 %v4691
    %5468 = vmatprep.subr.bf16.mxu0 %v4700
    %5469 = vmatpush1.bf16.msra.mxu0 %v4699
    %5470 = vmatprep.subr.bf16.mxu0 %v4708
    %5471 = vmatpush1.bf16.msra.mxu0 %v4707
    %5472 = vmatprep.subr.bf16.mxu0 %v4716
    %5473 = vmatpush1.bf16.msra.mxu0 %v4715
    %5474 = vmatprep.subr.bf16.mxu0 %v4724
    %5475 = vmatpush1.bf16.msra.mxu0 %v4723
    %5476 = vmatprep.subr.bf16.mxu0 %v4732
    %5477 = vmatpush1.bf16.msra.mxu0 %v4731
    %5478 = vmatprep.subr.bf16.mxu0 %v4740
    %5479 = vmatpush1.bf16.msra.mxu0 %v4739
    %5480 = vmatprep.subr.bf16.mxu0 %v4748
    %5481 = vmatpush1.bf16.msra.mxu0 %v4747
    %5482 = vmatprep.subr.bf16.mxu0 %v4756
    %5483 = vmatpush1.bf16.msra.mxu0 %v4755
    %5484 = vmatprep.subr.bf16.mxu0 %v4764
    %5485 = vmatpush1.bf16.msra.mxu0 %v4763
    %5486 = vmatprep.subr.bf16.mxu0 %v4772
    %5487 = vmatpush1.bf16.msra.mxu0 %v4771
    %5488 = vmatprep.subr.bf16.mxu0 %v4780
    %5489 = vmatpush1.bf16.msra.mxu0 %v4779
    %5490 = vmatprep.subr.bf16.mxu0 %v4788
    %5491 = vmatpush1.bf16.msra.mxu0 %v4787
    %5492 = vmatprep.mubr.bf16.mxu0 %v2184
    %5493 = vmatmul.mubr.bf16.gmra.mrb[0].mxu0 %v2183
    %v5494 = vpop.f32.mrb[0].mxu0
    %v5495 = vadd.f32 %v5444, %v5494
    %v5496 = vpop.f32.mrb[0].mxu0
    %v5497 = vadd.f32 %v5446, %v5496
    %v5498 = vpop.f32.mrb[0].mxu0
    %v5499 = vadd.f32 %v5448, %v5498
    %v5500 = vpop.f32.mrb[0].mxu0
    %v5501 = vadd.f32 %v5450, %v5500
    %5502 = vmatprep.mubr.bf16.mxu0 %v2192
    %5503 = vmatmul.mubr.bf16.gmra.mrb[0].mxu0 %v2191
    %v5504 = vpop.f32.mrb[0].mxu0
    %v5505 = vadd.f32 %v5454, %v5504
    %v5506 = vpop.f32.mrb[0].mxu0
    %v5507 = vadd.f32 %v5456, %v5506
    %v5508 = vpop.f32.mrb[0].mxu0
    %v5509 = vpop.f32.mrb[0].mxu0
    %5510 = vdwg.mxu0
    %5511 = vmatprep.subr.bf16.mxu0 %v4286
    %5512 = vmatpush1.bf16.msra.mxu0 %v4285
    %5513 = vmatprep.subr.bf16.mxu0 %v4294
    %5514 = vmatpush1.bf16.msra.mxu0 %v4293
    %5515 = vmatprep.subr.bf16.mxu0 %v4302
    %5516 = vmatpush1.bf16.msra.mxu0 %v4301
    %5517 = vmatprep.subr.bf16.mxu0 %v4310
    %5518 = vmatpush1.bf16.msra.mxu0 %v4309
    %5519 = vmatprep.subr.bf16.mxu0 %v4318
    %5520 = vmatpush1.bf16.msra.mxu0 %v4317
    %5521 = vmatprep.subr.bf16.mxu0 %v4326
    %5522 = vmatpush1.bf16.msra.mxu0 %v4325
    %5523 = vmatprep.subr.bf16.mxu0 %v4334
    %5524 = vmatpush1.bf16.msra.mxu0 %v4333
    %5525 = vmatprep.subr.bf16.mxu0 %v4342
    %5526 = vmatpush1.bf16.msra.mxu0 %v4341
    %5527 = vmatprep.subr.bf16.mxu0 %v4350
    %5528 = vmatpush1.bf16.msra.mxu0 %v4349
    %5529 = vmatprep.subr.bf16.mxu0 %v4358
    %5530 = vmatpush1.bf16.msra.mxu0 %v4357
    %5531 = vmatprep.subr.bf16.mxu0 %v4366
    %5532 = vmatpush1.bf16.msra.mxu0 %v4365
    %5533 = vmatprep.subr.bf16.mxu0 %v4374
    %5534 = vmatpush1.bf16.msra.mxu0 %v4373
    %5535 = vmatprep.subr.bf16.mxu0 %v4382
    %5536 = vmatpush1.bf16.msra.mxu0 %v4381
    %5537 = vmatprep.subr.bf16.mxu0 %v4390
    %5538 = vmatpush1.bf16.msra.mxu0 %v4389
    %5539 = vmatprep.subr.bf16.mxu0 %v4398
    %5540 = vmatpush1.bf16.msra.mxu0 %v4397
    %5541 = vmatprep.subr.bf16.mxu0 %v4406
    %5542 = vmatpush1.bf16.msra.mxu0 %v4405
    %5543 = vmatprep.mubr.bf16.mxu0 %v2178
    %5544 = vmatmul.mubr.bf16.gmra.mrb[0].mxu0 %v2177
    %v5545 = vpop.f32.mrb[0].mxu0
    %v5546 = vadd.f32 %v2718, %v5545
    %v5547 = vpop.f32.mrb[0].mxu0
    %v5548 = vadd.f32 %v2722, %v5547
    %v5549 = vpop.f32.mrb[0].mxu0
    %v5550 = vadd.f32 %v2718, %v5549
    %v5551 = vpop.f32.mrb[0].mxu0
    %v5552 = vadd.f32 %v2722, %v5551
    %5553 = vmatprep.mubr.bf16.mxu0 %v2186
    %5554 = vmatmul.mubr.bf16.gmra.mrb[0].mxu0 %v2185
    %v5555 = vpop.f32.mrb[0].mxu0
    %v5556 = vadd.f32 %v2718, %v5555
    %v5557 = vpop.f32.mrb[0].mxu0
    %v5558 = vadd.f32 %v2722, %v5557
    %v5559 = vpop.f32.mrb[0].mxu0
    %v5560 = vpop.f32.mrb[0].mxu0
    %5561 = vdwg.mxu0
    %5562 = vmatprep.subr.bf16.mxu0 %v4414
    %5563 = vmatpush1.bf16.msra.mxu0 %v4413
    %5564 = vmatprep.subr.bf16.mxu0 %v4422
    %5565 = vmatpush1.bf16.msra.mxu0 %v4421
    %5566 = vmatprep.subr.bf16.mxu0 %v4430
    %5567 = vmatpush1.bf16.msra.mxu0 %v4429
    %5568 = vmatprep.subr.bf16.mxu0 %v4438
    %5569 = vmatpush1.bf16.msra.mxu0 %v4437
    %5570 = vmatprep.subr.bf16.mxu0 %v4446
    %5571 = vmatpush1.bf16.msra.mxu0 %v4445
    %5572 = vmatprep.subr.bf16.mxu0 %v4454
    %5573 = vmatpush1.bf16.msra.mxu0 %v4453
    %5574 = vmatprep.subr.bf16.mxu0 %v4462
    %5575 = vmatpush1.bf16.msra.mxu0 %v4461
    %5576 = vmatprep.subr.bf16.mxu0 %v4470
    %5577 = vmatpush1.bf16.msra.mxu0 %v4469
    %5578 = vmatprep.subr.bf16.mxu0 %v4478
    %5579 = vmatpush1.bf16.msra.mxu0 %v4477
    %5580 = vmatprep.subr.bf16.mxu0 %v4486
    %5581 = vmatpush1.bf16.msra.mxu0 %v4485
    %5582 = vmatprep.subr.bf16.mxu0 %v4494
    %5583 = vmatpush1.bf16.msra.mxu0 %v4493
    %5584 = vmatprep.subr.bf16.mxu0 %v4502
    %5585 = vmatpush1.bf16.msra.mxu0 %v4501
    %5586 = vmatprep.subr.bf16.mxu0 %v4510
    %5587 = vmatpush1.bf16.msra.mxu0 %v4509
    %5588 = vmatprep.subr.bf16.mxu0 %v4518
    %5589 = vmatpush1.bf16.msra.mxu0 %v4517
    %5590 = vmatprep.subr.bf16.mxu0 %v4526
    %5591 = vmatpush1.bf16.msra.mxu0 %v4525
    %5592 = vmatprep.subr.bf16.mxu0 %v4534
    %5593 = vmatpush1.bf16.msra.mxu0 %v4533
    %5594 = vmatprep.mubr.bf16.mxu0 %v2180
    %5595 = vmatmul.mubr.bf16.gmra.mrb[0].mxu0 %v2179
    %v5596 = vpop.f32.mrb[0].mxu0
    %v5597 = vadd.f32 %v5546, %v5596
    %v5598 = vpop.f32.mrb[0].mxu0
    %v5599 = vadd.f32 %v5548, %v5598
    %v5600 = vpop.f32.mrb[0].mxu0
    %v5601 = vadd.f32 %v5550, %v5600
    %v5602 = vpop.f32.mrb[0].mxu0
    %v5603 = vadd.f32 %v5552, %v5602
    %5604 = vmatprep.mubr.bf16.mxu0 %v2188
    %5605 = vmatmul.mubr.bf16.gmra.mrb[0].mxu0 %v2187
    %v5606 = vpop.f32.mrb[0].mxu0
    %v5607 = vadd.f32 %v5556, %v5606
    %v5608 = vpop.f32.mrb[0].mxu0
    %v5609 = vadd.f32 %v5558, %v5608
    %v5610 = vpop.f32.mrb[0].mxu0
    %v5611 = vpop.f32.mrb[0].mxu0
    %5612 = vdwg.mxu0
    %5613 = vmatprep.subr.bf16.mxu0 %v4542
    %5614 = vmatpush1.bf16.msra.mxu0 %v4541
    %5615 = vmatprep.subr.bf16.mxu0 %v4550
    %5616 = vmatpush1.bf16.msra.mxu0 %v4549
    %5617 = vmatprep.subr.bf16.mxu0 %v4558
    %5618 = vmatpush1.bf16.msra.mxu0 %v4557
    %5619 = vmatprep.subr.bf16.mxu0 %v4566
    %5620 = vmatpush1.bf16.msra.mxu0 %v4565
    %5621 = vmatprep.subr.bf16.mxu0 %v4574
    %5622 = vmatpush1.bf16.msra.mxu0 %v4573
    %5623 = vmatprep.subr.bf16.mxu0 %v4582
    %5624 = vmatpush1.bf16.msra.mxu0 %v4581
    %5625 = vmatprep.subr.bf16.mxu0 %v4590
    %5626 = vmatpush1.bf16.msra.mxu0 %v4589
    %5627 = vmatprep.subr.bf16.mxu0 %v4598
    %5628 = vmatpush1.bf16.msra.mxu0 %v4597
    %5629 = vmatprep.subr.bf16.mxu0 %v4606
    %5630 = vmatpush1.bf16.msra.mxu0 %v4605
    %5631 = vmatprep.subr.bf16.mxu0 %v4614
    %5632 = vmatpush1.bf16.msra.mxu0 %v4613
    %5633 = vmatprep.subr.bf16.mxu0 %v4622
    %5634 = vmatpush1.bf16.msra.mxu0 %v4621
    %5635 = vmatprep.subr.bf16.mxu0 %v4630
    %5636 = vmatpush1.bf16.msra.mxu0 %v4629
    %5637 = vmatprep.subr.bf16.mxu0 %v4638
    %5638 = vmatpush1.bf16.msra.mxu0 %v4637
    %5639 = vmatprep.subr.bf16.mxu0 %v4646
    %5640 = vmatpush1.bf16.msra.mxu0 %v4645
    %5641 = vmatprep.subr.bf16.mxu0 %v4654
    %5642 = vmatpush1.bf16.msra.mxu0 %v4653
    %5643 = vmatprep.subr.bf16.mxu0 %v4662
    %5644 = vmatpush1.bf16.msra.mxu0 %v4661
    %5645 = vmatprep.mubr.bf16.mxu0 %v2182
    %5646 = vmatmul.mubr.bf16.gmra.mrb[0].mxu0 %v2181
    %v5647 = vpop.f32.mrb[0].mxu0
    %v5648 = vadd.f32 %v5597, %v5647
    %v5649 = vpop.f32.mrb[0].mxu0
    %v5650 = vadd.f32 %v5599, %v5649
    %v5651 = vpop.f32.mrb[0].mxu0
    %v5652 = vadd.f32 %v5601, %v5651
    %v5653 = vpop.f32.mrb[0].mxu0
    %v5654 = vadd.f32 %v5603, %v5653
    %5655 = vmatprep.mubr.bf16.mxu0 %v2190
    %5656 = vmatmul.mubr.bf16.gmra.mrb[0].mxu0 %v2189
    %v5657 = vpop.f32.mrb[0].mxu0
    %v5658 = vadd.f32 %v5607, %v5657
    %v5659 = vpop.f32.mrb[0].mxu0
    %v5660 = vadd.f32 %v5609, %v5659
    %v5661 = vpop.f32.mrb[0].mxu0
    %v5662 = vpop.f32.mrb[0].mxu0
    %5663 = vdwg.mxu0
    %5664 = vmatprep.subr.bf16.mxu0 %v4670
    %5665 = vmatpush1.bf16.msra.mxu0 %v4669
    %5666 = vmatprep.subr.bf16.mxu0 %v4678
    %5667 = vmatpush1.bf16.msra.mxu0 %v4677
    %5668 = vmatprep.subr.bf16.mxu0 %v4686
    %5669 = vmatpush1.bf16.msra.mxu0 %v4685
    %5670 = vmatprep.subr.bf16.mxu0 %v4694
    %5671 = vmatpush1.bf16.msra.mxu0 %v4693
    %5672 = vmatprep.subr.bf16.mxu0 %v4702
    %5673 = vmatpush1.bf16.msra.mxu0 %v4701
    %5674 = vmatprep.subr.bf16.mxu0 %v4710
    %5675 = vmatpush1.bf16.msra.mxu0 %v4709
    %5676 = vmatprep.subr.bf16.mxu0 %v4718
    %5677 = vmatpush1.bf16.msra.mxu0 %v4717
    %5678 = vmatprep.subr.bf16.mxu0 %v4726
    %5679 = vmatpush1.bf16.msra.mxu0 %v4725
    %5680 = vmatprep.subr.bf16.mxu0 %v4734
    %5681 = vmatpush1.bf16.msra.mxu0 %v4733
    %5682 = vmatprep.subr.bf16.mxu0 %v4742
    %5683 = vmatpush1.bf16.msra.mxu0 %v4741
    %5684 = vmatprep.subr.bf16.mxu0 %v4750
    %5685 = vmatpush1.bf16.msra.mxu0 %v4749
    %5686 = vmatprep.subr.bf16.mxu0 %v4758
    %5687 = vmatpush1.bf16.msra.mxu0 %v4757
    %5688 = vmatprep.subr.bf16.mxu0 %v4766
    %5689 = vmatpush1.bf16.msra.mxu0 %v4765
    %5690 = vmatprep.subr.bf16.mxu0 %v4774
    %5691 = vmatpush1.bf16.msra.mxu0 %v4773
    %5692 = vmatprep.subr.bf16.mxu0 %v4782
    %5693 = vmatpush1.bf16.msra.mxu0 %v4781
    %5694 = vmatprep.subr.bf16.mxu0 %v4790
    %5695 = vmatpush1.bf16.msra.mxu0 %v4789
    %5696 = vmatprep.mubr.bf16.mxu0 %v2184
    %5697 = vmatmul.mubr.bf16.gmra.mrb[0].mxu0 %v2183
    %v5698 = vpop.f32.mrb[0].mxu0
    %v5699 = vadd.f32 %v5648, %v5698
    %v5700 = vpop.f32.mrb[0].mxu0
    %v5701 = vadd.f32 %v5650, %v5700
    %v5702 = vpop.f32.mrb[0].mxu0
    %v5703 = vadd.f32 %v5652, %v5702
    %v5704 = vpop.f32.mrb[0].mxu0
    %v5705 = vadd.f32 %v5654, %v5704
    %5706 = vmatprep.mubr.bf16.mxu0 %v2192
    %5707 = vmatmul.mubr.bf16.gmra.mrb[0].mxu0 %v2191
    %v5708 = vpop.f32.mrb[0].mxu0
    %v5709 = vadd.f32 %v5658, %v5708
    %v5710 = vpop.f32.mrb[0].mxu0
    %v5711 = vadd.f32 %v5660, %v5710
    %v5712 = vpop.f32.mrb[0].mxu0
    %v5713 = vpop.f32.mrb[0].mxu0
    %5714 = vdwg.mxu0
    %5715 = vmatprep.subr.bf16.mxu0 %v4288
    %5716 = vmatpush1.bf16.msra.mxu0 %v4287
    %5717 = vmatprep.subr.bf16.mxu0 %v4296
    %5718 = vmatpush1.bf16.msra.mxu0 %v4295
    %5719 = vmatprep.subr.bf16.mxu0 %v4304
    %5720 = vmatpush1.bf16.msra.mxu0 %v4303
    %5721 = vmatprep.subr.bf16.mxu0 %v4312
    %5722 = vmatpush1.bf16.msra.mxu0 %v4311
    %5723 = vmatprep.subr.bf16.mxu0 %v4320
    %5724 = vmatpush1.bf16.msra.mxu0 %v4319
    %5725 = vmatprep.subr.bf16.mxu0 %v4328
    %5726 = vmatpush1.bf16.msra.mxu0 %v4327
    %5727 = vmatprep.subr.bf16.mxu0 %v4336
    %5728 = vmatpush1.bf16.msra.mxu0 %v4335
    %5729 = vmatprep.subr.bf16.mxu0 %v4344
    %5730 = vmatpush1.bf16.msra.mxu0 %v4343
    %5731 = vmatprep.subr.bf16.mxu0 %v4352
    %5732 = vmatpush1.bf16.msra.mxu0 %v4351
    %5733 = vmatprep.subr.bf16.mxu0 %v4360
    %5734 = vmatpush1.bf16.msra.mxu0 %v4359
    %5735 = vmatprep.subr.bf16.mxu0 %v4368
    %5736 = vmatpush1.bf16.msra.mxu0 %v4367
    %5737 = vmatprep.subr.bf16.mxu0 %v4376
    %5738 = vmatpush1.bf16.msra.mxu0 %v4375
    %5739 = vmatprep.subr.bf16.mxu0 %v4384
    %5740 = vmatpush1.bf16.msra.mxu0 %v4383
    %5741 = vmatprep.subr.bf16.mxu0 %v4392
    %5742 = vmatpush1.bf16.msra.mxu0 %v4391
    %5743 = vmatprep.subr.bf16.mxu0 %v4400
    %5744 = vmatpush1.bf16.msra.mxu0 %v4399
    %5745 = vmatprep.subr.bf16.mxu0 %v4408
    %5746 = vmatpush1.bf16.msra.mxu0 %v4407
    %5747 = vmatprep.mubr.bf16.mxu0 %v2178
    %5748 = vmatmul.mubr.bf16.gmra.mrb[0].mxu0 %v2177
    %v5749 = vpop.f32.mrb[0].mxu0
    %v5750 = vadd.f32 %v2726, %v5749
    %v5751 = vpop.f32.mrb[0].mxu0
    %v5752 = vadd.f32 %v2730, %v5751
    %v5753 = vpop.f32.mrb[0].mxu0
    %v5754 = vadd.f32 %v2726, %v5753
    %v5755 = vpop.f32.mrb[0].mxu0
    %v5756 = vadd.f32 %v2730, %v5755
    %5757 = vmatprep.mubr.bf16.mxu0 %v2186
    %5758 = vmatmul.mubr.bf16.gmra.mrb[0].mxu0 %v2185
    %v5759 = vpop.f32.mrb[0].mxu0
    %v5760 = vadd.f32 %v2726, %v5759
    %v5761 = vpop.f32.mrb[0].mxu0
    %v5762 = vadd.f32 %v2730, %v5761
    %v5763 = vpop.f32.mrb[0].mxu0
    %v5764 = vpop.f32.mrb[0].mxu0
    %5765 = vdwg.mxu0
    %5766 = vmatprep.subr.bf16.mxu0 %v4416
    %5767 = vmatpush1.bf16.msra.mxu0 %v4415
    %5768 = vmatprep.subr.bf16.mxu0 %v4424
    %5769 = vmatpush1.bf16.msra.mxu0 %v4423
    %5770 = vmatprep.subr.bf16.mxu0 %v4432
    %5771 = vmatpush1.bf16.msra.mxu0 %v4431
    %5772 = vmatprep.subr.bf16.mxu0 %v4440
    %5773 = vmatpush1.bf16.msra.mxu0 %v4439
    %5774 = vmatprep.subr.bf16.mxu0 %v4448
    %5775 = vmatpush1.bf16.msra.mxu0 %v4447
    %5776 = vmatprep.subr.bf16.mxu0 %v4456
    %5777 = vmatpush1.bf16.msra.mxu0 %v4455
    %5778 = vmatprep.subr.bf16.mxu0 %v4464
    %5779 = vmatpush1.bf16.msra.mxu0 %v4463
    %5780 = vmatprep.subr.bf16.mxu0 %v4472
    %5781 = vmatpush1.bf16.msra.mxu0 %v4471
    %5782 = vmatprep.subr.bf16.mxu0 %v4480
    %5783 = vmatpush1.bf16.msra.mxu0 %v4479
    %5784 = vmatprep.subr.bf16.mxu0 %v4488
    %5785 = vmatpush1.bf16.msra.mxu0 %v4487
    %5786 = vmatprep.subr.bf16.mxu0 %v4496
    %5787 = vmatpush1.bf16.msra.mxu0 %v4495
    %5788 = vmatprep.subr.bf16.mxu0 %v4504
    %5789 = vmatpush1.bf16.msra.mxu0 %v4503
    %5790 = vmatprep.subr.bf16.mxu0 %v4512
    %5791 = vmatpush1.bf16.msra.mxu0 %v4511
    %5792 = vmatprep.subr.bf16.mxu0 %v4520
    %5793 = vmatpush1.bf16.msra.mxu0 %v4519
    %5794 = vmatprep.subr.bf16.mxu0 %v4528
    %5795 = vmatpush1.bf16.msra.mxu0 %v4527
    %5796 = vmatprep.subr.bf16.mxu0 %v4536
    %5797 = vmatpush1.bf16.msra.mxu0 %v4535
    %5798 = vmatprep.mubr.bf16.mxu0 %v2180
    %5799 = vmatmul.mubr.bf16.gmra.mrb[0].mxu0 %v2179
    %v5800 = vpop.f32.mrb[0].mxu0
    %v5801 = vadd.f32 %v5750, %v5800
    %v5802 = vpop.f32.mrb[0].mxu0
    %v5803 = vadd.f32 %v5752, %v5802
    %v5804 = vpop.f32.mrb[0].mxu0
    %v5805 = vadd.f32 %v5754, %v5804
    %v5806 = vpop.f32.mrb[0].mxu0
    %v5807 = vadd.f32 %v5756, %v5806
    %5808 = vmatprep.mubr.bf16.mxu0 %v2188
    %5809 = vmatmul.mubr.bf16.gmra.mrb[0].mxu0 %v2187
    %v5810 = vpop.f32.mrb[0].mxu0
    %v5811 = vadd.f32 %v5760, %v5810
    %v5812 = vpop.f32.mrb[0].mxu0
    %v5813 = vadd.f32 %v5762, %v5812
    %v5814 = vpop.f32.mrb[0].mxu0
    %v5815 = vpop.f32.mrb[0].mxu0
    %5816 = vdwg.mxu0
    %5817 = vmatprep.subr.bf16.mxu0 %v4544
    %5818 = vmatpush1.bf16.msra.mxu0 %v4543
    %5819 = vmatprep.subr.bf16.mxu0 %v4552
    %5820 = vmatpush1.bf16.msra.mxu0 %v4551
    %5821 = vmatprep.subr.bf16.mxu0 %v4560
    %5822 = vmatpush1.bf16.msra.mxu0 %v4559
    %5823 = vmatprep.subr.bf16.mxu0 %v4568
    %5824 = vmatpush1.bf16.msra.mxu0 %v4567
    %5825 = vmatprep.subr.bf16.mxu0 %v4576
    %5826 = vmatpush1.bf16.msra.mxu0 %v4575
    %5827 = vmatprep.subr.bf16.mxu0 %v4584
    %5828 = vmatpush1.bf16.msra.mxu0 %v4583
    %5829 = vmatprep.subr.bf16.mxu0 %v4592
    %5830 = vmatpush1.bf16.msra.mxu0 %v4591
    %5831 = vmatprep.subr.bf16.mxu0 %v4600
    %5832 = vmatpush1.bf16.msra.mxu0 %v4599
    %5833 = vmatprep.subr.bf16.mxu0 %v4608
    %5834 = vmatpush1.bf16.msra.mxu0 %v4607
    %5835 = vmatprep.subr.bf16.mxu0 %v4616
    %5836 = vmatpush1.bf16.msra.mxu0 %v4615
    %5837 = vmatprep.subr.bf16.mxu0 %v4624
    %5838 = vmatpush1.bf16.msra.mxu0 %v4623
    %5839 = vmatprep.subr.bf16.mxu0 %v4632
    %5840 = vmatpush1.bf16.msra.mxu0 %v4631
    %5841 = vmatprep.subr.bf16.mxu0 %v4640
    %5842 = vmatpush1.bf16.msra.mxu0 %v4639
    %5843 = vmatprep.subr.bf16.mxu0 %v4648
    %5844 = vmatpush1.bf16.msra.mxu0 %v4647
    %5845 = vmatprep.subr.bf16.mxu0 %v4656
    %5846 = vmatpush1.bf16.msra.mxu0 %v4655
    %5847 = vmatprep.subr.bf16.mxu0 %v4664
    %5848 = vmatpush1.bf16.msra.mxu0 %v4663
    %5849 = vmatprep.mubr.bf16.mxu0 %v2182
    %5850 = vmatmul.mubr.bf16.gmra.mrb[0].mxu0 %v2181
    %v5851 = vpop.f32.mrb[0].mxu0
    %v5852 = vadd.f32 %v5801, %v5851
    %v5853 = vpop.f32.mrb[0].mxu0
    %v5854 = vadd.f32 %v5803, %v5853
    %v5855 = vpop.f32.mrb[0].mxu0
    %v5856 = vadd.f32 %v5805, %v5855
    %v5857 = vpop.f32.mrb[0].mxu0
    %v5858 = vadd.f32 %v5807, %v5857
    %5859 = vmatprep.mubr.bf16.mxu0 %v2190
    %5860 = vmatmul.mubr.bf16.gmra.mrb[0].mxu0 %v2189
    %v5861 = vpop.f32.mrb[0].mxu0
    %v5862 = vadd.f32 %v5811, %v5861
    %v5863 = vpop.f32.mrb[0].mxu0
    %v5864 = vadd.f32 %v5813, %v5863
    %v5865 = vpop.f32.mrb[0].mxu0
    %v5866 = vpop.f32.mrb[0].mxu0
    %5867 = vdwg.mxu0
    %5868 = vmatprep.subr.bf16.mxu0 %v4672
    %5869 = vmatpush1.bf16.msra.mxu0 %v4671
    %5870 = vmatprep.subr.bf16.mxu0 %v4680
    %5871 = vmatpush1.bf16.msra.mxu0 %v4679
    %5872 = vmatprep.subr.bf16.mxu0 %v4688
    %5873 = vmatpush1.bf16.msra.mxu0 %v4687
    %5874 = vmatprep.subr.bf16.mxu0 %v4696
    %5875 = vmatpush1.bf16.msra.mxu0 %v4695
    %5876 = vmatprep.subr.bf16.mxu0 %v4704
    %5877 = vmatpush1.bf16.msra.mxu0 %v4703
    %5878 = vmatprep.subr.bf16.mxu0 %v4712
    %5879 = vmatpush1.bf16.msra.mxu0 %v4711
    %5880 = vmatprep.subr.bf16.mxu0 %v4720
    %5881 = vmatpush1.bf16.msra.mxu0 %v4719
    %5882 = vmatprep.subr.bf16.mxu0 %v4728
    %5883 = vmatpush1.bf16.msra.mxu0 %v4727
    %5884 = vmatprep.subr.bf16.mxu0 %v4736
    %5885 = vmatpush1.bf16.msra.mxu0 %v4735
    %5886 = vmatprep.subr.bf16.mxu0 %v4744
    %5887 = vmatpush1.bf16.msra.mxu0 %v4743
    %5888 = vmatprep.subr.bf16.mxu0 %v4752
    %5889 = vmatpush1.bf16.msra.mxu0 %v4751
    %5890 = vmatprep.subr.bf16.mxu0 %v4760
    %5891 = vmatpush1.bf16.msra.mxu0 %v4759
    %5892 = vmatprep.subr.bf16.mxu0 %v4768
    %5893 = vmatpush1.bf16.msra.mxu0 %v4767
    %5894 = vmatprep.subr.bf16.mxu0 %v4776
    %5895 = vmatpush1.bf16.msra.mxu0 %v4775
    %5896 = vmatprep.subr.bf16.mxu0 %v4784
    %5897 = vmatpush1.bf16.msra.mxu0 %v4783
    %5898 = vmatprep.subr.bf16.mxu0 %v4792
    %5899 = vmatpush1.bf16.msra.mxu0 %v4791
    %5900 = vmatprep.mubr.bf16.mxu0 %v2184
    %5901 = vmatmul.mubr.bf16.gmra.mrb[0].mxu0 %v2183
    %v5902 = vpop.f32.mrb[0].mxu0
    %v5903 = vadd.f32 %v5852, %v5902
    %v5904 = vpop.f32.mrb[0].mxu0
    %v5905 = vadd.f32 %v5854, %v5904
    %v5906 = vpop.f32.mrb[0].mxu0
    %v5907 = vadd.f32 %v5856, %v5906
    %v5908 = vpop.f32.mrb[0].mxu0
    %v5909 = vadd.f32 %v5858, %v5908
    %5910 = vmatprep.mubr.bf16.mxu0 %v2192
    %5911 = vmatmul.mubr.bf16.gmra.mrb[0].mxu0 %v2191
    %v5912 = vpop.f32.mrb[0].mxu0
    %v5913 = vadd.f32 %v5862, %v5912
    %v5914 = vpop.f32.mrb[0].mxu0
    %v5915 = vadd.f32 %v5864, %v5914
    %v5916 = vpop.f32.mrb[0].mxu0
    %v5917 = vpop.f32.mrb[0].mxu0
    %5918 = vdwg.mxu0
    %5919 = vmatprep.subr.bf16.mxu0 %v4290
    %5920 = vmatpush1.bf16.msra.mxu0 %v4289
    %5921 = vmatprep.subr.bf16.mxu0 %v4298
    %5922 = vmatpush1.bf16.msra.mxu0 %v4297
    %5923 = vmatprep.subr.bf16.mxu0 %v4306
    %5924 = vmatpush1.bf16.msra.mxu0 %v4305
    %5925 = vmatprep.subr.bf16.mxu0 %v4314
    %5926 = vmatpush1.bf16.msra.mxu0 %v4313
    %5927 = vmatprep.subr.bf16.mxu0 %v4322
    %5928 = vmatpush1.bf16.msra.mxu0 %v4321
    %5929 = vmatprep.subr.bf16.mxu0 %v4330
    %5930 = vmatpush1.bf16.msra.mxu0 %v4329
    %5931 = vmatprep.subr.bf16.mxu0 %v4338
    %5932 = vmatpush1.bf16.msra.mxu0 %v4337
    %5933 = vmatprep.subr.bf16.mxu0 %v4346
    %5934 = vmatpush1.bf16.msra.mxu0 %v4345
    %5935 = vmatprep.subr.bf16.mxu0 %v4354
    %5936 = vmatpush1.bf16.msra.mxu0 %v4353
    %5937 = vmatprep.subr.bf16.mxu0 %v4362
    %5938 = vmatpush1.bf16.msra.mxu0 %v4361
    %5939 = vmatprep.subr.bf16.mxu0 %v4370
    %5940 = vmatpush1.bf16.msra.mxu0 %v4369
    %5941 = vmatprep.subr.bf16.mxu0 %v4378
    %5942 = vmatpush1.bf16.msra.mxu0 %v4377
    %5943 = vmatprep.subr.bf16.mxu0 %v4386
    %5944 = vmatpush1.bf16.msra.mxu0 %v4385
    %5945 = vmatprep.subr.bf16.mxu0 %v4394
    %5946 = vmatpush1.bf16.msra.mxu0 %v4393
    %5947 = vmatprep.subr.bf16.mxu0 %v4402
    %5948 = vmatpush1.bf16.msra.mxu0 %v4401
    %5949 = vmatprep.subr.bf16.mxu0 %v4410
    %5950 = vmatpush1.bf16.msra.mxu0 %v4409
    %5951 = vmatprep.mubr.bf16.mxu0 %v2178
    %5952 = vmatmul.mubr.bf16.gmra.mrb[0].mxu0 %v2177
    %v5953 = vpop.f32.mrb[0].mxu0
    %v5954 = vadd.f32 %v2734, %v5953
    %v5955 = vpop.f32.mrb[0].mxu0
    %v5956 = vadd.f32 %v2738, %v5955
    %v5957 = vpop.f32.mrb[0].mxu0
    %v5958 = vadd.f32 %v2734, %v5957
    %v5959 = vpop.f32.mrb[0].mxu0
    %v5960 = vadd.f32 %v2738, %v5959
    %5961 = vmatprep.mubr.bf16.mxu0 %v2186
    %5962 = vmatmul.mubr.bf16.gmra.mrb[0].mxu0 %v2185
    %v5963 = vpop.f32.mrb[0].mxu0
    %v5964 = vadd.f32 %v2734, %v5963
    %v5965 = vpop.f32.mrb[0].mxu0
    %v5966 = vadd.f32 %v2738, %v5965
    %v5967 = vpop.f32.mrb[0].mxu0
    %v5968 = vpop.f32.mrb[0].mxu0
    %5969 = vdwg.mxu0
    %5970 = vmatprep.subr.bf16.mxu0 %v4418
    %5971 = vmatpush1.bf16.msra.mxu0 %v4417
    %5972 = vmatprep.subr.bf16.mxu0 %v4426
    %5973 = vmatpush1.bf16.msra.mxu0 %v4425
    %5974 = vmatprep.subr.bf16.mxu0 %v4434
    %5975 = vmatpush1.bf16.msra.mxu0 %v4433
    %5976 = vmatprep.subr.bf16.mxu0 %v4442
    %5977 = vmatpush1.bf16.msra.mxu0 %v4441
    %5978 = vmatprep.subr.bf16.mxu0 %v4450
    %5979 = vmatpush1.bf16.msra.mxu0 %v4449
    %5980 = vmatprep.subr.bf16.mxu0 %v4458
    %5981 = vmatpush1.bf16.msra.mxu0 %v4457
    %5982 = vmatprep.subr.bf16.mxu0 %v4466
    %5983 = vmatpush1.bf16.msra.mxu0 %v4465
    %5984 = vmatprep.subr.bf16.mxu0 %v4474
    %5985 = vmatpush1.bf16.msra.mxu0 %v4473
    %5986 = vmatprep.subr.bf16.mxu0 %v4482
    %5987 = vmatpush1.bf16.msra.mxu0 %v4481
    %5988 = vmatprep.subr.bf16.mxu0 %v4490
    %5989 = vmatpush1.bf16.msra.mxu0 %v4489
    %5990 = vmatprep.subr.bf16.mxu0 %v4498
    %5991 = vmatpush1.bf16.msra.mxu0 %v4497
    %5992 = vmatprep.subr.bf16.mxu0 %v4506
    %5993 = vmatpush1.bf16.msra.mxu0 %v4505
    %5994 = vmatprep.subr.bf16.mxu0 %v4514
    %5995 = vmatpush1.bf16.msra.mxu0 %v4513
    %5996 = vmatprep.subr.bf16.mxu0 %v4522
    %5997 = vmatpush1.bf16.msra.mxu0 %v4521
    %5998 = vmatprep.subr.bf16.mxu0 %v4530
    %5999 = vmatpush1.bf16.msra.mxu0 %v4529
    %6000 = vmatprep.subr.bf16.mxu0 %v4538
    %6001 = vmatpush1.bf16.msra.mxu0 %v4537
    %6002 = vmatprep.mubr.bf16.mxu0 %v2180
    %6003 = vmatmul.mubr.bf16.gmra.mrb[0].mxu0 %v2179
    %v6004 = vpop.f32.mrb[0].mxu0
    %v6005 = vadd.f32 %v5954, %v6004
    %v6006 = vpop.f32.mrb[0].mxu0
    %v6007 = vadd.f32 %v5956, %v6006
    %v6008 = vpop.f32.mrb[0].mxu0
    %v6009 = vadd.f32 %v5958, %v6008
    %v6010 = vpop.f32.mrb[0].mxu0
    %v6011 = vadd.f32 %v5960, %v6010
    %6012 = vmatprep.mubr.bf16.mxu0 %v2188
    %6013 = vmatmul.mubr.bf16.gmra.mrb[0].mxu0 %v2187
    %v6014 = vpop.f32.mrb[0].mxu0
    %v6015 = vadd.f32 %v5964, %v6014
    %v6016 = vpop.f32.mrb[0].mxu0
    %v6017 = vadd.f32 %v5966, %v6016
    %v6018 = vpop.f32.mrb[0].mxu0
    %v6019 = vpop.f32.mrb[0].mxu0
    %6020 = vdwg.mxu0
    %6021 = vmatprep.subr.bf16.mxu0 %v4546
    %6022 = vmatpush1.bf16.msra.mxu0 %v4545
    %6023 = vmatprep.subr.bf16.mxu0 %v4554
    %6024 = vmatpush1.bf16.msra.mxu0 %v4553
    %6025 = vmatprep.subr.bf16.mxu0 %v4562
    %6026 = vmatpush1.bf16.msra.mxu0 %v4561
    %6027 = vmatprep.subr.bf16.mxu0 %v4570
    %6028 = vmatpush1.bf16.msra.mxu0 %v4569
    %6029 = vmatprep.subr.bf16.mxu0 %v4578
    %6030 = vmatpush1.bf16.msra.mxu0 %v4577
    %6031 = vmatprep.subr.bf16.mxu0 %v4586
    %6032 = vmatpush1.bf16.msra.mxu0 %v4585
    %6033 = vmatprep.subr.bf16.mxu0 %v4594
    %6034 = vmatpush1.bf16.msra.mxu0 %v4593
    %6035 = vmatprep.subr.bf16.mxu0 %v4602
    %6036 = vmatpush1.bf16.msra.mxu0 %v4601
    %6037 = vmatprep.subr.bf16.mxu0 %v4610
    %6038 = vmatpush1.bf16.msra.mxu0 %v4609
    %6039 = vmatprep.subr.bf16.mxu0 %v4618
    %6040 = vmatpush1.bf16.msra.mxu0 %v4617
    %6041 = vmatprep.subr.bf16.mxu0 %v4626
    %6042 = vmatpush1.bf16.msra.mxu0 %v4625
    %6043 = vmatprep.subr.bf16.mxu0 %v4634
    %6044 = vmatpush1.bf16.msra.mxu0 %v4633
    %6045 = vmatprep.subr.bf16.mxu0 %v4642
    %6046 = vmatpush1.bf16.msra.mxu0 %v4641
    %6047 = vmatprep.subr.bf16.mxu0 %v4650
    %6048 = vmatpush1.bf16.msra.mxu0 %v4649
    %6049 = vmatprep.subr.bf16.mxu0 %v4658
    %6050 = vmatpush1.bf16.msra.mxu0 %v4657
    %6051 = vmatprep.subr.bf16.mxu0 %v4666
    %6052 = vmatpush1.bf16.msra.mxu0 %v4665
    %6053 = vmatprep.mubr.bf16.mxu0 %v2182
    %6054 = vmatmul.mubr.bf16.gmra.mrb[0].mxu0 %v2181
    %v6055 = vpop.f32.mrb[0].mxu0
    %v6056 = vadd.f32 %v6005, %v6055
    %v6057 = vpop.f32.mrb[0].mxu0
    %v6058 = vadd.f32 %v6007, %v6057
    %v6059 = vpop.f32.mrb[0].mxu0
    %v6060 = vadd.f32 %v6009, %v6059
    %v6061 = vpop.f32.mrb[0].mxu0
    %v6062 = vadd.f32 %v6011, %v6061
    %6063 = vmatprep.mubr.bf16.mxu0 %v2190
    %6064 = vmatmul.mubr.bf16.gmra.mrb[0].mxu0 %v2189
    %v6065 = vpop.f32.mrb[0].mxu0
    %v6066 = vadd.f32 %v6015, %v6065
    %v6067 = vpop.f32.mrb[0].mxu0
    %v6068 = vadd.f32 %v6017, %v6067
    %v6069 = vpop.f32.mrb[0].mxu0
    %v6070 = vpop.f32.mrb[0].mxu0
    %6071 = vdwg.mxu0
    %6072 = vmatprep.subr.bf16.mxu0 %v4674
    %6073 = vmatpush1.bf16.msra.mxu0 %v4673
    %6074 = vmatprep.subr.bf16.mxu0 %v4682
    %6075 = vmatpush1.bf16.msra.mxu0 %v4681
    %6076 = vmatprep.subr.bf16.mxu0 %v4690
    %6077 = vmatpush1.bf16.msra.mxu0 %v4689
    %6078 = vmatprep.subr.bf16.mxu0 %v4698
    %6079 = vmatpush1.bf16.msra.mxu0 %v4697
    %6080 = vmatprep.subr.bf16.mxu0 %v4706
    %6081 = vmatpush1.bf16.msra.mxu0 %v4705
    %6082 = vmatprep.subr.bf16.mxu0 %v4714
    %6083 = vmatpush1.bf16.msra.mxu0 %v4713
    %6084 = vmatprep.subr.bf16.mxu0 %v4722
    %6085 = vmatpush1.bf16.msra.mxu0 %v4721
    %6086 = vmatprep.subr.bf16.mxu0 %v4730
    %6087 = vmatpush1.bf16.msra.mxu0 %v4729
    %6088 = vmatprep.subr.bf16.mxu0 %v4738
    %6089 = vmatpush1.bf16.msra.mxu0 %v4737
    %6090 = vmatprep.subr.bf16.mxu0 %v4746
    %6091 = vmatpush1.bf16.msra.mxu0 %v4745
    %6092 = vmatprep.subr.bf16.mxu0 %v4754
    %6093 = vmatpush1.bf16.msra.mxu0 %v4753
    %6094 = vmatprep.subr.bf16.mxu0 %v4762
    %6095 = vmatpush1.bf16.msra.mxu0 %v4761
    %6096 = vmatprep.subr.bf16.mxu0 %v4770
    %6097 = vmatpush1.bf16.msra.mxu0 %v4769
    %6098 = vmatprep.subr.bf16.mxu0 %v4778
    %6099 = vmatpush1.bf16.msra.mxu0 %v4777
    %6100 = vmatprep.subr.bf16.mxu0 %v4786
    %6101 = vmatpush1.bf16.msra.mxu0 %v4785
    %6102 = vmatprep.subr.bf16.mxu0 %v4794
    %6103 = vmatpush1.bf16.msra.mxu0 %v4793
    %6104 = vmatprep.mubr.bf16.mxu0 %v2184
    %6105 = vmatmul.mubr.bf16.gmra.mrb[0].mxu0 %v2183
    %v6106 = vpop.f32.mrb[0].mxu0
    %v6107 = vadd.f32 %v6056, %v6106
    %v6108 = vpop.f32.mrb[0].mxu0
    %v6109 = vadd.f32 %v6058, %v6108
    %v6110 = vpop.f32.mrb[0].mxu0
    %v6111 = vadd.f32 %v6060, %v6110
    %v6112 = vpop.f32.mrb[0].mxu0
    %v6113 = vadd.f32 %v6062, %v6112
    %6114 = vmatprep.mubr.bf16.mxu0 %v2192
    %6115 = vmatmul.mubr.bf16.gmra.mrb[0].mxu0 %v2191
    %v6116 = vpop.f32.mrb[0].mxu0
    %v6117 = vadd.f32 %v6066, %v6116
    %v6118 = vpop.f32.mrb[0].mxu0
    %v6119 = vadd.f32 %v6068, %v6118
    %v6120 = vpop.f32.mrb[0].mxu0
    %v6121 = vpop.f32.mrb[0].mxu0
    %6122 = vdwg.mxu0
    %v6123 = vmax.f32 %v5495, 0.0
    %v6124 = vmax.f32 %v5497, 0.0
    %v6125 = vmax.f32 %v5699, 0.0
    %v6126 = vmax.f32 %v5701, 0.0
    %v6127 = vmax.f32 %v5903, 0.0
    %v6128 = vmax.f32 %v5905, 0.0
    %v6129 = vmax.f32 %v6107, 0.0
    %v6130 = vmax.f32 %v6109, 0.0
    %v6131 = vmax.f32 %v5499, 0.0
    %v6132 = vmax.f32 %v5501, 0.0
    %v6133 = vmax.f32 %v5703, 0.0
    %v6134 = vmax.f32 %v5705, 0.0
    %v6135 = vmax.f32 %v5907, 0.0
    %v6136 = vmax.f32 %v5909, 0.0
    %v6137 = vmax.f32 %v6111, 0.0
    %v6138 = vmax.f32 %v6113, 0.0
    %v6139 = vmax.f32 %v5505, 0.0
    %v6140 = vmax.f32 %v5507, 0.0
    %v6141 = vmax.f32 %v5709, 0.0
    %v6142 = vmax.f32 %v5711, 0.0
    %v6143 = vmax.f32 %v5913, 0.0
    %v6144 = vmax.f32 %v5915, 0.0
    %v6145 = vmax.f32 %v6117, 0.0
    %v6146 = vmax.f32 %v6119, 0.0
    %v6147 = vpack.c.bf16 %v6131, %v6123
    %v6148 = vpack.c.bf16 %v6132, %v6124
    %v6149 = vpack.c.bf16 %v6133, %v6125
    %v6150 = vpack.c.bf16 %v6134, %v6126
    %v6151 = vpack.c.bf16 %v6135, %v6127
    %v6152 = vpack.c.bf16 %v6136, %v6128
    %v6153 = vpack.c.bf16 %v6137, %v6129
    %v6154 = vpack.c.bf16 %v6138, %v6130
    %v6155 = vpack.c.bf16 %v6139, %v6139
    %v6156 = vpack.c.bf16 %v6140, %v6140
    %v6157 = vpack.c.bf16 %v6141, %v6141
    %v6158 = vpack.c.bf16 %v6142, %v6142
    %v6159 = vpack.c.bf16 %v6143, %v6143
    %v6160 = vpack.c.bf16 %v6144, %v6144
    %v6161 = vpack.c.bf16 %v6145, %v6145
    %v6162 = vpack.c.bf16 %v6146, %v6146
    %v6163 = vld [vmem:[#allocation14] sm:$0xff]
    %v6164 = vld [vmem:[#allocation14 + $0x8] sm:$0xff]
    %v6165 = vld [vmem:[#allocation14 + $0x10] sm:$0xff]
    %v6166 = vld [vmem:[#allocation14 + $0x18] sm:$0xff]
    %v6167 = vld [vmem:[#allocation14 + $0x20] sm:$0xff]
    %v6168 = vld [vmem:[#allocation14 + $0x28] sm:$0xff]
    %v6169 = vld [vmem:[#allocation14 + $0x30] sm:$0xff]
    %v6170 = vld [vmem:[#allocation14 + $0x38] sm:$0xff]
    %v6171 = vld [vmem:[#allocation14 + $0x40] sm:$0xff]
    %v6172 = vld [vmem:[#allocation14 + $0x48] sm:$0xff]
    %v6173 = vld [vmem:[#allocation14 + $0x50] sm:$0xff]
    %v6174 = vld [vmem:[#allocation14 + $0x58] sm:$0xff]
    %v6175 = vld [vmem:[#allocation14 + $0x60] sm:$0xff]
    %v6176 = vld [vmem:[#allocation14 + $0x68] sm:$0xff]
    %v6177 = vld [vmem:[#allocation14 + $0x70] sm:$0xff]
    %v6178 = vld [vmem:[#allocation14 + $0x78] sm:$0xff]
    %v6179 = vld [vmem:[#allocation14 + $0x80] sm:$0xff]
    %v6180 = vld [vmem:[#allocation14 + $0x88] sm:$0xff]
    %v6181 = vld [vmem:[#allocation14 + $0x90] sm:$0xff]
    %v6182 = vld [vmem:[#allocation14 + $0x98] sm:$0xff]
    %v6183 = vld [vmem:[#allocation14 + $0xa0] sm:$0xff]
    %v6184 = vld [vmem:[#allocation14 + $0xa8] sm:$0xff]
    %v6185 = vld [vmem:[#allocation14 + $0xb0] sm:$0xff]
    %v6186 = vld [vmem:[#allocation14 + $0xb8] sm:$0xff]
    %v6187 = vld [vmem:[#allocation14 + $0xc0] sm:$0xff]
    %v6188 = vld [vmem:[#allocation14 + $0xc8] sm:$0xff]
    %v6189 = vld [vmem:[#allocation14 + $0xd0] sm:$0xff]
    %v6190 = vld [vmem:[#allocation14 + $0xd8] sm:$0xff]
    %v6191 = vld [vmem:[#allocation14 + $0xe0] sm:$0xff]
    %v6192 = vld [vmem:[#allocation14 + $0xe8] sm:$0xff]
    %v6193 = vld [vmem:[#allocation14 + $0xf0] sm:$0xff]
    %v6194 = vld [vmem:[#allocation14 + $0xf8] sm:$0xff]
    %v6195 = vld [vmem:[#allocation14 + $0x100] sm:$0xff]
    %v6196 = vld [vmem:[#allocation14 + $0x108] sm:$0xff]
    %v6197 = vld [vmem:[#allocation14 + $0x110] sm:$0xff]
    %v6198 = vld [vmem:[#allocation14 + $0x118] sm:$0xff]
    %v6199 = vld [vmem:[#allocation14 + $0x120] sm:$0xff]
    %v6200 = vld [vmem:[#allocation14 + $0x128] sm:$0xff]
    %v6201 = vld [vmem:[#allocation14 + $0x130] sm:$0xff]
    %v6202 = vld [vmem:[#allocation14 + $0x138] sm:$0xff]
    %v6203 = vld [vmem:[#allocation14 + $0x140] sm:$0xff]
    %v6204 = vld [vmem:[#allocation14 + $0x148] sm:$0xff]
    %v6205 = vld [vmem:[#allocation14 + $0x150] sm:$0xff]
    %v6206 = vld [vmem:[#allocation14 + $0x158] sm:$0xff]
    %v6207 = vld [vmem:[#allocation14 + $0x160] sm:$0xff]
    %v6208 = vld [vmem:[#allocation14 + $0x168] sm:$0xff]
    %v6209 = vld [vmem:[#allocation14 + $0x170] sm:$0xff]
    %v6210 = vld [vmem:[#allocation14 + $0x178] sm:$0xff]
    %v6211 = vld [vmem:[#allocation14 + $0x180] sm:$0xff]
    %v6212 = vld [vmem:[#allocation14 + $0x188] sm:$0xff]
    %v6213 = vld [vmem:[#allocation14 + $0x190] sm:$0xff]
    %v6214 = vld [vmem:[#allocation14 + $0x198] sm:$0xff]
    %v6215 = vld [vmem:[#allocation14 + $0x1a0] sm:$0xff]
    %v6216 = vld [vmem:[#allocation14 + $0x1a8] sm:$0xff]
    %v6217 = vld [vmem:[#allocation14 + $0x1b0] sm:$0xff]
    %v6218 = vld [vmem:[#allocation14 + $0x1b8] sm:$0xff]
    %v6219 = vld [vmem:[#allocation14 + $0x1c0] sm:$0xff]
    %v6220 = vld [vmem:[#allocation14 + $0x1c8] sm:$0xff]
    %v6221 = vld [vmem:[#allocation14 + $0x1d0] sm:$0xff]
    %v6222 = vld [vmem:[#allocation14 + $0x1d8] sm:$0xff]
    %v6223 = vld [vmem:[#allocation14 + $0x1e0] sm:$0xff]
    %v6224 = vld [vmem:[#allocation14 + $0x1e8] sm:$0xff]
    %v6225 = vld [vmem:[#allocation14 + $0x1f0] sm:$0xff]
    %v6226 = vld [vmem:[#allocation14 + $0x1f8] sm:$0xff]
    %v6227 = vld [vmem:[#allocation14 + $0x200] sm:$0xff]
    %v6228 = vld [vmem:[#allocation14 + $0x208] sm:$0xff]
    %v6229 = vld [vmem:[#allocation14 + $0x210] sm:$0xff]
    %v6230 = vld [vmem:[#allocation14 + $0x218] sm:$0xff]
    %v6231 = vld [vmem:[#allocation14 + $0x220] sm:$0xff]
    %v6232 = vld [vmem:[#allocation14 + $0x228] sm:$0xff]
    %v6233 = vld [vmem:[#allocation14 + $0x230] sm:$0xff]
    %v6234 = vld [vmem:[#allocation14 + $0x238] sm:$0xff]
    %v6235 = vld [vmem:[#allocation14 + $0x240] sm:$0xff]
    %v6236 = vld [vmem:[#allocation14 + $0x248] sm:$0xff]
    %v6237 = vld [vmem:[#allocation14 + $0x250] sm:$0xff]
    %v6238 = vld [vmem:[#allocation14 + $0x258] sm:$0xff]
    %v6239 = vld [vmem:[#allocation14 + $0x260] sm:$0xff]
    %v6240 = vld [vmem:[#allocation14 + $0x268] sm:$0xff]
    %v6241 = vld [vmem:[#allocation14 + $0x270] sm:$0xff]
    %v6242 = vld [vmem:[#allocation14 + $0x278] sm:$0xff]
    %v6243 = vld [vmem:[#allocation14 + $0x280] sm:$0xff]
    %v6244 = vld [vmem:[#allocation14 + $0x288] sm:$0xff]
    %v6245 = vld [vmem:[#allocation14 + $0x290] sm:$0xff]
    %v6246 = vld [vmem:[#allocation14 + $0x298] sm:$0xff]
    %v6247 = vld [vmem:[#allocation14 + $0x2a0] sm:$0xff]
    %v6248 = vld [vmem:[#allocation14 + $0x2a8] sm:$0xff]
    %v6249 = vld [vmem:[#allocation14 + $0x2b0] sm:$0xff]
    %v6250 = vld [vmem:[#allocation14 + $0x2b8] sm:$0xff]
    %v6251 = vld [vmem:[#allocation14 + $0x2c0] sm:$0xff]
    %v6252 = vld [vmem:[#allocation14 + $0x2c8] sm:$0xff]
    %v6253 = vld [vmem:[#allocation14 + $0x2d0] sm:$0xff]
    %v6254 = vld [vmem:[#allocation14 + $0x2d8] sm:$0xff]
    %v6255 = vld [vmem:[#allocation14 + $0x2e0] sm:$0xff]
    %v6256 = vld [vmem:[#allocation14 + $0x2e8] sm:$0xff]
    %v6257 = vld [vmem:[#allocation14 + $0x2f0] sm:$0xff]
    %v6258 = vld [vmem:[#allocation14 + $0x2f8] sm:$0xff]
    %v6259 = vld [vmem:[#allocation14 + $0x300] sm:$0xff]
    %v6260 = vld [vmem:[#allocation14 + $0x308] sm:$0xff]
    %v6261 = vld [vmem:[#allocation14 + $0x310] sm:$0xff]
    %v6262 = vld [vmem:[#allocation14 + $0x318] sm:$0xff]
    %v6263 = vld [vmem:[#allocation14 + $0x320] sm:$0xff]
    %v6264 = vld [vmem:[#allocation14 + $0x328] sm:$0xff]
    %v6265 = vld [vmem:[#allocation14 + $0x330] sm:$0xff]
    %v6266 = vld [vmem:[#allocation14 + $0x338] sm:$0xff]
    %v6267 = vld [vmem:[#allocation14 + $0x340] sm:$0xff]
    %v6268 = vld [vmem:[#allocation14 + $0x348] sm:$0xff]
    %v6269 = vld [vmem:[#allocation14 + $0x350] sm:$0xff]
    %v6270 = vld [vmem:[#allocation14 + $0x358] sm:$0xff]
    %v6271 = vld [vmem:[#allocation14 + $0x360] sm:$0xff]
    %v6272 = vld [vmem:[#allocation14 + $0x368] sm:$0xff]
    %v6273 = vld [vmem:[#allocation14 + $0x370] sm:$0xff]
    %v6274 = vld [vmem:[#allocation14 + $0x378] sm:$0xff]
    %v6275 = vld [vmem:[#allocation14 + $0x380] sm:$0xff]
    %v6276 = vld [vmem:[#allocation14 + $0x388] sm:$0xff]
    %v6277 = vld [vmem:[#allocation14 + $0x390] sm:$0xff]
    %v6278 = vld [vmem:[#allocation14 + $0x398] sm:$0xff]
    %v6279 = vld [vmem:[#allocation14 + $0x3a0] sm:$0xff]
    %v6280 = vld [vmem:[#allocation14 + $0x3a8] sm:$0xff]
    %v6281 = vld [vmem:[#allocation14 + $0x3b0] sm:$0xff]
    %v6282 = vld [vmem:[#allocation14 + $0x3b8] sm:$0xff]
    %v6283 = vld [vmem:[#allocation14 + $0x3c0] sm:$0xff]
    %v6284 = vld [vmem:[#allocation14 + $0x3c8] sm:$0xff]
    %v6285 = vld [vmem:[#allocation14 + $0x3d0] sm:$0xff]
    %v6286 = vld [vmem:[#allocation14 + $0x3d8] sm:$0xff]
    %v6287 = vld [vmem:[#allocation14 + $0x3e0] sm:$0xff]
    %v6288 = vld [vmem:[#allocation14 + $0x3e8] sm:$0xff]
    %v6289 = vld [vmem:[#allocation14 + $0x3f0] sm:$0xff]
    %v6290 = vld [vmem:[#allocation14 + $0x3f8] sm:$0xff]
    %v6291 = vld [vmem:[#allocation14 + $0x400] sm:$0xff]
    %v6292 = vld [vmem:[#allocation14 + $0x408] sm:$0xff]
    %v6293 = vld [vmem:[#allocation14 + $0x410] sm:$0xff]
    %v6294 = vld [vmem:[#allocation14 + $0x418] sm:$0xff]
    %v6295 = vld [vmem:[#allocation14 + $0x420] sm:$0xff]
    %v6296 = vld [vmem:[#allocation14 + $0x428] sm:$0xff]
    %v6297 = vld [vmem:[#allocation14 + $0x430] sm:$0xff]
    %v6298 = vld [vmem:[#allocation14 + $0x438] sm:$0xff]
    %v6299 = vld [vmem:[#allocation14 + $0x440] sm:$0xff]
    %v6300 = vld [vmem:[#allocation14 + $0x448] sm:$0xff]
    %v6301 = vld [vmem:[#allocation14 + $0x450] sm:$0xff]
    %v6302 = vld [vmem:[#allocation14 + $0x458] sm:$0xff]
    %v6303 = vld [vmem:[#allocation14 + $0x460] sm:$0xff]
    %v6304 = vld [vmem:[#allocation14 + $0x468] sm:$0xff]
    %v6305 = vld [vmem:[#allocation14 + $0x470] sm:$0xff]
    %v6306 = vld [vmem:[#allocation14 + $0x478] sm:$0xff]
    %v6307 = vld [vmem:[#allocation14 + $0x480] sm:$0xff]
    %v6308 = vld [vmem:[#allocation14 + $0x488] sm:$0xff]
    %v6309 = vld [vmem:[#allocation14 + $0x490] sm:$0xff]
    %v6310 = vld [vmem:[#allocation14 + $0x498] sm:$0xff]
    %v6311 = vld [vmem:[#allocation14 + $0x4a0] sm:$0xff]
    %v6312 = vld [vmem:[#allocation14 + $0x4a8] sm:$0xff]
    %v6313 = vld [vmem:[#allocation14 + $0x4b0] sm:$0xff]
    %v6314 = vld [vmem:[#allocation14 + $0x4b8] sm:$0xff]
    %v6315 = vld [vmem:[#allocation14 + $0x4c0] sm:$0xff]
    %v6316 = vld [vmem:[#allocation14 + $0x4c8] sm:$0xff]
    %v6317 = vld [vmem:[#allocation14 + $0x4d0] sm:$0xff]
    %v6318 = vld [vmem:[#allocation14 + $0x4d8] sm:$0xff]
    %v6319 = vld [vmem:[#allocation14 + $0x4e0] sm:$0xff]
    %v6320 = vld [vmem:[#allocation14 + $0x4e8] sm:$0xff]
    %v6321 = vld [vmem:[#allocation14 + $0x4f0] sm:$0xff]
    %v6322 = vld [vmem:[#allocation14 + $0x4f8] sm:$0xff]
    %v6323 = vld [vmem:[#allocation14 + $0x500] sm:$0xff]
    %v6324 = vld [vmem:[#allocation14 + $0x508] sm:$0xff]
    %v6325 = vld [vmem:[#allocation14 + $0x510] sm:$0xff]
    %v6326 = vld [vmem:[#allocation14 + $0x518] sm:$0xff]
    %v6327 = vld [vmem:[#allocation14 + $0x520] sm:$0xff]
    %v6328 = vld [vmem:[#allocation14 + $0x528] sm:$0xff]
    %v6329 = vld [vmem:[#allocation14 + $0x530] sm:$0xff]
    %v6330 = vld [vmem:[#allocation14 + $0x538] sm:$0xff]
    %v6331 = vld [vmem:[#allocation14 + $0x540] sm:$0xff]
    %v6332 = vld [vmem:[#allocation14 + $0x548] sm:$0xff]
    %v6333 = vld [vmem:[#allocation14 + $0x550] sm:$0xff]
    %v6334 = vld [vmem:[#allocation14 + $0x558] sm:$0xff]
    %v6335 = vld [vmem:[#allocation14 + $0x560] sm:$0xff]
    %v6336 = vld [vmem:[#allocation14 + $0x568] sm:$0xff]
    %v6337 = vld [vmem:[#allocation14 + $0x570] sm:$0xff]
    %v6338 = vld [vmem:[#allocation14 + $0x578] sm:$0xff]
    %v6339 = vld [vmem:[#allocation14 + $0x580] sm:$0xff]
    %v6340 = vld [vmem:[#allocation14 + $0x588] sm:$0xff]
    %v6341 = vld [vmem:[#allocation14 + $0x590] sm:$0xff]
    %v6342 = vld [vmem:[#allocation14 + $0x598] sm:$0xff]
    %v6343 = vld [vmem:[#allocation14 + $0x5a0] sm:$0xff]
    %v6344 = vld [vmem:[#allocation14 + $0x5a8] sm:$0xff]
    %v6345 = vld [vmem:[#allocation14 + $0x5b0] sm:$0xff]
    %v6346 = vld [vmem:[#allocation14 + $0x5b8] sm:$0xff]
    %v6347 = vld [vmem:[#allocation14 + $0x5c0] sm:$0xff]
    %v6348 = vld [vmem:[#allocation14 + $0x5c8] sm:$0xff]
    %v6349 = vld [vmem:[#allocation14 + $0x5d0] sm:$0xff]
    %v6350 = vld [vmem:[#allocation14 + $0x5d8] sm:$0xff]
    %v6351 = vld [vmem:[#allocation14 + $0x5e0] sm:$0xff]
    %v6352 = vld [vmem:[#allocation14 + $0x5e8] sm:$0xff]
    %v6353 = vld [vmem:[#allocation14 + $0x5f0] sm:$0xff]
    %v6354 = vld [vmem:[#allocation14 + $0x5f8] sm:$0xff]
    %v6355 = vld [vmem:[#allocation14 + $0x600] sm:$0xff]
    %v6356 = vld [vmem:[#allocation14 + $0x608] sm:$0xff]
    %v6357 = vld [vmem:[#allocation14 + $0x610] sm:$0xff]
    %v6358 = vld [vmem:[#allocation14 + $0x618] sm:$0xff]
    %v6359 = vld [vmem:[#allocation14 + $0x620] sm:$0xff]
    %v6360 = vld [vmem:[#allocation14 + $0x628] sm:$0xff]
    %v6361 = vld [vmem:[#allocation14 + $0x630] sm:$0xff]
    %v6362 = vld [vmem:[#allocation14 + $0x638] sm:$0xff]
    %v6363 = vld [vmem:[#allocation14 + $0x640] sm:$0xff]
    %v6364 = vld [vmem:[#allocation14 + $0x648] sm:$0xff]
    %v6365 = vld [vmem:[#allocation14 + $0x650] sm:$0xff]
    %v6366 = vld [vmem:[#allocation14 + $0x658] sm:$0xff]
    %v6367 = vld [vmem:[#allocation14 + $0x660] sm:$0xff]
    %v6368 = vld [vmem:[#allocation14 + $0x668] sm:$0xff]
    %v6369 = vld [vmem:[#allocation14 + $0x670] sm:$0xff]
    %v6370 = vld [vmem:[#allocation14 + $0x678] sm:$0xff]
    %v6371 = vld [vmem:[#allocation14 + $0x680] sm:$0xff]
    %v6372 = vld [vmem:[#allocation14 + $0x688] sm:$0xff]
    %v6373 = vld [vmem:[#allocation14 + $0x690] sm:$0xff]
    %v6374 = vld [vmem:[#allocation14 + $0x698] sm:$0xff]
    %v6375 = vld [vmem:[#allocation14 + $0x6a0] sm:$0xff]
    %v6376 = vld [vmem:[#allocation14 + $0x6a8] sm:$0xff]
    %v6377 = vld [vmem:[#allocation14 + $0x6b0] sm:$0xff]
    %v6378 = vld [vmem:[#allocation14 + $0x6b8] sm:$0xff]
    %v6379 = vld [vmem:[#allocation14 + $0x6c0] sm:$0xff]
    %v6380 = vld [vmem:[#allocation14 + $0x6c8] sm:$0xff]
    %v6381 = vld [vmem:[#allocation14 + $0x6d0] sm:$0xff]
    %v6382 = vld [vmem:[#allocation14 + $0x6d8] sm:$0xff]
    %v6383 = vld [vmem:[#allocation14 + $0x6e0] sm:$0xff]
    %v6384 = vld [vmem:[#allocation14 + $0x6e8] sm:$0xff]
    %v6385 = vld [vmem:[#allocation14 + $0x6f0] sm:$0xff]
    %v6386 = vld [vmem:[#allocation14 + $0x6f8] sm:$0xff]
    %v6387 = vld [vmem:[#allocation14 + $0x700] sm:$0xff]
    %v6388 = vld [vmem:[#allocation14 + $0x708] sm:$0xff]
    %v6389 = vld [vmem:[#allocation14 + $0x710] sm:$0xff]
    %v6390 = vld [vmem:[#allocation14 + $0x718] sm:$0xff]
    %v6391 = vld [vmem:[#allocation14 + $0x720] sm:$0xff]
    %v6392 = vld [vmem:[#allocation14 + $0x728] sm:$0xff]
    %v6393 = vld [vmem:[#allocation14 + $0x730] sm:$0xff]
    %v6394 = vld [vmem:[#allocation14 + $0x738] sm:$0xff]
    %v6395 = vld [vmem:[#allocation14 + $0x740] sm:$0xff]
    %v6396 = vld [vmem:[#allocation14 + $0x748] sm:$0xff]
    %v6397 = vld [vmem:[#allocation14 + $0x750] sm:$0xff]
    %v6398 = vld [vmem:[#allocation14 + $0x758] sm:$0xff]
    %v6399 = vld [vmem:[#allocation14 + $0x760] sm:$0xff]
    %v6400 = vld [vmem:[#allocation14 + $0x768] sm:$0xff]
    %v6401 = vld [vmem:[#allocation14 + $0x770] sm:$0xff]
    %v6402 = vld [vmem:[#allocation14 + $0x778] sm:$0xff]
    %v6403 = vld [vmem:[#allocation14 + $0x780] sm:$0xff]
    %v6404 = vld [vmem:[#allocation14 + $0x788] sm:$0xff]
    %v6405 = vld [vmem:[#allocation14 + $0x790] sm:$0xff]
    %v6406 = vld [vmem:[#allocation14 + $0x798] sm:$0xff]
    %v6407 = vld [vmem:[#allocation14 + $0x7a0] sm:$0xff]
    %v6408 = vld [vmem:[#allocation14 + $0x7a8] sm:$0xff]
    %v6409 = vld [vmem:[#allocation14 + $0x7b0] sm:$0xff]
    %v6410 = vld [vmem:[#allocation14 + $0x7b8] sm:$0xff]
    %v6411 = vld [vmem:[#allocation14 + $0x7c0] sm:$0xff]
    %v6412 = vld [vmem:[#allocation14 + $0x7c8] sm:$0xff]
    %v6413 = vld [vmem:[#allocation14 + $0x7d0] sm:$0xff]
    %v6414 = vld [vmem:[#allocation14 + $0x7d8] sm:$0xff]
    %v6415 = vld [vmem:[#allocation14 + $0x7e0] sm:$0xff]
    %v6416 = vld [vmem:[#allocation14 + $0x7e8] sm:$0xff]
    %v6417 = vld [vmem:[#allocation14 + $0x7f0] sm:$0xff]
    %v6418 = vld [vmem:[#allocation14 + $0x7f8] sm:$0xff]
    %v6419 = vld [vmem:[#allocation16] sm:$0xf]
    %v6421 = vlaneseq
    %v6422 = vshrl.u32 %v6421, 7
    %v6423 = vsub.s32 0, %v6422
    %v6424 = vrot.slane %v6419, %v6423
    %v6425 = vlaneseq
    %v6426 = vshrl.u32 %v6425, 7
    %v6427 = vsub.s32 1, %v6426
    %v6428 = vrot.slane %v6419, %v6427
    %v6429 = vlaneseq
    %v6430 = vshrl.u32 %v6429, 7
    %v6431 = vsub.s32 2, %v6430
    %v6432 = vrot.slane %v6419, %v6431
    %v6433 = vlaneseq
    %v6434 = vshrl.u32 %v6433, 7
    %v6435 = vsub.s32 3, %v6434
    %v6436 = vrot.slane %v6419, %v6435
    %v6697 = vunpack.c.l.b16 %v6163
    %v6698 = vunpack.c.h.b16 %v6163
    %v6699 = vunpack.c.l.b16 %v6164
    %v6700 = vunpack.c.h.b16 %v6164
    %v6701 = vunpack.c.l.b16 %v6165
    %v6702 = vunpack.c.h.b16 %v6165
    %v6703 = vunpack.c.l.b16 %v6166
    %v6704 = vunpack.c.h.b16 %v6166
    %v6705 = vunpack.c.l.b16 %v6167
    %v6706 = vunpack.c.h.b16 %v6167
    %v6707 = vunpack.c.l.b16 %v6168
    %v6708 = vunpack.c.h.b16 %v6168
    %v6709 = vunpack.c.l.b16 %v6169
    %v6710 = vunpack.c.h.b16 %v6169
    %v6711 = vunpack.c.l.b16 %v6170
    %v6712 = vunpack.c.h.b16 %v6170
    %v6713 = vunpack.c.l.b16 %v6171
    %v6714 = vunpack.c.h.b16 %v6171
    %v6715 = vunpack.c.l.b16 %v6172
    %v6716 = vunpack.c.h.b16 %v6172
    %v6717 = vunpack.c.l.b16 %v6173
    %v6718 = vunpack.c.h.b16 %v6173
    %v6719 = vunpack.c.l.b16 %v6174
    %v6720 = vunpack.c.h.b16 %v6174
    %v6721 = vunpack.c.l.b16 %v6175
    %v6722 = vunpack.c.h.b16 %v6175
    %v6723 = vunpack.c.l.b16 %v6176
    %v6724 = vunpack.c.h.b16 %v6176
    %v6725 = vunpack.c.l.b16 %v6177
    %v6726 = vunpack.c.h.b16 %v6177
    %v6727 = vunpack.c.l.b16 %v6178
    %v6728 = vunpack.c.h.b16 %v6178
    %v6729 = vunpack.c.l.b16 %v6179
    %v6730 = vunpack.c.h.b16 %v6179
    %v6731 = vunpack.c.l.b16 %v6180
    %v6732 = vunpack.c.h.b16 %v6180
    %v6733 = vunpack.c.l.b16 %v6181
    %v6734 = vunpack.c.h.b16 %v6181
    %v6735 = vunpack.c.l.b16 %v6182
    %v6736 = vunpack.c.h.b16 %v6182
    %v6737 = vunpack.c.l.b16 %v6183
    %v6738 = vunpack.c.h.b16 %v6183
    %v6739 = vunpack.c.l.b16 %v6184
    %v6740 = vunpack.c.h.b16 %v6184
    %v6741 = vunpack.c.l.b16 %v6185
    %v6742 = vunpack.c.h.b16 %v6185
    %v6743 = vunpack.c.l.b16 %v6186
    %v6744 = vunpack.c.h.b16 %v6186
    %v6745 = vunpack.c.l.b16 %v6187
    %v6746 = vunpack.c.h.b16 %v6187
    %v6747 = vunpack.c.l.b16 %v6188
    %v6748 = vunpack.c.h.b16 %v6188
    %v6749 = vunpack.c.l.b16 %v6189
    %v6750 = vunpack.c.h.b16 %v6189
    %v6751 = vunpack.c.l.b16 %v6190
    %v6752 = vunpack.c.h.b16 %v6190
    %v6753 = vunpack.c.l.b16 %v6191
    %v6754 = vunpack.c.h.b16 %v6191
    %v6755 = vunpack.c.l.b16 %v6192
    %v6756 = vunpack.c.h.b16 %v6192
    %v6757 = vunpack.c.l.b16 %v6193
    %v6758 = vunpack.c.h.b16 %v6193
    %v6759 = vunpack.c.l.b16 %v6194
    %v6760 = vunpack.c.h.b16 %v6194
    %v6761 = vunpack.c.l.b16 %v6195
    %v6762 = vunpack.c.h.b16 %v6195
    %v6763 = vunpack.c.l.b16 %v6196
    %v6764 = vunpack.c.h.b16 %v6196
    %v6765 = vunpack.c.l.b16 %v6197
    %v6766 = vunpack.c.h.b16 %v6197
    %v6767 = vunpack.c.l.b16 %v6198
    %v6768 = vunpack.c.h.b16 %v6198
    %v6769 = vunpack.c.l.b16 %v6199
    %v6770 = vunpack.c.h.b16 %v6199
    %v6771 = vunpack.c.l.b16 %v6200
    %v6772 = vunpack.c.h.b16 %v6200
    %v6773 = vunpack.c.l.b16 %v6201
    %v6774 = vunpack.c.h.b16 %v6201
    %v6775 = vunpack.c.l.b16 %v6202
    %v6776 = vunpack.c.h.b16 %v6202
    %v6777 = vunpack.c.l.b16 %v6203
    %v6778 = vunpack.c.h.b16 %v6203
    %v6779 = vunpack.c.l.b16 %v6204
    %v6780 = vunpack.c.h.b16 %v6204
    %v6781 = vunpack.c.l.b16 %v6205
    %v6782 = vunpack.c.h.b16 %v6205
    %v6783 = vunpack.c.l.b16 %v6206
    %v6784 = vunpack.c.h.b16 %v6206
    %v6785 = vunpack.c.l.b16 %v6207
    %v6786 = vunpack.c.h.b16 %v6207
    %v6787 = vunpack.c.l.b16 %v6208
    %v6788 = vunpack.c.h.b16 %v6208
    %v6789 = vunpack.c.l.b16 %v6209
    %v6790 = vunpack.c.h.b16 %v6209
    %v6791 = vunpack.c.l.b16 %v6210
    %v6792 = vunpack.c.h.b16 %v6210
    %v6793 = vunpack.c.l.b16 %v6211
    %v6794 = vunpack.c.h.b16 %v6211
    %v6795 = vunpack.c.l.b16 %v6212
    %v6796 = vunpack.c.h.b16 %v6212
    %v6797 = vunpack.c.l.b16 %v6213
    %v6798 = vunpack.c.h.b16 %v6213
    %v6799 = vunpack.c.l.b16 %v6214
    %v6800 = vunpack.c.h.b16 %v6214
    %v6801 = vunpack.c.l.b16 %v6215
    %v6802 = vunpack.c.h.b16 %v6215
    %v6803 = vunpack.c.l.b16 %v6216
    %v6804 = vunpack.c.h.b16 %v6216
    %v6805 = vunpack.c.l.b16 %v6217
    %v6806 = vunpack.c.h.b16 %v6217
    %v6807 = vunpack.c.l.b16 %v6218
    %v6808 = vunpack.c.h.b16 %v6218
    %v6809 = vunpack.c.l.b16 %v6219
    %v6810 = vunpack.c.h.b16 %v6219
    %v6811 = vunpack.c.l.b16 %v6220
    %v6812 = vunpack.c.h.b16 %v6220
    %v6813 = vunpack.c.l.b16 %v6221
    %v6814 = vunpack.c.h.b16 %v6221
    %v6815 = vunpack.c.l.b16 %v6222
    %v6816 = vunpack.c.h.b16 %v6222
    %v6817 = vunpack.c.l.b16 %v6223
    %v6818 = vunpack.c.h.b16 %v6223
    %v6819 = vunpack.c.l.b16 %v6224
    %v6820 = vunpack.c.h.b16 %v6224
    %v6821 = vunpack.c.l.b16 %v6225
    %v6822 = vunpack.c.h.b16 %v6225
    %v6823 = vunpack.c.l.b16 %v6226
    %v6824 = vunpack.c.h.b16 %v6226
    %v6825 = vunpack.c.l.b16 %v6227
    %v6826 = vunpack.c.h.b16 %v6227
    %v6827 = vunpack.c.l.b16 %v6228
    %v6828 = vunpack.c.h.b16 %v6228
    %v6829 = vunpack.c.l.b16 %v6229
    %v6830 = vunpack.c.h.b16 %v6229
    %v6831 = vunpack.c.l.b16 %v6230
    %v6832 = vunpack.c.h.b16 %v6230
    %v6833 = vunpack.c.l.b16 %v6231
    %v6834 = vunpack.c.h.b16 %v6231
    %v6835 = vunpack.c.l.b16 %v6232
    %v6836 = vunpack.c.h.b16 %v6232
    %v6837 = vunpack.c.l.b16 %v6233
    %v6838 = vunpack.c.h.b16 %v6233
    %v6839 = vunpack.c.l.b16 %v6234
    %v6840 = vunpack.c.h.b16 %v6234
    %v6841 = vunpack.c.l.b16 %v6235
    %v6842 = vunpack.c.h.b16 %v6235
    %v6843 = vunpack.c.l.b16 %v6236
    %v6844 = vunpack.c.h.b16 %v6236
    %v6845 = vunpack.c.l.b16 %v6237
    %v6846 = vunpack.c.h.b16 %v6237
    %v6847 = vunpack.c.l.b16 %v6238
    %v6848 = vunpack.c.h.b16 %v6238
    %v6849 = vunpack.c.l.b16 %v6239
    %v6850 = vunpack.c.h.b16 %v6239
    %v6851 = vunpack.c.l.b16 %v6240
    %v6852 = vunpack.c.h.b16 %v6240
    %v6853 = vunpack.c.l.b16 %v6241
    %v6854 = vunpack.c.h.b16 %v6241
    %v6855 = vunpack.c.l.b16 %v6242
    %v6856 = vunpack.c.h.b16 %v6242
    %v6857 = vunpack.c.l.b16 %v6243
    %v6858 = vunpack.c.h.b16 %v6243
    %v6859 = vunpack.c.l.b16 %v6244
    %v6860 = vunpack.c.h.b16 %v6244
    %v6861 = vunpack.c.l.b16 %v6245
    %v6862 = vunpack.c.h.b16 %v6245
    %v6863 = vunpack.c.l.b16 %v6246
    %v6864 = vunpack.c.h.b16 %v6246
    %v6865 = vunpack.c.l.b16 %v6247
    %v6866 = vunpack.c.h.b16 %v6247
    %v6867 = vunpack.c.l.b16 %v6248
    %v6868 = vunpack.c.h.b16 %v6248
    %v6869 = vunpack.c.l.b16 %v6249
    %v6870 = vunpack.c.h.b16 %v6249
    %v6871 = vunpack.c.l.b16 %v6250
    %v6872 = vunpack.c.h.b16 %v6250
    %v6873 = vunpack.c.l.b16 %v6251
    %v6874 = vunpack.c.h.b16 %v6251
    %v6875 = vunpack.c.l.b16 %v6252
    %v6876 = vunpack.c.h.b16 %v6252
    %v6877 = vunpack.c.l.b16 %v6253
    %v6878 = vunpack.c.h.b16 %v6253
    %v6879 = vunpack.c.l.b16 %v6254
    %v6880 = vunpack.c.h.b16 %v6254
    %v6881 = vunpack.c.l.b16 %v6255
    %v6882 = vunpack.c.h.b16 %v6255
    %v6883 = vunpack.c.l.b16 %v6256
    %v6884 = vunpack.c.h.b16 %v6256
    %v6885 = vunpack.c.l.b16 %v6257
    %v6886 = vunpack.c.h.b16 %v6257
    %v6887 = vunpack.c.l.b16 %v6258
    %v6888 = vunpack.c.h.b16 %v6258
    %v6889 = vunpack.c.l.b16 %v6259
    %v6890 = vunpack.c.h.b16 %v6259
    %v6891 = vunpack.c.l.b16 %v6260
    %v6892 = vunpack.c.h.b16 %v6260
    %v6893 = vunpack.c.l.b16 %v6261
    %v6894 = vunpack.c.h.b16 %v6261
    %v6895 = vunpack.c.l.b16 %v6262
    %v6896 = vunpack.c.h.b16 %v6262
    %v6897 = vunpack.c.l.b16 %v6263
    %v6898 = vunpack.c.h.b16 %v6263
    %v6899 = vunpack.c.l.b16 %v6264
    %v6900 = vunpack.c.h.b16 %v6264
    %v6901 = vunpack.c.l.b16 %v6265
    %v6902 = vunpack.c.h.b16 %v6265
    %v6903 = vunpack.c.l.b16 %v6266
    %v6904 = vunpack.c.h.b16 %v6266
    %v6905 = vunpack.c.l.b16 %v6267
    %v6906 = vunpack.c.h.b16 %v6267
    %v6907 = vunpack.c.l.b16 %v6268
    %v6908 = vunpack.c.h.b16 %v6268
    %v6909 = vunpack.c.l.b16 %v6269
    %v6910 = vunpack.c.h.b16 %v6269
    %v6911 = vunpack.c.l.b16 %v6270
    %v6912 = vunpack.c.h.b16 %v6270
    %v6913 = vunpack.c.l.b16 %v6271
    %v6914 = vunpack.c.h.b16 %v6271
    %v6915 = vunpack.c.l.b16 %v6272
    %v6916 = vunpack.c.h.b16 %v6272
    %v6917 = vunpack.c.l.b16 %v6273
    %v6918 = vunpack.c.h.b16 %v6273
    %v6919 = vunpack.c.l.b16 %v6274
    %v6920 = vunpack.c.h.b16 %v6274
    %v6921 = vunpack.c.l.b16 %v6275
    %v6922 = vunpack.c.h.b16 %v6275
    %v6923 = vunpack.c.l.b16 %v6276
    %v6924 = vunpack.c.h.b16 %v6276
    %v6925 = vunpack.c.l.b16 %v6277
    %v6926 = vunpack.c.h.b16 %v6277
    %v6927 = vunpack.c.l.b16 %v6278
    %v6928 = vunpack.c.h.b16 %v6278
    %v6929 = vunpack.c.l.b16 %v6279
    %v6930 = vunpack.c.h.b16 %v6279
    %v6931 = vunpack.c.l.b16 %v6280
    %v6932 = vunpack.c.h.b16 %v6280
    %v6933 = vunpack.c.l.b16 %v6281
    %v6934 = vunpack.c.h.b16 %v6281
    %v6935 = vunpack.c.l.b16 %v6282
    %v6936 = vunpack.c.h.b16 %v6282
    %v6937 = vunpack.c.l.b16 %v6283
    %v6938 = vunpack.c.h.b16 %v6283
    %v6939 = vunpack.c.l.b16 %v6284
    %v6940 = vunpack.c.h.b16 %v6284
    %v6941 = vunpack.c.l.b16 %v6285
    %v6942 = vunpack.c.h.b16 %v6285
    %v6943 = vunpack.c.l.b16 %v6286
    %v6944 = vunpack.c.h.b16 %v6286
    %v6945 = vunpack.c.l.b16 %v6287
    %v6946 = vunpack.c.h.b16 %v6287
    %v6947 = vunpack.c.l.b16 %v6288
    %v6948 = vunpack.c.h.b16 %v6288
    %v6949 = vunpack.c.l.b16 %v6289
    %v6950 = vunpack.c.h.b16 %v6289
    %v6951 = vunpack.c.l.b16 %v6290
    %v6952 = vunpack.c.h.b16 %v6290
    %v6953 = vunpack.c.l.b16 %v6291
    %v6954 = vunpack.c.h.b16 %v6291
    %v6955 = vunpack.c.l.b16 %v6292
    %v6956 = vunpack.c.h.b16 %v6292
    %v6957 = vunpack.c.l.b16 %v6293
    %v6958 = vunpack.c.h.b16 %v6293
    %v6959 = vunpack.c.l.b16 %v6294
    %v6960 = vunpack.c.h.b16 %v6294
    %v6961 = vunpack.c.l.b16 %v6295
    %v6962 = vunpack.c.h.b16 %v6295
    %v6963 = vunpack.c.l.b16 %v6296
    %v6964 = vunpack.c.h.b16 %v6296
    %v6965 = vunpack.c.l.b16 %v6297
    %v6966 = vunpack.c.h.b16 %v6297
    %v6967 = vunpack.c.l.b16 %v6298
    %v6968 = vunpack.c.h.b16 %v6298
    %v6969 = vunpack.c.l.b16 %v6299
    %v6970 = vunpack.c.h.b16 %v6299
    %v6971 = vunpack.c.l.b16 %v6300
    %v6972 = vunpack.c.h.b16 %v6300
    %v6973 = vunpack.c.l.b16 %v6301
    %v6974 = vunpack.c.h.b16 %v6301
    %v6975 = vunpack.c.l.b16 %v6302
    %v6976 = vunpack.c.h.b16 %v6302
    %v6977 = vunpack.c.l.b16 %v6303
    %v6978 = vunpack.c.h.b16 %v6303
    %v6979 = vunpack.c.l.b16 %v6304
    %v6980 = vunpack.c.h.b16 %v6304
    %v6981 = vunpack.c.l.b16 %v6305
    %v6982 = vunpack.c.h.b16 %v6305
    %v6983 = vunpack.c.l.b16 %v6306
    %v6984 = vunpack.c.h.b16 %v6306
    %v6985 = vunpack.c.l.b16 %v6307
    %v6986 = vunpack.c.h.b16 %v6307
    %v6987 = vunpack.c.l.b16 %v6308
    %v6988 = vunpack.c.h.b16 %v6308
    %v6989 = vunpack.c.l.b16 %v6309
    %v6990 = vunpack.c.h.b16 %v6309
    %v6991 = vunpack.c.l.b16 %v6310
    %v6992 = vunpack.c.h.b16 %v6310
    %v6993 = vunpack.c.l.b16 %v6311
    %v6994 = vunpack.c.h.b16 %v6311
    %v6995 = vunpack.c.l.b16 %v6312
    %v6996 = vunpack.c.h.b16 %v6312
    %v6997 = vunpack.c.l.b16 %v6313
    %v6998 = vunpack.c.h.b16 %v6313
    %v6999 = vunpack.c.l.b16 %v6314
    %v7000 = vunpack.c.h.b16 %v6314
    %v7001 = vunpack.c.l.b16 %v6315
    %v7002 = vunpack.c.h.b16 %v6315
    %v7003 = vunpack.c.l.b16 %v6316
    %v7004 = vunpack.c.h.b16 %v6316
    %v7005 = vunpack.c.l.b16 %v6317
    %v7006 = vunpack.c.h.b16 %v6317
    %v7007 = vunpack.c.l.b16 %v6318
    %v7008 = vunpack.c.h.b16 %v6318
    %v7009 = vunpack.c.l.b16 %v6319
    %v7010 = vunpack.c.h.b16 %v6319
    %v7011 = vunpack.c.l.b16 %v6320
    %v7012 = vunpack.c.h.b16 %v6320
    %v7013 = vunpack.c.l.b16 %v6321
    %v7014 = vunpack.c.h.b16 %v6321
    %v7015 = vunpack.c.l.b16 %v6322
    %v7016 = vunpack.c.h.b16 %v6322
    %v7017 = vunpack.c.l.b16 %v6323
    %v7018 = vunpack.c.h.b16 %v6323
    %v7019 = vunpack.c.l.b16 %v6324
    %v7020 = vunpack.c.h.b16 %v6324
    %v7021 = vunpack.c.l.b16 %v6325
    %v7022 = vunpack.c.h.b16 %v6325
    %v7023 = vunpack.c.l.b16 %v6326
    %v7024 = vunpack.c.h.b16 %v6326
    %v7025 = vunpack.c.l.b16 %v6327
    %v7026 = vunpack.c.h.b16 %v6327
    %v7027 = vunpack.c.l.b16 %v6328
    %v7028 = vunpack.c.h.b16 %v6328
    %v7029 = vunpack.c.l.b16 %v6329
    %v7030 = vunpack.c.h.b16 %v6329
    %v7031 = vunpack.c.l.b16 %v6330
    %v7032 = vunpack.c.h.b16 %v6330
    %v7033 = vunpack.c.l.b16 %v6331
    %v7034 = vunpack.c.h.b16 %v6331
    %v7035 = vunpack.c.l.b16 %v6332
    %v7036 = vunpack.c.h.b16 %v6332
    %v7037 = vunpack.c.l.b16 %v6333
    %v7038 = vunpack.c.h.b16 %v6333
    %v7039 = vunpack.c.l.b16 %v6334
    %v7040 = vunpack.c.h.b16 %v6334
    %v7041 = vunpack.c.l.b16 %v6335
    %v7042 = vunpack.c.h.b16 %v6335
    %v7043 = vunpack.c.l.b16 %v6336
    %v7044 = vunpack.c.h.b16 %v6336
    %v7045 = vunpack.c.l.b16 %v6337
    %v7046 = vunpack.c.h.b16 %v6337
    %v7047 = vunpack.c.l.b16 %v6338
    %v7048 = vunpack.c.h.b16 %v6338
    %v7049 = vunpack.c.l.b16 %v6339
    %v7050 = vunpack.c.h.b16 %v6339
    %v7051 = vunpack.c.l.b16 %v6340
    %v7052 = vunpack.c.h.b16 %v6340
    %v7053 = vunpack.c.l.b16 %v6341
    %v7054 = vunpack.c.h.b16 %v6341
    %v7055 = vunpack.c.l.b16 %v6342
    %v7056 = vunpack.c.h.b16 %v6342
    %v7057 = vunpack.c.l.b16 %v6343
    %v7058 = vunpack.c.h.b16 %v6343
    %v7059 = vunpack.c.l.b16 %v6344
    %v7060 = vunpack.c.h.b16 %v6344
    %v7061 = vunpack.c.l.b16 %v6345
    %v7062 = vunpack.c.h.b16 %v6345
    %v7063 = vunpack.c.l.b16 %v6346
    %v7064 = vunpack.c.h.b16 %v6346
    %v7065 = vunpack.c.l.b16 %v6347
    %v7066 = vunpack.c.h.b16 %v6347
    %v7067 = vunpack.c.l.b16 %v6348
    %v7068 = vunpack.c.h.b16 %v6348
    %v7069 = vunpack.c.l.b16 %v6349
    %v7070 = vunpack.c.h.b16 %v6349
    %v7071 = vunpack.c.l.b16 %v6350
    %v7072 = vunpack.c.h.b16 %v6350
    %v7073 = vunpack.c.l.b16 %v6351
    %v7074 = vunpack.c.h.b16 %v6351
    %v7075 = vunpack.c.l.b16 %v6352
    %v7076 = vunpack.c.h.b16 %v6352
    %v7077 = vunpack.c.l.b16 %v6353
    %v7078 = vunpack.c.h.b16 %v6353
    %v7079 = vunpack.c.l.b16 %v6354
    %v7080 = vunpack.c.h.b16 %v6354
    %v7081 = vunpack.c.l.b16 %v6355
    %v7082 = vunpack.c.h.b16 %v6355
    %v7083 = vunpack.c.l.b16 %v6356
    %v7084 = vunpack.c.h.b16 %v6356
    %v7085 = vunpack.c.l.b16 %v6357
    %v7086 = vunpack.c.h.b16 %v6357
    %v7087 = vunpack.c.l.b16 %v6358
    %v7088 = vunpack.c.h.b16 %v6358
    %v7089 = vunpack.c.l.b16 %v6359
    %v7090 = vunpack.c.h.b16 %v6359
    %v7091 = vunpack.c.l.b16 %v6360
    %v7092 = vunpack.c.h.b16 %v6360
    %v7093 = vunpack.c.l.b16 %v6361
    %v7094 = vunpack.c.h.b16 %v6361
    %v7095 = vunpack.c.l.b16 %v6362
    %v7096 = vunpack.c.h.b16 %v6362
    %v7097 = vunpack.c.l.b16 %v6363
    %v7098 = vunpack.c.h.b16 %v6363
    %v7099 = vunpack.c.l.b16 %v6364
    %v7100 = vunpack.c.h.b16 %v6364
    %v7101 = vunpack.c.l.b16 %v6365
    %v7102 = vunpack.c.h.b16 %v6365
    %v7103 = vunpack.c.l.b16 %v6366
    %v7104 = vunpack.c.h.b16 %v6366
    %v7105 = vunpack.c.l.b16 %v6367
    %v7106 = vunpack.c.h.b16 %v6367
    %v7107 = vunpack.c.l.b16 %v6368
    %v7108 = vunpack.c.h.b16 %v6368
    %v7109 = vunpack.c.l.b16 %v6369
    %v7110 = vunpack.c.h.b16 %v6369
    %v7111 = vunpack.c.l.b16 %v6370
    %v7112 = vunpack.c.h.b16 %v6370
    %v7113 = vunpack.c.l.b16 %v6371
    %v7114 = vunpack.c.h.b16 %v6371
    %v7115 = vunpack.c.l.b16 %v6372
    %v7116 = vunpack.c.h.b16 %v6372
    %v7117 = vunpack.c.l.b16 %v6373
    %v7118 = vunpack.c.h.b16 %v6373
    %v7119 = vunpack.c.l.b16 %v6374
    %v7120 = vunpack.c.h.b16 %v6374
    %v7121 = vunpack.c.l.b16 %v6375
    %v7122 = vunpack.c.h.b16 %v6375
    %v7123 = vunpack.c.l.b16 %v6376
    %v7124 = vunpack.c.h.b16 %v6376
    %v7125 = vunpack.c.l.b16 %v6377
    %v7126 = vunpack.c.h.b16 %v6377
    %v7127 = vunpack.c.l.b16 %v6378
    %v7128 = vunpack.c.h.b16 %v6378
    %v7129 = vunpack.c.l.b16 %v6379
    %v7130 = vunpack.c.h.b16 %v6379
    %v7131 = vunpack.c.l.b16 %v6380
    %v7132 = vunpack.c.h.b16 %v6380
    %v7133 = vunpack.c.l.b16 %v6381
    %v7134 = vunpack.c.h.b16 %v6381
    %v7135 = vunpack.c.l.b16 %v6382
    %v7136 = vunpack.c.h.b16 %v6382
    %v7137 = vunpack.c.l.b16 %v6383
    %v7138 = vunpack.c.h.b16 %v6383
    %v7139 = vunpack.c.l.b16 %v6384
    %v7140 = vunpack.c.h.b16 %v6384
    %v7141 = vunpack.c.l.b16 %v6385
    %v7142 = vunpack.c.h.b16 %v6385
    %v7143 = vunpack.c.l.b16 %v6386
    %v7144 = vunpack.c.h.b16 %v6386
    %v7145 = vunpack.c.l.b16 %v6387
    %v7146 = vunpack.c.h.b16 %v6387
    %v7147 = vunpack.c.l.b16 %v6388
    %v7148 = vunpack.c.h.b16 %v6388
    %v7149 = vunpack.c.l.b16 %v6389
    %v7150 = vunpack.c.h.b16 %v6389
    %v7151 = vunpack.c.l.b16 %v6390
    %v7152 = vunpack.c.h.b16 %v6390
    %v7153 = vunpack.c.l.b16 %v6391
    %v7154 = vunpack.c.h.b16 %v6391
    %v7155 = vunpack.c.l.b16 %v6392
    %v7156 = vunpack.c.h.b16 %v6392
    %v7157 = vunpack.c.l.b16 %v6393
    %v7158 = vunpack.c.h.b16 %v6393
    %v7159 = vunpack.c.l.b16 %v6394
    %v7160 = vunpack.c.h.b16 %v6394
    %v7161 = vunpack.c.l.b16 %v6395
    %v7162 = vunpack.c.h.b16 %v6395
    %v7163 = vunpack.c.l.b16 %v6396
    %v7164 = vunpack.c.h.b16 %v6396
    %v7165 = vunpack.c.l.b16 %v6397
    %v7166 = vunpack.c.h.b16 %v6397
    %v7167 = vunpack.c.l.b16 %v6398
    %v7168 = vunpack.c.h.b16 %v6398
    %v7169 = vunpack.c.l.b16 %v6399
    %v7170 = vunpack.c.h.b16 %v6399
    %v7171 = vunpack.c.l.b16 %v6400
    %v7172 = vunpack.c.h.b16 %v6400
    %v7173 = vunpack.c.l.b16 %v6401
    %v7174 = vunpack.c.h.b16 %v6401
    %v7175 = vunpack.c.l.b16 %v6402
    %v7176 = vunpack.c.h.b16 %v6402
    %v7177 = vunpack.c.l.b16 %v6403
    %v7178 = vunpack.c.h.b16 %v6403
    %v7179 = vunpack.c.l.b16 %v6404
    %v7180 = vunpack.c.h.b16 %v6404
    %v7181 = vunpack.c.l.b16 %v6405
    %v7182 = vunpack.c.h.b16 %v6405
    %v7183 = vunpack.c.l.b16 %v6406
    %v7184 = vunpack.c.h.b16 %v6406
    %v7185 = vunpack.c.l.b16 %v6407
    %v7186 = vunpack.c.h.b16 %v6407
    %v7187 = vunpack.c.l.b16 %v6408
    %v7188 = vunpack.c.h.b16 %v6408
    %v7189 = vunpack.c.l.b16 %v6409
    %v7190 = vunpack.c.h.b16 %v6409
    %v7191 = vunpack.c.l.b16 %v6410
    %v7192 = vunpack.c.h.b16 %v6410
    %v7193 = vunpack.c.l.b16 %v6411
    %v7194 = vunpack.c.h.b16 %v6411
    %v7195 = vunpack.c.l.b16 %v6412
    %v7196 = vunpack.c.h.b16 %v6412
    %v7197 = vunpack.c.l.b16 %v6413
    %v7198 = vunpack.c.h.b16 %v6413
    %v7199 = vunpack.c.l.b16 %v6414
    %v7200 = vunpack.c.h.b16 %v6414
    %v7201 = vunpack.c.l.b16 %v6415
    %v7202 = vunpack.c.h.b16 %v6415
    %v7203 = vunpack.c.l.b16 %v6416
    %v7204 = vunpack.c.h.b16 %v6416
    %v7205 = vunpack.c.l.b16 %v6417
    %v7206 = vunpack.c.h.b16 %v6417
    %v7207 = vunpack.c.l.b16 %v6418
    %v7208 = vunpack.c.h.b16 %v6418
    %v7209 = vpack.c.b16 %v6701, %v6697
    %v7210 = vpack.c.b16 %v6702, %v6698
    %v7211 = vpack.c.b16 %v6703, %v6699
    %v7212 = vpack.c.b16 %v6704, %v6700
    %v7213 = vpack.c.b16 %v6709, %v6705
    %v7214 = vpack.c.b16 %v6710, %v6706
    %v7215 = vpack.c.b16 %v6711, %v6707
    %v7216 = vpack.c.b16 %v6712, %v6708
    %v7217 = vpack.c.b16 %v6717, %v6713
    %v7218 = vpack.c.b16 %v6718, %v6714
    %v7219 = vpack.c.b16 %v6719, %v6715
    %v7220 = vpack.c.b16 %v6720, %v6716
    %v7221 = vpack.c.b16 %v6725, %v6721
    %v7222 = vpack.c.b16 %v6726, %v6722
    %v7223 = vpack.c.b16 %v6727, %v6723
    %v7224 = vpack.c.b16 %v6728, %v6724
    %v7225 = vpack.c.b16 %v6733, %v6729
    %v7226 = vpack.c.b16 %v6734, %v6730
    %v7227 = vpack.c.b16 %v6735, %v6731
    %v7228 = vpack.c.b16 %v6736, %v6732
    %v7229 = vpack.c.b16 %v6741, %v6737
    %v7230 = vpack.c.b16 %v6742, %v6738
    %v7231 = vpack.c.b16 %v6743, %v6739
    %v7232 = vpack.c.b16 %v6744, %v6740
    %v7233 = vpack.c.b16 %v6749, %v6745
    %v7234 = vpack.c.b16 %v6750, %v6746
    %v7235 = vpack.c.b16 %v6751, %v6747
    %v7236 = vpack.c.b16 %v6752, %v6748
    %v7237 = vpack.c.b16 %v6757, %v6753
    %v7238 = vpack.c.b16 %v6758, %v6754
    %v7239 = vpack.c.b16 %v6759, %v6755
    %v7240 = vpack.c.b16 %v6760, %v6756
    %v7241 = vpack.c.b16 %v6765, %v6761
    %v7242 = vpack.c.b16 %v6766, %v6762
    %v7243 = vpack.c.b16 %v6767, %v6763
    %v7244 = vpack.c.b16 %v6768, %v6764
    %v7245 = vpack.c.b16 %v6773, %v6769
    %v7246 = vpack.c.b16 %v6774, %v6770
    %v7247 = vpack.c.b16 %v6775, %v6771
    %v7248 = vpack.c.b16 %v6776, %v6772
    %v7249 = vpack.c.b16 %v6781, %v6777
    %v7250 = vpack.c.b16 %v6782, %v6778
    %v7251 = vpack.c.b16 %v6783, %v6779
    %v7252 = vpack.c.b16 %v6784, %v6780
    %v7253 = vpack.c.b16 %v6789, %v6785
    %v7254 = vpack.c.b16 %v6790, %v6786
    %v7255 = vpack.c.b16 %v6791, %v6787
    %v7256 = vpack.c.b16 %v6792, %v6788
    %v7257 = vpack.c.b16 %v6797, %v6793
    %v7258 = vpack.c.b16 %v6798, %v6794
    %v7259 = vpack.c.b16 %v6799, %v6795
    %v7260 = vpack.c.b16 %v6800, %v6796
    %v7261 = vpack.c.b16 %v6805, %v6801
    %v7262 = vpack.c.b16 %v6806, %v6802
    %v7263 = vpack.c.b16 %v6807, %v6803
    %v7264 = vpack.c.b16 %v6808, %v6804
    %v7265 = vpack.c.b16 %v6813, %v6809
    %v7266 = vpack.c.b16 %v6814, %v6810
    %v7267 = vpack.c.b16 %v6815, %v6811
    %v7268 = vpack.c.b16 %v6816, %v6812
    %v7269 = vpack.c.b16 %v6821, %v6817
    %v7270 = vpack.c.b16 %v6822, %v6818
    %v7271 = vpack.c.b16 %v6823, %v6819
    %v7272 = vpack.c.b16 %v6824, %v6820
    %v7273 = vpack.c.b16 %v6829, %v6825
    %v7274 = vpack.c.b16 %v6830, %v6826
    %v7275 = vpack.c.b16 %v6831, %v6827
    %v7276 = vpack.c.b16 %v6832, %v6828
    %v7277 = vpack.c.b16 %v6837, %v6833
    %v7278 = vpack.c.b16 %v6838, %v6834
    %v7279 = vpack.c.b16 %v6839, %v6835
    %v7280 = vpack.c.b16 %v6840, %v6836
    %v7281 = vpack.c.b16 %v6845, %v6841
    %v7282 = vpack.c.b16 %v6846, %v6842
    %v7283 = vpack.c.b16 %v6847, %v6843
    %v7284 = vpack.c.b16 %v6848, %v6844
    %v7285 = vpack.c.b16 %v6853, %v6849
    %v7286 = vpack.c.b16 %v6854, %v6850
    %v7287 = vpack.c.b16 %v6855, %v6851
    %v7288 = vpack.c.b16 %v6856, %v6852
    %v7289 = vpack.c.b16 %v6861, %v6857
    %v7290 = vpack.c.b16 %v6862, %v6858
    %v7291 = vpack.c.b16 %v6863, %v6859
    %v7292 = vpack.c.b16 %v6864, %v6860
    %v7293 = vpack.c.b16 %v6869, %v6865
    %v7294 = vpack.c.b16 %v6870, %v6866
    %v7295 = vpack.c.b16 %v6871, %v6867
    %v7296 = vpack.c.b16 %v6872, %v6868
    %v7297 = vpack.c.b16 %v6877, %v6873
    %v7298 = vpack.c.b16 %v6878, %v6874
    %v7299 = vpack.c.b16 %v6879, %v6875
    %v7300 = vpack.c.b16 %v6880, %v6876
    %v7301 = vpack.c.b16 %v6885, %v6881
    %v7302 = vpack.c.b16 %v6886, %v6882
    %v7303 = vpack.c.b16 %v6887, %v6883
    %v7304 = vpack.c.b16 %v6888, %v6884
    %v7305 = vpack.c.b16 %v6893, %v6889
    %v7306 = vpack.c.b16 %v6894, %v6890
    %v7307 = vpack.c.b16 %v6895, %v6891
    %v7308 = vpack.c.b16 %v6896, %v6892
    %v7309 = vpack.c.b16 %v6901, %v6897
    %v7310 = vpack.c.b16 %v6902, %v6898
    %v7311 = vpack.c.b16 %v6903, %v6899
    %v7312 = vpack.c.b16 %v6904, %v6900
    %v7313 = vpack.c.b16 %v6909, %v6905
    %v7314 = vpack.c.b16 %v6910, %v6906
    %v7315 = vpack.c.b16 %v6911, %v6907
    %v7316 = vpack.c.b16 %v6912, %v6908
    %v7317 = vpack.c.b16 %v6917, %v6913
    %v7318 = vpack.c.b16 %v6918, %v6914
    %v7319 = vpack.c.b16 %v6919, %v6915
    %v7320 = vpack.c.b16 %v6920, %v6916
    %v7321 = vpack.c.b16 %v6925, %v6921
    %v7322 = vpack.c.b16 %v6926, %v6922
    %v7323 = vpack.c.b16 %v6927, %v6923
    %v7324 = vpack.c.b16 %v6928, %v6924
    %v7325 = vpack.c.b16 %v6933, %v6929
    %v7326 = vpack.c.b16 %v6934, %v6930
    %v7327 = vpack.c.b16 %v6935, %v6931
    %v7328 = vpack.c.b16 %v6936, %v6932
    %v7329 = vpack.c.b16 %v6941, %v6937
    %v7330 = vpack.c.b16 %v6942, %v6938
    %v7331 = vpack.c.b16 %v6943, %v6939
    %v7332 = vpack.c.b16 %v6944, %v6940
    %v7333 = vpack.c.b16 %v6949, %v6945
    %v7334 = vpack.c.b16 %v6950, %v6946
    %v7335 = vpack.c.b16 %v6951, %v6947
    %v7336 = vpack.c.b16 %v6952, %v6948
    %v7337 = vpack.c.b16 %v6957, %v6953
    %v7338 = vpack.c.b16 %v6958, %v6954
    %v7339 = vpack.c.b16 %v6959, %v6955
    %v7340 = vpack.c.b16 %v6960, %v6956
    %v7341 = vpack.c.b16 %v6965, %v6961
    %v7342 = vpack.c.b16 %v6966, %v6962
    %v7343 = vpack.c.b16 %v6967, %v6963
    %v7344 = vpack.c.b16 %v6968, %v6964
    %v7345 = vpack.c.b16 %v6973, %v6969
    %v7346 = vpack.c.b16 %v6974, %v6970
    %v7347 = vpack.c.b16 %v6975, %v6971
    %v7348 = vpack.c.b16 %v6976, %v6972
    %v7349 = vpack.c.b16 %v6981, %v6977
    %v7350 = vpack.c.b16 %v6982, %v6978
    %v7351 = vpack.c.b16 %v6983, %v6979
    %v7352 = vpack.c.b16 %v6984, %v6980
    %v7353 = vpack.c.b16 %v6989, %v6985
    %v7354 = vpack.c.b16 %v6990, %v6986
    %v7355 = vpack.c.b16 %v6991, %v6987
    %v7356 = vpack.c.b16 %v6992, %v6988
    %v7357 = vpack.c.b16 %v6997, %v6993
    %v7358 = vpack.c.b16 %v6998, %v6994
    %v7359 = vpack.c.b16 %v6999, %v6995
    %v7360 = vpack.c.b16 %v7000, %v6996
    %v7361 = vpack.c.b16 %v7005, %v7001
    %v7362 = vpack.c.b16 %v7006, %v7002
    %v7363 = vpack.c.b16 %v7007, %v7003
    %v7364 = vpack.c.b16 %v7008, %v7004
    %v7365 = vpack.c.b16 %v7013, %v7009
    %v7366 = vpack.c.b16 %v7014, %v7010
    %v7367 = vpack.c.b16 %v7015, %v7011
    %v7368 = vpack.c.b16 %v7016, %v7012
    %v7369 = vpack.c.b16 %v7021, %v7017
    %v7370 = vpack.c.b16 %v7022, %v7018
    %v7371 = vpack.c.b16 %v7023, %v7019
    %v7372 = vpack.c.b16 %v7024, %v7020
    %v7373 = vpack.c.b16 %v7029, %v7025
    %v7374 = vpack.c.b16 %v7030, %v7026
    %v7375 = vpack.c.b16 %v7031, %v7027
    %v7376 = vpack.c.b16 %v7032, %v7028
    %v7377 = vpack.c.b16 %v7037, %v7033
    %v7378 = vpack.c.b16 %v7038, %v7034
    %v7379 = vpack.c.b16 %v7039, %v7035
    %v7380 = vpack.c.b16 %v7040, %v7036
    %v7381 = vpack.c.b16 %v7045, %v7041
    %v7382 = vpack.c.b16 %v7046, %v7042
    %v7383 = vpack.c.b16 %v7047, %v7043
    %v7384 = vpack.c.b16 %v7048, %v7044
    %v7385 = vpack.c.b16 %v7053, %v7049
    %v7386 = vpack.c.b16 %v7054, %v7050
    %v7387 = vpack.c.b16 %v7055, %v7051
    %v7388 = vpack.c.b16 %v7056, %v7052
    %v7389 = vpack.c.b16 %v7061, %v7057
    %v7390 = vpack.c.b16 %v7062, %v7058
    %v7391 = vpack.c.b16 %v7063, %v7059
    %v7392 = vpack.c.b16 %v7064, %v7060
    %v7393 = vpack.c.b16 %v7069, %v7065
    %v7394 = vpack.c.b16 %v7070, %v7066
    %v7395 = vpack.c.b16 %v7071, %v7067
    %v7396 = vpack.c.b16 %v7072, %v7068
    %v7397 = vpack.c.b16 %v7077, %v7073
    %v7398 = vpack.c.b16 %v7078, %v7074
    %v7399 = vpack.c.b16 %v7079, %v7075
    %v7400 = vpack.c.b16 %v7080, %v7076
    %v7401 = vpack.c.b16 %v7085, %v7081
    %v7402 = vpack.c.b16 %v7086, %v7082
    %v7403 = vpack.c.b16 %v7087, %v7083
    %v7404 = vpack.c.b16 %v7088, %v7084
    %v7405 = vpack.c.b16 %v7093, %v7089
    %v7406 = vpack.c.b16 %v7094, %v7090
    %v7407 = vpack.c.b16 %v7095, %v7091
    %v7408 = vpack.c.b16 %v7096, %v7092
    %v7409 = vpack.c.b16 %v7101, %v7097
    %v7410 = vpack.c.b16 %v7102, %v7098
    %v7411 = vpack.c.b16 %v7103, %v7099
    %v7412 = vpack.c.b16 %v7104, %v7100
    %v7413 = vpack.c.b16 %v7109, %v7105
    %v7414 = vpack.c.b16 %v7110, %v7106
    %v7415 = vpack.c.b16 %v7111, %v7107
    %v7416 = vpack.c.b16 %v7112, %v7108
    %v7417 = vpack.c.b16 %v7117, %v7113
    %v7418 = vpack.c.b16 %v7118, %v7114
    %v7419 = vpack.c.b16 %v7119, %v7115
    %v7420 = vpack.c.b16 %v7120, %v7116
    %v7421 = vpack.c.b16 %v7125, %v7121
    %v7422 = vpack.c.b16 %v7126, %v7122
    %v7423 = vpack.c.b16 %v7127, %v7123
    %v7424 = vpack.c.b16 %v7128, %v7124
    %v7425 = vpack.c.b16 %v7133, %v7129
    %v7426 = vpack.c.b16 %v7134, %v7130
    %v7427 = vpack.c.b16 %v7135, %v7131
    %v7428 = vpack.c.b16 %v7136, %v7132
    %v7429 = vpack.c.b16 %v7141, %v7137
    %v7430 = vpack.c.b16 %v7142, %v7138
    %v7431 = vpack.c.b16 %v7143, %v7139
    %v7432 = vpack.c.b16 %v7144, %v7140
    %v7433 = vpack.c.b16 %v7149, %v7145
    %v7434 = vpack.c.b16 %v7150, %v7146
    %v7435 = vpack.c.b16 %v7151, %v7147
    %v7436 = vpack.c.b16 %v7152, %v7148
    %v7437 = vpack.c.b16 %v7157, %v7153
    %v7438 = vpack.c.b16 %v7158, %v7154
    %v7439 = vpack.c.b16 %v7159, %v7155
    %v7440 = vpack.c.b16 %v7160, %v7156
    %v7441 = vpack.c.b16 %v7165, %v7161
    %v7442 = vpack.c.b16 %v7166, %v7162
    %v7443 = vpack.c.b16 %v7167, %v7163
    %v7444 = vpack.c.b16 %v7168, %v7164
    %v7445 = vpack.c.b16 %v7173, %v7169
    %v7446 = vpack.c.b16 %v7174, %v7170
    %v7447 = vpack.c.b16 %v7175, %v7171
    %v7448 = vpack.c.b16 %v7176, %v7172
    %v7449 = vpack.c.b16 %v7181, %v7177
    %v7450 = vpack.c.b16 %v7182, %v7178
    %v7451 = vpack.c.b16 %v7183, %v7179
    %v7452 = vpack.c.b16 %v7184, %v7180
    %v7453 = vpack.c.b16 %v7189, %v7185
    %v7454 = vpack.c.b16 %v7190, %v7186
    %v7455 = vpack.c.b16 %v7191, %v7187
    %v7456 = vpack.c.b16 %v7192, %v7188
    %v7457 = vpack.c.b16 %v7197, %v7193
    %v7458 = vpack.c.b16 %v7198, %v7194
    %v7459 = vpack.c.b16 %v7199, %v7195
    %v7460 = vpack.c.b16 %v7200, %v7196
    %v7461 = vpack.c.b16 %v7205, %v7201
    %v7462 = vpack.c.b16 %v7206, %v7202
    %v7463 = vpack.c.b16 %v7207, %v7203
    %v7464 = vpack.c.b16 %v7208, %v7204
    %7721 = vmatprep.subr.bf16.mxu0 %v7210
    %7722 = vmatpush1.bf16.msra.mxu0 %v7209
    %7723 = vmatprep.subr.bf16.mxu0 %v7214
    %7724 = vmatpush1.bf16.msra.mxu0 %v7213
    %7725 = vmatprep.subr.bf16.mxu0 %v7218
    %7726 = vmatpush1.bf16.msra.mxu0 %v7217
    %7727 = vmatprep.subr.bf16.mxu0 %v7222
    %7728 = vmatpush1.bf16.msra.mxu0 %v7221
    %7729 = vmatprep.subr.bf16.mxu0 %v7226
    %7730 = vmatpush1.bf16.msra.mxu0 %v7225
    %7731 = vmatprep.subr.bf16.mxu0 %v7230
    %7732 = vmatpush1.bf16.msra.mxu0 %v7229
    %7733 = vmatprep.subr.bf16.mxu0 %v7234
    %7734 = vmatpush1.bf16.msra.mxu0 %v7233
    %7735 = vmatprep.subr.bf16.mxu0 %v7238
    %7736 = vmatpush1.bf16.msra.mxu0 %v7237
    %7737 = vmatprep.subr.bf16.mxu0 %v7242
    %7738 = vmatpush1.bf16.msra.mxu0 %v7241
    %7739 = vmatprep.subr.bf16.mxu0 %v7246
    %7740 = vmatpush1.bf16.msra.mxu0 %v7245
    %7741 = vmatprep.subr.bf16.mxu0 %v7250
    %7742 = vmatpush1.bf16.msra.mxu0 %v7249
    %7743 = vmatprep.subr.bf16.mxu0 %v7254
    %7744 = vmatpush1.bf16.msra.mxu0 %v7253
    %7745 = vmatprep.subr.bf16.mxu0 %v7258
    %7746 = vmatpush1.bf16.msra.mxu0 %v7257
    %7747 = vmatprep.subr.bf16.mxu0 %v7262
    %7748 = vmatpush1.bf16.msra.mxu0 %v7261
    %7749 = vmatprep.subr.bf16.mxu0 %v7266
    %7750 = vmatpush1.bf16.msra.mxu0 %v7265
    %7751 = vmatprep.subr.bf16.mxu0 %v7270
    %7752 = vmatpush1.bf16.msra.mxu0 %v7269
    %7753 = vmatprep.mubr.bf16.mxu0 %v6148
    %7754 = vmatmul.mubr.bf16.gmra.mrb[0].mxu0 %v6147
    %v7755 = vpop.f32.mrb[0].mxu0
    %v7756 = vadd.f32 %v6424, %v7755
    %v7757 = vpop.f32.mrb[0].mxu0
    %v7758 = vadd.f32 %v6428, %v7757
    %v7759 = vpop.f32.mrb[0].mxu0
    %v7760 = vadd.f32 %v6424, %v7759
    %v7761 = vpop.f32.mrb[0].mxu0
    %v7762 = vadd.f32 %v6428, %v7761
    %7763 = vmatprep.mubr.bf16.mxu0 %v6156
    %7764 = vmatmul.mubr.bf16.gmra.mrb[0].mxu0 %v6155
    %v7765 = vpop.f32.mrb[0].mxu0
    %v7766 = vadd.f32 %v6424, %v7765
    %v7767 = vpop.f32.mrb[0].mxu0
    %v7768 = vadd.f32 %v6428, %v7767
    %v7769 = vpop.f32.mrb[0].mxu0
    %v7770 = vpop.f32.mrb[0].mxu0
    %7771 = vdwg.mxu0
    %7772 = vmatprep.subr.bf16.mxu0 %v7274
    %7773 = vmatpush1.bf16.msra.mxu0 %v7273
    %7774 = vmatprep.subr.bf16.mxu0 %v7278
    %7775 = vmatpush1.bf16.msra.mxu0 %v7277
    %7776 = vmatprep.subr.bf16.mxu0 %v7282
    %7777 = vmatpush1.bf16.msra.mxu0 %v7281
    %7778 = vmatprep.subr.bf16.mxu0 %v7286
    %7779 = vmatpush1.bf16.msra.mxu0 %v7285
    %7780 = vmatprep.subr.bf16.mxu0 %v7290
    %7781 = vmatpush1.bf16.msra.mxu0 %v7289
    %7782 = vmatprep.subr.bf16.mxu0 %v7294
    %7783 = vmatpush1.bf16.msra.mxu0 %v7293
    %7784 = vmatprep.subr.bf16.mxu0 %v7298
    %7785 = vmatpush1.bf16.msra.mxu0 %v7297
    %7786 = vmatprep.subr.bf16.mxu0 %v7302
    %7787 = vmatpush1.bf16.msra.mxu0 %v7301
    %7788 = vmatprep.subr.bf16.mxu0 %v7306
    %7789 = vmatpush1.bf16.msra.mxu0 %v7305
    %7790 = vmatprep.subr.bf16.mxu0 %v7310
    %7791 = vmatpush1.bf16.msra.mxu0 %v7309
    %7792 = vmatprep.subr.bf16.mxu0 %v7314
    %7793 = vmatpush1.bf16.msra.mxu0 %v7313
    %7794 = vmatprep.subr.bf16.mxu0 %v7318
    %7795 = vmatpush1.bf16.msra.mxu0 %v7317
    %7796 = vmatprep.subr.bf16.mxu0 %v7322
    %7797 = vmatpush1.bf16.msra.mxu0 %v7321
    %7798 = vmatprep.subr.bf16.mxu0 %v7326
    %7799 = vmatpush1.bf16.msra.mxu0 %v7325
    %7800 = vmatprep.subr.bf16.mxu0 %v7330
    %7801 = vmatpush1.bf16.msra.mxu0 %v7329
    %7802 = vmatprep.subr.bf16.mxu0 %v7334
    %7803 = vmatpush1.bf16.msra.mxu0 %v7333
    %7804 = vmatprep.mubr.bf16.mxu0 %v6150
    %7805 = vmatmul.mubr.bf16.gmra.mrb[0].mxu0 %v6149
    %v7806 = vpop.f32.mrb[0].mxu0
    %v7807 = vadd.f32 %v7756, %v7806
    %v7808 = vpop.f32.mrb[0].mxu0
    %v7809 = vadd.f32 %v7758, %v7808
    %v7810 = vpop.f32.mrb[0].mxu0
    %v7811 = vadd.f32 %v7760, %v7810
    %v7812 = vpop.f32.mrb[0].mxu0
    %v7813 = vadd.f32 %v7762, %v7812
    %7814 = vmatprep.mubr.bf16.mxu0 %v6158
    %7815 = vmatmul.mubr.bf16.gmra.mrb[0].mxu0 %v6157
    %v7816 = vpop.f32.mrb[0].mxu0
    %v7817 = vadd.f32 %v7766, %v7816
    %v7818 = vpop.f32.mrb[0].mxu0
    %v7819 = vadd.f32 %v7768, %v7818
    %v7820 = vpop.f32.mrb[0].mxu0
    %v7821 = vpop.f32.mrb[0].mxu0
    %7822 = vdwg.mxu0
    %7823 = vmatprep.subr.bf16.mxu0 %v7338
    %7824 = vmatpush1.bf16.msra.mxu0 %v7337
    %7825 = vmatprep.subr.bf16.mxu0 %v7342
    %7826 = vmatpush1.bf16.msra.mxu0 %v7341
    %7827 = vmatprep.subr.bf16.mxu0 %v7346
    %7828 = vmatpush1.bf16.msra.mxu0 %v7345
    %7829 = vmatprep.subr.bf16.mxu0 %v7350
    %7830 = vmatpush1.bf16.msra.mxu0 %v7349
    %7831 = vmatprep.subr.bf16.mxu0 %v7354
    %7832 = vmatpush1.bf16.msra.mxu0 %v7353
    %7833 = vmatprep.subr.bf16.mxu0 %v7358
    %7834 = vmatpush1.bf16.msra.mxu0 %v7357
    %7835 = vmatprep.subr.bf16.mxu0 %v7362
    %7836 = vmatpush1.bf16.msra.mxu0 %v7361
    %7837 = vmatprep.subr.bf16.mxu0 %v7366
    %7838 = vmatpush1.bf16.msra.mxu0 %v7365
    %7839 = vmatprep.subr.bf16.mxu0 %v7370
    %7840 = vmatpush1.bf16.msra.mxu0 %v7369
    %7841 = vmatprep.subr.bf16.mxu0 %v7374
    %7842 = vmatpush1.bf16.msra.mxu0 %v7373
    %7843 = vmatprep.subr.bf16.mxu0 %v7378
    %7844 = vmatpush1.bf16.msra.mxu0 %v7377
    %7845 = vmatprep.subr.bf16.mxu0 %v7382
    %7846 = vmatpush1.bf16.msra.mxu0 %v7381
    %7847 = vmatprep.subr.bf16.mxu0 %v7386
    %7848 = vmatpush1.bf16.msra.mxu0 %v7385
    %7849 = vmatprep.subr.bf16.mxu0 %v7390
    %7850 = vmatpush1.bf16.msra.mxu0 %v7389
    %7851 = vmatprep.subr.bf16.mxu0 %v7394
    %7852 = vmatpush1.bf16.msra.mxu0 %v7393
    %7853 = vmatprep.subr.bf16.mxu0 %v7398
    %7854 = vmatpush1.bf16.msra.mxu0 %v7397
    %7855 = vmatprep.mubr.bf16.mxu0 %v6152
    %7856 = vmatmul.mubr.bf16.gmra.mrb[0].mxu0 %v6151
    %v7857 = vpop.f32.mrb[0].mxu0
    %v7858 = vadd.f32 %v7807, %v7857
    %v7859 = vpop.f32.mrb[0].mxu0
    %v7860 = vadd.f32 %v7809, %v7859
    %v7861 = vpop.f32.mrb[0].mxu0
    %v7862 = vadd.f32 %v7811, %v7861
    %v7863 = vpop.f32.mrb[0].mxu0
    %v7864 = vadd.f32 %v7813, %v7863
    %7865 = vmatprep.mubr.bf16.mxu0 %v6160
    %7866 = vmatmul.mubr.bf16.gmra.mrb[0].mxu0 %v6159
    %v7867 = vpop.f32.mrb[0].mxu0
    %v7868 = vadd.f32 %v7817, %v7867
    %v7869 = vpop.f32.mrb[0].mxu0
    %v7870 = vadd.f32 %v7819, %v7869
    %v7871 = vpop.f32.mrb[0].mxu0
    %v7872 = vpop.f32.mrb[0].mxu0
    %7873 = vdwg.mxu0
    %7874 = vmatprep.subr.bf16.mxu0 %v7402
    %7875 = vmatpush1.bf16.msra.mxu0 %v7401
    %7876 = vmatprep.subr.bf16.mxu0 %v7406
    %7877 = vmatpush1.bf16.msra.mxu0 %v7405
    %7878 = vmatprep.subr.bf16.mxu0 %v7410
    %7879 = vmatpush1.bf16.msra.mxu0 %v7409
    %7880 = vmatprep.subr.bf16.mxu0 %v7414
    %7881 = vmatpush1.bf16.msra.mxu0 %v7413
    %7882 = vmatprep.subr.bf16.mxu0 %v7418
    %7883 = vmatpush1.bf16.msra.mxu0 %v7417
    %7884 = vmatprep.subr.bf16.mxu0 %v7422
    %7885 = vmatpush1.bf16.msra.mxu0 %v7421
    %7886 = vmatprep.subr.bf16.mxu0 %v7426
    %7887 = vmatpush1.bf16.msra.mxu0 %v7425
    %7888 = vmatprep.subr.bf16.mxu0 %v7430
    %7889 = vmatpush1.bf16.msra.mxu0 %v7429
    %7890 = vmatprep.subr.bf16.mxu0 %v7434
    %7891 = vmatpush1.bf16.msra.mxu0 %v7433
    %7892 = vmatprep.subr.bf16.mxu0 %v7438
    %7893 = vmatpush1.bf16.msra.mxu0 %v7437
    %7894 = vmatprep.subr.bf16.mxu0 %v7442
    %7895 = vmatpush1.bf16.msra.mxu0 %v7441
    %7896 = vmatprep.subr.bf16.mxu0 %v7446
    %7897 = vmatpush1.bf16.msra.mxu0 %v7445
    %7898 = vmatprep.subr.bf16.mxu0 %v7450
    %7899 = vmatpush1.bf16.msra.mxu0 %v7449
    %7900 = vmatprep.subr.bf16.mxu0 %v7454
    %7901 = vmatpush1.bf16.msra.mxu0 %v7453
    %7902 = vmatprep.subr.bf16.mxu0 %v7458
    %7903 = vmatpush1.bf16.msra.mxu0 %v7457
    %7904 = vmatprep.subr.bf16.mxu0 %v7462
    %7905 = vmatpush1.bf16.msra.mxu0 %v7461
    %7906 = vmatprep.mubr.bf16.mxu0 %v6154
    %7907 = vmatmul.mubr.bf16.gmra.mrb[0].mxu0 %v6153
    %v7908 = vpop.f32.mrb[0].mxu0
    %v7909 = vadd.f32 %v7858, %v7908
    %v7910 = vpop.f32.mrb[0].mxu0
    %v7911 = vadd.f32 %v7860, %v7910
    %v7912 = vpop.f32.mrb[0].mxu0
    %v7913 = vadd.f32 %v7862, %v7912
    %v7914 = vpop.f32.mrb[0].mxu0
    %v7915 = vadd.f32 %v7864, %v7914
    %7916 = vmatprep.mubr.bf16.mxu0 %v6162
    %7917 = vmatmul.mubr.bf16.gmra.mrb[0].mxu0 %v6161
    %v7918 = vpop.f32.mrb[0].mxu0
    %v7919 = vadd.f32 %v7868, %v7918
    %v7920 = vpop.f32.mrb[0].mxu0
    %v7921 = vadd.f32 %v7870, %v7920
    %v7922 = vpop.f32.mrb[0].mxu0
    %v7923 = vpop.f32.mrb[0].mxu0
    %7924 = vdwg.mxu0
    %7925 = vmatprep.subr.bf16.mxu0 %v7212
    %7926 = vmatpush1.bf16.msra.mxu0 %v7211
    %7927 = vmatprep.subr.bf16.mxu0 %v7216
    %7928 = vmatpush1.bf16.msra.mxu0 %v7215
    %7929 = vmatprep.subr.bf16.mxu0 %v7220
    %7930 = vmatpush1.bf16.msra.mxu0 %v7219
    %7931 = vmatprep.subr.bf16.mxu0 %v7224
    %7932 = vmatpush1.bf16.msra.mxu0 %v7223
    %7933 = vmatprep.subr.bf16.mxu0 %v7228
    %7934 = vmatpush1.bf16.msra.mxu0 %v7227
    %7935 = vmatprep.subr.bf16.mxu0 %v7232
    %7936 = vmatpush1.bf16.msra.mxu0 %v7231
    %7937 = vmatprep.subr.bf16.mxu0 %v7236
    %7938 = vmatpush1.bf16.msra.mxu0 %v7235
    %7939 = vmatprep.subr.bf16.mxu0 %v7240
    %7940 = vmatpush1.bf16.msra.mxu0 %v7239
    %7941 = vmatprep.subr.bf16.mxu0 %v7244
    %7942 = vmatpush1.bf16.msra.mxu0 %v7243
    %7943 = vmatprep.subr.bf16.mxu0 %v7248
    %7944 = vmatpush1.bf16.msra.mxu0 %v7247
    %7945 = vmatprep.subr.bf16.mxu0 %v7252
    %7946 = vmatpush1.bf16.msra.mxu0 %v7251
    %7947 = vmatprep.subr.bf16.mxu0 %v7256
    %7948 = vmatpush1.bf16.msra.mxu0 %v7255
    %7949 = vmatprep.subr.bf16.mxu0 %v7260
    %7950 = vmatpush1.bf16.msra.mxu0 %v7259
    %7951 = vmatprep.subr.bf16.mxu0 %v7264
    %7952 = vmatpush1.bf16.msra.mxu0 %v7263
    %7953 = vmatprep.subr.bf16.mxu0 %v7268
    %7954 = vmatpush1.bf16.msra.mxu0 %v7267
    %7955 = vmatprep.subr.bf16.mxu0 %v7272
    %7956 = vmatpush1.bf16.msra.mxu0 %v7271
    %7957 = vmatprep.mubr.bf16.mxu0 %v6148
    %7958 = vmatmul.mubr.bf16.gmra.mrb[0].mxu0 %v6147
    %v7959 = vpop.f32.mrb[0].mxu0
    %v7960 = vadd.f32 %v6432, %v7959
    %v7961 = vpop.f32.mrb[0].mxu0
    %v7962 = vadd.f32 %v6436, %v7961
    %v7963 = vpop.f32.mrb[0].mxu0
    %v7964 = vadd.f32 %v6432, %v7963
    %v7965 = vpop.f32.mrb[0].mxu0
    %v7966 = vadd.f32 %v6436, %v7965
    %7967 = vmatprep.mubr.bf16.mxu0 %v6156
    %7968 = vmatmul.mubr.bf16.gmra.mrb[0].mxu0 %v6155
    %v7969 = vpop.f32.mrb[0].mxu0
    %v7970 = vadd.f32 %v6432, %v7969
    %v7971 = vpop.f32.mrb[0].mxu0
    %v7972 = vadd.f32 %v6436, %v7971
    %v7973 = vpop.f32.mrb[0].mxu0
    %v7974 = vpop.f32.mrb[0].mxu0
    %7975 = vdwg.mxu0
    %7976 = vmatprep.subr.bf16.mxu0 %v7276
    %7977 = vmatpush1.bf16.msra.mxu0 %v7275
    %7978 = vmatprep.subr.bf16.mxu0 %v7280
    %7979 = vmatpush1.bf16.msra.mxu0 %v7279
    %7980 = vmatprep.subr.bf16.mxu0 %v7284
    %7981 = vmatpush1.bf16.msra.mxu0 %v7283
    %7982 = vmatprep.subr.bf16.mxu0 %v7288
    %7983 = vmatpush1.bf16.msra.mxu0 %v7287
    %7984 = vmatprep.subr.bf16.mxu0 %v7292
    %7985 = vmatpush1.bf16.msra.mxu0 %v7291
    %7986 = vmatprep.subr.bf16.mxu0 %v7296
    %7987 = vmatpush1.bf16.msra.mxu0 %v7295
    %7988 = vmatprep.subr.bf16.mxu0 %v7300
    %7989 = vmatpush1.bf16.msra.mxu0 %v7299
    %7990 = vmatprep.subr.bf16.mxu0 %v7304
    %7991 = vmatpush1.bf16.msra.mxu0 %v7303
    %7992 = vmatprep.subr.bf16.mxu0 %v7308
    %7993 = vmatpush1.bf16.msra.mxu0 %v7307
    %7994 = vmatprep.subr.bf16.mxu0 %v7312
    %7995 = vmatpush1.bf16.msra.mxu0 %v7311
    %7996 = vmatprep.subr.bf16.mxu0 %v7316
    %7997 = vmatpush1.bf16.msra.mxu0 %v7315
    %7998 = vmatprep.subr.bf16.mxu0 %v7320
    %7999 = vmatpush1.bf16.msra.mxu0 %v7319
    %8000 = vmatprep.subr.bf16.mxu0 %v7324
    %8001 = vmatpush1.bf16.msra.mxu0 %v7323
    %8002 = vmatprep.subr.bf16.mxu0 %v7328
    %8003 = vmatpush1.bf16.msra.mxu0 %v7327
    %8004 = vmatprep.subr.bf16.mxu0 %v7332
    %8005 = vmatpush1.bf16.msra.mxu0 %v7331
    %8006 = vmatprep.subr.bf16.mxu0 %v7336
    %8007 = vmatpush1.bf16.msra.mxu0 %v7335
    %8008 = vmatprep.mubr.bf16.mxu0 %v6150
    %8009 = vmatmul.mubr.bf16.gmra.mrb[0].mxu0 %v6149
    %v8010 = vpop.f32.mrb[0].mxu0
    %v8011 = vadd.f32 %v7960, %v8010
    %v8012 = vpop.f32.mrb[0].mxu0
    %v8013 = vadd.f32 %v7962, %v8012
    %v8014 = vpop.f32.mrb[0].mxu0
    %v8015 = vadd.f32 %v7964, %v8014
    %v8016 = vpop.f32.mrb[0].mxu0
    %v8017 = vadd.f32 %v7966, %v8016
    %8018 = vmatprep.mubr.bf16.mxu0 %v6158
    %8019 = vmatmul.mubr.bf16.gmra.mrb[0].mxu0 %v6157
    %v8020 = vpop.f32.mrb[0].mxu0
    %v8021 = vadd.f32 %v7970, %v8020
    %v8022 = vpop.f32.mrb[0].mxu0
    %v8023 = vadd.f32 %v7972, %v8022
    %v8024 = vpop.f32.mrb[0].mxu0
    %v8025 = vpop.f32.mrb[0].mxu0
    %8026 = vdwg.mxu0
    %8027 = vmatprep.subr.bf16.mxu0 %v7340
    %8028 = vmatpush1.bf16.msra.mxu0 %v7339
    %8029 = vmatprep.subr.bf16.mxu0 %v7344
    %8030 = vmatpush1.bf16.msra.mxu0 %v7343
    %8031 = vmatprep.subr.bf16.mxu0 %v7348
    %8032 = vmatpush1.bf16.msra.mxu0 %v7347
    %8033 = vmatprep.subr.bf16.mxu0 %v7352
    %8034 = vmatpush1.bf16.msra.mxu0 %v7351
    %8035 = vmatprep.subr.bf16.mxu0 %v7356
    %8036 = vmatpush1.bf16.msra.mxu0 %v7355
    %8037 = vmatprep.subr.bf16.mxu0 %v7360
    %8038 = vmatpush1.bf16.msra.mxu0 %v7359
    %8039 = vmatprep.subr.bf16.mxu0 %v7364
    %8040 = vmatpush1.bf16.msra.mxu0 %v7363
    %8041 = vmatprep.subr.bf16.mxu0 %v7368
    %8042 = vmatpush1.bf16.msra.mxu0 %v7367
    %8043 = vmatprep.subr.bf16.mxu0 %v7372
    %8044 = vmatpush1.bf16.msra.mxu0 %v7371
    %8045 = vmatprep.subr.bf16.mxu0 %v7376
    %8046 = vmatpush1.bf16.msra.mxu0 %v7375
    %8047 = vmatprep.subr.bf16.mxu0 %v7380
    %8048 = vmatpush1.bf16.msra.mxu0 %v7379
    %8049 = vmatprep.subr.bf16.mxu0 %v7384
    %8050 = vmatpush1.bf16.msra.mxu0 %v7383
    %8051 = vmatprep.subr.bf16.mxu0 %v7388
    %8052 = vmatpush1.bf16.msra.mxu0 %v7387
    %8053 = vmatprep.subr.bf16.mxu0 %v7392
    %8054 = vmatpush1.bf16.msra.mxu0 %v7391
    %8055 = vmatprep.subr.bf16.mxu0 %v7396
    %8056 = vmatpush1.bf16.msra.mxu0 %v7395
    %8057 = vmatprep.subr.bf16.mxu0 %v7400
    %8058 = vmatpush1.bf16.msra.mxu0 %v7399
    %8059 = vmatprep.mubr.bf16.mxu0 %v6152
    %8060 = vmatmul.mubr.bf16.gmra.mrb[0].mxu0 %v6151
    %v8061 = vpop.f32.mrb[0].mxu0
    %v8062 = vadd.f32 %v8011, %v8061
    %v8063 = vpop.f32.mrb[0].mxu0
    %v8064 = vadd.f32 %v8013, %v8063
    %v8065 = vpop.f32.mrb[0].mxu0
    %v8066 = vadd.f32 %v8015, %v8065
    %v8067 = vpop.f32.mrb[0].mxu0
    %v8068 = vadd.f32 %v8017, %v8067
    %8069 = vmatprep.mubr.bf16.mxu0 %v6160
    %8070 = vmatmul.mubr.bf16.gmra.mrb[0].mxu0 %v6159
    %v8071 = vpop.f32.mrb[0].mxu0
    %v8072 = vadd.f32 %v8021, %v8071
    %v8073 = vpop.f32.mrb[0].mxu0
    %v8074 = vadd.f32 %v8023, %v8073
    %v8075 = vpop.f32.mrb[0].mxu0
    %v8076 = vpop.f32.mrb[0].mxu0
    %8077 = vdwg.mxu0
    %8078 = vmatprep.subr.bf16.mxu0 %v7404
    %8079 = vmatpush1.bf16.msra.mxu0 %v7403
    %8080 = vmatprep.subr.bf16.mxu0 %v7408
    %8081 = vmatpush1.bf16.msra.mxu0 %v7407
    %8082 = vmatprep.subr.bf16.mxu0 %v7412
    %8083 = vmatpush1.bf16.msra.mxu0 %v7411
    %8084 = vmatprep.subr.bf16.mxu0 %v7416
    %8085 = vmatpush1.bf16.msra.mxu0 %v7415
    %8086 = vmatprep.subr.bf16.mxu0 %v7420
    %8087 = vmatpush1.bf16.msra.mxu0 %v7419
    %8088 = vmatprep.subr.bf16.mxu0 %v7424
    %8089 = vmatpush1.bf16.msra.mxu0 %v7423
    %8090 = vmatprep.subr.bf16.mxu0 %v7428
    %8091 = vmatpush1.bf16.msra.mxu0 %v7427
    %8092 = vmatprep.subr.bf16.mxu0 %v7432
    %8093 = vmatpush1.bf16.msra.mxu0 %v7431
    %8094 = vmatprep.subr.bf16.mxu0 %v7436
    %8095 = vmatpush1.bf16.msra.mxu0 %v7435
    %8096 = vmatprep.subr.bf16.mxu0 %v7440
    %8097 = vmatpush1.bf16.msra.mxu0 %v7439
    %8098 = vmatprep.subr.bf16.mxu0 %v7444
    %8099 = vmatpush1.bf16.msra.mxu0 %v7443
    %8100 = vmatprep.subr.bf16.mxu0 %v7448
    %8101 = vmatpush1.bf16.msra.mxu0 %v7447
    %8102 = vmatprep.subr.bf16.mxu0 %v7452
    %8103 = vmatpush1.bf16.msra.mxu0 %v7451
    %8104 = vmatprep.subr.bf16.mxu0 %v7456
    %8105 = vmatpush1.bf16.msra.mxu0 %v7455
    %8106 = vmatprep.subr.bf16.mxu0 %v7460
    %8107 = vmatpush1.bf16.msra.mxu0 %v7459
    %8108 = vmatprep.subr.bf16.mxu0 %v7464
    %8109 = vmatpush1.bf16.msra.mxu0 %v7463
    %8110 = vmatprep.mubr.bf16.mxu0 %v6154
    %8111 = vmatmul.mubr.bf16.gmra.mrb[0].mxu0 %v6153
    %v8112 = vpop.f32.mrb[0].mxu0
    %v8113 = vadd.f32 %v8062, %v8112
    %v8114 = vpop.f32.mrb[0].mxu0
    %v8115 = vadd.f32 %v8064, %v8114
    %v8116 = vpop.f32.mrb[0].mxu0
    %v8117 = vadd.f32 %v8066, %v8116
    %v8118 = vpop.f32.mrb[0].mxu0
    %v8119 = vadd.f32 %v8068, %v8118
    %8120 = vmatprep.mubr.bf16.mxu0 %v6162
    %8121 = vmatmul.mubr.bf16.gmra.mrb[0].mxu0 %v6161
    %v8122 = vpop.f32.mrb[0].mxu0
    %v8123 = vadd.f32 %v8072, %v8122
    %v8124 = vpop.f32.mrb[0].mxu0
    %v8125 = vadd.f32 %v8074, %v8124
    %v8126 = vpop.f32.mrb[0].mxu0
    %v8127 = vpop.f32.mrb[0].mxu0
    %8128 = vdwg.mxu0
    %8129 = vst [vmem:[#allocation17] sm:$0xff] %v7909
    %8130 = vst [vmem:[#allocation17 + $0x8] sm:$0xff] %v7911
    %8131 = vst [vmem:[#allocation17 + $0x10] sm:$0xff] %v8113
    %8132 = vst [vmem:[#allocation17 + $0x18] sm:$0xff] %v8115
    %8133 = vst [vmem:[#allocation18] sm:$0xff] %v7913
    %8134 = vst [vmem:[#allocation18 + $0x8] sm:$0xff] %v7915
    %8135 = vst [vmem:[#allocation18 + $0x10] sm:$0xff] %v8117
    %8136 = vst [vmem:[#allocation18 + $0x18] sm:$0xff] %v8119
    %8137 = vst [vmem:[#allocation20] sm:$0xff] %v7919
    %8138 = vst [vmem:[#allocation20 + $0x8] sm:$0xff] %v7921
    %8139 = vst [vmem:[#allocation20 + $0x10] sm:$0xff] %v8123
    %8140 = vst [vmem:[#allocation20 + $0x18] sm:$0xff] %v8125
    // Predicated region
    $region74: #{_mlp3.1} parent=1 // pred_check
      _
    $region75: #{_mlp3.1} parent=1 // pred_check_branch
      %8142 = sbr.rel (0) target = $region77
    $region76: #{_mlp3.1} parent=1 // pred_region
      %s8144 = ssub.s32 512, 512
      %8145 = vsyncadd [#allocation4], %s8144
      %s8147 = sshll.u32 [#allocation17], 4
      %s8148 = int_to_ptr.vmem [resolvable:$true] %s8147
      %8150 = dma.vmem_to_hbm [thread:$0]  %s8148, 512, %s9, [#allocation4]
    $region77: #{_mlp3.1} parent=1 // pred_fallthru
      _
    // Predicated region
    $region78: #{_mlp3.1} parent=1 // pred_check
      _
    $region79: #{_mlp3.1} parent=1 // pred_check_branch
      %8152 = sbr.rel (0) target = $region81
    $region80: #{_mlp3.1} parent=1 // pred_region
      %s8154 = ssub.s32 512, 512
      %8155 = vsyncadd [#allocation19], %s8154
      %s8157 = sshll.u32 [#allocation18], 4
      %s8158 = int_to_ptr.vmem [resolvable:$true] %s8157
      %8160 = dma.vmem_to_hbm [thread:$0]  %s8158, 512, %s10, [#allocation19]
    $region81: #{_mlp3.1} parent=1 // pred_fallthru
      _
    // Predicated region
    $region82: #{_mlp3.1} parent=1 // pred_check
      _
    $region83: #{_mlp3.1} parent=1 // pred_check_branch
      %8162 = sbr.rel (0) target = $region85
    $region84: #{_mlp3.1} parent=1 // pred_region
      %s8164 = ssub.s32 512, 512
      %8165 = vsyncadd [#allocation19], %s8164
      %s8167 = sshll.u32 [#allocation20], 4
      %s8168 = int_to_ptr.vmem [resolvable:$true] %s8167
      %8170 = dma.vmem_to_hbm [thread:$0]  %s8168, 512, %s11, [#allocation19]
    $region85: #{_mlp3.1} parent=1 // pred_fallthru
      _
    // Predicated region
    $region86: #{_mlp3.1} parent=1 // pred_check
      _
    $region87: #{_mlp3.1} parent=1 // pred_check_branch
      %8172 = sbr.rel (0) target = $region89
    $region88: #{_mlp3.1} parent=1 // pred_region
      %8173 = dma.done [#allocation4], 512
    $region89: #{_mlp3.1} parent=1 // pred_fallthru
      _
    // Predicated region
    $region90: #{_mlp3.1} parent=1 // pred_check
      _
    $region91: #{_mlp3.1} parent=1 // pred_check_branch
      %8175 = sbr.rel (0) target = $region93
    $region92: #{_mlp3.1} parent=1 // pred_region
      %8176 = dma.done [#allocation19], 512
    $region93: #{_mlp3.1} parent=1 // pred_fallthru
      _
    // Predicated region
    $region94: #{_mlp3.1} parent=1 // pred_check
      _
    $region95: #{_mlp3.1} parent=1 // pred_check_branch
      %8178 = sbr.rel (0) target = $region97
    $region96: #{_mlp3.1} parent=1 // pred_region
      %8179 = dma.done [#allocation19], 512
    $region97: #{_mlp3.1} parent=1 // pred_fallthru
      _
    %8180 = vsyncpa [#allocation3], 1
    %8181 = vsyncpa [#allocation6], 1
    %8182 = vsyncpa [#allocation9], 1
    %8183 = vsyncpa [#allocation12], 1
    %8184 = vsyncpa [#allocation15], 1
    %8185 = vsyncpa [#allocation4], 1
    %8186 = vsyncpa [#allocation19], 1

</llo_original>
